<compile_context>
chip_gen: v6e
topology: v6e:2x2x1
jax: 0.10.0
libtpu: 0.0.40
codegen_flags: <defaults>
</compile_context>

<pallas_src>
import functools

import jax
import jax.numpy as jnp
from jax import lax
from jax.experimental import pallas as pl
from jax.experimental.pallas import tpu as pltpu

# ---------------- model hyper-parameters (small, deterministic) -------------
D_MODEL = 32
NHEAD = 4
HEAD_DIM = D_MODEL // NHEAD
DIM_FF = 64
NUM_LAYERS = 2
EPS = 1e-5                       # PyTorch LayerNorm default
SCALE = float(HEAD_DIM) ** -0.5

_VMEM = pl.BlockSpec(memory_space=pltpu.MemorySpace.VMEM)


# --------------------------- in-kernel helpers --------------------------------
def _layernorm(x, g, b):
    # Matches torch.nn.LayerNorm: biased variance, eps inside rsqrt.
    mean = jnp.mean(x, axis=-1, keepdims=True)
    var = jnp.mean(jnp.square(x - mean), axis=-1, keepdims=True)
    return (x - mean) * lax.rsqrt(var + EPS) * g + b


def _matmul(a, b):
    return jnp.dot(a, b, preferred_element_type=jnp.float32)


def _mha(q, k, v, batch, lq, lk):
    """Multi-head attention, batched over the batch axis.

    q: (batch*lq, D), k/v: (batch*lk, D), batch-major rows.  Per head one
    batched dot_general for scores and one for P@V (leading batch dim only,
    so the lowering path is the proven flash-attention pattern).
    Returns (batch*lq, D)."""
    q3 = q.reshape(batch, lq, D_MODEL)      # leading-dim split: no relayout
    k3 = k.reshape(batch, lk, D_MODEL)
    v3 = v.reshape(batch, lk, D_MODEL)
    outs = []
    for h in range(NHEAD):
        lo, hi = h * HEAD_DIM, (h + 1) * HEAD_DIM
        qh, kh, vh = q3[..., lo:hi], k3[..., lo:hi], v3[..., lo:hi]
        s = jnp.einsum('bqd,bkd->bqk', qh, kh,
                       preferred_element_type=jnp.float32) * SCALE
        s = s - jnp.max(s, axis=-1, keepdims=True)
        p = jnp.exp(s)
        p = p / jnp.sum(p, axis=-1, keepdims=True)        # exact softmax
        outs.append(jnp.einsum('bqk,bkd->bqd', p, vh,
                               preferred_element_type=jnp.float32))
    return jnp.concatenate(outs, axis=-1).reshape(batch * lq, D_MODEL)


# ------------------------------ fused kernel ----------------------------------
def _decoder_kernel(batch, tq, sk, num_layers, index,
                    act_ref, param_ref, out_ref):
    """Whole decoder in one kernel.

    act_ref:   packed activations (2*(batch*tq) + 2*(batch*sk), D)
               rows = [tgt | query_pos | memory | pos], batch-major.
    param_ref: packed parameter slab (see _pack_params).
    out_ref:   (batch*tq, 2*D) = [norm(output) | output].
    """
    rt, rs = batch * tq, batch * sk
    D = D_MODEL

    def W(name):
        off, r, c = index[name]
        return param_ref[off:off + r, :c]

    x = act_ref[0:rt, :]
    qpos = act_ref[rt:2 * rt, :]
    mem = act_ref[2 * rt:2 * rt + rs, :]
    pos = act_ref[2 * rt + rs:2 * rt + 2 * rs, :]

    # Cross-attn K/V depend only on (memory, pos): project once for ALL layers.
    memk = mem + pos
    ck_all = _matmul(memk, W("w_ck")) + W("b_ck")        # (rs, num_layers*D)
    cv_all = _matmul(mem, W("w_cv")) + W("b_cv")         # (rs, num_layers*D)

    for i in range(num_layers):
        # ---- self-attention: q = k = x + query_pos, v = x -------------------
        w_qkv = W(f"w_qkv_s{i}")                          # (D, 3D)
        qkv = _matmul(x, w_qkv) + W(f"b_qkv_s{i}")        # fused QKV, N = 3D
        qk_pos = _matmul(qpos, w_qkv[:, :2 * D])          # qpos correction
        q = qkv[:, :D] + qk_pos[:, :D]
        k = qkv[:, D:2 * D] + qk_pos[:, D:]
        v = qkv[:, 2 * D:]
        sa = _matmul(_mha(q, k, v, batch, tq, tq), W(f"w_o_s{i}")) + W(f"b_o_s{i}")
        x = _layernorm(x + sa, W(f"n1g_{i}"), W(f"n1b_{i}"))

        # ---- cross-attention: q = x + query_pos, k = mem + pos, v = mem ------
        q = _matmul(x + qpos, W(f"w_q_c{i}")) + W(f"b_q_c{i}")
        k = ck_all[:, i * D:(i + 1) * D]
        v = cv_all[:, i * D:(i + 1) * D]
        ca = _matmul(_mha(q, k, v, batch, tq, sk), W(f"w_o_c{i}")) + W(f"b_o_c{i}")
        x = _layernorm(x + ca, W(f"n2g_{i}"), W(f"n2b_{i}"))

        # ---- feed-forward -----------------------------------------------------
        h = jnp.maximum(_matmul(x, W(f"w1_{i}")) + W(f"b1_{i}"), 0.0)
        x = _layernorm(x + _matmul(h, W(f"w2_{i}")) + W(f"b2_{i}"),
                       W(f"n3g_{i}"), W(f"n3b_{i}"))

    normed = _layernorm(x, W("ng"), W("nb"))
    # Single lane-dense (rt, 2D) store: [normed | raw].
    out_ref[...] = jnp.concatenate([normed, x], axis=-1).astype(out_ref.dtype)


# --------------------------- host-side param packing --------------------------
def _pack_params(params):
    """Pack all decoder parameters into one 2-D f32 slab (one DMA).

    Row offsets are padded to multiples of 8 (sublane tile) so every in-kernel
    slice is aligned.  Cross-attention K/V weights and biases are concatenated
    across layers so the kernel can project them with a single matmul each.
    Returns (slab, index, num_layers) where index[name] = (row_off, rows, cols).
    """
    D = D_MODEL
    layers = params["layers"]
    entries = []
    for i, lp in enumerate(layers):
        sa, ca = lp["self_attn"], lp["cross_attn"]
        entries += [
            (f"w_qkv_s{i}", sa["wqkv"]), (f"b_qkv_s{i}", sa["bqkv"]),
            (f"w_o_s{i}", sa["wo"]), (f"b_o_s{i}", sa["bo"]),
            (f"w_q_c{i}", ca["wqkv"][:, :D]), (f"b_q_c{i}", ca["bqkv"][:, :D]),
            (f"w_o_c{i}", ca["wo"]), (f"b_o_c{i}", ca["bo"]),
            (f"w1_{i}", lp["w1"]), (f"b1_{i}", lp["b1"]),
            (f"w2_{i}", lp["w2"]), (f"b2_{i}", lp["b2"]),
            (f"n1g_{i}", lp["norm1_g"]), (f"n1b_{i}", lp["norm1_b"]),
            (f"n2g_{i}", lp["norm2_g"]), (f"n2b_{i}", lp["norm2_b"]),
            (f"n3g_{i}", lp["norm3_g"]), (f"n3b_{i}", lp["norm3_b"]),
        ]
    w_ck = jnp.concatenate([lp["cross_attn"]["wqkv"][:, D:2 * D] for lp in layers], axis=1)
    b_ck = jnp.concatenate([lp["cross_attn"]["bqkv"][:, D:2 * D] for lp in layers], axis=1)
    w_cv = jnp.concatenate([lp["cross_attn"]["wqkv"][:, 2 * D:] for lp in layers], axis=1)
    b_cv = jnp.concatenate([lp["cross_attn"]["bqkv"][:, 2 * D:] for lp in layers], axis=1)
    entries += [("w_ck", w_ck), ("b_ck", b_ck), ("w_cv", w_cv), ("b_cv", b_cv),
                ("ng", params["norm_g"]), ("nb", params["norm_b"])]

    width = max(int(a.shape[1]) for _, a in entries)
    index, total = {}, 0
    for name, a in entries:
        r, c = int(a.shape[0]), int(a.shape[1])
        index[name] = (total, r, c)
        total += -(-r // 8) * 8                   # pad rows to multiple of 8
    slab = jnp.zeros((total, width), jnp.float32)
    for name, a in entries:
        off, r, c = index[name]
        slab = slab.at[off:off + r, :c].set(a.astype(jnp.float32))
    return slab, index, len(layers)


# ------------------------------ wrapper ---------------------------------------
def transformer_decoder_forward(tgt, memory, packed_params, pos, query_pos):
    """TransformerDecoder.forward with all masks None, return_intermediate=False,
    track_attention=False, norm=LayerNorm.  Returns (norm(output), output)."""
    # TODO(synk): track_attention branch (per-layer track-query encoder),
    # optional attention/padding masks and return_intermediate stacking are not
    # exercised in this configuration.
    slab, index, num_layers = packed_params
    T, B, D = tgt.shape
    S = memory.shape[0]

    def rows(x, length):
        # (L, B, D) -> (B*L, D), batch-major rows (contiguous per-batch slices).
        return x.transpose(1, 0, 2).reshape(B * length, D)

    # One activation slab -> one DMA; XLA fuses the layout change + concat.
    acts = jnp.concatenate([rows(tgt, T), rows(query_pos, T),
                            rows(memory, S), rows(pos, S)], axis=0)

    kern = functools.partial(_decoder_kernel, B, T, S, num_layers, index)
    out2d = pl.pallas_call(
        kern,
        out_shape=jax.ShapeDtypeStruct((B * T, 2 * D), tgt.dtype),
        in_specs=[_VMEM, _VMEM],
        out_specs=_VMEM,
    )(acts, slab)

    out3 = out2d.reshape(B, T, 2 * D).transpose(1, 0, 2)   # (T, B, 2D)
    return out3[:, :, :D], out3[:, :, D:]                   # (normed, raw)


# ------------------------------ parameter init --------------------------------
def _dense(key, fan_in, fan_out, scale=0.05):
    kw, kb = jax.random.split(key)
    w = jax.random.normal(kw, (fan_in, fan_out), jnp.float32) * scale
    b = jax.random.normal(kb, (1, fan_out), jnp.float32) * scale
    return w, b


def _mha_params(key):
    kqkv, ko = jax.random.split(key)
    # Concatenated q|k|v projection, equivalent to PyTorch in_proj_weight/bias.
    wqkv, bqkv = _dense(kqkv, D_MODEL, 3 * D_MODEL)
    wo, bo = _dense(ko, D_MODEL, D_MODEL)
    return dict(wqkv=wqkv, bqkv=bqkv, wo=wo, bo=bo)


def init_params(key):
    keys = jax.random.split(key, NUM_LAYERS)
    ones = jnp.ones((1, D_MODEL), jnp.float32)
    zeros = jnp.zeros((1, D_MODEL), jnp.float32)
    layers = []
    for lk in keys:
        ks = jax.random.split(lk, 4)
        w1, b1 = _dense(ks[2], D_MODEL, DIM_FF)
        w2, b2 = _dense(ks[3], DIM_FF, D_MODEL)
        layers.append(dict(
            self_attn=_mha_params(ks[0]),
            cross_attn=_mha_params(ks[1]),
            w1=w1, b1=b1, w2=w2, b2=b2,
            norm1_g=ones, norm1_b=zeros,
            norm2_g=ones, norm2_b=zeros,
            norm3_g=ones, norm3_b=zeros,
        ))
    return dict(layers=layers, norm_g=ones, norm_b=zeros)


# ---------------------------------- main ---------------------------------------
if __name__ == "__main__":
    T = 8    # number of object queries (tgt sequence length)
    S = 16   # memory (encoder output) sequence length
    B = 2    # batch

    key = jax.random.PRNGKey(0)
    k_tgt, k_mem, k_qp, k_pos, k_par = jax.random.split(key, 5)

    tgt = jax.random.normal(k_tgt, (T, B, D_MODEL), jnp.float32)
    memory = jax.random.normal(k_mem, (S, B, D_MODEL), jnp.float32)
    query_pos = jax.random.normal(k_qp, (T, B, D_MODEL), jnp.float32)
    pos = jax.random.normal(k_pos, (S, B, D_MODEL), jnp.float32)

    params = init_params(k_par)
    slab, index, num_layers = _pack_params(params)   # host-side, once

    fwd = jax.jit(
        lambda t, m, qp, p, s: transformer_decoder_forward(
            t, m, (s, index, num_layers), p, qp))
    normed_out, raw_out = fwd(tgt, memory, query_pos, pos, slab)
    jax.block_until_ready((normed_out, raw_out))

    assert normed_out.shape == (T, B, D_MODEL)
    assert raw_out.shape == (T, B, D_MODEL)
    assert bool(jnp.isfinite(normed_out).all())
    assert bool(jnp.isfinite(raw_out).all())
    print("KERNEL_OK")
</pallas_src>

<mosaic_0001>
module attributes {stable_mosaic.version = 11 : i64} {
  func.func @_decoder_kernel(%arg0: memref<96x32xf32, #tpu.memory_space<vmem>>, %arg1: memref<736x96xf32, #tpu.memory_space<vmem>>, %arg2: memref<16x64xf32, #tpu.memory_space<vmem>>) attributes {dimension_semantics = [], scalar_prefetch = 0 : i64, scratch_operands = 0 : i64, tpu.core_type = #tpu.core_type<tc>} {
    %c0 = arith.constant 0 : index
    %c0_0 = arith.constant 0 : index
    %0 = vector.load %arg0[%c0, %c0_0] : memref<96x32xf32, #tpu.memory_space<vmem>>, vector<16x32xf32>
    %c16 = arith.constant 16 : index
    %c0_1 = arith.constant 0 : index
    %1 = vector.load %arg0[%c16, %c0_1] : memref<96x32xf32, #tpu.memory_space<vmem>>, vector<16x32xf32>
    %c32 = arith.constant 32 : index
    %c0_2 = arith.constant 0 : index
    %2 = vector.load %arg0[%c32, %c0_2] : memref<96x32xf32, #tpu.memory_space<vmem>>, vector<32x32xf32>
    %c64 = arith.constant 64 : index
    %c0_3 = arith.constant 0 : index
    %3 = vector.load %arg0[%c64, %c0_3] : memref<96x32xf32, #tpu.memory_space<vmem>>, vector<32x32xf32>
    %4 = arith.addf %2, %3 : vector<32x32xf32>
    %c640 = arith.constant 640 : index
    %c0_4 = arith.constant 0 : index
    %5 = vector.load %arg1[%c640, %c0_4] : memref<736x96xf32, #tpu.memory_space<vmem>>, vector<32x64xf32>
    %cst = arith.constant dense<0.000000e+00> : vector<32x64xf32>
    %6 = tpu.matmul %4, %5, %cst {dimension_numbers = #tpu.dot_dimension_numbers<[1], [0], [0], [1], [0, 0, 1, 1], [], []>} : vector<32x32xf32>, vector<32x64xf32>, vector<32x64xf32> -> vector<32x64xf32>
    %c672 = arith.constant 672 : index
    %c0_5 = arith.constant 0 : index
    %7 = vector.load %arg1[%c672, %c0_5] : memref<736x96xf32, #tpu.memory_space<vmem>>, vector<1x64xf32>
    %8 = vector.broadcast %7 : vector<1x64xf32> to vector<32x64xf32>
    %9 = arith.addf %6, %8 : vector<32x64xf32>
    %c680 = arith.constant 680 : index
    %c0_6 = arith.constant 0 : index
    %10 = vector.load %arg1[%c680, %c0_6] : memref<736x96xf32, #tpu.memory_space<vmem>>, vector<32x64xf32>
    %cst_7 = arith.constant dense<0.000000e+00> : vector<32x64xf32>
    %11 = tpu.matmul %2, %10, %cst_7 {dimension_numbers = #tpu.dot_dimension_numbers<[1], [0], [0], [1], [0, 0, 1, 1], [], []>} : vector<32x32xf32>, vector<32x64xf32>, vector<32x64xf32> -> vector<32x64xf32>
    %c712 = arith.constant 712 : index
    %c0_8 = arith.constant 0 : index
    %12 = vector.load %arg1[%c712, %c0_8] : memref<736x96xf32, #tpu.memory_space<vmem>>, vector<1x64xf32>
    %13 = vector.broadcast %12 : vector<1x64xf32> to vector<32x64xf32>
    %14 = arith.addf %11, %13 : vector<32x64xf32>
    %c0_9 = arith.constant 0 : index
    %c0_10 = arith.constant 0 : index
    %15 = vector.load %arg1[%c0_9, %c0_10] : memref<736x96xf32, #tpu.memory_space<vmem>>, vector<32x96xf32>
    %cst_11 = arith.constant dense<0.000000e+00> : vector<16x96xf32>
    %16 = tpu.matmul %0, %15, %cst_11 {dimension_numbers = #tpu.dot_dimension_numbers<[1], [0], [0], [1], [0, 0, 1, 1], [], []>} : vector<16x32xf32>, vector<32x96xf32>, vector<16x96xf32> -> vector<16x96xf32>
    %c32_12 = arith.constant 32 : index
    %c0_13 = arith.constant 0 : index
    %17 = vector.load %arg1[%c32_12, %c0_13] : memref<736x96xf32, #tpu.memory_space<vmem>>, vector<1x96xf32>
    %18 = vector.broadcast %17 : vector<1x96xf32> to vector<16x96xf32>
    %19 = arith.addf %16, %18 : vector<16x96xf32>
    %20 = vector.extract_strided_slice %15 {offsets = [0, 0], sizes = [32, 64], strides = [1, 1]} : vector<32x96xf32> to vector<32x64xf32>
    %cst_14 = arith.constant dense<0.000000e+00> : vector<16x64xf32>
    %21 = tpu.matmul %1, %20, %cst_14 {dimension_numbers = #tpu.dot_dimension_numbers<[1], [0], [0], [1], [0, 0, 1, 1], [], []>} : vector<16x32xf32>, vector<32x64xf32>, vector<16x64xf32> -> vector<16x64xf32>
    %22 = vector.extract_strided_slice %19 {offsets = [0, 0], sizes = [16, 32], strides = [1, 1]} : vector<16x96xf32> to vector<16x32xf32>
    %23 = vector.extract_strided_slice %21 {offsets = [0, 0], sizes = [16, 32], strides = [1, 1]} : vector<16x64xf32> to vector<16x32xf32>
    %24 = arith.addf %22, %23 : vector<16x32xf32>
    %25 = vector.extract_strided_slice %19 {offsets = [0, 32], sizes = [16, 32], strides = [1, 1]} : vector<16x96xf32> to vector<16x32xf32>
    %26 = vector.extract_strided_slice %21 {offsets = [0, 32], sizes = [16, 32], strides = [1, 1]} : vector<16x64xf32> to vector<16x32xf32>
    %27 = arith.addf %25, %26 : vector<16x32xf32>
    %28 = vector.extract_strided_slice %19 {offsets = [0, 64], sizes = [16, 32], strides = [1, 1]} : vector<16x96xf32> to vector<16x32xf32>
    %29 = vector.shape_cast %24 : vector<16x32xf32> to vector<2x8x32xf32>
    %30 = vector.shape_cast %27 : vector<16x32xf32> to vector<2x8x32xf32>
    %31 = vector.shape_cast %28 : vector<16x32xf32> to vector<2x8x32xf32>
    %32 = vector.extract_strided_slice %29 {offsets = [0, 0, 0], sizes = [2, 8, 8], strides = [1, 1, 1]} : vector<2x8x32xf32> to vector<2x8x8xf32>
    %33 = vector.extract_strided_slice %30 {offsets = [0, 0, 0], sizes = [2, 8, 8], strides = [1, 1, 1]} : vector<2x8x32xf32> to vector<2x8x8xf32>
    %34 = vector.extract_strided_slice %31 {offsets = [0, 0, 0], sizes = [2, 8, 8], strides = [1, 1, 1]} : vector<2x8x32xf32> to vector<2x8x8xf32>
    "tpu.trace_start"() <{level = 10 : i32, message = "bqd,bkd->bqk"}> : () -> ()
    %cst_15 = arith.constant dense<0.000000e+00> : vector<2x8x8xf32>
    %35 = tpu.matmul %32, %33, %cst_15 {dimension_numbers = #tpu.dot_dimension_numbers<[2], [2], [1], [1], [0, 0, 0, 1, 1, 1], [0], [0]>} : vector<2x8x8xf32>, vector<2x8x8xf32>, vector<2x8x8xf32> -> vector<2x8x8xf32>
    "tpu.trace_stop"() : () -> ()
    %cst_16 = arith.constant 0.353553385 : f32
    %36 = vector.broadcast %cst_16 : f32 to vector<2x8x8xf32>
    %37 = arith.mulf %35, %36 : vector<2x8x8xf32>
    %cst_17 = arith.constant dense<0xFF800000> : vector<2x8xf32>
    %38 = vector.multi_reduction <maximumf>, %37, %cst_17 [2] : vector<2x8x8xf32> to vector<2x8xf32>
    %39 = vector.shape_cast %38 : vector<2x8xf32> to vector<2x8x1xf32>
    %40 = vector.broadcast %39 : vector<2x8x1xf32> to vector<2x8x8xf32>
    %41 = arith.subf %37, %40 : vector<2x8x8xf32>
    %42 = math.exp %41 : vector<2x8x8xf32>
    %cst_18 = arith.constant dense<0.000000e+00> : vector<2x8xf32>
    %43 = vector.multi_reduction <add>, %42, %cst_18 [2] : vector<2x8x8xf32> to vector<2x8xf32>
    %44 = vector.shape_cast %43 : vector<2x8xf32> to vector<2x8x1xf32>
    %45 = vector.broadcast %44 : vector<2x8x1xf32> to vector<2x8x8xf32>
    %46 = arith.divf %42, %45 : vector<2x8x8xf32>
    "tpu.trace_start"() <{level = 10 : i32, message = "bqk,bkd->bqd"}> : () -> ()
    %cst_19 = arith.constant dense<0.000000e+00> : vector<2x8x8xf32>
    %47 = tpu.matmul %46, %34, %cst_19 {dimension_numbers = #tpu.dot_dimension_numbers<[2], [1], [1], [2], [0, 0, 0, 1, 1, 2], [0], [0]>} : vector<2x8x8xf32>, vector<2x8x8xf32>, vector<2x8x8xf32> -> vector<2x8x8xf32>
    "tpu.trace_stop"() : () -> ()
    %48 = vector.extract_strided_slice %29 {offsets = [0, 0, 8], sizes = [2, 8, 8], strides = [1, 1, 1]} : vector<2x8x32xf32> to vector<2x8x8xf32>
    %49 = vector.extract_strided_slice %30 {offsets = [0, 0, 8], sizes = [2, 8, 8], strides = [1, 1, 1]} : vector<2x8x32xf32> to vector<2x8x8xf32>
    %50 = vector.extract_strided_slice %31 {offsets = [0, 0, 8], sizes = [2, 8, 8], strides = [1, 1, 1]} : vector<2x8x32xf32> to vector<2x8x8xf32>
    "tpu.trace_start"() <{level = 10 : i32, message = "bqd,bkd->bqk"}> : () -> ()
    %cst_20 = arith.constant dense<0.000000e+00> : vector<2x8x8xf32>
    %51 = tpu.matmul %48, %49, %cst_20 {dimension_numbers = #tpu.dot_dimension_numbers<[2], [2], [1], [1], [0, 0, 0, 1, 1, 1], [0], [0]>} : vector<2x8x8xf32>, vector<2x8x8xf32>, vector<2x8x8xf32> -> vector<2x8x8xf32>
    "tpu.trace_stop"() : () -> ()
    %cst_21 = arith.constant 0.353553385 : f32
    %52 = vector.broadcast %cst_21 : f32 to vector<2x8x8xf32>
    %53 = arith.mulf %51, %52 : vector<2x8x8xf32>
    %cst_22 = arith.constant dense<0xFF800000> : vector<2x8xf32>
    %54 = vector.multi_reduction <maximumf>, %53, %cst_22 [2] : vector<2x8x8xf32> to vector<2x8xf32>
    %55 = vector.shape_cast %54 : vector<2x8xf32> to vector<2x8x1xf32>
    %56 = vector.broadcast %55 : vector<2x8x1xf32> to vector<2x8x8xf32>
    %57 = arith.subf %53, %56 : vector<2x8x8xf32>
    %58 = math.exp %57 : vector<2x8x8xf32>
    %cst_23 = arith.constant dense<0.000000e+00> : vector<2x8xf32>
    %59 = vector.multi_reduction <add>, %58, %cst_23 [2] : vector<2x8x8xf32> to vector<2x8xf32>
    %60 = vector.shape_cast %59 : vector<2x8xf32> to vector<2x8x1xf32>
    %61 = vector.broadcast %60 : vector<2x8x1xf32> to vector<2x8x8xf32>
    %62 = arith.divf %58, %61 : vector<2x8x8xf32>
    "tpu.trace_start"() <{level = 10 : i32, message = "bqk,bkd->bqd"}> : () -> ()
    %cst_24 = arith.constant dense<0.000000e+00> : vector<2x8x8xf32>
    %63 = tpu.matmul %62, %50, %cst_24 {dimension_numbers = #tpu.dot_dimension_numbers<[2], [1], [1], [2], [0, 0, 0, 1, 1, 2], [0], [0]>} : vector<2x8x8xf32>, vector<2x8x8xf32>, vector<2x8x8xf32> -> vector<2x8x8xf32>
    "tpu.trace_stop"() : () -> ()
    %64 = vector.extract_strided_slice %29 {offsets = [0, 0, 16], sizes = [2, 8, 8], strides = [1, 1, 1]} : vector<2x8x32xf32> to vector<2x8x8xf32>
    %65 = vector.extract_strided_slice %30 {offsets = [0, 0, 16], sizes = [2, 8, 8], strides = [1, 1, 1]} : vector<2x8x32xf32> to vector<2x8x8xf32>
    %66 = vector.extract_strided_slice %31 {offsets = [0, 0, 16], sizes = [2, 8, 8], strides = [1, 1, 1]} : vector<2x8x32xf32> to vector<2x8x8xf32>
    "tpu.trace_start"() <{level = 10 : i32, message = "bqd,bkd->bqk"}> : () -> ()
    %cst_25 = arith.constant dense<0.000000e+00> : vector<2x8x8xf32>
    %67 = tpu.matmul %64, %65, %cst_25 {dimension_numbers = #tpu.dot_dimension_numbers<[2], [2], [1], [1], [0, 0, 0, 1, 1, 1], [0], [0]>} : vector<2x8x8xf32>, vector<2x8x8xf32>, vector<2x8x8xf32> -> vector<2x8x8xf32>
    "tpu.trace_stop"() : () -> ()
    %cst_26 = arith.constant 0.353553385 : f32
    %68 = vector.broadcast %cst_26 : f32 to vector<2x8x8xf32>
    %69 = arith.mulf %67, %68 : vector<2x8x8xf32>
    %cst_27 = arith.constant dense<0xFF800000> : vector<2x8xf32>
    %70 = vector.multi_reduction <maximumf>, %69, %cst_27 [2] : vector<2x8x8xf32> to vector<2x8xf32>
    %71 = vector.shape_cast %70 : vector<2x8xf32> to vector<2x8x1xf32>
    %72 = vector.broadcast %71 : vector<2x8x1xf32> to vector<2x8x8xf32>
    %73 = arith.subf %69, %72 : vector<2x8x8xf32>
    %74 = math.exp %73 : vector<2x8x8xf32>
    %cst_28 = arith.constant dense<0.000000e+00> : vector<2x8xf32>
    %75 = vector.multi_reduction <add>, %74, %cst_28 [2] : vector<2x8x8xf32> to vector<2x8xf32>
    %76 = vector.shape_cast %75 : vector<2x8xf32> to vector<2x8x1xf32>
    %77 = vector.broadcast %76 : vector<2x8x1xf32> to vector<2x8x8xf32>
    %78 = arith.divf %74, %77 : vector<2x8x8xf32>
    "tpu.trace_start"() <{level = 10 : i32, message = "bqk,bkd->bqd"}> : () -> ()
    %cst_29 = arith.constant dense<0.000000e+00> : vector<2x8x8xf32>
    %79 = tpu.matmul %78, %66, %cst_29 {dimension_numbers = #tpu.dot_dimension_numbers<[2], [1], [1], [2], [0, 0, 0, 1, 1, 2], [0], [0]>} : vector<2x8x8xf32>, vector<2x8x8xf32>, vector<2x8x8xf32> -> vector<2x8x8xf32>
    "tpu.trace_stop"() : () -> ()
    %80 = vector.extract_strided_slice %29 {offsets = [0, 0, 24], sizes = [2, 8, 8], strides = [1, 1, 1]} : vector<2x8x32xf32> to vector<2x8x8xf32>
    %81 = vector.extract_strided_slice %30 {offsets = [0, 0, 24], sizes = [2, 8, 8], strides = [1, 1, 1]} : vector<2x8x32xf32> to vector<2x8x8xf32>
    %82 = vector.extract_strided_slice %31 {offsets = [0, 0, 24], sizes = [2, 8, 8], strides = [1, 1, 1]} : vector<2x8x32xf32> to vector<2x8x8xf32>
    "tpu.trace_start"() <{level = 10 : i32, message = "bqd,bkd->bqk"}> : () -> ()
    %cst_30 = arith.constant dense<0.000000e+00> : vector<2x8x8xf32>
    %83 = tpu.matmul %80, %81, %cst_30 {dimension_numbers = #tpu.dot_dimension_numbers<[2], [2], [1], [1], [0, 0, 0, 1, 1, 1], [0], [0]>} : vector<2x8x8xf32>, vector<2x8x8xf32>, vector<2x8x8xf32> -> vector<2x8x8xf32>
    "tpu.trace_stop"() : () -> ()
    %cst_31 = arith.constant 0.353553385 : f32
    %84 = vector.broadcast %cst_31 : f32 to vector<2x8x8xf32>
    %85 = arith.mulf %83, %84 : vector<2x8x8xf32>
    %cst_32 = arith.constant dense<0xFF800000> : vector<2x8xf32>
    %86 = vector.multi_reduction <maximumf>, %85, %cst_32 [2] : vector<2x8x8xf32> to vector<2x8xf32>
    %87 = vector.shape_cast %86 : vector<2x8xf32> to vector<2x8x1xf32>
    %88 = vector.broadcast %87 : vector<2x8x1xf32> to vector<2x8x8xf32>
    %89 = arith.subf %85, %88 : vector<2x8x8xf32>
    %90 = math.exp %89 : vector<2x8x8xf32>
    %cst_33 = arith.constant dense<0.000000e+00> : vector<2x8xf32>
    %91 = vector.multi_reduction <add>, %90, %cst_33 [2] : vector<2x8x8xf32> to vector<2x8xf32>
    %92 = vector.shape_cast %91 : vector<2x8xf32> to vector<2x8x1xf32>
    %93 = vector.broadcast %92 : vector<2x8x1xf32> to vector<2x8x8xf32>
    %94 = arith.divf %90, %93 : vector<2x8x8xf32>
    "tpu.trace_start"() <{level = 10 : i32, message = "bqk,bkd->bqd"}> : () -> ()
    %cst_34 = arith.constant dense<0.000000e+00> : vector<2x8x8xf32>
    %95 = tpu.matmul %94, %82, %cst_34 {dimension_numbers = #tpu.dot_dimension_numbers<[2], [1], [1], [2], [0, 0, 0, 1, 1, 2], [0], [0]>} : vector<2x8x8xf32>, vector<2x8x8xf32>, vector<2x8x8xf32> -> vector<2x8x8xf32>
    "tpu.trace_stop"() : () -> ()
    %96 = tpu.concatenate %47, %63, %79, %95 in 2 : vector<2x8x8xf32>, vector<2x8x8xf32>, vector<2x8x8xf32>, vector<2x8x8xf32> -> vector<2x8x32xf32>
    %97 = vector.shape_cast %96 : vector<2x8x32xf32> to vector<16x32xf32>
    %c40 = arith.constant 40 : index
    %c0_35 = arith.constant 0 : index
    %98 = vector.load %arg1[%c40, %c0_35] : memref<736x96xf32, #tpu.memory_space<vmem>>, vector<32x32xf32>
    %cst_36 = arith.constant dense<0.000000e+00> : vector<16x32xf32>
    %99 = tpu.matmul %97, %98, %cst_36 {dimension_numbers = #tpu.dot_dimension_numbers<[1], [0], [0], [1], [0, 0, 1, 1], [], []>} : vector<16x32xf32>, vector<32x32xf32>, vector<16x32xf32> -> vector<16x32xf32>
    %c72 = arith.constant 72 : index
    %c0_37 = arith.constant 0 : index
    %100 = vector.load %arg1[%c72, %c0_37] : memref<736x96xf32, #tpu.memory_space<vmem>>, vector<1x32xf32>
    %101 = vector.broadcast %100 : vector<1x32xf32> to vector<16x32xf32>
    %102 = arith.addf %99, %101 : vector<16x32xf32>
    %103 = arith.addf %0, %102 : vector<16x32xf32>
    %c272 = arith.constant 272 : index
    %c0_38 = arith.constant 0 : index
    %104 = vector.load %arg1[%c272, %c0_38] : memref<736x96xf32, #tpu.memory_space<vmem>>, vector<1x32xf32>
    %c280 = arith.constant 280 : index
    %c0_39 = arith.constant 0 : index
    %105 = vector.load %arg1[%c280, %c0_39] : memref<736x96xf32, #tpu.memory_space<vmem>>, vector<1x32xf32>
    %cst_40 = arith.constant dense<0.000000e+00> : vector<16xf32>
    %106 = vector.multi_reduction <add>, %103, %cst_40 [1] : vector<16x32xf32> to vector<16xf32>
    %107 = vector.shape_cast %106 : vector<16xf32> to vector<16x1xf32>
    %cst_41 = arith.constant 3.200000e+01 : f32
    %108 = vector.broadcast %cst_41 : f32 to vector<16x1xf32>
    %109 = arith.divf %107, %108 : vector<16x1xf32>
    %110 = vector.broadcast %109 : vector<16x1xf32> to vector<16x32xf32>
    %111 = arith.subf %103, %110 : vector<16x32xf32>
    %112 = arith.mulf %111, %111 : vector<16x32xf32>
    %cst_42 = arith.constant dense<0.000000e+00> : vector<16xf32>
    %113 = vector.multi_reduction <add>, %112, %cst_42 [1] : vector<16x32xf32> to vector<16xf32>
    %114 = vector.shape_cast %113 : vector<16xf32> to vector<16x1xf32>
    %cst_43 = arith.constant 3.200000e+01 : f32
    %115 = vector.broadcast %cst_43 : f32 to vector<16x1xf32>
    %116 = arith.divf %114, %115 : vector<16x1xf32>
    %117 = vector.broadcast %109 : vector<16x1xf32> to vector<16x32xf32>
    %118 = arith.subf %103, %117 : vector<16x32xf32>
    %cst_44 = arith.constant 9.99999974E-6 : f32
    %119 = vector.broadcast %cst_44 : f32 to vector<16x1xf32>
    %120 = arith.addf %116, %119 : vector<16x1xf32>
    %121 = math.rsqrt %120 : vector<16x1xf32>
    %122 = vector.broadcast %121 : vector<16x1xf32> to vector<16x32xf32>
    %123 = arith.mulf %118, %122 : vector<16x32xf32>
    %124 = vector.broadcast %104 : vector<1x32xf32> to vector<16x32xf32>
    %125 = arith.mulf %123, %124 : vector<16x32xf32>
    %126 = vector.broadcast %105 : vector<1x32xf32> to vector<16x32xf32>
    %127 = arith.addf %125, %126 : vector<16x32xf32>
    %128 = arith.addf %127, %1 : vector<16x32xf32>
    %c80 = arith.constant 80 : index
    %c0_45 = arith.constant 0 : index
    %129 = vector.load %arg1[%c80, %c0_45] : memref<736x96xf32, #tpu.memory_space<vmem>>, vector<32x32xf32>
    %cst_46 = arith.constant dense<0.000000e+00> : vector<16x32xf32>
    %130 = tpu.matmul %128, %129, %cst_46 {dimension_numbers = #tpu.dot_dimension_numbers<[1], [0], [0], [1], [0, 0, 1, 1], [], []>} : vector<16x32xf32>, vector<32x32xf32>, vector<16x32xf32> -> vector<16x32xf32>
    %c112 = arith.constant 112 : index
    %c0_47 = arith.constant 0 : index
    %131 = vector.load %arg1[%c112, %c0_47] : memref<736x96xf32, #tpu.memory_space<vmem>>, vector<1x32xf32>
    %132 = vector.broadcast %131 : vector<1x32xf32> to vector<16x32xf32>
    %133 = arith.addf %130, %132 : vector<16x32xf32>
    %134 = vector.extract_strided_slice %9 {offsets = [0, 0], sizes = [32, 32], strides = [1, 1]} : vector<32x64xf32> to vector<32x32xf32>
    %135 = vector.extract_strided_slice %14 {offsets = [0, 0], sizes = [32, 32], strides = [1, 1]} : vector<32x64xf32> to vector<32x32xf32>
    %136 = vector.shape_cast %133 : vector<16x32xf32> to vector<2x8x32xf32>
    %137 = vector.shape_cast %134 : vector<32x32xf32> to vector<2x16x32xf32>
    %138 = vector.shape_cast %135 : vector<32x32xf32> to vector<2x16x32xf32>
    %139 = vector.extract_strided_slice %136 {offsets = [0, 0, 0], sizes = [2, 8, 8], strides = [1, 1, 1]} : vector<2x8x32xf32> to vector<2x8x8xf32>
    %140 = vector.extract_strided_slice %137 {offsets = [0, 0, 0], sizes = [2, 16, 8], strides = [1, 1, 1]} : vector<2x16x32xf32> to vector<2x16x8xf32>
    %141 = vector.extract_strided_slice %138 {offsets = [0, 0, 0], sizes = [2, 16, 8], strides = [1, 1, 1]} : vector<2x16x32xf32> to vector<2x16x8xf32>
    "tpu.trace_start"() <{level = 10 : i32, message = "bqd,bkd->bqk"}> : () -> ()
    %cst_48 = arith.constant dense<0.000000e+00> : vector<2x8x16xf32>
    %142 = tpu.matmul %139, %140, %cst_48 {dimension_numbers = #tpu.dot_dimension_numbers<[2], [2], [1], [1], [0, 0, 0, 1, 1, 1], [0], [0]>} : vector<2x8x8xf32>, vector<2x16x8xf32>, vector<2x8x16xf32> -> vector<2x8x16xf32>
    "tpu.trace_stop"() : () -> ()
    %cst_49 = arith.constant 0.353553385 : f32
    %143 = vector.broadcast %cst_49 : f32 to vector<2x8x16xf32>
    %144 = arith.mulf %142, %143 : vector<2x8x16xf32>
    %cst_50 = arith.constant dense<0xFF800000> : vector<2x8xf32>
    %145 = vector.multi_reduction <maximumf>, %144, %cst_50 [2] : vector<2x8x16xf32> to vector<2x8xf32>
    %146 = vector.shape_cast %145 : vector<2x8xf32> to vector<2x8x1xf32>
    %147 = vector.broadcast %146 : vector<2x8x1xf32> to vector<2x8x16xf32>
    %148 = arith.subf %144, %147 : vector<2x8x16xf32>
    %149 = math.exp %148 : vector<2x8x16xf32>
    %cst_51 = arith.constant dense<0.000000e+00> : vector<2x8xf32>
    %150 = vector.multi_reduction <add>, %149, %cst_51 [2] : vector<2x8x16xf32> to vector<2x8xf32>
    %151 = vector.shape_cast %150 : vector<2x8xf32> to vector<2x8x1xf32>
    %152 = vector.broadcast %151 : vector<2x8x1xf32> to vector<2x8x16xf32>
    %153 = arith.divf %149, %152 : vector<2x8x16xf32>
    "tpu.trace_start"() <{level = 10 : i32, message = "bqk,bkd->bqd"}> : () -> ()
    %cst_52 = arith.constant dense<0.000000e+00> : vector<2x8x8xf32>
    %154 = tpu.matmul %153, %141, %cst_52 {dimension_numbers = #tpu.dot_dimension_numbers<[2], [1], [1], [2], [0, 0, 0, 1, 1, 2], [0], [0]>} : vector<2x8x16xf32>, vector<2x16x8xf32>, vector<2x8x8xf32> -> vector<2x8x8xf32>
    "tpu.trace_stop"() : () -> ()
    %155 = vector.extract_strided_slice %136 {offsets = [0, 0, 8], sizes = [2, 8, 8], strides = [1, 1, 1]} : vector<2x8x32xf32> to vector<2x8x8xf32>
    %156 = vector.extract_strided_slice %137 {offsets = [0, 0, 8], sizes = [2, 16, 8], strides = [1, 1, 1]} : vector<2x16x32xf32> to vector<2x16x8xf32>
    %157 = vector.extract_strided_slice %138 {offsets = [0, 0, 8], sizes = [2, 16, 8], strides = [1, 1, 1]} : vector<2x16x32xf32> to vector<2x16x8xf32>
    "tpu.trace_start"() <{level = 10 : i32, message = "bqd,bkd->bqk"}> : () -> ()
    %cst_53 = arith.constant dense<0.000000e+00> : vector<2x8x16xf32>
    %158 = tpu.matmul %155, %156, %cst_53 {dimension_numbers = #tpu.dot_dimension_numbers<[2], [2], [1], [1], [0, 0, 0, 1, 1, 1], [0], [0]>} : vector<2x8x8xf32>, vector<2x16x8xf32>, vector<2x8x16xf32> -> vector<2x8x16xf32>
    "tpu.trace_stop"() : () -> ()
    %cst_54 = arith.constant 0.353553385 : f32
    %159 = vector.broadcast %cst_54 : f32 to vector<2x8x16xf32>
    %160 = arith.mulf %158, %159 : vector<2x8x16xf32>
    %cst_55 = arith.constant dense<0xFF800000> : vector<2x8xf32>
    %161 = vector.multi_reduction <maximumf>, %160, %cst_55 [2] : vector<2x8x16xf32> to vector<2x8xf32>
    %162 = vector.shape_cast %161 : vector<2x8xf32> to vector<2x8x1xf32>
    %163 = vector.broadcast %162 : vector<2x8x1xf32> to vector<2x8x16xf32>
    %164 = arith.subf %160, %163 : vector<2x8x16xf32>
    %165 = math.exp %164 : vector<2x8x16xf32>
    %cst_56 = arith.constant dense<0.000000e+00> : vector<2x8xf32>
    %166 = vector.multi_reduction <add>, %165, %cst_56 [2] : vector<2x8x16xf32> to vector<2x8xf32>
    %167 = vector.shape_cast %166 : vector<2x8xf32> to vector<2x8x1xf32>
    %168 = vector.broadcast %167 : vector<2x8x1xf32> to vector<2x8x16xf32>
    %169 = arith.divf %165, %168 : vector<2x8x16xf32>
    "tpu.trace_start"() <{level = 10 : i32, message = "bqk,bkd->bqd"}> : () -> ()
    %cst_57 = arith.constant dense<0.000000e+00> : vector<2x8x8xf32>
    %170 = tpu.matmul %169, %157, %cst_57 {dimension_numbers = #tpu.dot_dimension_numbers<[2], [1], [1], [2], [0, 0, 0, 1, 1, 2], [0], [0]>} : vector<2x8x16xf32>, vector<2x16x8xf32>, vector<2x8x8xf32> -> vector<2x8x8xf32>
    "tpu.trace_stop"() : () -> ()
    %171 = vector.extract_strided_slice %136 {offsets = [0, 0, 16], sizes = [2, 8, 8], strides = [1, 1, 1]} : vector<2x8x32xf32> to vector<2x8x8xf32>
    %172 = vector.extract_strided_slice %137 {offsets = [0, 0, 16], sizes = [2, 16, 8], strides = [1, 1, 1]} : vector<2x16x32xf32> to vector<2x16x8xf32>
    %173 = vector.extract_strided_slice %138 {offsets = [0, 0, 16], sizes = [2, 16, 8], strides = [1, 1, 1]} : vector<2x16x32xf32> to vector<2x16x8xf32>
    "tpu.trace_start"() <{level = 10 : i32, message = "bqd,bkd->bqk"}> : () -> ()
    %cst_58 = arith.constant dense<0.000000e+00> : vector<2x8x16xf32>
    %174 = tpu.matmul %171, %172, %cst_58 {dimension_numbers = #tpu.dot_dimension_numbers<[2], [2], [1], [1], [0, 0, 0, 1, 1, 1], [0], [0]>} : vector<2x8x8xf32>, vector<2x16x8xf32>, vector<2x8x16xf32> -> vector<2x8x16xf32>
    "tpu.trace_stop"() : () -> ()
    %cst_59 = arith.constant 0.353553385 : f32
    %175 = vector.broadcast %cst_59 : f32 to vector<2x8x16xf32>
    %176 = arith.mulf %174, %175 : vector<2x8x16xf32>
    %cst_60 = arith.constant dense<0xFF800000> : vector<2x8xf32>
    %177 = vector.multi_reduction <maximumf>, %176, %cst_60 [2] : vector<2x8x16xf32> to vector<2x8xf32>
    %178 = vector.shape_cast %177 : vector<2x8xf32> to vector<2x8x1xf32>
    %179 = vector.broadcast %178 : vector<2x8x1xf32> to vector<2x8x16xf32>
    %180 = arith.subf %176, %179 : vector<2x8x16xf32>
    %181 = math.exp %180 : vector<2x8x16xf32>
    %cst_61 = arith.constant dense<0.000000e+00> : vector<2x8xf32>
    %182 = vector.multi_reduction <add>, %181, %cst_61 [2] : vector<2x8x16xf32> to vector<2x8xf32>
    %183 = vector.shape_cast %182 : vector<2x8xf32> to vector<2x8x1xf32>
    %184 = vector.broadcast %183 : vector<2x8x1xf32> to vector<2x8x16xf32>
    %185 = arith.divf %181, %184 : vector<2x8x16xf32>
    "tpu.trace_start"() <{level = 10 : i32, message = "bqk,bkd->bqd"}> : () -> ()
    %cst_62 = arith.constant dense<0.000000e+00> : vector<2x8x8xf32>
    %186 = tpu.matmul %185, %173, %cst_62 {dimension_numbers = #tpu.dot_dimension_numbers<[2], [1], [1], [2], [0, 0, 0, 1, 1, 2], [0], [0]>} : vector<2x8x16xf32>, vector<2x16x8xf32>, vector<2x8x8xf32> -> vector<2x8x8xf32>
    "tpu.trace_stop"() : () -> ()
    %187 = vector.extract_strided_slice %136 {offsets = [0, 0, 24], sizes = [2, 8, 8], strides = [1, 1, 1]} : vector<2x8x32xf32> to vector<2x8x8xf32>
    %188 = vector.extract_strided_slice %137 {offsets = [0, 0, 24], sizes = [2, 16, 8], strides = [1, 1, 1]} : vector<2x16x32xf32> to vector<2x16x8xf32>
    %189 = vector.extract_strided_slice %138 {offsets = [0, 0, 24], sizes = [2, 16, 8], strides = [1, 1, 1]} : vector<2x16x32xf32> to vector<2x16x8xf32>
    "tpu.trace_start"() <{level = 10 : i32, message = "bqd,bkd->bqk"}> : () -> ()
    %cst_63 = arith.constant dense<0.000000e+00> : vector<2x8x16xf32>
    %190 = tpu.matmul %187, %188, %cst_63 {dimension_numbers = #tpu.dot_dimension_numbers<[2], [2], [1], [1], [0, 0, 0, 1, 1, 1], [0], [0]>} : vector<2x8x8xf32>, vector<2x16x8xf32>, vector<2x8x16xf32> -> vector<2x8x16xf32>
    "tpu.trace_stop"() : () -> ()
    %cst_64 = arith.constant 0.353553385 : f32
    %191 = vector.broadcast %cst_64 : f32 to vector<2x8x16xf32>
    %192 = arith.mulf %190, %191 : vector<2x8x16xf32>
    %cst_65 = arith.constant dense<0xFF800000> : vector<2x8xf32>
    %193 = vector.multi_reduction <maximumf>, %192, %cst_65 [2] : vector<2x8x16xf32> to vector<2x8xf32>
    %194 = vector.shape_cast %193 : vector<2x8xf32> to vector<2x8x1xf32>
    %195 = vector.broadcast %194 : vector<2x8x1xf32> to vector<2x8x16xf32>
    %196 = arith.subf %192, %195 : vector<2x8x16xf32>
    %197 = math.exp %196 : vector<2x8x16xf32>
    %cst_66 = arith.constant dense<0.000000e+00> : vector<2x8xf32>
    %198 = vector.multi_reduction <add>, %197, %cst_66 [2] : vector<2x8x16xf32> to vector<2x8xf32>
    %199 = vector.shape_cast %198 : vector<2x8xf32> to vector<2x8x1xf32>
    %200 = vector.broadcast %199 : vector<2x8x1xf32> to vector<2x8x16xf32>
    %201 = arith.divf %197, %200 : vector<2x8x16xf32>
    "tpu.trace_start"() <{level = 10 : i32, message = "bqk,bkd->bqd"}> : () -> ()
    %cst_67 = arith.constant dense<0.000000e+00> : vector<2x8x8xf32>
    %202 = tpu.matmul %201, %189, %cst_67 {dimension_numbers = #tpu.dot_dimension_numbers<[2], [1], [1], [2], [0, 0, 0, 1, 1, 2], [0], [0]>} : vector<2x8x16xf32>, vector<2x16x8xf32>, vector<2x8x8xf32> -> vector<2x8x8xf32>
    "tpu.trace_stop"() : () -> ()
    %203 = tpu.concatenate %154, %170, %186, %202 in 2 : vector<2x8x8xf32>, vector<2x8x8xf32>, vector<2x8x8xf32>, vector<2x8x8xf32> -> vector<2x8x32xf32>
    %204 = vector.shape_cast %203 : vector<2x8x32xf32> to vector<16x32xf32>
    %c120 = arith.constant 120 : index
    %c0_68 = arith.constant 0 : index
    %205 = vector.load %arg1[%c120, %c0_68] : memref<736x96xf32, #tpu.memory_space<vmem>>, vector<32x32xf32>
    %cst_69 = arith.constant dense<0.000000e+00> : vector<16x32xf32>
    %206 = tpu.matmul %204, %205, %cst_69 {dimension_numbers = #tpu.dot_dimension_numbers<[1], [0], [0], [1], [0, 0, 1, 1], [], []>} : vector<16x32xf32>, vector<32x32xf32>, vector<16x32xf32> -> vector<16x32xf32>
    %c152 = arith.constant 152 : index
    %c0_70 = arith.constant 0 : index
    %207 = vector.load %arg1[%c152, %c0_70] : memref<736x96xf32, #tpu.memory_space<vmem>>, vector<1x32xf32>
    %208 = vector.broadcast %207 : vector<1x32xf32> to vector<16x32xf32>
    %209 = arith.addf %206, %208 : vector<16x32xf32>
    %210 = arith.addf %127, %209 : vector<16x32xf32>
    %c288 = arith.constant 288 : index
    %c0_71 = arith.constant 0 : index
    %211 = vector.load %arg1[%c288, %c0_71] : memref<736x96xf32, #tpu.memory_space<vmem>>, vector<1x32xf32>
    %c296 = arith.constant 296 : index
    %c0_72 = arith.constant 0 : index
    %212 = vector.load %arg1[%c296, %c0_72] : memref<736x96xf32, #tpu.memory_space<vmem>>, vector<1x32xf32>
    %cst_73 = arith.constant dense<0.000000e+00> : vector<16xf32>
    %213 = vector.multi_reduction <add>, %210, %cst_73 [1] : vector<16x32xf32> to vector<16xf32>
    %214 = vector.shape_cast %213 : vector<16xf32> to vector<16x1xf32>
    %cst_74 = arith.constant 3.200000e+01 : f32
    %215 = vector.broadcast %cst_74 : f32 to vector<16x1xf32>
    %216 = arith.divf %214, %215 : vector<16x1xf32>
    %217 = vector.broadcast %216 : vector<16x1xf32> to vector<16x32xf32>
    %218 = arith.subf %210, %217 : vector<16x32xf32>
    %219 = arith.mulf %218, %218 : vector<16x32xf32>
    %cst_75 = arith.constant dense<0.000000e+00> : vector<16xf32>
    %220 = vector.multi_reduction <add>, %219, %cst_75 [1] : vector<16x32xf32> to vector<16xf32>
    %221 = vector.shape_cast %220 : vector<16xf32> to vector<16x1xf32>
    %cst_76 = arith.constant 3.200000e+01 : f32
    %222 = vector.broadcast %cst_76 : f32 to vector<16x1xf32>
    %223 = arith.divf %221, %222 : vector<16x1xf32>
    %224 = vector.broadcast %216 : vector<16x1xf32> to vector<16x32xf32>
    %225 = arith.subf %210, %224 : vector<16x32xf32>
    %cst_77 = arith.constant 9.99999974E-6 : f32
    %226 = vector.broadcast %cst_77 : f32 to vector<16x1xf32>
    %227 = arith.addf %223, %226 : vector<16x1xf32>
    %228 = math.rsqrt %227 : vector<16x1xf32>
    %229 = vector.broadcast %228 : vector<16x1xf32> to vector<16x32xf32>
    %230 = arith.mulf %225, %229 : vector<16x32xf32>
    %231 = vector.broadcast %211 : vector<1x32xf32> to vector<16x32xf32>
    %232 = arith.mulf %230, %231 : vector<16x32xf32>
    %233 = vector.broadcast %212 : vector<1x32xf32> to vector<16x32xf32>
    %234 = arith.addf %232, %233 : vector<16x32xf32>
    %c160 = arith.constant 160 : index
    %c0_78 = arith.constant 0 : index
    %235 = vector.load %arg1[%c160, %c0_78] : memref<736x96xf32, #tpu.memory_space<vmem>>, vector<32x64xf32>
    %cst_79 = arith.constant dense<0.000000e+00> : vector<16x64xf32>
    %236 = tpu.matmul %234, %235, %cst_79 {dimension_numbers = #tpu.dot_dimension_numbers<[1], [0], [0], [1], [0, 0, 1, 1], [], []>} : vector<16x32xf32>, vector<32x64xf32>, vector<16x64xf32> -> vector<16x64xf32>
    %c192 = arith.constant 192 : index
    %c0_80 = arith.constant 0 : index
    %237 = vector.load %arg1[%c192, %c0_80] : memref<736x96xf32, #tpu.memory_space<vmem>>, vector<1x64xf32>
    %238 = vector.broadcast %237 : vector<1x64xf32> to vector<16x64xf32>
    %239 = arith.addf %236, %238 : vector<16x64xf32>
    %cst_81 = arith.constant 0.000000e+00 : f32
    %240 = vector.broadcast %cst_81 : f32 to vector<16x64xf32>
    %241 = arith.maximumf %239, %240 : vector<16x64xf32>
    %c200 = arith.constant 200 : index
    %c0_82 = arith.constant 0 : index
    %242 = vector.load %arg1[%c200, %c0_82] : memref<736x96xf32, #tpu.memory_space<vmem>>, vector<64x32xf32>
    %cst_83 = arith.constant dense<0.000000e+00> : vector<16x32xf32>
    %243 = tpu.matmul %241, %242, %cst_83 {dimension_numbers = #tpu.dot_dimension_numbers<[1], [0], [0], [1], [0, 0, 1, 1], [], []>} : vector<16x64xf32>, vector<64x32xf32>, vector<16x32xf32> -> vector<16x32xf32>
    %244 = arith.addf %234, %243 : vector<16x32xf32>
    %c264 = arith.constant 264 : index
    %c0_84 = arith.constant 0 : index
    %245 = vector.load %arg1[%c264, %c0_84] : memref<736x96xf32, #tpu.memory_space<vmem>>, vector<1x32xf32>
    %246 = vector.broadcast %245 : vector<1x32xf32> to vector<16x32xf32>
    %247 = arith.addf %244, %246 : vector<16x32xf32>
    %c304 = arith.constant 304 : index
    %c0_85 = arith.constant 0 : index
    %248 = vector.load %arg1[%c304, %c0_85] : memref<736x96xf32, #tpu.memory_space<vmem>>, vector<1x32xf32>
    %c312 = arith.constant 312 : index
    %c0_86 = arith.constant 0 : index
    %249 = vector.load %arg1[%c312, %c0_86] : memref<736x96xf32, #tpu.memory_space<vmem>>, vector<1x32xf32>
    %cst_87 = arith.constant dense<0.000000e+00> : vector<16xf32>
    %250 = vector.multi_reduction <add>, %247, %cst_87 [1] : vector<16x32xf32> to vector<16xf32>
    %251 = vector.shape_cast %250 : vector<16xf32> to vector<16x1xf32>
    %cst_88 = arith.constant 3.200000e+01 : f32
    %252 = vector.broadcast %cst_88 : f32 to vector<16x1xf32>
    %253 = arith.divf %251, %252 : vector<16x1xf32>
    %254 = vector.broadcast %253 : vector<16x1xf32> to vector<16x32xf32>
    %255 = arith.subf %247, %254 : vector<16x32xf32>
    %256 = arith.mulf %255, %255 : vector<16x32xf32>
    %cst_89 = arith.constant dense<0.000000e+00> : vector<16xf32>
    %257 = vector.multi_reduction <add>, %256, %cst_89 [1] : vector<16x32xf32> to vector<16xf32>
    %258 = vector.shape_cast %257 : vector<16xf32> to vector<16x1xf32>
    %cst_90 = arith.constant 3.200000e+01 : f32
    %259 = vector.broadcast %cst_90 : f32 to vector<16x1xf32>
    %260 = arith.divf %258, %259 : vector<16x1xf32>
    %261 = vector.broadcast %253 : vector<16x1xf32> to vector<16x32xf32>
    %262 = arith.subf %247, %261 : vector<16x32xf32>
    %cst_91 = arith.constant 9.99999974E-6 : f32
    %263 = vector.broadcast %cst_91 : f32 to vector<16x1xf32>
    %264 = arith.addf %260, %263 : vector<16x1xf32>
    %265 = math.rsqrt %264 : vector<16x1xf32>
    %266 = vector.broadcast %265 : vector<16x1xf32> to vector<16x32xf32>
    %267 = arith.mulf %262, %266 : vector<16x32xf32>
    %268 = vector.broadcast %248 : vector<1x32xf32> to vector<16x32xf32>
    %269 = arith.mulf %267, %268 : vector<16x32xf32>
    %270 = vector.broadcast %249 : vector<1x32xf32> to vector<16x32xf32>
    %271 = arith.addf %269, %270 : vector<16x32xf32>
    %c320 = arith.constant 320 : index
    %c0_92 = arith.constant 0 : index
    %272 = vector.load %arg1[%c320, %c0_92] : memref<736x96xf32, #tpu.memory_space<vmem>>, vector<32x96xf32>
    %cst_93 = arith.constant dense<0.000000e+00> : vector<16x96xf32>
    %273 = tpu.matmul %271, %272, %cst_93 {dimension_numbers = #tpu.dot_dimension_numbers<[1], [0], [0], [1], [0, 0, 1, 1], [], []>} : vector<16x32xf32>, vector<32x96xf32>, vector<16x96xf32> -> vector<16x96xf32>
    %c352 = arith.constant 352 : index
    %c0_94 = arith.constant 0 : index
    %274 = vector.load %arg1[%c352, %c0_94] : memref<736x96xf32, #tpu.memory_space<vmem>>, vector<1x96xf32>
    %275 = vector.broadcast %274 : vector<1x96xf32> to vector<16x96xf32>
    %276 = arith.addf %273, %275 : vector<16x96xf32>
    %277 = vector.extract_strided_slice %272 {offsets = [0, 0], sizes = [32, 64], strides = [1, 1]} : vector<32x96xf32> to vector<32x64xf32>
    %cst_95 = arith.constant dense<0.000000e+00> : vector<16x64xf32>
    %278 = tpu.matmul %1, %277, %cst_95 {dimension_numbers = #tpu.dot_dimension_numbers<[1], [0], [0], [1], [0, 0, 1, 1], [], []>} : vector<16x32xf32>, vector<32x64xf32>, vector<16x64xf32> -> vector<16x64xf32>
    %279 = vector.extract_strided_slice %276 {offsets = [0, 0], sizes = [16, 32], strides = [1, 1]} : vector<16x96xf32> to vector<16x32xf32>
    %280 = vector.extract_strided_slice %278 {offsets = [0, 0], sizes = [16, 32], strides = [1, 1]} : vector<16x64xf32> to vector<16x32xf32>
    %281 = arith.addf %279, %280 : vector<16x32xf32>
    %282 = vector.extract_strided_slice %276 {offsets = [0, 32], sizes = [16, 32], strides = [1, 1]} : vector<16x96xf32> to vector<16x32xf32>
    %283 = vector.extract_strided_slice %278 {offsets = [0, 32], sizes = [16, 32], strides = [1, 1]} : vector<16x64xf32> to vector<16x32xf32>
    %284 = arith.addf %282, %283 : vector<16x32xf32>
    %285 = vector.extract_strided_slice %276 {offsets = [0, 64], sizes = [16, 32], strides = [1, 1]} : vector<16x96xf32> to vector<16x32xf32>
    %286 = vector.shape_cast %281 : vector<16x32xf32> to vector<2x8x32xf32>
    %287 = vector.shape_cast %284 : vector<16x32xf32> to vector<2x8x32xf32>
    %288 = vector.shape_cast %285 : vector<16x32xf32> to vector<2x8x32xf32>
    %289 = vector.extract_strided_slice %286 {offsets = [0, 0, 0], sizes = [2, 8, 8], strides = [1, 1, 1]} : vector<2x8x32xf32> to vector<2x8x8xf32>
    %290 = vector.extract_strided_slice %287 {offsets = [0, 0, 0], sizes = [2, 8, 8], strides = [1, 1, 1]} : vector<2x8x32xf32> to vector<2x8x8xf32>
    %291 = vector.extract_strided_slice %288 {offsets = [0, 0, 0], sizes = [2, 8, 8], strides = [1, 1, 1]} : vector<2x8x32xf32> to vector<2x8x8xf32>
    "tpu.trace_start"() <{level = 10 : i32, message = "bqd,bkd->bqk"}> : () -> ()
    %cst_96 = arith.constant dense<0.000000e+00> : vector<2x8x8xf32>
    %292 = tpu.matmul %289, %290, %cst_96 {dimension_numbers = #tpu.dot_dimension_numbers<[2], [2], [1], [1], [0, 0, 0, 1, 1, 1], [0], [0]>} : vector<2x8x8xf32>, vector<2x8x8xf32>, vector<2x8x8xf32> -> vector<2x8x8xf32>
    "tpu.trace_stop"() : () -> ()
    %cst_97 = arith.constant 0.353553385 : f32
    %293 = vector.broadcast %cst_97 : f32 to vector<2x8x8xf32>
    %294 = arith.mulf %292, %293 : vector<2x8x8xf32>
    %cst_98 = arith.constant dense<0xFF800000> : vector<2x8xf32>
    %295 = vector.multi_reduction <maximumf>, %294, %cst_98 [2] : vector<2x8x8xf32> to vector<2x8xf32>
    %296 = vector.shape_cast %295 : vector<2x8xf32> to vector<2x8x1xf32>
    %297 = vector.broadcast %296 : vector<2x8x1xf32> to vector<2x8x8xf32>
    %298 = arith.subf %294, %297 : vector<2x8x8xf32>
    %299 = math.exp %298 : vector<2x8x8xf32>
    %cst_99 = arith.constant dense<0.000000e+00> : vector<2x8xf32>
    %300 = vector.multi_reduction <add>, %299, %cst_99 [2] : vector<2x8x8xf32> to vector<2x8xf32>
    %301 = vector.shape_cast %300 : vector<2x8xf32> to vector<2x8x1xf32>
    %302 = vector.broadcast %301 : vector<2x8x1xf32> to vector<2x8x8xf32>
    %303 = arith.divf %299, %302 : vector<2x8x8xf32>
    "tpu.trace_start"() <{level = 10 : i32, message = "bqk,bkd->bqd"}> : () -> ()
    %cst_100 = arith.constant dense<0.000000e+00> : vector<2x8x8xf32>
    %304 = tpu.matmul %303, %291, %cst_100 {dimension_numbers = #tpu.dot_dimension_numbers<[2], [1], [1], [2], [0, 0, 0, 1, 1, 2], [0], [0]>} : vector<2x8x8xf32>, vector<2x8x8xf32>, vector<2x8x8xf32> -> vector<2x8x8xf32>
    "tpu.trace_stop"() : () -> ()
    %305 = vector.extract_strided_slice %286 {offsets = [0, 0, 8], sizes = [2, 8, 8], strides = [1, 1, 1]} : vector<2x8x32xf32> to vector<2x8x8xf32>
    %306 = vector.extract_strided_slice %287 {offsets = [0, 0, 8], sizes = [2, 8, 8], strides = [1, 1, 1]} : vector<2x8x32xf32> to vector<2x8x8xf32>
    %307 = vector.extract_strided_slice %288 {offsets = [0, 0, 8], sizes = [2, 8, 8], strides = [1, 1, 1]} : vector<2x8x32xf32> to vector<2x8x8xf32>
    "tpu.trace_start"() <{level = 10 : i32, message = "bqd,bkd->bqk"}> : () -> ()
    %cst_101 = arith.constant dense<0.000000e+00> : vector<2x8x8xf32>
    %308 = tpu.matmul %305, %306, %cst_101 {dimension_numbers = #tpu.dot_dimension_numbers<[2], [2], [1], [1], [0, 0, 0, 1, 1, 1], [0], [0]>} : vector<2x8x8xf32>, vector<2x8x8xf32>, vector<2x8x8xf32> -> vector<2x8x8xf32>
    "tpu.trace_stop"() : () -> ()
    %cst_102 = arith.constant 0.353553385 : f32
    %309 = vector.broadcast %cst_102 : f32 to vector<2x8x8xf32>
    %310 = arith.mulf %308, %309 : vector<2x8x8xf32>
    %cst_103 = arith.constant dense<0xFF800000> : vector<2x8xf32>
    %311 = vector.multi_reduction <maximumf>, %310, %cst_103 [2] : vector<2x8x8xf32> to vector<2x8xf32>
    %312 = vector.shape_cast %311 : vector<2x8xf32> to vector<2x8x1xf32>
    %313 = vector.broadcast %312 : vector<2x8x1xf32> to vector<2x8x8xf32>
    %314 = arith.subf %310, %313 : vector<2x8x8xf32>
    %315 = math.exp %314 : vector<2x8x8xf32>
    %cst_104 = arith.constant dense<0.000000e+00> : vector<2x8xf32>
    %316 = vector.multi_reduction <add>, %315, %cst_104 [2] : vector<2x8x8xf32> to vector<2x8xf32>
    %317 = vector.shape_cast %316 : vector<2x8xf32> to vector<2x8x1xf32>
    %318 = vector.broadcast %317 : vector<2x8x1xf32> to vector<2x8x8xf32>
    %319 = arith.divf %315, %318 : vector<2x8x8xf32>
    "tpu.trace_start"() <{level = 10 : i32, message = "bqk,bkd->bqd"}> : () -> ()
    %cst_105 = arith.constant dense<0.000000e+00> : vector<2x8x8xf32>
    %320 = tpu.matmul %319, %307, %cst_105 {dimension_numbers = #tpu.dot_dimension_numbers<[2], [1], [1], [2], [0, 0, 0, 1, 1, 2], [0], [0]>} : vector<2x8x8xf32>, vector<2x8x8xf32>, vector<2x8x8xf32> -> vector<2x8x8xf32>
    "tpu.trace_stop"() : () -> ()
    %321 = vector.extract_strided_slice %286 {offsets = [0, 0, 16], sizes = [2, 8, 8], strides = [1, 1, 1]} : vector<2x8x32xf32> to vector<2x8x8xf32>
    %322 = vector.extract_strided_slice %287 {offsets = [0, 0, 16], sizes = [2, 8, 8], strides = [1, 1, 1]} : vector<2x8x32xf32> to vector<2x8x8xf32>
    %323 = vector.extract_strided_slice %288 {offsets = [0, 0, 16], sizes = [2, 8, 8], strides = [1, 1, 1]} : vector<2x8x32xf32> to vector<2x8x8xf32>
    "tpu.trace_start"() <{level = 10 : i32, message = "bqd,bkd->bqk"}> : () -> ()
    %cst_106 = arith.constant dense<0.000000e+00> : vector<2x8x8xf32>
    %324 = tpu.matmul %321, %322, %cst_106 {dimension_numbers = #tpu.dot_dimension_numbers<[2], [2], [1], [1], [0, 0, 0, 1, 1, 1], [0], [0]>} : vector<2x8x8xf32>, vector<2x8x8xf32>, vector<2x8x8xf32> -> vector<2x8x8xf32>
    "tpu.trace_stop"() : () -> ()
    %cst_107 = arith.constant 0.353553385 : f32
    %325 = vector.broadcast %cst_107 : f32 to vector<2x8x8xf32>
    %326 = arith.mulf %324, %325 : vector<2x8x8xf32>
    %cst_108 = arith.constant dense<0xFF800000> : vector<2x8xf32>
    %327 = vector.multi_reduction <maximumf>, %326, %cst_108 [2] : vector<2x8x8xf32> to vector<2x8xf32>
    %328 = vector.shape_cast %327 : vector<2x8xf32> to vector<2x8x1xf32>
    %329 = vector.broadcast %328 : vector<2x8x1xf32> to vector<2x8x8xf32>
    %330 = arith.subf %326, %329 : vector<2x8x8xf32>
    %331 = math.exp %330 : vector<2x8x8xf32>
    %cst_109 = arith.constant dense<0.000000e+00> : vector<2x8xf32>
    %332 = vector.multi_reduction <add>, %331, %cst_109 [2] : vector<2x8x8xf32> to vector<2x8xf32>
    %333 = vector.shape_cast %332 : vector<2x8xf32> to vector<2x8x1xf32>
    %334 = vector.broadcast %333 : vector<2x8x1xf32> to vector<2x8x8xf32>
    %335 = arith.divf %331, %334 : vector<2x8x8xf32>
    "tpu.trace_start"() <{level = 10 : i32, message = "bqk,bkd->bqd"}> : () -> ()
    %cst_110 = arith.constant dense<0.000000e+00> : vector<2x8x8xf32>
    %336 = tpu.matmul %335, %323, %cst_110 {dimension_numbers = #tpu.dot_dimension_numbers<[2], [1], [1], [2], [0, 0, 0, 1, 1, 2], [0], [0]>} : vector<2x8x8xf32>, vector<2x8x8xf32>, vector<2x8x8xf32> -> vector<2x8x8xf32>
    "tpu.trace_stop"() : () -> ()
    %337 = vector.extract_strided_slice %286 {offsets = [0, 0, 24], sizes = [2, 8, 8], strides = [1, 1, 1]} : vector<2x8x32xf32> to vector<2x8x8xf32>
    %338 = vector.extract_strided_slice %287 {offsets = [0, 0, 24], sizes = [2, 8, 8], strides = [1, 1, 1]} : vector<2x8x32xf32> to vector<2x8x8xf32>
    %339 = vector.extract_strided_slice %288 {offsets = [0, 0, 24], sizes = [2, 8, 8], strides = [1, 1, 1]} : vector<2x8x32xf32> to vector<2x8x8xf32>
    "tpu.trace_start"() <{level = 10 : i32, message = "bqd,bkd->bqk"}> : () -> ()
    %cst_111 = arith.constant dense<0.000000e+00> : vector<2x8x8xf32>
    %340 = tpu.matmul %337, %338, %cst_111 {dimension_numbers = #tpu.dot_dimension_numbers<[2], [2], [1], [1], [0, 0, 0, 1, 1, 1], [0], [0]>} : vector<2x8x8xf32>, vector<2x8x8xf32>, vector<2x8x8xf32> -> vector<2x8x8xf32>
    "tpu.trace_stop"() : () -> ()
    %cst_112 = arith.constant 0.353553385 : f32
    %341 = vector.broadcast %cst_112 : f32 to vector<2x8x8xf32>
    %342 = arith.mulf %340, %341 : vector<2x8x8xf32>
    %cst_113 = arith.constant dense<0xFF800000> : vector<2x8xf32>
    %343 = vector.multi_reduction <maximumf>, %342, %cst_113 [2] : vector<2x8x8xf32> to vector<2x8xf32>
    %344 = vector.shape_cast %343 : vector<2x8xf32> to vector<2x8x1xf32>
    %345 = vector.broadcast %344 : vector<2x8x1xf32> to vector<2x8x8xf32>
    %346 = arith.subf %342, %345 : vector<2x8x8xf32>
    %347 = math.exp %346 : vector<2x8x8xf32>
    %cst_114 = arith.constant dense<0.000000e+00> : vector<2x8xf32>
    %348 = vector.multi_reduction <add>, %347, %cst_114 [2] : vector<2x8x8xf32> to vector<2x8xf32>
    %349 = vector.shape_cast %348 : vector<2x8xf32> to vector<2x8x1xf32>
    %350 = vector.broadcast %349 : vector<2x8x1xf32> to vector<2x8x8xf32>
    %351 = arith.divf %347, %350 : vector<2x8x8xf32>
    "tpu.trace_start"() <{level = 10 : i32, message = "bqk,bkd->bqd"}> : () -> ()
    %cst_115 = arith.constant dense<0.000000e+00> : vector<2x8x8xf32>
    %352 = tpu.matmul %351, %339, %cst_115 {dimension_numbers = #tpu.dot_dimension_numbers<[2], [1], [1], [2], [0, 0, 0, 1, 1, 2], [0], [0]>} : vector<2x8x8xf32>, vector<2x8x8xf32>, vector<2x8x8xf32> -> vector<2x8x8xf32>
    "tpu.trace_stop"() : () -> ()
    %353 = tpu.concatenate %304, %320, %336, %352 in 2 : vector<2x8x8xf32>, vector<2x8x8xf32>, vector<2x8x8xf32>, vector<2x8x8xf32> -> vector<2x8x32xf32>
    %354 = vector.shape_cast %353 : vector<2x8x32xf32> to vector<16x32xf32>
    %c360 = arith.constant 360 : index
    %c0_116 = arith.constant 0 : index
    %355 = vector.load %arg1[%c360, %c0_116] : memref<736x96xf32, #tpu.memory_space<vmem>>, vector<32x32xf32>
    %cst_117 = arith.constant dense<0.000000e+00> : vector<16x32xf32>
    %356 = tpu.matmul %354, %355, %cst_117 {dimension_numbers = #tpu.dot_dimension_numbers<[1], [0], [0], [1], [0, 0, 1, 1], [], []>} : vector<16x32xf32>, vector<32x32xf32>, vector<16x32xf32> -> vector<16x32xf32>
    %c392 = arith.constant 392 : index
    %c0_118 = arith.constant 0 : index
    %357 = vector.load %arg1[%c392, %c0_118] : memref<736x96xf32, #tpu.memory_space<vmem>>, vector<1x32xf32>
    %358 = vector.broadcast %357 : vector<1x32xf32> to vector<16x32xf32>
    %359 = arith.addf %356, %358 : vector<16x32xf32>
    %360 = arith.addf %271, %359 : vector<16x32xf32>
    %c592 = arith.constant 592 : index
    %c0_119 = arith.constant 0 : index
    %361 = vector.load %arg1[%c592, %c0_119] : memref<736x96xf32, #tpu.memory_space<vmem>>, vector<1x32xf32>
    %c600 = arith.constant 600 : index
    %c0_120 = arith.constant 0 : index
    %362 = vector.load %arg1[%c600, %c0_120] : memref<736x96xf32, #tpu.memory_space<vmem>>, vector<1x32xf32>
    %cst_121 = arith.constant dense<0.000000e+00> : vector<16xf32>
    %363 = vector.multi_reduction <add>, %360, %cst_121 [1] : vector<16x32xf32> to vector<16xf32>
    %364 = vector.shape_cast %363 : vector<16xf32> to vector<16x1xf32>
    %cst_122 = arith.constant 3.200000e+01 : f32
    %365 = vector.broadcast %cst_122 : f32 to vector<16x1xf32>
    %366 = arith.divf %364, %365 : vector<16x1xf32>
    %367 = vector.broadcast %366 : vector<16x1xf32> to vector<16x32xf32>
    %368 = arith.subf %360, %367 : vector<16x32xf32>
    %369 = arith.mulf %368, %368 : vector<16x32xf32>
    %cst_123 = arith.constant dense<0.000000e+00> : vector<16xf32>
    %370 = vector.multi_reduction <add>, %369, %cst_123 [1] : vector<16x32xf32> to vector<16xf32>
    %371 = vector.shape_cast %370 : vector<16xf32> to vector<16x1xf32>
    %cst_124 = arith.constant 3.200000e+01 : f32
    %372 = vector.broadcast %cst_124 : f32 to vector<16x1xf32>
    %373 = arith.divf %371, %372 : vector<16x1xf32>
    %374 = vector.broadcast %366 : vector<16x1xf32> to vector<16x32xf32>
    %375 = arith.subf %360, %374 : vector<16x32xf32>
    %cst_125 = arith.constant 9.99999974E-6 : f32
    %376 = vector.broadcast %cst_125 : f32 to vector<16x1xf32>
    %377 = arith.addf %373, %376 : vector<16x1xf32>
    %378 = math.rsqrt %377 : vector<16x1xf32>
    %379 = vector.broadcast %378 : vector<16x1xf32> to vector<16x32xf32>
    %380 = arith.mulf %375, %379 : vector<16x32xf32>
    %381 = vector.broadcast %361 : vector<1x32xf32> to vector<16x32xf32>
    %382 = arith.mulf %380, %381 : vector<16x32xf32>
    %383 = vector.broadcast %362 : vector<1x32xf32> to vector<16x32xf32>
    %384 = arith.addf %382, %383 : vector<16x32xf32>
    %385 = arith.addf %384, %1 : vector<16x32xf32>
    %c400 = arith.constant 400 : index
    %c0_126 = arith.constant 0 : index
    %386 = vector.load %arg1[%c400, %c0_126] : memref<736x96xf32, #tpu.memory_space<vmem>>, vector<32x32xf32>
    %cst_127 = arith.constant dense<0.000000e+00> : vector<16x32xf32>
    %387 = tpu.matmul %385, %386, %cst_127 {dimension_numbers = #tpu.dot_dimension_numbers<[1], [0], [0], [1], [0, 0, 1, 1], [], []>} : vector<16x32xf32>, vector<32x32xf32>, vector<16x32xf32> -> vector<16x32xf32>
    %c432 = arith.constant 432 : index
    %c0_128 = arith.constant 0 : index
    %388 = vector.load %arg1[%c432, %c0_128] : memref<736x96xf32, #tpu.memory_space<vmem>>, vector<1x32xf32>
    %389 = vector.broadcast %388 : vector<1x32xf32> to vector<16x32xf32>
    %390 = arith.addf %387, %389 : vector<16x32xf32>
    %391 = vector.extract_strided_slice %9 {offsets = [0, 32], sizes = [32, 32], strides = [1, 1]} : vector<32x64xf32> to vector<32x32xf32>
    %392 = vector.extract_strided_slice %14 {offsets = [0, 32], sizes = [32, 32], strides = [1, 1]} : vector<32x64xf32> to vector<32x32xf32>
    %393 = vector.shape_cast %390 : vector<16x32xf32> to vector<2x8x32xf32>
    %394 = vector.shape_cast %391 : vector<32x32xf32> to vector<2x16x32xf32>
    %395 = vector.shape_cast %392 : vector<32x32xf32> to vector<2x16x32xf32>
    %396 = vector.extract_strided_slice %393 {offsets = [0, 0, 0], sizes = [2, 8, 8], strides = [1, 1, 1]} : vector<2x8x32xf32> to vector<2x8x8xf32>
    %397 = vector.extract_strided_slice %394 {offsets = [0, 0, 0], sizes = [2, 16, 8], strides = [1, 1, 1]} : vector<2x16x32xf32> to vector<2x16x8xf32>
    %398 = vector.extract_strided_slice %395 {offsets = [0, 0, 0], sizes = [2, 16, 8], strides = [1, 1, 1]} : vector<2x16x32xf32> to vector<2x16x8xf32>
    "tpu.trace_start"() <{level = 10 : i32, message = "bqd,bkd->bqk"}> : () -> ()
    %cst_129 = arith.constant dense<0.000000e+00> : vector<2x8x16xf32>
    %399 = tpu.matmul %396, %397, %cst_129 {dimension_numbers = #tpu.dot_dimension_numbers<[2], [2], [1], [1], [0, 0, 0, 1, 1, 1], [0], [0]>} : vector<2x8x8xf32>, vector<2x16x8xf32>, vector<2x8x16xf32> -> vector<2x8x16xf32>
    "tpu.trace_stop"() : () -> ()
    %cst_130 = arith.constant 0.353553385 : f32
    %400 = vector.broadcast %cst_130 : f32 to vector<2x8x16xf32>
    %401 = arith.mulf %399, %400 : vector<2x8x16xf32>
    %cst_131 = arith.constant dense<0xFF800000> : vector<2x8xf32>
    %402 = vector.multi_reduction <maximumf>, %401, %cst_131 [2] : vector<2x8x16xf32> to vector<2x8xf32>
    %403 = vector.shape_cast %402 : vector<2x8xf32> to vector<2x8x1xf32>
    %404 = vector.broadcast %403 : vector<2x8x1xf32> to vector<2x8x16xf32>
    %405 = arith.subf %401, %404 : vector<2x8x16xf32>
    %406 = math.exp %405 : vector<2x8x16xf32>
    %cst_132 = arith.constant dense<0.000000e+00> : vector<2x8xf32>
    %407 = vector.multi_reduction <add>, %406, %cst_132 [2] : vector<2x8x16xf32> to vector<2x8xf32>
    %408 = vector.shape_cast %407 : vector<2x8xf32> to vector<2x8x1xf32>
    %409 = vector.broadcast %408 : vector<2x8x1xf32> to vector<2x8x16xf32>
    %410 = arith.divf %406, %409 : vector<2x8x16xf32>
    "tpu.trace_start"() <{level = 10 : i32, message = "bqk,bkd->bqd"}> : () -> ()
    %cst_133 = arith.constant dense<0.000000e+00> : vector<2x8x8xf32>
    %411 = tpu.matmul %410, %398, %cst_133 {dimension_numbers = #tpu.dot_dimension_numbers<[2], [1], [1], [2], [0, 0, 0, 1, 1, 2], [0], [0]>} : vector<2x8x16xf32>, vector<2x16x8xf32>, vector<2x8x8xf32> -> vector<2x8x8xf32>
    "tpu.trace_stop"() : () -> ()
    %412 = vector.extract_strided_slice %393 {offsets = [0, 0, 8], sizes = [2, 8, 8], strides = [1, 1, 1]} : vector<2x8x32xf32> to vector<2x8x8xf32>
    %413 = vector.extract_strided_slice %394 {offsets = [0, 0, 8], sizes = [2, 16, 8], strides = [1, 1, 1]} : vector<2x16x32xf32> to vector<2x16x8xf32>
    %414 = vector.extract_strided_slice %395 {offsets = [0, 0, 8], sizes = [2, 16, 8], strides = [1, 1, 1]} : vector<2x16x32xf32> to vector<2x16x8xf32>
    "tpu.trace_start"() <{level = 10 : i32, message = "bqd,bkd->bqk"}> : () -> ()
    %cst_134 = arith.constant dense<0.000000e+00> : vector<2x8x16xf32>
    %415 = tpu.matmul %412, %413, %cst_134 {dimension_numbers = #tpu.dot_dimension_numbers<[2], [2], [1], [1], [0, 0, 0, 1, 1, 1], [0], [0]>} : vector<2x8x8xf32>, vector<2x16x8xf32>, vector<2x8x16xf32> -> vector<2x8x16xf32>
    "tpu.trace_stop"() : () -> ()
    %cst_135 = arith.constant 0.353553385 : f32
    %416 = vector.broadcast %cst_135 : f32 to vector<2x8x16xf32>
    %417 = arith.mulf %415, %416 : vector<2x8x16xf32>
    %cst_136 = arith.constant dense<0xFF800000> : vector<2x8xf32>
    %418 = vector.multi_reduction <maximumf>, %417, %cst_136 [2] : vector<2x8x16xf32> to vector<2x8xf32>
    %419 = vector.shape_cast %418 : vector<2x8xf32> to vector<2x8x1xf32>
    %420 = vector.broadcast %419 : vector<2x8x1xf32> to vector<2x8x16xf32>
    %421 = arith.subf %417, %420 : vector<2x8x16xf32>
    %422 = math.exp %421 : vector<2x8x16xf32>
    %cst_137 = arith.constant dense<0.000000e+00> : vector<2x8xf32>
    %423 = vector.multi_reduction <add>, %422, %cst_137 [2] : vector<2x8x16xf32> to vector<2x8xf32>
    %424 = vector.shape_cast %423 : vector<2x8xf32> to vector<2x8x1xf32>
    %425 = vector.broadcast %424 : vector<2x8x1xf32> to vector<2x8x16xf32>
    %426 = arith.divf %422, %425 : vector<2x8x16xf32>
    "tpu.trace_start"() <{level = 10 : i32, message = "bqk,bkd->bqd"}> : () -> ()
    %cst_138 = arith.constant dense<0.000000e+00> : vector<2x8x8xf32>
    %427 = tpu.matmul %426, %414, %cst_138 {dimension_numbers = #tpu.dot_dimension_numbers<[2], [1], [1], [2], [0, 0, 0, 1, 1, 2], [0], [0]>} : vector<2x8x16xf32>, vector<2x16x8xf32>, vector<2x8x8xf32> -> vector<2x8x8xf32>
    "tpu.trace_stop"() : () -> ()
    %428 = vector.extract_strided_slice %393 {offsets = [0, 0, 16], sizes = [2, 8, 8], strides = [1, 1, 1]} : vector<2x8x32xf32> to vector<2x8x8xf32>
    %429 = vector.extract_strided_slice %394 {offsets = [0, 0, 16], sizes = [2, 16, 8], strides = [1, 1, 1]} : vector<2x16x32xf32> to vector<2x16x8xf32>
    %430 = vector.extract_strided_slice %395 {offsets = [0, 0, 16], sizes = [2, 16, 8], strides = [1, 1, 1]} : vector<2x16x32xf32> to vector<2x16x8xf32>
    "tpu.trace_start"() <{level = 10 : i32, message = "bqd,bkd->bqk"}> : () -> ()
    %cst_139 = arith.constant dense<0.000000e+00> : vector<2x8x16xf32>
    %431 = tpu.matmul %428, %429, %cst_139 {dimension_numbers = #tpu.dot_dimension_numbers<[2], [2], [1], [1], [0, 0, 0, 1, 1, 1], [0], [0]>} : vector<2x8x8xf32>, vector<2x16x8xf32>, vector<2x8x16xf32> -> vector<2x8x16xf32>
    "tpu.trace_stop"() : () -> ()
    %cst_140 = arith.constant 0.353553385 : f32
    %432 = vector.broadcast %cst_140 : f32 to vector<2x8x16xf32>
    %433 = arith.mulf %431, %432 : vector<2x8x16xf32>
    %cst_141 = arith.constant dense<0xFF800000> : vector<2x8xf32>
    %434 = vector.multi_reduction <maximumf>, %433, %cst_141 [2] : vector<2x8x16xf32> to vector<2x8xf32>
    %435 = vector.shape_cast %434 : vector<2x8xf32> to vector<2x8x1xf32>
    %436 = vector.broadcast %435 : vector<2x8x1xf32> to vector<2x8x16xf32>
    %437 = arith.subf %433, %436 : vector<2x8x16xf32>
    %438 = math.exp %437 : vector<2x8x16xf32>
    %cst_142 = arith.constant dense<0.000000e+00> : vector<2x8xf32>
    %439 = vector.multi_reduction <add>, %438, %cst_142 [2] : vector<2x8x16xf32> to vector<2x8xf32>
    %440 = vector.shape_cast %439 : vector<2x8xf32> to vector<2x8x1xf32>
    %441 = vector.broadcast %440 : vector<2x8x1xf32> to vector<2x8x16xf32>
    %442 = arith.divf %438, %441 : vector<2x8x16xf32>
    "tpu.trace_start"() <{level = 10 : i32, message = "bqk,bkd->bqd"}> : () -> ()
    %cst_143 = arith.constant dense<0.000000e+00> : vector<2x8x8xf32>
    %443 = tpu.matmul %442, %430, %cst_143 {dimension_numbers = #tpu.dot_dimension_numbers<[2], [1], [1], [2], [0, 0, 0, 1, 1, 2], [0], [0]>} : vector<2x8x16xf32>, vector<2x16x8xf32>, vector<2x8x8xf32> -> vector<2x8x8xf32>
    "tpu.trace_stop"() : () -> ()
    %444 = vector.extract_strided_slice %393 {offsets = [0, 0, 24], sizes = [2, 8, 8], strides = [1, 1, 1]} : vector<2x8x32xf32> to vector<2x8x8xf32>
    %445 = vector.extract_strided_slice %394 {offsets = [0, 0, 24], sizes = [2, 16, 8], strides = [1, 1, 1]} : vector<2x16x32xf32> to vector<2x16x8xf32>
    %446 = vector.extract_strided_slice %395 {offsets = [0, 0, 24], sizes = [2, 16, 8], strides = [1, 1, 1]} : vector<2x16x32xf32> to vector<2x16x8xf32>
    "tpu.trace_start"() <{level = 10 : i32, message = "bqd,bkd->bqk"}> : () -> ()
    %cst_144 = arith.constant dense<0.000000e+00> : vector<2x8x16xf32>
    %447 = tpu.matmul %444, %445, %cst_144 {dimension_numbers = #tpu.dot_dimension_numbers<[2], [2], [1], [1], [0, 0, 0, 1, 1, 1], [0], [0]>} : vector<2x8x8xf32>, vector<2x16x8xf32>, vector<2x8x16xf32> -> vector<2x8x16xf32>
    "tpu.trace_stop"() : () -> ()
    %cst_145 = arith.constant 0.353553385 : f32
    %448 = vector.broadcast %cst_145 : f32 to vector<2x8x16xf32>
    %449 = arith.mulf %447, %448 : vector<2x8x16xf32>
    %cst_146 = arith.constant dense<0xFF800000> : vector<2x8xf32>
    %450 = vector.multi_reduction <maximumf>, %449, %cst_146 [2] : vector<2x8x16xf32> to vector<2x8xf32>
    %451 = vector.shape_cast %450 : vector<2x8xf32> to vector<2x8x1xf32>
    %452 = vector.broadcast %451 : vector<2x8x1xf32> to vector<2x8x16xf32>
    %453 = arith.subf %449, %452 : vector<2x8x16xf32>
    %454 = math.exp %453 : vector<2x8x16xf32>
    %cst_147 = arith.constant dense<0.000000e+00> : vector<2x8xf32>
    %455 = vector.multi_reduction <add>, %454, %cst_147 [2] : vector<2x8x16xf32> to vector<2x8xf32>
    %456 = vector.shape_cast %455 : vector<2x8xf32> to vector<2x8x1xf32>
    %457 = vector.broadcast %456 : vector<2x8x1xf32> to vector<2x8x16xf32>
    %458 = arith.divf %454, %457 : vector<2x8x16xf32>
    "tpu.trace_start"() <{level = 10 : i32, message = "bqk,bkd->bqd"}> : () -> ()
    %cst_148 = arith.constant dense<0.000000e+00> : vector<2x8x8xf32>
    %459 = tpu.matmul %458, %446, %cst_148 {dimension_numbers = #tpu.dot_dimension_numbers<[2], [1], [1], [2], [0, 0, 0, 1, 1, 2], [0], [0]>} : vector<2x8x16xf32>, vector<2x16x8xf32>, vector<2x8x8xf32> -> vector<2x8x8xf32>
    "tpu.trace_stop"() : () -> ()
    %460 = tpu.concatenate %411, %427, %443, %459 in 2 : vector<2x8x8xf32>, vector<2x8x8xf32>, vector<2x8x8xf32>, vector<2x8x8xf32> -> vector<2x8x32xf32>
    %461 = vector.shape_cast %460 : vector<2x8x32xf32> to vector<16x32xf32>
    %c440 = arith.constant 440 : index
    %c0_149 = arith.constant 0 : index
    %462 = vector.load %arg1[%c440, %c0_149] : memref<736x96xf32, #tpu.memory_space<vmem>>, vector<32x32xf32>
    %cst_150 = arith.constant dense<0.000000e+00> : vector<16x32xf32>
    %463 = tpu.matmul %461, %462, %cst_150 {dimension_numbers = #tpu.dot_dimension_numbers<[1], [0], [0], [1], [0, 0, 1, 1], [], []>} : vector<16x32xf32>, vector<32x32xf32>, vector<16x32xf32> -> vector<16x32xf32>
    %c472 = arith.constant 472 : index
    %c0_151 = arith.constant 0 : index
    %464 = vector.load %arg1[%c472, %c0_151] : memref<736x96xf32, #tpu.memory_space<vmem>>, vector<1x32xf32>
    %465 = vector.broadcast %464 : vector<1x32xf32> to vector<16x32xf32>
    %466 = arith.addf %463, %465 : vector<16x32xf32>
    %467 = arith.addf %384, %466 : vector<16x32xf32>
    %c608 = arith.constant 608 : index
    %c0_152 = arith.constant 0 : index
    %468 = vector.load %arg1[%c608, %c0_152] : memref<736x96xf32, #tpu.memory_space<vmem>>, vector<1x32xf32>
    %c616 = arith.constant 616 : index
    %c0_153 = arith.constant 0 : index
    %469 = vector.load %arg1[%c616, %c0_153] : memref<736x96xf32, #tpu.memory_space<vmem>>, vector<1x32xf32>
    %cst_154 = arith.constant dense<0.000000e+00> : vector<16xf32>
    %470 = vector.multi_reduction <add>, %467, %cst_154 [1] : vector<16x32xf32> to vector<16xf32>
    %471 = vector.shape_cast %470 : vector<16xf32> to vector<16x1xf32>
    %cst_155 = arith.constant 3.200000e+01 : f32
    %472 = vector.broadcast %cst_155 : f32 to vector<16x1xf32>
    %473 = arith.divf %471, %472 : vector<16x1xf32>
    %474 = vector.broadcast %473 : vector<16x1xf32> to vector<16x32xf32>
    %475 = arith.subf %467, %474 : vector<16x32xf32>
    %476 = arith.mulf %475, %475 : vector<16x32xf32>
    %cst_156 = arith.constant dense<0.000000e+00> : vector<16xf32>
    %477 = vector.multi_reduction <add>, %476, %cst_156 [1] : vector<16x32xf32> to vector<16xf32>
    %478 = vector.shape_cast %477 : vector<16xf32> to vector<16x1xf32>
    %cst_157 = arith.constant 3.200000e+01 : f32
    %479 = vector.broadcast %cst_157 : f32 to vector<16x1xf32>
    %480 = arith.divf %478, %479 : vector<16x1xf32>
    %481 = vector.broadcast %473 : vector<16x1xf32> to vector<16x32xf32>
    %482 = arith.subf %467, %481 : vector<16x32xf32>
    %cst_158 = arith.constant 9.99999974E-6 : f32
    %483 = vector.broadcast %cst_158 : f32 to vector<16x1xf32>
    %484 = arith.addf %480, %483 : vector<16x1xf32>
    %485 = math.rsqrt %484 : vector<16x1xf32>
    %486 = vector.broadcast %485 : vector<16x1xf32> to vector<16x32xf32>
    %487 = arith.mulf %482, %486 : vector<16x32xf32>
    %488 = vector.broadcast %468 : vector<1x32xf32> to vector<16x32xf32>
    %489 = arith.mulf %487, %488 : vector<16x32xf32>
    %490 = vector.broadcast %469 : vector<1x32xf32> to vector<16x32xf32>
    %491 = arith.addf %489, %490 : vector<16x32xf32>
    %c480 = arith.constant 480 : index
    %c0_159 = arith.constant 0 : index
    %492 = vector.load %arg1[%c480, %c0_159] : memref<736x96xf32, #tpu.memory_space<vmem>>, vector<32x64xf32>
    %cst_160 = arith.constant dense<0.000000e+00> : vector<16x64xf32>
    %493 = tpu.matmul %491, %492, %cst_160 {dimension_numbers = #tpu.dot_dimension_numbers<[1], [0], [0], [1], [0, 0, 1, 1], [], []>} : vector<16x32xf32>, vector<32x64xf32>, vector<16x64xf32> -> vector<16x64xf32>
    %c512 = arith.constant 512 : index
    %c0_161 = arith.constant 0 : index
    %494 = vector.load %arg1[%c512, %c0_161] : memref<736x96xf32, #tpu.memory_space<vmem>>, vector<1x64xf32>
    %495 = vector.broadcast %494 : vector<1x64xf32> to vector<16x64xf32>
    %496 = arith.addf %493, %495 : vector<16x64xf32>
    %cst_162 = arith.constant 0.000000e+00 : f32
    %497 = vector.broadcast %cst_162 : f32 to vector<16x64xf32>
    %498 = arith.maximumf %496, %497 : vector<16x64xf32>
    %c520 = arith.constant 520 : index
    %c0_163 = arith.constant 0 : index
    %499 = vector.load %arg1[%c520, %c0_163] : memref<736x96xf32, #tpu.memory_space<vmem>>, vector<64x32xf32>
    %cst_164 = arith.constant dense<0.000000e+00> : vector<16x32xf32>
    %500 = tpu.matmul %498, %499, %cst_164 {dimension_numbers = #tpu.dot_dimension_numbers<[1], [0], [0], [1], [0, 0, 1, 1], [], []>} : vector<16x64xf32>, vector<64x32xf32>, vector<16x32xf32> -> vector<16x32xf32>
    %501 = arith.addf %491, %500 : vector<16x32xf32>
    %c584 = arith.constant 584 : index
    %c0_165 = arith.constant 0 : index
    %502 = vector.load %arg1[%c584, %c0_165] : memref<736x96xf32, #tpu.memory_space<vmem>>, vector<1x32xf32>
    %503 = vector.broadcast %502 : vector<1x32xf32> to vector<16x32xf32>
    %504 = arith.addf %501, %503 : vector<16x32xf32>
    %c624 = arith.constant 624 : index
    %c0_166 = arith.constant 0 : index
    %505 = vector.load %arg1[%c624, %c0_166] : memref<736x96xf32, #tpu.memory_space<vmem>>, vector<1x32xf32>
    %c632 = arith.constant 632 : index
    %c0_167 = arith.constant 0 : index
    %506 = vector.load %arg1[%c632, %c0_167] : memref<736x96xf32, #tpu.memory_space<vmem>>, vector<1x32xf32>
    %cst_168 = arith.constant dense<0.000000e+00> : vector<16xf32>
    %507 = vector.multi_reduction <add>, %504, %cst_168 [1] : vector<16x32xf32> to vector<16xf32>
    %508 = vector.shape_cast %507 : vector<16xf32> to vector<16x1xf32>
    %cst_169 = arith.constant 3.200000e+01 : f32
    %509 = vector.broadcast %cst_169 : f32 to vector<16x1xf32>
    %510 = arith.divf %508, %509 : vector<16x1xf32>
    %511 = vector.broadcast %510 : vector<16x1xf32> to vector<16x32xf32>
    %512 = arith.subf %504, %511 : vector<16x32xf32>
    %513 = arith.mulf %512, %512 : vector<16x32xf32>
    %cst_170 = arith.constant dense<0.000000e+00> : vector<16xf32>
    %514 = vector.multi_reduction <add>, %513, %cst_170 [1] : vector<16x32xf32> to vector<16xf32>
    %515 = vector.shape_cast %514 : vector<16xf32> to vector<16x1xf32>
    %cst_171 = arith.constant 3.200000e+01 : f32
    %516 = vector.broadcast %cst_171 : f32 to vector<16x1xf32>
    %517 = arith.divf %515, %516 : vector<16x1xf32>
    %518 = vector.broadcast %510 : vector<16x1xf32> to vector<16x32xf32>
    %519 = arith.subf %504, %518 : vector<16x32xf32>
    %cst_172 = arith.constant 9.99999974E-6 : f32
    %520 = vector.broadcast %cst_172 : f32 to vector<16x1xf32>
    %521 = arith.addf %517, %520 : vector<16x1xf32>
    %522 = math.rsqrt %521 : vector<16x1xf32>
    %523 = vector.broadcast %522 : vector<16x1xf32> to vector<16x32xf32>
    %524 = arith.mulf %519, %523 : vector<16x32xf32>
    %525 = vector.broadcast %505 : vector<1x32xf32> to vector<16x32xf32>
    %526 = arith.mulf %524, %525 : vector<16x32xf32>
    %527 = vector.broadcast %506 : vector<1x32xf32> to vector<16x32xf32>
    %528 = arith.addf %526, %527 : vector<16x32xf32>
    %c720 = arith.constant 720 : index
    %c0_173 = arith.constant 0 : index
    %529 = vector.load %arg1[%c720, %c0_173] : memref<736x96xf32, #tpu.memory_space<vmem>>, vector<1x32xf32>
    %c728 = arith.constant 728 : index
    %c0_174 = arith.constant 0 : index
    %530 = vector.load %arg1[%c728, %c0_174] : memref<736x96xf32, #tpu.memory_space<vmem>>, vector<1x32xf32>
    %cst_175 = arith.constant dense<0.000000e+00> : vector<16xf32>
    %531 = vector.multi_reduction <add>, %528, %cst_175 [1] : vector<16x32xf32> to vector<16xf32>
    %532 = vector.shape_cast %531 : vector<16xf32> to vector<16x1xf32>
    %cst_176 = arith.constant 3.200000e+01 : f32
    %533 = vector.broadcast %cst_176 : f32 to vector<16x1xf32>
    %534 = arith.divf %532, %533 : vector<16x1xf32>
    %535 = vector.broadcast %534 : vector<16x1xf32> to vector<16x32xf32>
    %536 = arith.subf %528, %535 : vector<16x32xf32>
    %537 = arith.mulf %536, %536 : vector<16x32xf32>
    %cst_177 = arith.constant dense<0.000000e+00> : vector<16xf32>
    %538 = vector.multi_reduction <add>, %537, %cst_177 [1] : vector<16x32xf32> to vector<16xf32>
    %539 = vector.shape_cast %538 : vector<16xf32> to vector<16x1xf32>
    %cst_178 = arith.constant 3.200000e+01 : f32
    %540 = vector.broadcast %cst_178 : f32 to vector<16x1xf32>
    %541 = arith.divf %539, %540 : vector<16x1xf32>
    %542 = vector.broadcast %534 : vector<16x1xf32> to vector<16x32xf32>
    %543 = arith.subf %528, %542 : vector<16x32xf32>
    %cst_179 = arith.constant 9.99999974E-6 : f32
    %544 = vector.broadcast %cst_179 : f32 to vector<16x1xf32>
    %545 = arith.addf %541, %544 : vector<16x1xf32>
    %546 = math.rsqrt %545 : vector<16x1xf32>
    %547 = vector.broadcast %546 : vector<16x1xf32> to vector<16x32xf32>
    %548 = arith.mulf %543, %547 : vector<16x32xf32>
    %549 = vector.broadcast %529 : vector<1x32xf32> to vector<16x32xf32>
    %550 = arith.mulf %548, %549 : vector<16x32xf32>
    %551 = vector.broadcast %530 : vector<1x32xf32> to vector<16x32xf32>
    %552 = arith.addf %550, %551 : vector<16x32xf32>
    %553 = tpu.concatenate %552, %528 in 1 : vector<16x32xf32>, vector<16x32xf32> -> vector<16x64xf32>
    %c0_180 = arith.constant 0 : index
    %c0_181 = arith.constant 0 : index
    %554 = vector.load %arg2[%c0_180, %c0_181] : memref<16x64xf32, #tpu.memory_space<vmem>>, vector<16x64xf32>
    tpu.vector_store %arg2[%c0_180, %c0_181], %553 {strides = array<i32>} : memref<16x64xf32, #tpu.memory_space<vmem>>, vector<16x64xf32>,
    return
  }
}

</mosaic_0001>

<llo_original>
// kernel: _lambda_.1
$region0: #{_lambda_.1}
  #allocation0 [shape = 'u32[]', space=smem, size = 0x4, offset = 0x4, fixed_abs, tag = 'smem constant byte address 0x4 - core index']
  #allocation1 [shape = 'u32[144,128]{1,0:T(1,128)}', space=vmem, size = 0x12000, scoped, tag = 'internal scratch']
  %s0 = inlined_call_operand.vmem [shape: f32[96,32], index: 0, kind: input, shape index: {}]
  %s1 = inlined_call_operand.vmem [shape: f32[736,96], index: 1, kind: input, shape index: {}]
  %s2 = inlined_call_operand.vmem [shape: f32[16,64], index: 2, kind: output, shape index: {}]
  %s3 = sld [smem:[#allocation0]]
  $region18: #{_lambda_.1} parent=0
    _
  %s5 = ssub.s32 1, %s3
  %s6 = scalar_select 0, %s5, %s3
  // Predicated region
  $region2: #{_lambda_.1} parent=0 // pred_check
    _
  $region3: #{_lambda_.1} parent=0 // pred_check_branch
    %8 = sbr.rel (0) target = $region5
  $region4: #{_lambda_.1} parent=0 // pred_region
    _
  $region5: #{_lambda_.1} parent=0 // pred_fallthru
    _
  // Predicated region
  $region6: #{_lambda_.1} parent=0 // pred_check
    _
  $region7: #{_lambda_.1} parent=0 // pred_check_branch
    %10 = sbr.rel (0) target = $region9
  $region8: #{_lambda_.1} parent=0 // pred_region
    _
  $region9: #{_lambda_.1} parent=0 // pred_fallthru
    _
  %v11 = vld [vmem:[%s0] sm:$0xff]
  %v12 = vld [vmem:[%s0 + $0x8] sm:$0xff]
  %v13 = vld [vmem:[%s0 + $0x10] sm:$0xff]
  %v14 = vld [vmem:[%s0 + $0x18] sm:$0xff]
  %v15 = vld [vmem:[%s0 + $0x20] sm:$0xff]
  %v16 = vld [vmem:[%s0 + $0x28] sm:$0xff]
  %v17 = vld [vmem:[%s0 + $0x30] sm:$0xff]
  %v18 = vld [vmem:[%s0 + $0x38] sm:$0xff]
  %v19 = vld [vmem:[%s0 + $0x40] sm:$0xff]
  %v20 = vld [vmem:[%s0 + $0x48] sm:$0xff]
  %v21 = vld [vmem:[%s0 + $0x50] sm:$0xff]
  %v22 = vld [vmem:[%s0 + $0x58] sm:$0xff]
  %v23 = vadd.f32 %v15, %v19
  %v24 = vadd.f32 %v16, %v20
  %v25 = vadd.f32 %v17, %v21
  %v26 = vadd.f32 %v18, %v22
  %v27 = vld [vmem:[%s1 + $0x280] sm:$0xff]
  %v28 = vld [vmem:[%s1 + $0x288] sm:$0xff]
  %v29 = vld [vmem:[%s1 + $0x290] sm:$0xff]
  %v30 = vld [vmem:[%s1 + $0x298] sm:$0xff]
  %v31 = vld [vmem:[%s1 + $0x2a0] sm:$0x1]
  %v32 = vlaneseq
  %v33 = vshrl.u32 %v32, 7
  %v34 = vsub.s32 0, %v33
  %v35 = vrot.slane %v31, %v34
  %vm36 = vcmask 261120
  %v38 = vsel %vm36, %v23, 0
  %v41 = vsel %vm36, %v24, 0
  %v44 = vsel %vm36, %v25, 0
  %v47 = vsel %vm36, %v26, 0
  %49 = vmatprep.subr.mxu0 0.0
  %50 = vmatpush1.msra.mxu0 0.0
  %51 = vmatprep.subr.mxu0 0.0
  %52 = vmatpush1.msra.mxu0 0.0
  %53 = vmatprep.subr.mxu0 0.0
  %54 = vmatpush1.msra.mxu0 0.0
  %55 = vmatprep.subr.mxu0 0.0
  %56 = vmatpush1.msra.mxu0 0.0
  %57 = vmatprep.subr.mxu0 0.0
  %58 = vmatpush1.msra.mxu0 0.0
  %59 = vmatprep.subr.mxu0 0.0
  %60 = vmatpush1.msra.mxu0 0.0
  %61 = vmatprep.subr.mxu0 0.0
  %62 = vmatpush1.msra.mxu0 0.0
  %63 = vmatprep.subr.mxu0 0.0
  %64 = vmatpush1.msra.mxu0 0.0
  %65 = vmatprep.subr.mxu0 0.0
  %66 = vmatpush1.msra.mxu0 0.0
  %67 = vmatprep.subr.mxu0 0.0
  %68 = vmatpush1.msra.mxu0 0.0
  %69 = vmatprep.subr.mxu0 0.0
  %70 = vmatpush1.msra.mxu0 0.0
  %71 = vmatprep.subr.mxu0 0.0
  %72 = vmatpush1.msra.mxu0 0.0
  %73 = vmatprep.subr.mxu0 0.0
  %74 = vmatpush1.msra.mxu0 %v30
  %75 = vmatprep.subr.mxu0 0.0
  %76 = vmatpush1.msra.mxu0 %v29
  %77 = vmatprep.subr.mxu0 0.0
  %78 = vmatpush1.msra.mxu0 %v28
  %79 = vmatprep.subr.mxu0 0.0
  %80 = vmatpush1.msra.mxu0 %v27
  %81 = vmatprep.subr.mxu0 0.0
  %82 = vmatpush2.msra.mxu0 0.0
  %83 = vmatprep.subr.mxu0 0.0
  %84 = vmatpush2.msra.mxu0 0.0
  %85 = vmatprep.subr.mxu0 0.0
  %86 = vmatpush2.msra.mxu0 0.0
  %87 = vmatprep.subr.mxu0 0.0
  %88 = vmatpush2.msra.mxu0 0.0
  %89 = vmatprep.subr.mxu0 0.0
  %90 = vmatpush2.msra.mxu0 0.0
  %91 = vmatprep.subr.mxu0 0.0
  %92 = vmatpush2.msra.mxu0 0.0
  %93 = vmatprep.subr.mxu0 0.0
  %94 = vmatpush2.msra.mxu0 0.0
  %95 = vmatprep.subr.mxu0 0.0
  %96 = vmatpush2.msra.mxu0 0.0
  %97 = vmatprep.subr.mxu0 0.0
  %98 = vmatpush2.msra.mxu0 0.0
  %99 = vmatprep.subr.mxu0 0.0
  %100 = vmatpush2.msra.mxu0 0.0
  %101 = vmatprep.subr.mxu0 0.0
  %102 = vmatpush2.msra.mxu0 0.0
  %103 = vmatprep.subr.mxu0 0.0
  %104 = vmatpush2.msra.mxu0 0.0
  %105 = vmatprep.subr.mxu0 0.0
  %106 = vmatpush2.msra.mxu0 0.0
  %107 = vmatprep.subr.mxu0 0.0
  %108 = vmatpush2.msra.mxu0 0.0
  %109 = vmatprep.subr.mxu0 0.0
  %110 = vmatpush2.msra.mxu0 0.0
  %111 = vmatprep.subr.mxu0 0.0
  %112 = vmatpush2.msra.mxu0 0.0
  %113 = vmatprep.mubr.f32.mxu0 0.0
  %114 = vmatmul.mubr.f32.gmra.mxu0 %v38
  %v115 = vpop.f32.mrf.mxu0
  %v116 = vadd.f32 %v35, %v115
  %v117 = vpop.f32.mrf.mxu0
  %118 = vmatprep.mubr.f32.mxu0 0.0
  %119 = vmatmul.mubr.f32.gmra.mxu0 %v41
  %v120 = vpop.f32.mrf.mxu0
  %v121 = vadd.f32 %v35, %v120
  %v122 = vpop.f32.mrf.mxu0
  %123 = vmatprep.mubr.f32.mxu0 0.0
  %124 = vmatmul.mubr.f32.gmra.mxu0 %v44
  %v125 = vpop.f32.mrf.mxu0
  %v126 = vadd.f32 %v35, %v125
  %v127 = vpop.f32.mrf.mxu0
  %128 = vmatprep.mubr.f32.mxu0 0.0
  %129 = vmatmul.mubr.f32.gmra.mxu0 %v47
  %v130 = vpop.f32.mrf.mxu0
  %v131 = vadd.f32 %v35, %v130
  %v132 = vpop.f32.mrf.mxu0
  %133 = vdwg.mxu0
  %v134 = vld [vmem:[%s1 + $0x2a8] sm:$0xff]
  %v135 = vld [vmem:[%s1 + $0x2b0] sm:$0xff]
  %v136 = vld [vmem:[%s1 + $0x2b8] sm:$0xff]
  %v137 = vld [vmem:[%s1 + $0x2c0] sm:$0xff]
  %v138 = vld [vmem:[%s1 + $0x2c8] sm:$0x1]
  %v139 = vlaneseq
  %v140 = vshrl.u32 %v139, 7
  %v141 = vsub.s32 0, %v140
  %v142 = vrot.slane %v138, %v141
  %v144 = vsel %vm36, %v15, 0
  %v147 = vsel %vm36, %v16, 0
  %v150 = vsel %vm36, %v17, 0
  %v153 = vsel %vm36, %v18, 0
  %155 = vmatprep.subr.mxu0 0.0
  %156 = vmatpush1.msra.mxu0 0.0
  %157 = vmatprep.subr.mxu0 0.0
  %158 = vmatpush1.msra.mxu0 0.0
  %159 = vmatprep.subr.mxu0 0.0
  %160 = vmatpush1.msra.mxu0 0.0
  %161 = vmatprep.subr.mxu0 0.0
  %162 = vmatpush1.msra.mxu0 0.0
  %163 = vmatprep.subr.mxu0 0.0
  %164 = vmatpush1.msra.mxu0 0.0
  %165 = vmatprep.subr.mxu0 0.0
  %166 = vmatpush1.msra.mxu0 0.0
  %167 = vmatprep.subr.mxu0 0.0
  %168 = vmatpush1.msra.mxu0 0.0
  %169 = vmatprep.subr.mxu0 0.0
  %170 = vmatpush1.msra.mxu0 0.0
  %171 = vmatprep.subr.mxu0 0.0
  %172 = vmatpush1.msra.mxu0 0.0
  %173 = vmatprep.subr.mxu0 0.0
  %174 = vmatpush1.msra.mxu0 0.0
  %175 = vmatprep.subr.mxu0 0.0
  %176 = vmatpush1.msra.mxu0 0.0
  %177 = vmatprep.subr.mxu0 0.0
  %178 = vmatpush1.msra.mxu0 0.0
  %179 = vmatprep.subr.mxu0 0.0
  %180 = vmatpush1.msra.mxu0 %v137
  %181 = vmatprep.subr.mxu0 0.0
  %182 = vmatpush1.msra.mxu0 %v136
  %183 = vmatprep.subr.mxu0 0.0
  %184 = vmatpush1.msra.mxu0 %v135
  %185 = vmatprep.subr.mxu0 0.0
  %186 = vmatpush1.msra.mxu0 %v134
  %187 = vmatprep.subr.mxu0 0.0
  %188 = vmatpush2.msra.mxu0 0.0
  %189 = vmatprep.subr.mxu0 0.0
  %190 = vmatpush2.msra.mxu0 0.0
  %191 = vmatprep.subr.mxu0 0.0
  %192 = vmatpush2.msra.mxu0 0.0
  %193 = vmatprep.subr.mxu0 0.0
  %194 = vmatpush2.msra.mxu0 0.0
  %195 = vmatprep.subr.mxu0 0.0
  %196 = vmatpush2.msra.mxu0 0.0
  %197 = vmatprep.subr.mxu0 0.0
  %198 = vmatpush2.msra.mxu0 0.0
  %199 = vmatprep.subr.mxu0 0.0
  %200 = vmatpush2.msra.mxu0 0.0
  %201 = vmatprep.subr.mxu0 0.0
  %202 = vmatpush2.msra.mxu0 0.0
  %203 = vmatprep.subr.mxu0 0.0
  %204 = vmatpush2.msra.mxu0 0.0
  %205 = vmatprep.subr.mxu0 0.0
  %206 = vmatpush2.msra.mxu0 0.0
  %207 = vmatprep.subr.mxu0 0.0
  %208 = vmatpush2.msra.mxu0 0.0
  %209 = vmatprep.subr.mxu0 0.0
  %210 = vmatpush2.msra.mxu0 0.0
  %211 = vmatprep.subr.mxu0 0.0
  %212 = vmatpush2.msra.mxu0 0.0
  %213 = vmatprep.subr.mxu0 0.0
  %214 = vmatpush2.msra.mxu0 0.0
  %215 = vmatprep.subr.mxu0 0.0
  %216 = vmatpush2.msra.mxu0 0.0
  %217 = vmatprep.subr.mxu0 0.0
  %218 = vmatpush2.msra.mxu0 0.0
  %219 = vmatprep.mubr.f32.mxu0 0.0
  %220 = vmatmul.mubr.f32.gmra.mxu0 %v144
  %v221 = vpop.f32.mrf.mxu0
  %v222 = vadd.f32 %v142, %v221
  %v223 = vpop.f32.mrf.mxu0
  %224 = vmatprep.mubr.f32.mxu0 0.0
  %225 = vmatmul.mubr.f32.gmra.mxu0 %v147
  %v226 = vpop.f32.mrf.mxu0
  %v227 = vadd.f32 %v142, %v226
  %v228 = vpop.f32.mrf.mxu0
  %229 = vmatprep.mubr.f32.mxu0 0.0
  %230 = vmatmul.mubr.f32.gmra.mxu0 %v150
  %v231 = vpop.f32.mrf.mxu0
  %v232 = vadd.f32 %v142, %v231
  %v233 = vpop.f32.mrf.mxu0
  %234 = vmatprep.mubr.f32.mxu0 0.0
  %235 = vmatmul.mubr.f32.gmra.mxu0 %v153
  %v236 = vpop.f32.mrf.mxu0
  %v237 = vadd.f32 %v142, %v236
  %v238 = vpop.f32.mrf.mxu0
  %239 = vdwg.mxu0
  %v240 = vld [vmem:[%s1] sm:$0xff]
  %v241 = vld [vmem:[%s1 + $0x8] sm:$0xff]
  %v242 = vld [vmem:[%s1 + $0x10] sm:$0xff]
  %v243 = vld [vmem:[%s1 + $0x18] sm:$0xff]
  %v244 = vld [vmem:[%s1 + $0x20] sm:$0x1]
  %v245 = vlaneseq
  %v246 = vshrl.u32 %v245, 7
  %v247 = vsub.s32 0, %v246
  %v248 = vrot.slane %v244, %v247
  %v250 = vsel %vm36, %v11, 0
  %v253 = vsel %vm36, %v12, 0
  %255 = vmatprep.subr.mxu0 0.0
  %256 = vmatpush1.msra.mxu0 0.0
  %257 = vmatprep.subr.mxu0 0.0
  %258 = vmatpush1.msra.mxu0 0.0
  %259 = vmatprep.subr.mxu0 0.0
  %260 = vmatpush1.msra.mxu0 0.0
  %261 = vmatprep.subr.mxu0 0.0
  %262 = vmatpush1.msra.mxu0 0.0
  %263 = vmatprep.subr.mxu0 0.0
  %264 = vmatpush1.msra.mxu0 0.0
  %265 = vmatprep.subr.mxu0 0.0
  %266 = vmatpush1.msra.mxu0 0.0
  %267 = vmatprep.subr.mxu0 0.0
  %268 = vmatpush1.msra.mxu0 0.0
  %269 = vmatprep.subr.mxu0 0.0
  %270 = vmatpush1.msra.mxu0 0.0
  %271 = vmatprep.subr.mxu0 0.0
  %272 = vmatpush1.msra.mxu0 0.0
  %273 = vmatprep.subr.mxu0 0.0
  %274 = vmatpush1.msra.mxu0 0.0
  %275 = vmatprep.subr.mxu0 0.0
  %276 = vmatpush1.msra.mxu0 0.0
  %277 = vmatprep.subr.mxu0 0.0
  %278 = vmatpush1.msra.mxu0 0.0
  %279 = vmatprep.subr.mxu0 0.0
  %280 = vmatpush1.msra.mxu0 %v243
  %281 = vmatprep.subr.mxu0 0.0
  %282 = vmatpush1.msra.mxu0 %v242
  %283 = vmatprep.subr.mxu0 0.0
  %284 = vmatpush1.msra.mxu0 %v241
  %285 = vmatprep.subr.mxu0 0.0
  %286 = vmatpush1.msra.mxu0 %v240
  %287 = vmatprep.subr.mxu0 0.0
  %288 = vmatpush2.msra.mxu0 0.0
  %289 = vmatprep.subr.mxu0 0.0
  %290 = vmatpush2.msra.mxu0 0.0
  %291 = vmatprep.subr.mxu0 0.0
  %292 = vmatpush2.msra.mxu0 0.0
  %293 = vmatprep.subr.mxu0 0.0
  %294 = vmatpush2.msra.mxu0 0.0
  %295 = vmatprep.subr.mxu0 0.0
  %296 = vmatpush2.msra.mxu0 0.0
  %297 = vmatprep.subr.mxu0 0.0
  %298 = vmatpush2.msra.mxu0 0.0
  %299 = vmatprep.subr.mxu0 0.0
  %300 = vmatpush2.msra.mxu0 0.0
  %301 = vmatprep.subr.mxu0 0.0
  %302 = vmatpush2.msra.mxu0 0.0
  %303 = vmatprep.subr.mxu0 0.0
  %304 = vmatpush2.msra.mxu0 0.0
  %305 = vmatprep.subr.mxu0 0.0
  %306 = vmatpush2.msra.mxu0 0.0
  %307 = vmatprep.subr.mxu0 0.0
  %308 = vmatpush2.msra.mxu0 0.0
  %309 = vmatprep.subr.mxu0 0.0
  %310 = vmatpush2.msra.mxu0 0.0
  %311 = vmatprep.subr.mxu0 0.0
  %312 = vmatpush2.msra.mxu0 0.0
  %313 = vmatprep.subr.mxu0 0.0
  %314 = vmatpush2.msra.mxu0 0.0
  %315 = vmatprep.subr.mxu0 0.0
  %316 = vmatpush2.msra.mxu0 0.0
  %317 = vmatprep.subr.mxu0 0.0
  %318 = vmatpush2.msra.mxu0 0.0
  %319 = vmatprep.mubr.f32.mxu0 0.0
  %320 = vmatmul.mubr.f32.gmra.mxu0 %v250
  %v321 = vpop.f32.mrf.mxu0
  %v322 = vadd.f32 %v248, %v321
  %v323 = vpop.f32.mrf.mxu0
  %324 = vmatprep.mubr.f32.mxu0 0.0
  %325 = vmatmul.mubr.f32.gmra.mxu0 %v253
  %v326 = vpop.f32.mrf.mxu0
  %v327 = vadd.f32 %v248, %v326
  %v328 = vpop.f32.mrf.mxu0
  %329 = vdwg.mxu0
  %v331 = vsel %vm36, %v13, 0
  %v334 = vsel %vm36, %v14, 0
  %336 = vmatprep.subr.mxu0 0.0
  %337 = vmatpush1.msra.mxu0 0.0
  %338 = vmatprep.subr.mxu0 0.0
  %339 = vmatpush1.msra.mxu0 0.0
  %340 = vmatprep.subr.mxu0 0.0
  %341 = vmatpush1.msra.mxu0 0.0
  %342 = vmatprep.subr.mxu0 0.0
  %343 = vmatpush1.msra.mxu0 0.0
  %344 = vmatprep.subr.mxu0 0.0
  %345 = vmatpush1.msra.mxu0 0.0
  %346 = vmatprep.subr.mxu0 0.0
  %347 = vmatpush1.msra.mxu0 0.0
  %348 = vmatprep.subr.mxu0 0.0
  %349 = vmatpush1.msra.mxu0 0.0
  %350 = vmatprep.subr.mxu0 0.0
  %351 = vmatpush1.msra.mxu0 0.0
  %352 = vmatprep.subr.mxu0 0.0
  %353 = vmatpush1.msra.mxu0 0.0
  %354 = vmatprep.subr.mxu0 0.0
  %355 = vmatpush1.msra.mxu0 0.0
  %356 = vmatprep.subr.mxu0 0.0
  %357 = vmatpush1.msra.mxu0 0.0
  %358 = vmatprep.subr.mxu0 0.0
  %359 = vmatpush1.msra.mxu0 0.0
  %360 = vmatprep.subr.mxu0 0.0
  %361 = vmatpush1.msra.mxu0 %v243
  %362 = vmatprep.subr.mxu0 0.0
  %363 = vmatpush1.msra.mxu0 %v242
  %364 = vmatprep.subr.mxu0 0.0
  %365 = vmatpush1.msra.mxu0 %v241
  %366 = vmatprep.subr.mxu0 0.0
  %367 = vmatpush1.msra.mxu0 %v240
  %368 = vmatprep.subr.mxu0 0.0
  %369 = vmatpush2.msra.mxu0 0.0
  %370 = vmatprep.subr.mxu0 0.0
  %371 = vmatpush2.msra.mxu0 0.0
  %372 = vmatprep.subr.mxu0 0.0
  %373 = vmatpush2.msra.mxu0 0.0
  %374 = vmatprep.subr.mxu0 0.0
  %375 = vmatpush2.msra.mxu0 0.0
  %376 = vmatprep.subr.mxu0 0.0
  %377 = vmatpush2.msra.mxu0 0.0
  %378 = vmatprep.subr.mxu0 0.0
  %379 = vmatpush2.msra.mxu0 0.0
  %380 = vmatprep.subr.mxu0 0.0
  %381 = vmatpush2.msra.mxu0 0.0
  %382 = vmatprep.subr.mxu0 0.0
  %383 = vmatpush2.msra.mxu0 0.0
  %384 = vmatprep.subr.mxu0 0.0
  %385 = vmatpush2.msra.mxu0 0.0
  %386 = vmatprep.subr.mxu0 0.0
  %387 = vmatpush2.msra.mxu0 0.0
  %388 = vmatprep.subr.mxu0 0.0
  %389 = vmatpush2.msra.mxu0 0.0
  %390 = vmatprep.subr.mxu0 0.0
  %391 = vmatpush2.msra.mxu0 0.0
  %392 = vmatprep.subr.mxu0 0.0
  %393 = vmatpush2.msra.mxu0 0.0
  %394 = vmatprep.subr.mxu0 0.0
  %395 = vmatpush2.msra.mxu0 0.0
  %396 = vmatprep.subr.mxu0 0.0
  %397 = vmatpush2.msra.mxu0 0.0
  %398 = vmatprep.subr.mxu0 0.0
  %399 = vmatpush2.msra.mxu0 0.0
  %400 = vmatprep.mubr.f32.mxu0 0.0
  %401 = vmatmul.mubr.f32.gmra.mxu0 %v331
  %v402 = vpop.f32.mrf.mxu0
  %v403 = vadd.f32 0.0, %v402
  %v404 = vpop.f32.mrf.mxu0
  %405 = vmatprep.mubr.f32.mxu0 0.0
  %406 = vmatmul.mubr.f32.gmra.mxu0 %v334
  %v407 = vpop.f32.mrf.mxu0
  %v408 = vadd.f32 0.0, %v407
  %v409 = vpop.f32.mrf.mxu0
  %410 = vdwg.mxu0
  %v411 = vadd.f32 %v322, %v403
  %v412 = vadd.f32 %v327, %v408
  %414 = vrot.lane.b32.xlu0 %v411, 96
  %v415 = vpop.permute.xlu0 %414
  %vm416 = vcmask 64512
  %v417 = vsel %vm416, %v411, 0
  %v419 = vsel %vm416, %v415, 0
  %421 = vmatprep.subr.mxu0 0.0
  %422 = vmatpush1.xpose.msra.mxu0 0.0
  %423 = vmatprep.subr.mxu0 0.0
  %424 = vmatpush1.xpose.msra.mxu0 0.0
  %425 = vmatprep.subr.mxu0 0.0
  %426 = vmatpush1.xpose.msra.mxu0 0.0
  %427 = vmatprep.subr.mxu0 0.0
  %428 = vmatpush1.xpose.msra.mxu0 0.0
  %429 = vmatprep.subr.mxu0 0.0
  %430 = vmatpush1.xpose.msra.mxu0 0.0
  %431 = vmatprep.subr.mxu0 0.0
  %432 = vmatpush1.xpose.msra.mxu0 0.0
  %433 = vmatprep.subr.mxu0 0.0
  %434 = vmatpush1.xpose.msra.mxu0 0.0
  %435 = vmatprep.subr.mxu0 0.0
  %436 = vmatpush1.xpose.msra.mxu0 0.0
  %437 = vmatprep.subr.mxu0 0.0
  %438 = vmatpush1.xpose.msra.mxu0 0.0
  %439 = vmatprep.subr.mxu0 0.0
  %440 = vmatpush1.xpose.msra.mxu0 0.0
  %441 = vmatprep.subr.mxu0 0.0
  %442 = vmatpush1.xpose.msra.mxu0 0.0
  %443 = vmatprep.subr.mxu0 0.0
  %444 = vmatpush1.xpose.msra.mxu0 0.0
  %445 = vmatprep.subr.mxu0 0.0
  %446 = vmatpush1.xpose.msra.mxu0 0.0
  %447 = vmatprep.subr.mxu0 0.0
  %448 = vmatpush1.xpose.msra.mxu0 0.0
  %449 = vmatprep.subr.mxu0 0.0
  %450 = vmatpush1.xpose.msra.mxu0 0.0
  %451 = vmatprep.subr.mxu0 0.0
  %452 = vmatpush1.xpose.msra.mxu0 %v419
  %453 = vmatprep.subr.mxu0 0.0
  %454 = vmatpush2.xpose.msra.mxu0 0.0
  %455 = vmatprep.subr.mxu0 0.0
  %456 = vmatpush2.xpose.msra.mxu0 0.0
  %457 = vmatprep.subr.mxu0 0.0
  %458 = vmatpush2.xpose.msra.mxu0 0.0
  %459 = vmatprep.subr.mxu0 0.0
  %460 = vmatpush2.xpose.msra.mxu0 0.0
  %461 = vmatprep.subr.mxu0 0.0
  %462 = vmatpush2.xpose.msra.mxu0 0.0
  %463 = vmatprep.subr.mxu0 0.0
  %464 = vmatpush2.xpose.msra.mxu0 0.0
  %465 = vmatprep.subr.mxu0 0.0
  %466 = vmatpush2.xpose.msra.mxu0 0.0
  %467 = vmatprep.subr.mxu0 0.0
  %468 = vmatpush2.xpose.msra.mxu0 0.0
  %469 = vmatprep.subr.mxu0 0.0
  %470 = vmatpush2.xpose.msra.mxu0 0.0
  %471 = vmatprep.subr.mxu0 0.0
  %472 = vmatpush2.xpose.msra.mxu0 0.0
  %473 = vmatprep.subr.mxu0 0.0
  %474 = vmatpush2.xpose.msra.mxu0 0.0
  %475 = vmatprep.subr.mxu0 0.0
  %476 = vmatpush2.xpose.msra.mxu0 0.0
  %477 = vmatprep.subr.mxu0 0.0
  %478 = vmatpush2.xpose.msra.mxu0 0.0
  %479 = vmatprep.subr.mxu0 0.0
  %480 = vmatpush2.xpose.msra.mxu0 0.0
  %481 = vmatprep.subr.mxu0 0.0
  %482 = vmatpush2.xpose.msra.mxu0 0.0
  %483 = vmatprep.subr.mxu0 0.0
  %484 = vmatpush2.xpose.msra.mxu0 0.0
  %485 = vmatprep.mubr.f32.mxu0 0.0
  %486 = vmatmul.mubr.f32.gmra.mxu0 %v417
  %v487 = vpop.f32.mrf.mxu0
  %v488 = vadd.f32 0.0, %v487
  %v489 = vpop.f32.mrf.mxu0
  %490 = vdwg.mxu0
  %492 = vrot.lane.b32.xlu0 %v412, 96
  %v493 = vpop.permute.xlu0 %492
  %v494 = vsel %vm416, %v412, 0
  %v496 = vsel %vm416, %v493, 0
  %498 = vmatprep.subr.mxu0 0.0
  %499 = vmatpush1.xpose.msra.mxu0 0.0
  %500 = vmatprep.subr.mxu0 0.0
  %501 = vmatpush1.xpose.msra.mxu0 0.0
  %502 = vmatprep.subr.mxu0 0.0
  %503 = vmatpush1.xpose.msra.mxu0 0.0
  %504 = vmatprep.subr.mxu0 0.0
  %505 = vmatpush1.xpose.msra.mxu0 0.0
  %506 = vmatprep.subr.mxu0 0.0
  %507 = vmatpush1.xpose.msra.mxu0 0.0
  %508 = vmatprep.subr.mxu0 0.0
  %509 = vmatpush1.xpose.msra.mxu0 0.0
  %510 = vmatprep.subr.mxu0 0.0
  %511 = vmatpush1.xpose.msra.mxu0 0.0
  %512 = vmatprep.subr.mxu0 0.0
  %513 = vmatpush1.xpose.msra.mxu0 0.0
  %514 = vmatprep.subr.mxu0 0.0
  %515 = vmatpush1.xpose.msra.mxu0 0.0
  %516 = vmatprep.subr.mxu0 0.0
  %517 = vmatpush1.xpose.msra.mxu0 0.0
  %518 = vmatprep.subr.mxu0 0.0
  %519 = vmatpush1.xpose.msra.mxu0 0.0
  %520 = vmatprep.subr.mxu0 0.0
  %521 = vmatpush1.xpose.msra.mxu0 0.0
  %522 = vmatprep.subr.mxu0 0.0
  %523 = vmatpush1.xpose.msra.mxu0 0.0
  %524 = vmatprep.subr.mxu0 0.0
  %525 = vmatpush1.xpose.msra.mxu0 0.0
  %526 = vmatprep.subr.mxu0 0.0
  %527 = vmatpush1.xpose.msra.mxu0 0.0
  %528 = vmatprep.subr.mxu0 0.0
  %529 = vmatpush1.xpose.msra.mxu0 %v496
  %530 = vmatprep.subr.mxu0 0.0
  %531 = vmatpush2.xpose.msra.mxu0 0.0
  %532 = vmatprep.subr.mxu0 0.0
  %533 = vmatpush2.xpose.msra.mxu0 0.0
  %534 = vmatprep.subr.mxu0 0.0
  %535 = vmatpush2.xpose.msra.mxu0 0.0
  %536 = vmatprep.subr.mxu0 0.0
  %537 = vmatpush2.xpose.msra.mxu0 0.0
  %538 = vmatprep.subr.mxu0 0.0
  %539 = vmatpush2.xpose.msra.mxu0 0.0
  %540 = vmatprep.subr.mxu0 0.0
  %541 = vmatpush2.xpose.msra.mxu0 0.0
  %542 = vmatprep.subr.mxu0 0.0
  %543 = vmatpush2.xpose.msra.mxu0 0.0
  %544 = vmatprep.subr.mxu0 0.0
  %545 = vmatpush2.xpose.msra.mxu0 0.0
  %546 = vmatprep.subr.mxu0 0.0
  %547 = vmatpush2.xpose.msra.mxu0 0.0
  %548 = vmatprep.subr.mxu0 0.0
  %549 = vmatpush2.xpose.msra.mxu0 0.0
  %550 = vmatprep.subr.mxu0 0.0
  %551 = vmatpush2.xpose.msra.mxu0 0.0
  %552 = vmatprep.subr.mxu0 0.0
  %553 = vmatpush2.xpose.msra.mxu0 0.0
  %554 = vmatprep.subr.mxu0 0.0
  %555 = vmatpush2.xpose.msra.mxu0 0.0
  %556 = vmatprep.subr.mxu0 0.0
  %557 = vmatpush2.xpose.msra.mxu0 0.0
  %558 = vmatprep.subr.mxu0 0.0
  %559 = vmatpush2.xpose.msra.mxu0 0.0
  %560 = vmatprep.subr.mxu0 0.0
  %561 = vmatpush2.xpose.msra.mxu0 0.0
  %562 = vmatprep.mubr.f32.mxu0 0.0
  %563 = vmatmul.mubr.f32.gmra.mxu0 %v494
  %v564 = vpop.f32.mrf.mxu0
  %v565 = vadd.f32 0.0, %v564
  %v566 = vpop.f32.mrf.mxu0
  %567 = vdwg.mxu0
  %v568 = vmul.f32 %v488, 0.35355338
  %v569 = vmul.f32 %v565, 0.35355338
  %v570 = vsel %vm416, %v568, -inf
  %571 = vmax.xlane.f32.xlu0 %v570
  %v572 = vpop.xlane.xlu0 %571
  %v573 = vsel %vm416, %v569, -inf
  %574 = vmax.xlane.f32.xlu0 %v573
  %v575 = vpop.xlane.xlu0 %574
  %v576 = vsub.f32 %v568, %v572
  %v577 = vsub.f32 %v569, %v575
  %v578 = vmul.f32 %v576, 1.442695
  %v579 = vpow.pop %v578
  %v580 = vmul.f32 %v577, 1.442695
  %v581 = vpow.pop %v580
  %v582 = vsel %vm416, %v579, 0.0
  %583 = vadd.xlane.f32.xlu0 %v582
  %v584 = vpop.xlane.xlu0 %583
  %v585 = vsel %vm416, %v581, 0.0
  %586 = vadd.xlane.f32.xlu0 %v585
  %v587 = vpop.xlane.xlu0 %586
  %v588 = vrcp.pop %v584
  %v589 = vmul.f32 %v579, %v588
  %v590 = vrcp.pop %v587
  %v591 = vmul.f32 %v581, %v590
  %593 = vrot.lane.b32.xlu0 %v322, 64
  %v594 = vpop.permute.xlu0 %593
  %v597 = vsel %vm416, %v589, 0
  %599 = vmatprep.subr.mxu0 0.0
  %600 = vmatpush1.msra.mxu0 0.0
  %601 = vmatprep.subr.mxu0 0.0
  %602 = vmatpush1.msra.mxu0 0.0
  %603 = vmatprep.subr.mxu0 0.0
  %604 = vmatpush1.msra.mxu0 0.0
  %605 = vmatprep.subr.mxu0 0.0
  %606 = vmatpush1.msra.mxu0 0.0
  %607 = vmatprep.subr.mxu0 0.0
  %608 = vmatpush1.msra.mxu0 0.0
  %609 = vmatprep.subr.mxu0 0.0
  %610 = vmatpush1.msra.mxu0 0.0
  %611 = vmatprep.subr.mxu0 0.0
  %612 = vmatpush1.msra.mxu0 0.0
  %613 = vmatprep.subr.mxu0 0.0
  %614 = vmatpush1.msra.mxu0 0.0
  %615 = vmatprep.subr.mxu0 0.0
  %616 = vmatpush1.msra.mxu0 0.0
  %617 = vmatprep.subr.mxu0 0.0
  %618 = vmatpush1.msra.mxu0 0.0
  %619 = vmatprep.subr.mxu0 0.0
  %620 = vmatpush1.msra.mxu0 0.0
  %621 = vmatprep.subr.mxu0 0.0
  %622 = vmatpush1.msra.mxu0 0.0
  %623 = vmatprep.subr.mxu0 0.0
  %624 = vmatpush1.msra.mxu0 0.0
  %625 = vmatprep.subr.mxu0 0.0
  %626 = vmatpush1.msra.mxu0 0.0
  %627 = vmatprep.subr.mxu0 0.0
  %628 = vmatpush1.msra.mxu0 0.0
  %629 = vmatprep.subr.mxu0 0.0
  %630 = vmatpush1.msra.mxu0 %v594
  %631 = vmatprep.subr.mxu0 0.0
  %632 = vmatpush2.msra.mxu0 0.0
  %633 = vmatprep.subr.mxu0 0.0
  %634 = vmatpush2.msra.mxu0 0.0
  %635 = vmatprep.subr.mxu0 0.0
  %636 = vmatpush2.msra.mxu0 0.0
  %637 = vmatprep.subr.mxu0 0.0
  %638 = vmatpush2.msra.mxu0 0.0
  %639 = vmatprep.subr.mxu0 0.0
  %640 = vmatpush2.msra.mxu0 0.0
  %641 = vmatprep.subr.mxu0 0.0
  %642 = vmatpush2.msra.mxu0 0.0
  %643 = vmatprep.subr.mxu0 0.0
  %644 = vmatpush2.msra.mxu0 0.0
  %645 = vmatprep.subr.mxu0 0.0
  %646 = vmatpush2.msra.mxu0 0.0
  %647 = vmatprep.subr.mxu0 0.0
  %648 = vmatpush2.msra.mxu0 0.0
  %649 = vmatprep.subr.mxu0 0.0
  %650 = vmatpush2.msra.mxu0 0.0
  %651 = vmatprep.subr.mxu0 0.0
  %652 = vmatpush2.msra.mxu0 0.0
  %653 = vmatprep.subr.mxu0 0.0
  %654 = vmatpush2.msra.mxu0 0.0
  %655 = vmatprep.subr.mxu0 0.0
  %656 = vmatpush2.msra.mxu0 0.0
  %657 = vmatprep.subr.mxu0 0.0
  %658 = vmatpush2.msra.mxu0 0.0
  %659 = vmatprep.subr.mxu0 0.0
  %660 = vmatpush2.msra.mxu0 0.0
  %661 = vmatprep.subr.mxu0 0.0
  %662 = vmatpush2.msra.mxu0 0.0
  %663 = vmatprep.mubr.f32.mxu0 0.0
  %664 = vmatmul.mubr.f32.gmra.mxu0 %v597
  %v665 = vpop.f32.mrf.mxu0
  %v666 = vadd.f32 0.0, %v665
  %v667 = vpop.f32.mrf.mxu0
  %668 = vdwg.mxu0
  %670 = vrot.lane.b32.xlu0 %v327, 64
  %v671 = vpop.permute.xlu0 %670
  %v674 = vsel %vm416, %v591, 0
  %676 = vmatprep.subr.mxu0 0.0
  %677 = vmatpush1.msra.mxu0 0.0
  %678 = vmatprep.subr.mxu0 0.0
  %679 = vmatpush1.msra.mxu0 0.0
  %680 = vmatprep.subr.mxu0 0.0
  %681 = vmatpush1.msra.mxu0 0.0
  %682 = vmatprep.subr.mxu0 0.0
  %683 = vmatpush1.msra.mxu0 0.0
  %684 = vmatprep.subr.mxu0 0.0
  %685 = vmatpush1.msra.mxu0 0.0
  %686 = vmatprep.subr.mxu0 0.0
  %687 = vmatpush1.msra.mxu0 0.0
  %688 = vmatprep.subr.mxu0 0.0
  %689 = vmatpush1.msra.mxu0 0.0
  %690 = vmatprep.subr.mxu0 0.0
  %691 = vmatpush1.msra.mxu0 0.0
  %692 = vmatprep.subr.mxu0 0.0
  %693 = vmatpush1.msra.mxu0 0.0
  %694 = vmatprep.subr.mxu0 0.0
  %695 = vmatpush1.msra.mxu0 0.0
  %696 = vmatprep.subr.mxu0 0.0
  %697 = vmatpush1.msra.mxu0 0.0
  %698 = vmatprep.subr.mxu0 0.0
  %699 = vmatpush1.msra.mxu0 0.0
  %700 = vmatprep.subr.mxu0 0.0
  %701 = vmatpush1.msra.mxu0 0.0
  %702 = vmatprep.subr.mxu0 0.0
  %703 = vmatpush1.msra.mxu0 0.0
  %704 = vmatprep.subr.mxu0 0.0
  %705 = vmatpush1.msra.mxu0 0.0
  %706 = vmatprep.subr.mxu0 0.0
  %707 = vmatpush1.msra.mxu0 %v671
  %708 = vmatprep.subr.mxu0 0.0
  %709 = vmatpush2.msra.mxu0 0.0
  %710 = vmatprep.subr.mxu0 0.0
  %711 = vmatpush2.msra.mxu0 0.0
  %712 = vmatprep.subr.mxu0 0.0
  %713 = vmatpush2.msra.mxu0 0.0
  %714 = vmatprep.subr.mxu0 0.0
  %715 = vmatpush2.msra.mxu0 0.0
  %716 = vmatprep.subr.mxu0 0.0
  %717 = vmatpush2.msra.mxu0 0.0
  %718 = vmatprep.subr.mxu0 0.0
  %719 = vmatpush2.msra.mxu0 0.0
  %720 = vmatprep.subr.mxu0 0.0
  %721 = vmatpush2.msra.mxu0 0.0
  %722 = vmatprep.subr.mxu0 0.0
  %723 = vmatpush2.msra.mxu0 0.0
  %724 = vmatprep.subr.mxu0 0.0
  %725 = vmatpush2.msra.mxu0 0.0
  %726 = vmatprep.subr.mxu0 0.0
  %727 = vmatpush2.msra.mxu0 0.0
  %728 = vmatprep.subr.mxu0 0.0
  %729 = vmatpush2.msra.mxu0 0.0
  %730 = vmatprep.subr.mxu0 0.0
  %731 = vmatpush2.msra.mxu0 0.0
  %732 = vmatprep.subr.mxu0 0.0
  %733 = vmatpush2.msra.mxu0 0.0
  %734 = vmatprep.subr.mxu0 0.0
  %735 = vmatpush2.msra.mxu0 0.0
  %736 = vmatprep.subr.mxu0 0.0
  %737 = vmatpush2.msra.mxu0 0.0
  %738 = vmatprep.subr.mxu0 0.0
  %739 = vmatpush2.msra.mxu0 0.0
  %740 = vmatprep.mubr.f32.mxu0 0.0
  %741 = vmatmul.mubr.f32.gmra.mxu0 %v674
  %v742 = vpop.f32.mrf.mxu0
  %v743 = vadd.f32 0.0, %v742
  %v744 = vpop.f32.mrf.mxu0
  %745 = vdwg.mxu0
  %746 = vrot.lane.b32.xlu0 %v411, 120
  %v747 = vpop.permute.xlu0 %746
  %748 = vrot.lane.b32.xlu0 %v411, 88
  %v749 = vpop.permute.xlu0 %748
  %v750 = vsel %vm416, %v747, 0
  %v752 = vsel %vm416, %v749, 0
  %754 = vmatprep.subr.mxu0 0.0
  %755 = vmatpush1.xpose.msra.mxu0 0.0
  %756 = vmatprep.subr.mxu0 0.0
  %757 = vmatpush1.xpose.msra.mxu0 0.0
  %758 = vmatprep.subr.mxu0 0.0
  %759 = vmatpush1.xpose.msra.mxu0 0.0
  %760 = vmatprep.subr.mxu0 0.0
  %761 = vmatpush1.xpose.msra.mxu0 0.0
  %762 = vmatprep.subr.mxu0 0.0
  %763 = vmatpush1.xpose.msra.mxu0 0.0
  %764 = vmatprep.subr.mxu0 0.0
  %765 = vmatpush1.xpose.msra.mxu0 0.0
  %766 = vmatprep.subr.mxu0 0.0
  %767 = vmatpush1.xpose.msra.mxu0 0.0
  %768 = vmatprep.subr.mxu0 0.0
  %769 = vmatpush1.xpose.msra.mxu0 0.0
  %770 = vmatprep.subr.mxu0 0.0
  %771 = vmatpush1.xpose.msra.mxu0 0.0
  %772 = vmatprep.subr.mxu0 0.0
  %773 = vmatpush1.xpose.msra.mxu0 0.0
  %774 = vmatprep.subr.mxu0 0.0
  %775 = vmatpush1.xpose.msra.mxu0 0.0
  %776 = vmatprep.subr.mxu0 0.0
  %777 = vmatpush1.xpose.msra.mxu0 0.0
  %778 = vmatprep.subr.mxu0 0.0
  %779 = vmatpush1.xpose.msra.mxu0 0.0
  %780 = vmatprep.subr.mxu0 0.0
  %781 = vmatpush1.xpose.msra.mxu0 0.0
  %782 = vmatprep.subr.mxu0 0.0
  %783 = vmatpush1.xpose.msra.mxu0 0.0
  %784 = vmatprep.subr.mxu0 0.0
  %785 = vmatpush1.xpose.msra.mxu0 %v752
  %786 = vmatprep.subr.mxu0 0.0
  %787 = vmatpush2.xpose.msra.mxu0 0.0
  %788 = vmatprep.subr.mxu0 0.0
  %789 = vmatpush2.xpose.msra.mxu0 0.0
  %790 = vmatprep.subr.mxu0 0.0
  %791 = vmatpush2.xpose.msra.mxu0 0.0
  %792 = vmatprep.subr.mxu0 0.0
  %793 = vmatpush2.xpose.msra.mxu0 0.0
  %794 = vmatprep.subr.mxu0 0.0
  %795 = vmatpush2.xpose.msra.mxu0 0.0
  %796 = vmatprep.subr.mxu0 0.0
  %797 = vmatpush2.xpose.msra.mxu0 0.0
  %798 = vmatprep.subr.mxu0 0.0
  %799 = vmatpush2.xpose.msra.mxu0 0.0
  %800 = vmatprep.subr.mxu0 0.0
  %801 = vmatpush2.xpose.msra.mxu0 0.0
  %802 = vmatprep.subr.mxu0 0.0
  %803 = vmatpush2.xpose.msra.mxu0 0.0
  %804 = vmatprep.subr.mxu0 0.0
  %805 = vmatpush2.xpose.msra.mxu0 0.0
  %806 = vmatprep.subr.mxu0 0.0
  %807 = vmatpush2.xpose.msra.mxu0 0.0
  %808 = vmatprep.subr.mxu0 0.0
  %809 = vmatpush2.xpose.msra.mxu0 0.0
  %810 = vmatprep.subr.mxu0 0.0
  %811 = vmatpush2.xpose.msra.mxu0 0.0
  %812 = vmatprep.subr.mxu0 0.0
  %813 = vmatpush2.xpose.msra.mxu0 0.0
  %814 = vmatprep.subr.mxu0 0.0
  %815 = vmatpush2.xpose.msra.mxu0 0.0
  %816 = vmatprep.subr.mxu0 0.0
  %817 = vmatpush2.xpose.msra.mxu0 0.0
  %818 = vmatprep.mubr.f32.mxu0 0.0
  %819 = vmatmul.mubr.f32.gmra.mxu0 %v750
  %v820 = vpop.f32.mrf.mxu0
  %v821 = vadd.f32 0.0, %v820
  %v822 = vpop.f32.mrf.mxu0
  %823 = vdwg.mxu0
  %824 = vrot.lane.b32.xlu0 %v412, 120
  %v825 = vpop.permute.xlu0 %824
  %826 = vrot.lane.b32.xlu0 %v412, 88
  %v827 = vpop.permute.xlu0 %826
  %v828 = vsel %vm416, %v825, 0
  %v830 = vsel %vm416, %v827, 0
  %832 = vmatprep.subr.mxu0 0.0
  %833 = vmatpush1.xpose.msra.mxu0 0.0
  %834 = vmatprep.subr.mxu0 0.0
  %835 = vmatpush1.xpose.msra.mxu0 0.0
  %836 = vmatprep.subr.mxu0 0.0
  %837 = vmatpush1.xpose.msra.mxu0 0.0
  %838 = vmatprep.subr.mxu0 0.0
  %839 = vmatpush1.xpose.msra.mxu0 0.0
  %840 = vmatprep.subr.mxu0 0.0
  %841 = vmatpush1.xpose.msra.mxu0 0.0
  %842 = vmatprep.subr.mxu0 0.0
  %843 = vmatpush1.xpose.msra.mxu0 0.0
  %844 = vmatprep.subr.mxu0 0.0
  %845 = vmatpush1.xpose.msra.mxu0 0.0
  %846 = vmatprep.subr.mxu0 0.0
  %847 = vmatpush1.xpose.msra.mxu0 0.0
  %848 = vmatprep.subr.mxu0 0.0
  %849 = vmatpush1.xpose.msra.mxu0 0.0
  %850 = vmatprep.subr.mxu0 0.0
  %851 = vmatpush1.xpose.msra.mxu0 0.0
  %852 = vmatprep.subr.mxu0 0.0
  %853 = vmatpush1.xpose.msra.mxu0 0.0
  %854 = vmatprep.subr.mxu0 0.0
  %855 = vmatpush1.xpose.msra.mxu0 0.0
  %856 = vmatprep.subr.mxu0 0.0
  %857 = vmatpush1.xpose.msra.mxu0 0.0
  %858 = vmatprep.subr.mxu0 0.0
  %859 = vmatpush1.xpose.msra.mxu0 0.0
  %860 = vmatprep.subr.mxu0 0.0
  %861 = vmatpush1.xpose.msra.mxu0 0.0
  %862 = vmatprep.subr.mxu0 0.0
  %863 = vmatpush1.xpose.msra.mxu0 %v830
  %864 = vmatprep.subr.mxu0 0.0
  %865 = vmatpush2.xpose.msra.mxu0 0.0
  %866 = vmatprep.subr.mxu0 0.0
  %867 = vmatpush2.xpose.msra.mxu0 0.0
  %868 = vmatprep.subr.mxu0 0.0
  %869 = vmatpush2.xpose.msra.mxu0 0.0
  %870 = vmatprep.subr.mxu0 0.0
  %871 = vmatpush2.xpose.msra.mxu0 0.0
  %872 = vmatprep.subr.mxu0 0.0
  %873 = vmatpush2.xpose.msra.mxu0 0.0
  %874 = vmatprep.subr.mxu0 0.0
  %875 = vmatpush2.xpose.msra.mxu0 0.0
  %876 = vmatprep.subr.mxu0 0.0
  %877 = vmatpush2.xpose.msra.mxu0 0.0
  %878 = vmatprep.subr.mxu0 0.0
  %879 = vmatpush2.xpose.msra.mxu0 0.0
  %880 = vmatprep.subr.mxu0 0.0
  %881 = vmatpush2.xpose.msra.mxu0 0.0
  %882 = vmatprep.subr.mxu0 0.0
  %883 = vmatpush2.xpose.msra.mxu0 0.0
  %884 = vmatprep.subr.mxu0 0.0
  %885 = vmatpush2.xpose.msra.mxu0 0.0
  %886 = vmatprep.subr.mxu0 0.0
  %887 = vmatpush2.xpose.msra.mxu0 0.0
  %888 = vmatprep.subr.mxu0 0.0
  %889 = vmatpush2.xpose.msra.mxu0 0.0
  %890 = vmatprep.subr.mxu0 0.0
  %891 = vmatpush2.xpose.msra.mxu0 0.0
  %892 = vmatprep.subr.mxu0 0.0
  %893 = vmatpush2.xpose.msra.mxu0 0.0
  %894 = vmatprep.subr.mxu0 0.0
  %895 = vmatpush2.xpose.msra.mxu0 0.0
  %896 = vmatprep.mubr.f32.mxu0 0.0
  %897 = vmatmul.mubr.f32.gmra.mxu0 %v828
  %v898 = vpop.f32.mrf.mxu0
  %v899 = vadd.f32 0.0, %v898
  %v900 = vpop.f32.mrf.mxu0
  %901 = vdwg.mxu0
  %v902 = vmul.f32 %v821, 0.35355338
  %v903 = vmul.f32 %v899, 0.35355338
  %v904 = vsel %vm416, %v902, -inf
  %905 = vmax.xlane.f32.xlu0 %v904
  %v906 = vpop.xlane.xlu0 %905
  %v907 = vsel %vm416, %v903, -inf
  %908 = vmax.xlane.f32.xlu0 %v907
  %v909 = vpop.xlane.xlu0 %908
  %v910 = vsub.f32 %v902, %v906
  %v911 = vsub.f32 %v903, %v909
  %v912 = vmul.f32 %v910, 1.442695
  %v913 = vpow.pop %v912
  %v914 = vmul.f32 %v911, 1.442695
  %v915 = vpow.pop %v914
  %v916 = vsel %vm416, %v913, 0.0
  %917 = vadd.xlane.f32.xlu0 %v916
  %v918 = vpop.xlane.xlu0 %917
  %v919 = vsel %vm416, %v915, 0.0
  %920 = vadd.xlane.f32.xlu0 %v919
  %v921 = vpop.xlane.xlu0 %920
  %v922 = vrcp.pop %v918
  %v923 = vmul.f32 %v913, %v922
  %v924 = vrcp.pop %v921
  %v925 = vmul.f32 %v915, %v924
  %926 = vrot.lane.b32.xlu0 %v322, 56
  %v927 = vpop.permute.xlu0 %926
  %v930 = vsel %vm416, %v923, 0
  %932 = vmatprep.subr.mxu0 0.0
  %933 = vmatpush1.msra.mxu0 0.0
  %934 = vmatprep.subr.mxu0 0.0
  %935 = vmatpush1.msra.mxu0 0.0
  %936 = vmatprep.subr.mxu0 0.0
  %937 = vmatpush1.msra.mxu0 0.0
  %938 = vmatprep.subr.mxu0 0.0
  %939 = vmatpush1.msra.mxu0 0.0
  %940 = vmatprep.subr.mxu0 0.0
  %941 = vmatpush1.msra.mxu0 0.0
  %942 = vmatprep.subr.mxu0 0.0
  %943 = vmatpush1.msra.mxu0 0.0
  %944 = vmatprep.subr.mxu0 0.0
  %945 = vmatpush1.msra.mxu0 0.0
  %946 = vmatprep.subr.mxu0 0.0
  %947 = vmatpush1.msra.mxu0 0.0
  %948 = vmatprep.subr.mxu0 0.0
  %949 = vmatpush1.msra.mxu0 0.0
  %950 = vmatprep.subr.mxu0 0.0
  %951 = vmatpush1.msra.mxu0 0.0
  %952 = vmatprep.subr.mxu0 0.0
  %953 = vmatpush1.msra.mxu0 0.0
  %954 = vmatprep.subr.mxu0 0.0
  %955 = vmatpush1.msra.mxu0 0.0
  %956 = vmatprep.subr.mxu0 0.0
  %957 = vmatpush1.msra.mxu0 0.0
  %958 = vmatprep.subr.mxu0 0.0
  %959 = vmatpush1.msra.mxu0 0.0
  %960 = vmatprep.subr.mxu0 0.0
  %961 = vmatpush1.msra.mxu0 0.0
  %962 = vmatprep.subr.mxu0 0.0
  %963 = vmatpush1.msra.mxu0 %v927
  %964 = vmatprep.subr.mxu0 0.0
  %965 = vmatpush2.msra.mxu0 0.0
  %966 = vmatprep.subr.mxu0 0.0
  %967 = vmatpush2.msra.mxu0 0.0
  %968 = vmatprep.subr.mxu0 0.0
  %969 = vmatpush2.msra.mxu0 0.0
  %970 = vmatprep.subr.mxu0 0.0
  %971 = vmatpush2.msra.mxu0 0.0
  %972 = vmatprep.subr.mxu0 0.0
  %973 = vmatpush2.msra.mxu0 0.0
  %974 = vmatprep.subr.mxu0 0.0
  %975 = vmatpush2.msra.mxu0 0.0
  %976 = vmatprep.subr.mxu0 0.0
  %977 = vmatpush2.msra.mxu0 0.0
  %978 = vmatprep.subr.mxu0 0.0
  %979 = vmatpush2.msra.mxu0 0.0
  %980 = vmatprep.subr.mxu0 0.0
  %981 = vmatpush2.msra.mxu0 0.0
  %982 = vmatprep.subr.mxu0 0.0
  %983 = vmatpush2.msra.mxu0 0.0
  %984 = vmatprep.subr.mxu0 0.0
  %985 = vmatpush2.msra.mxu0 0.0
  %986 = vmatprep.subr.mxu0 0.0
  %987 = vmatpush2.msra.mxu0 0.0
  %988 = vmatprep.subr.mxu0 0.0
  %989 = vmatpush2.msra.mxu0 0.0
  %990 = vmatprep.subr.mxu0 0.0
  %991 = vmatpush2.msra.mxu0 0.0
  %992 = vmatprep.subr.mxu0 0.0
  %993 = vmatpush2.msra.mxu0 0.0
  %994 = vmatprep.subr.mxu0 0.0
  %995 = vmatpush2.msra.mxu0 0.0
  %996 = vmatprep.mubr.f32.mxu0 0.0
  %997 = vmatmul.mubr.f32.gmra.mxu0 %v930
  %v998 = vpop.f32.mrf.mxu0
  %v999 = vadd.f32 0.0, %v998
  %v1000 = vpop.f32.mrf.mxu0
  %1001 = vdwg.mxu0
  %1002 = vrot.lane.b32.xlu0 %v327, 56
  %v1003 = vpop.permute.xlu0 %1002
  %v1006 = vsel %vm416, %v925, 0
  %1008 = vmatprep.subr.mxu0 0.0
  %1009 = vmatpush1.msra.mxu0 0.0
  %1010 = vmatprep.subr.mxu0 0.0
  %1011 = vmatpush1.msra.mxu0 0.0
  %1012 = vmatprep.subr.mxu0 0.0
  %1013 = vmatpush1.msra.mxu0 0.0
  %1014 = vmatprep.subr.mxu0 0.0
  %1015 = vmatpush1.msra.mxu0 0.0
  %1016 = vmatprep.subr.mxu0 0.0
  %1017 = vmatpush1.msra.mxu0 0.0
  %1018 = vmatprep.subr.mxu0 0.0
  %1019 = vmatpush1.msra.mxu0 0.0
  %1020 = vmatprep.subr.mxu0 0.0
  %1021 = vmatpush1.msra.mxu0 0.0
  %1022 = vmatprep.subr.mxu0 0.0
  %1023 = vmatpush1.msra.mxu0 0.0
  %1024 = vmatprep.subr.mxu0 0.0
  %1025 = vmatpush1.msra.mxu0 0.0
  %1026 = vmatprep.subr.mxu0 0.0
  %1027 = vmatpush1.msra.mxu0 0.0
  %1028 = vmatprep.subr.mxu0 0.0
  %1029 = vmatpush1.msra.mxu0 0.0
  %1030 = vmatprep.subr.mxu0 0.0
  %1031 = vmatpush1.msra.mxu0 0.0
  %1032 = vmatprep.subr.mxu0 0.0
  %1033 = vmatpush1.msra.mxu0 0.0
  %1034 = vmatprep.subr.mxu0 0.0
  %1035 = vmatpush1.msra.mxu0 0.0
  %1036 = vmatprep.subr.mxu0 0.0
  %1037 = vmatpush1.msra.mxu0 0.0
  %1038 = vmatprep.subr.mxu0 0.0
  %1039 = vmatpush1.msra.mxu0 %v1003
  %1040 = vmatprep.subr.mxu0 0.0
  %1041 = vmatpush2.msra.mxu0 0.0
  %1042 = vmatprep.subr.mxu0 0.0
  %1043 = vmatpush2.msra.mxu0 0.0
  %1044 = vmatprep.subr.mxu0 0.0
  %1045 = vmatpush2.msra.mxu0 0.0
  %1046 = vmatprep.subr.mxu0 0.0
  %1047 = vmatpush2.msra.mxu0 0.0
  %1048 = vmatprep.subr.mxu0 0.0
  %1049 = vmatpush2.msra.mxu0 0.0
  %1050 = vmatprep.subr.mxu0 0.0
  %1051 = vmatpush2.msra.mxu0 0.0
  %1052 = vmatprep.subr.mxu0 0.0
  %1053 = vmatpush2.msra.mxu0 0.0
  %1054 = vmatprep.subr.mxu0 0.0
  %1055 = vmatpush2.msra.mxu0 0.0
  %1056 = vmatprep.subr.mxu0 0.0
  %1057 = vmatpush2.msra.mxu0 0.0
  %1058 = vmatprep.subr.mxu0 0.0
  %1059 = vmatpush2.msra.mxu0 0.0
  %1060 = vmatprep.subr.mxu0 0.0
  %1061 = vmatpush2.msra.mxu0 0.0
  %1062 = vmatprep.subr.mxu0 0.0
  %1063 = vmatpush2.msra.mxu0 0.0
  %1064 = vmatprep.subr.mxu0 0.0
  %1065 = vmatpush2.msra.mxu0 0.0
  %1066 = vmatprep.subr.mxu0 0.0
  %1067 = vmatpush2.msra.mxu0 0.0
  %1068 = vmatprep.subr.mxu0 0.0
  %1069 = vmatpush2.msra.mxu0 0.0
  %1070 = vmatprep.subr.mxu0 0.0
  %1071 = vmatpush2.msra.mxu0 0.0
  %1072 = vmatprep.mubr.f32.mxu0 0.0
  %1073 = vmatmul.mubr.f32.gmra.mxu0 %v1006
  %v1074 = vpop.f32.mrf.mxu0
  %v1075 = vadd.f32 0.0, %v1074
  %v1076 = vpop.f32.mrf.mxu0
  %1077 = vdwg.mxu0
  %1078 = vrot.lane.b32.xlu0 %v411, 112
  %v1079 = vpop.permute.xlu0 %1078
  %1080 = vrot.lane.b32.xlu0 %v411, 80
  %v1081 = vpop.permute.xlu0 %1080
  %v1082 = vsel %vm416, %v1079, 0
  %v1084 = vsel %vm416, %v1081, 0
  %1086 = vmatprep.subr.mxu0 0.0
  %1087 = vmatpush1.xpose.msra.mxu0 0.0
  %1088 = vmatprep.subr.mxu0 0.0
  %1089 = vmatpush1.xpose.msra.mxu0 0.0
  %1090 = vmatprep.subr.mxu0 0.0
  %1091 = vmatpush1.xpose.msra.mxu0 0.0
  %1092 = vmatprep.subr.mxu0 0.0
  %1093 = vmatpush1.xpose.msra.mxu0 0.0
  %1094 = vmatprep.subr.mxu0 0.0
  %1095 = vmatpush1.xpose.msra.mxu0 0.0
  %1096 = vmatprep.subr.mxu0 0.0
  %1097 = vmatpush1.xpose.msra.mxu0 0.0
  %1098 = vmatprep.subr.mxu0 0.0
  %1099 = vmatpush1.xpose.msra.mxu0 0.0
  %1100 = vmatprep.subr.mxu0 0.0
  %1101 = vmatpush1.xpose.msra.mxu0 0.0
  %1102 = vmatprep.subr.mxu0 0.0
  %1103 = vmatpush1.xpose.msra.mxu0 0.0
  %1104 = vmatprep.subr.mxu0 0.0
  %1105 = vmatpush1.xpose.msra.mxu0 0.0
  %1106 = vmatprep.subr.mxu0 0.0
  %1107 = vmatpush1.xpose.msra.mxu0 0.0
  %1108 = vmatprep.subr.mxu0 0.0
  %1109 = vmatpush1.xpose.msra.mxu0 0.0
  %1110 = vmatprep.subr.mxu0 0.0
  %1111 = vmatpush1.xpose.msra.mxu0 0.0
  %1112 = vmatprep.subr.mxu0 0.0
  %1113 = vmatpush1.xpose.msra.mxu0 0.0
  %1114 = vmatprep.subr.mxu0 0.0
  %1115 = vmatpush1.xpose.msra.mxu0 0.0
  %1116 = vmatprep.subr.mxu0 0.0
  %1117 = vmatpush1.xpose.msra.mxu0 %v1084
  %1118 = vmatprep.subr.mxu0 0.0
  %1119 = vmatpush2.xpose.msra.mxu0 0.0
  %1120 = vmatprep.subr.mxu0 0.0
  %1121 = vmatpush2.xpose.msra.mxu0 0.0
  %1122 = vmatprep.subr.mxu0 0.0
  %1123 = vmatpush2.xpose.msra.mxu0 0.0
  %1124 = vmatprep.subr.mxu0 0.0
  %1125 = vmatpush2.xpose.msra.mxu0 0.0
  %1126 = vmatprep.subr.mxu0 0.0
  %1127 = vmatpush2.xpose.msra.mxu0 0.0
  %1128 = vmatprep.subr.mxu0 0.0
  %1129 = vmatpush2.xpose.msra.mxu0 0.0
  %1130 = vmatprep.subr.mxu0 0.0
  %1131 = vmatpush2.xpose.msra.mxu0 0.0
  %1132 = vmatprep.subr.mxu0 0.0
  %1133 = vmatpush2.xpose.msra.mxu0 0.0
  %1134 = vmatprep.subr.mxu0 0.0
  %1135 = vmatpush2.xpose.msra.mxu0 0.0
  %1136 = vmatprep.subr.mxu0 0.0
  %1137 = vmatpush2.xpose.msra.mxu0 0.0
  %1138 = vmatprep.subr.mxu0 0.0
  %1139 = vmatpush2.xpose.msra.mxu0 0.0
  %1140 = vmatprep.subr.mxu0 0.0
  %1141 = vmatpush2.xpose.msra.mxu0 0.0
  %1142 = vmatprep.subr.mxu0 0.0
  %1143 = vmatpush2.xpose.msra.mxu0 0.0
  %1144 = vmatprep.subr.mxu0 0.0
  %1145 = vmatpush2.xpose.msra.mxu0 0.0
  %1146 = vmatprep.subr.mxu0 0.0
  %1147 = vmatpush2.xpose.msra.mxu0 0.0
  %1148 = vmatprep.subr.mxu0 0.0
  %1149 = vmatpush2.xpose.msra.mxu0 0.0
  %1150 = vmatprep.mubr.f32.mxu0 0.0
  %1151 = vmatmul.mubr.f32.gmra.mxu0 %v1082
  %v1152 = vpop.f32.mrf.mxu0
  %v1153 = vadd.f32 0.0, %v1152
  %v1154 = vpop.f32.mrf.mxu0
  %1155 = vdwg.mxu0
  %1156 = vrot.lane.b32.xlu0 %v412, 112
  %v1157 = vpop.permute.xlu0 %1156
  %1158 = vrot.lane.b32.xlu0 %v412, 80
  %v1159 = vpop.permute.xlu0 %1158
  %v1160 = vsel %vm416, %v1157, 0
  %v1162 = vsel %vm416, %v1159, 0
  %1164 = vmatprep.subr.mxu0 0.0
  %1165 = vmatpush1.xpose.msra.mxu0 0.0
  %1166 = vmatprep.subr.mxu0 0.0
  %1167 = vmatpush1.xpose.msra.mxu0 0.0
  %1168 = vmatprep.subr.mxu0 0.0
  %1169 = vmatpush1.xpose.msra.mxu0 0.0
  %1170 = vmatprep.subr.mxu0 0.0
  %1171 = vmatpush1.xpose.msra.mxu0 0.0
  %1172 = vmatprep.subr.mxu0 0.0
  %1173 = vmatpush1.xpose.msra.mxu0 0.0
  %1174 = vmatprep.subr.mxu0 0.0
  %1175 = vmatpush1.xpose.msra.mxu0 0.0
  %1176 = vmatprep.subr.mxu0 0.0
  %1177 = vmatpush1.xpose.msra.mxu0 0.0
  %1178 = vmatprep.subr.mxu0 0.0
  %1179 = vmatpush1.xpose.msra.mxu0 0.0
  %1180 = vmatprep.subr.mxu0 0.0
  %1181 = vmatpush1.xpose.msra.mxu0 0.0
  %1182 = vmatprep.subr.mxu0 0.0
  %1183 = vmatpush1.xpose.msra.mxu0 0.0
  %1184 = vmatprep.subr.mxu0 0.0
  %1185 = vmatpush1.xpose.msra.mxu0 0.0
  %1186 = vmatprep.subr.mxu0 0.0
  %1187 = vmatpush1.xpose.msra.mxu0 0.0
  %1188 = vmatprep.subr.mxu0 0.0
  %1189 = vmatpush1.xpose.msra.mxu0 0.0
  %1190 = vmatprep.subr.mxu0 0.0
  %1191 = vmatpush1.xpose.msra.mxu0 0.0
  %1192 = vmatprep.subr.mxu0 0.0
  %1193 = vmatpush1.xpose.msra.mxu0 0.0
  %1194 = vmatprep.subr.mxu0 0.0
  %1195 = vmatpush1.xpose.msra.mxu0 %v1162
  %1196 = vmatprep.subr.mxu0 0.0
  %1197 = vmatpush2.xpose.msra.mxu0 0.0
  %1198 = vmatprep.subr.mxu0 0.0
  %1199 = vmatpush2.xpose.msra.mxu0 0.0
  %1200 = vmatprep.subr.mxu0 0.0
  %1201 = vmatpush2.xpose.msra.mxu0 0.0
  %1202 = vmatprep.subr.mxu0 0.0
  %1203 = vmatpush2.xpose.msra.mxu0 0.0
  %1204 = vmatprep.subr.mxu0 0.0
  %1205 = vmatpush2.xpose.msra.mxu0 0.0
  %1206 = vmatprep.subr.mxu0 0.0
  %1207 = vmatpush2.xpose.msra.mxu0 0.0
  %1208 = vmatprep.subr.mxu0 0.0
  %1209 = vmatpush2.xpose.msra.mxu0 0.0
  %1210 = vmatprep.subr.mxu0 0.0
  %1211 = vmatpush2.xpose.msra.mxu0 0.0
  %1212 = vmatprep.subr.mxu0 0.0
  %1213 = vmatpush2.xpose.msra.mxu0 0.0
  %1214 = vmatprep.subr.mxu0 0.0
  %1215 = vmatpush2.xpose.msra.mxu0 0.0
  %1216 = vmatprep.subr.mxu0 0.0
  %1217 = vmatpush2.xpose.msra.mxu0 0.0
  %1218 = vmatprep.subr.mxu0 0.0
  %1219 = vmatpush2.xpose.msra.mxu0 0.0
  %1220 = vmatprep.subr.mxu0 0.0
  %1221 = vmatpush2.xpose.msra.mxu0 0.0
  %1222 = vmatprep.subr.mxu0 0.0
  %1223 = vmatpush2.xpose.msra.mxu0 0.0
  %1224 = vmatprep.subr.mxu0 0.0
  %1225 = vmatpush2.xpose.msra.mxu0 0.0
  %1226 = vmatprep.subr.mxu0 0.0
  %1227 = vmatpush2.xpose.msra.mxu0 0.0
  %1228 = vmatprep.mubr.f32.mxu0 0.0
  %1229 = vmatmul.mubr.f32.gmra.mxu0 %v1160
  %v1230 = vpop.f32.mrf.mxu0
  %v1231 = vadd.f32 0.0, %v1230
  %v1232 = vpop.f32.mrf.mxu0
  %1233 = vdwg.mxu0
  %v1234 = vmul.f32 %v1153, 0.35355338
  %v1235 = vmul.f32 %v1231, 0.35355338
  %v1236 = vsel %vm416, %v1234, -inf
  %1237 = vmax.xlane.f32.xlu0 %v1236
  %v1238 = vpop.xlane.xlu0 %1237
  %v1239 = vsel %vm416, %v1235, -inf
  %1240 = vmax.xlane.f32.xlu0 %v1239
  %v1241 = vpop.xlane.xlu0 %1240
  %v1242 = vsub.f32 %v1234, %v1238
  %v1243 = vsub.f32 %v1235, %v1241
  %v1244 = vmul.f32 %v1242, 1.442695
  %v1245 = vpow.pop %v1244
  %v1246 = vmul.f32 %v1243, 1.442695
  %v1247 = vpow.pop %v1246
  %v1248 = vsel %vm416, %v1245, 0.0
  %1249 = vadd.xlane.f32.xlu0 %v1248
  %v1250 = vpop.xlane.xlu0 %1249
  %v1251 = vsel %vm416, %v1247, 0.0
  %1252 = vadd.xlane.f32.xlu0 %v1251
  %v1253 = vpop.xlane.xlu0 %1252
  %v1254 = vrcp.pop %v1250
  %v1255 = vmul.f32 %v1245, %v1254
  %v1256 = vrcp.pop %v1253
  %v1257 = vmul.f32 %v1247, %v1256
  %1258 = vrot.lane.b32.xlu0 %v322, 48
  %v1259 = vpop.permute.xlu0 %1258
  %v1262 = vsel %vm416, %v1255, 0
  %1264 = vmatprep.subr.mxu0 0.0
  %1265 = vmatpush1.msra.mxu0 0.0
  %1266 = vmatprep.subr.mxu0 0.0
  %1267 = vmatpush1.msra.mxu0 0.0
  %1268 = vmatprep.subr.mxu0 0.0
  %1269 = vmatpush1.msra.mxu0 0.0
  %1270 = vmatprep.subr.mxu0 0.0
  %1271 = vmatpush1.msra.mxu0 0.0
  %1272 = vmatprep.subr.mxu0 0.0
  %1273 = vmatpush1.msra.mxu0 0.0
  %1274 = vmatprep.subr.mxu0 0.0
  %1275 = vmatpush1.msra.mxu0 0.0
  %1276 = vmatprep.subr.mxu0 0.0
  %1277 = vmatpush1.msra.mxu0 0.0
  %1278 = vmatprep.subr.mxu0 0.0
  %1279 = vmatpush1.msra.mxu0 0.0
  %1280 = vmatprep.subr.mxu0 0.0
  %1281 = vmatpush1.msra.mxu0 0.0
  %1282 = vmatprep.subr.mxu0 0.0
  %1283 = vmatpush1.msra.mxu0 0.0
  %1284 = vmatprep.subr.mxu0 0.0
  %1285 = vmatpush1.msra.mxu0 0.0
  %1286 = vmatprep.subr.mxu0 0.0
  %1287 = vmatpush1.msra.mxu0 0.0
  %1288 = vmatprep.subr.mxu0 0.0
  %1289 = vmatpush1.msra.mxu0 0.0
  %1290 = vmatprep.subr.mxu0 0.0
  %1291 = vmatpush1.msra.mxu0 0.0
  %1292 = vmatprep.subr.mxu0 0.0
  %1293 = vmatpush1.msra.mxu0 0.0
  %1294 = vmatprep.subr.mxu0 0.0
  %1295 = vmatpush1.msra.mxu0 %v1259
  %1296 = vmatprep.subr.mxu0 0.0
  %1297 = vmatpush2.msra.mxu0 0.0
  %1298 = vmatprep.subr.mxu0 0.0
  %1299 = vmatpush2.msra.mxu0 0.0
  %1300 = vmatprep.subr.mxu0 0.0
  %1301 = vmatpush2.msra.mxu0 0.0
  %1302 = vmatprep.subr.mxu0 0.0
  %1303 = vmatpush2.msra.mxu0 0.0
  %1304 = vmatprep.subr.mxu0 0.0
  %1305 = vmatpush2.msra.mxu0 0.0
  %1306 = vmatprep.subr.mxu0 0.0
  %1307 = vmatpush2.msra.mxu0 0.0
  %1308 = vmatprep.subr.mxu0 0.0
  %1309 = vmatpush2.msra.mxu0 0.0
  %1310 = vmatprep.subr.mxu0 0.0
  %1311 = vmatpush2.msra.mxu0 0.0
  %1312 = vmatprep.subr.mxu0 0.0
  %1313 = vmatpush2.msra.mxu0 0.0
  %1314 = vmatprep.subr.mxu0 0.0
  %1315 = vmatpush2.msra.mxu0 0.0
  %1316 = vmatprep.subr.mxu0 0.0
  %1317 = vmatpush2.msra.mxu0 0.0
  %1318 = vmatprep.subr.mxu0 0.0
  %1319 = vmatpush2.msra.mxu0 0.0
  %1320 = vmatprep.subr.mxu0 0.0
  %1321 = vmatpush2.msra.mxu0 0.0
  %1322 = vmatprep.subr.mxu0 0.0
  %1323 = vmatpush2.msra.mxu0 0.0
  %1324 = vmatprep.subr.mxu0 0.0
  %1325 = vmatpush2.msra.mxu0 0.0
  %1326 = vmatprep.subr.mxu0 0.0
  %1327 = vmatpush2.msra.mxu0 0.0
  %1328 = vmatprep.mubr.f32.mxu0 0.0
  %1329 = vmatmul.mubr.f32.gmra.mxu0 %v1262
  %v1330 = vpop.f32.mrf.mxu0
  %v1331 = vadd.f32 0.0, %v1330
  %v1332 = vpop.f32.mrf.mxu0
  %1333 = vdwg.mxu0
  %1334 = vrot.lane.b32.xlu0 %v327, 48
  %v1335 = vpop.permute.xlu0 %1334
  %v1338 = vsel %vm416, %v1257, 0
  %1340 = vmatprep.subr.mxu0 0.0
  %1341 = vmatpush1.msra.mxu0 0.0
  %1342 = vmatprep.subr.mxu0 0.0
  %1343 = vmatpush1.msra.mxu0 0.0
  %1344 = vmatprep.subr.mxu0 0.0
  %1345 = vmatpush1.msra.mxu0 0.0
  %1346 = vmatprep.subr.mxu0 0.0
  %1347 = vmatpush1.msra.mxu0 0.0
  %1348 = vmatprep.subr.mxu0 0.0
  %1349 = vmatpush1.msra.mxu0 0.0
  %1350 = vmatprep.subr.mxu0 0.0
  %1351 = vmatpush1.msra.mxu0 0.0
  %1352 = vmatprep.subr.mxu0 0.0
  %1353 = vmatpush1.msra.mxu0 0.0
  %1354 = vmatprep.subr.mxu0 0.0
  %1355 = vmatpush1.msra.mxu0 0.0
  %1356 = vmatprep.subr.mxu0 0.0
  %1357 = vmatpush1.msra.mxu0 0.0
  %1358 = vmatprep.subr.mxu0 0.0
  %1359 = vmatpush1.msra.mxu0 0.0
  %1360 = vmatprep.subr.mxu0 0.0
  %1361 = vmatpush1.msra.mxu0 0.0
  %1362 = vmatprep.subr.mxu0 0.0
  %1363 = vmatpush1.msra.mxu0 0.0
  %1364 = vmatprep.subr.mxu0 0.0
  %1365 = vmatpush1.msra.mxu0 0.0
  %1366 = vmatprep.subr.mxu0 0.0
  %1367 = vmatpush1.msra.mxu0 0.0
  %1368 = vmatprep.subr.mxu0 0.0
  %1369 = vmatpush1.msra.mxu0 0.0
  %1370 = vmatprep.subr.mxu0 0.0
  %1371 = vmatpush1.msra.mxu0 %v1335
  %1372 = vmatprep.subr.mxu0 0.0
  %1373 = vmatpush2.msra.mxu0 0.0
  %1374 = vmatprep.subr.mxu0 0.0
  %1375 = vmatpush2.msra.mxu0 0.0
  %1376 = vmatprep.subr.mxu0 0.0
  %1377 = vmatpush2.msra.mxu0 0.0
  %1378 = vmatprep.subr.mxu0 0.0
  %1379 = vmatpush2.msra.mxu0 0.0
  %1380 = vmatprep.subr.mxu0 0.0
  %1381 = vmatpush2.msra.mxu0 0.0
  %1382 = vmatprep.subr.mxu0 0.0
  %1383 = vmatpush2.msra.mxu0 0.0
  %1384 = vmatprep.subr.mxu0 0.0
  %1385 = vmatpush2.msra.mxu0 0.0
  %1386 = vmatprep.subr.mxu0 0.0
  %1387 = vmatpush2.msra.mxu0 0.0
  %1388 = vmatprep.subr.mxu0 0.0
  %1389 = vmatpush2.msra.mxu0 0.0
  %1390 = vmatprep.subr.mxu0 0.0
  %1391 = vmatpush2.msra.mxu0 0.0
  %1392 = vmatprep.subr.mxu0 0.0
  %1393 = vmatpush2.msra.mxu0 0.0
  %1394 = vmatprep.subr.mxu0 0.0
  %1395 = vmatpush2.msra.mxu0 0.0
  %1396 = vmatprep.subr.mxu0 0.0
  %1397 = vmatpush2.msra.mxu0 0.0
  %1398 = vmatprep.subr.mxu0 0.0
  %1399 = vmatpush2.msra.mxu0 0.0
  %1400 = vmatprep.subr.mxu0 0.0
  %1401 = vmatpush2.msra.mxu0 0.0
  %1402 = vmatprep.subr.mxu0 0.0
  %1403 = vmatpush2.msra.mxu0 0.0
  %1404 = vmatprep.mubr.f32.mxu0 0.0
  %1405 = vmatmul.mubr.f32.gmra.mxu0 %v1338
  %v1406 = vpop.f32.mrf.mxu0
  %v1407 = vadd.f32 0.0, %v1406
  %v1408 = vpop.f32.mrf.mxu0
  %1409 = vdwg.mxu0
  %1410 = vrot.lane.b32.xlu0 %v411, 104
  %v1411 = vpop.permute.xlu0 %1410
  %1412 = vrot.lane.b32.xlu0 %v411, 72
  %v1413 = vpop.permute.xlu0 %1412
  %v1414 = vsel %vm416, %v1411, 0
  %v1416 = vsel %vm416, %v1413, 0
  %1418 = vmatprep.subr.mxu0 0.0
  %1419 = vmatpush1.xpose.msra.mxu0 0.0
  %1420 = vmatprep.subr.mxu0 0.0
  %1421 = vmatpush1.xpose.msra.mxu0 0.0
  %1422 = vmatprep.subr.mxu0 0.0
  %1423 = vmatpush1.xpose.msra.mxu0 0.0
  %1424 = vmatprep.subr.mxu0 0.0
  %1425 = vmatpush1.xpose.msra.mxu0 0.0
  %1426 = vmatprep.subr.mxu0 0.0
  %1427 = vmatpush1.xpose.msra.mxu0 0.0
  %1428 = vmatprep.subr.mxu0 0.0
  %1429 = vmatpush1.xpose.msra.mxu0 0.0
  %1430 = vmatprep.subr.mxu0 0.0
  %1431 = vmatpush1.xpose.msra.mxu0 0.0
  %1432 = vmatprep.subr.mxu0 0.0
  %1433 = vmatpush1.xpose.msra.mxu0 0.0
  %1434 = vmatprep.subr.mxu0 0.0
  %1435 = vmatpush1.xpose.msra.mxu0 0.0
  %1436 = vmatprep.subr.mxu0 0.0
  %1437 = vmatpush1.xpose.msra.mxu0 0.0
  %1438 = vmatprep.subr.mxu0 0.0
  %1439 = vmatpush1.xpose.msra.mxu0 0.0
  %1440 = vmatprep.subr.mxu0 0.0
  %1441 = vmatpush1.xpose.msra.mxu0 0.0
  %1442 = vmatprep.subr.mxu0 0.0
  %1443 = vmatpush1.xpose.msra.mxu0 0.0
  %1444 = vmatprep.subr.mxu0 0.0
  %1445 = vmatpush1.xpose.msra.mxu0 0.0
  %1446 = vmatprep.subr.mxu0 0.0
  %1447 = vmatpush1.xpose.msra.mxu0 0.0
  %1448 = vmatprep.subr.mxu0 0.0
  %1449 = vmatpush1.xpose.msra.mxu0 %v1416
  %1450 = vmatprep.subr.mxu0 0.0
  %1451 = vmatpush2.xpose.msra.mxu0 0.0
  %1452 = vmatprep.subr.mxu0 0.0
  %1453 = vmatpush2.xpose.msra.mxu0 0.0
  %1454 = vmatprep.subr.mxu0 0.0
  %1455 = vmatpush2.xpose.msra.mxu0 0.0
  %1456 = vmatprep.subr.mxu0 0.0
  %1457 = vmatpush2.xpose.msra.mxu0 0.0
  %1458 = vmatprep.subr.mxu0 0.0
  %1459 = vmatpush2.xpose.msra.mxu0 0.0
  %1460 = vmatprep.subr.mxu0 0.0
  %1461 = vmatpush2.xpose.msra.mxu0 0.0
  %1462 = vmatprep.subr.mxu0 0.0
  %1463 = vmatpush2.xpose.msra.mxu0 0.0
  %1464 = vmatprep.subr.mxu0 0.0
  %1465 = vmatpush2.xpose.msra.mxu0 0.0
  %1466 = vmatprep.subr.mxu0 0.0
  %1467 = vmatpush2.xpose.msra.mxu0 0.0
  %1468 = vmatprep.subr.mxu0 0.0
  %1469 = vmatpush2.xpose.msra.mxu0 0.0
  %1470 = vmatprep.subr.mxu0 0.0
  %1471 = vmatpush2.xpose.msra.mxu0 0.0
  %1472 = vmatprep.subr.mxu0 0.0
  %1473 = vmatpush2.xpose.msra.mxu0 0.0
  %1474 = vmatprep.subr.mxu0 0.0
  %1475 = vmatpush2.xpose.msra.mxu0 0.0
  %1476 = vmatprep.subr.mxu0 0.0
  %1477 = vmatpush2.xpose.msra.mxu0 0.0
  %1478 = vmatprep.subr.mxu0 0.0
  %1479 = vmatpush2.xpose.msra.mxu0 0.0
  %1480 = vmatprep.subr.mxu0 0.0
  %1481 = vmatpush2.xpose.msra.mxu0 0.0
  %1482 = vmatprep.mubr.f32.mxu0 0.0
  %1483 = vmatmul.mubr.f32.gmra.mxu0 %v1414
  %v1484 = vpop.f32.mrf.mxu0
  %v1485 = vadd.f32 0.0, %v1484
  %v1486 = vpop.f32.mrf.mxu0
  %1487 = vdwg.mxu0
  %1488 = vrot.lane.b32.xlu0 %v412, 104
  %v1489 = vpop.permute.xlu0 %1488
  %1490 = vrot.lane.b32.xlu0 %v412, 72
  %v1491 = vpop.permute.xlu0 %1490
  %v1492 = vsel %vm416, %v1489, 0
  %v1494 = vsel %vm416, %v1491, 0
  %1496 = vmatprep.subr.mxu0 0.0
  %1497 = vmatpush1.xpose.msra.mxu0 0.0
  %1498 = vmatprep.subr.mxu0 0.0
  %1499 = vmatpush1.xpose.msra.mxu0 0.0
  %1500 = vmatprep.subr.mxu0 0.0
  %1501 = vmatpush1.xpose.msra.mxu0 0.0
  %1502 = vmatprep.subr.mxu0 0.0
  %1503 = vmatpush1.xpose.msra.mxu0 0.0
  %1504 = vmatprep.subr.mxu0 0.0
  %1505 = vmatpush1.xpose.msra.mxu0 0.0
  %1506 = vmatprep.subr.mxu0 0.0
  %1507 = vmatpush1.xpose.msra.mxu0 0.0
  %1508 = vmatprep.subr.mxu0 0.0
  %1509 = vmatpush1.xpose.msra.mxu0 0.0
  %1510 = vmatprep.subr.mxu0 0.0
  %1511 = vmatpush1.xpose.msra.mxu0 0.0
  %1512 = vmatprep.subr.mxu0 0.0
  %1513 = vmatpush1.xpose.msra.mxu0 0.0
  %1514 = vmatprep.subr.mxu0 0.0
  %1515 = vmatpush1.xpose.msra.mxu0 0.0
  %1516 = vmatprep.subr.mxu0 0.0
  %1517 = vmatpush1.xpose.msra.mxu0 0.0
  %1518 = vmatprep.subr.mxu0 0.0
  %1519 = vmatpush1.xpose.msra.mxu0 0.0
  %1520 = vmatprep.subr.mxu0 0.0
  %1521 = vmatpush1.xpose.msra.mxu0 0.0
  %1522 = vmatprep.subr.mxu0 0.0
  %1523 = vmatpush1.xpose.msra.mxu0 0.0
  %1524 = vmatprep.subr.mxu0 0.0
  %1525 = vmatpush1.xpose.msra.mxu0 0.0
  %1526 = vmatprep.subr.mxu0 0.0
  %1527 = vmatpush1.xpose.msra.mxu0 %v1494
  %1528 = vmatprep.subr.mxu0 0.0
  %1529 = vmatpush2.xpose.msra.mxu0 0.0
  %1530 = vmatprep.subr.mxu0 0.0
  %1531 = vmatpush2.xpose.msra.mxu0 0.0
  %1532 = vmatprep.subr.mxu0 0.0
  %1533 = vmatpush2.xpose.msra.mxu0 0.0
  %1534 = vmatprep.subr.mxu0 0.0
  %1535 = vmatpush2.xpose.msra.mxu0 0.0
  %1536 = vmatprep.subr.mxu0 0.0
  %1537 = vmatpush2.xpose.msra.mxu0 0.0
  %1538 = vmatprep.subr.mxu0 0.0
  %1539 = vmatpush2.xpose.msra.mxu0 0.0
  %1540 = vmatprep.subr.mxu0 0.0
  %1541 = vmatpush2.xpose.msra.mxu0 0.0
  %1542 = vmatprep.subr.mxu0 0.0
  %1543 = vmatpush2.xpose.msra.mxu0 0.0
  %1544 = vmatprep.subr.mxu0 0.0
  %1545 = vmatpush2.xpose.msra.mxu0 0.0
  %1546 = vmatprep.subr.mxu0 0.0
  %1547 = vmatpush2.xpose.msra.mxu0 0.0
  %1548 = vmatprep.subr.mxu0 0.0
  %1549 = vmatpush2.xpose.msra.mxu0 0.0
  %1550 = vmatprep.subr.mxu0 0.0
  %1551 = vmatpush2.xpose.msra.mxu0 0.0
  %1552 = vmatprep.subr.mxu0 0.0
  %1553 = vmatpush2.xpose.msra.mxu0 0.0
  %1554 = vmatprep.subr.mxu0 0.0
  %1555 = vmatpush2.xpose.msra.mxu0 0.0
  %1556 = vmatprep.subr.mxu0 0.0
  %1557 = vmatpush2.xpose.msra.mxu0 0.0
  %1558 = vmatprep.subr.mxu0 0.0
  %1559 = vmatpush2.xpose.msra.mxu0 0.0
  %1560 = vmatprep.mubr.f32.mxu0 0.0
  %1561 = vmatmul.mubr.f32.gmra.mxu0 %v1492
  %v1562 = vpop.f32.mrf.mxu0
  %v1563 = vadd.f32 0.0, %v1562
  %v1564 = vpop.f32.mrf.mxu0
  %1565 = vdwg.mxu0
  %v1566 = vmul.f32 %v1485, 0.35355338
  %v1567 = vmul.f32 %v1563, 0.35355338
  %v1568 = vsel %vm416, %v1566, -inf
  %1569 = vmax.xlane.f32.xlu0 %v1568
  %v1570 = vpop.xlane.xlu0 %1569
  %v1571 = vsel %vm416, %v1567, -inf
  %1572 = vmax.xlane.f32.xlu0 %v1571
  %v1573 = vpop.xlane.xlu0 %1572
  %v1574 = vsub.f32 %v1566, %v1570
  %v1575 = vsub.f32 %v1567, %v1573
  %v1576 = vmul.f32 %v1574, 1.442695
  %v1577 = vpow.pop %v1576
  %v1578 = vmul.f32 %v1575, 1.442695
  %v1579 = vpow.pop %v1578
  %v1580 = vsel %vm416, %v1577, 0.0
  %1581 = vadd.xlane.f32.xlu0 %v1580
  %v1582 = vpop.xlane.xlu0 %1581
  %v1583 = vsel %vm416, %v1579, 0.0
  %1584 = vadd.xlane.f32.xlu0 %v1583
  %v1585 = vpop.xlane.xlu0 %1584
  %v1586 = vrcp.pop %v1582
  %v1587 = vmul.f32 %v1577, %v1586
  %v1588 = vrcp.pop %v1585
  %v1589 = vmul.f32 %v1579, %v1588
  %1590 = vrot.lane.b32.xlu0 %v322, 40
  %v1591 = vpop.permute.xlu0 %1590
  %v1594 = vsel %vm416, %v1587, 0
  %1596 = vmatprep.subr.mxu0 0.0
  %1597 = vmatpush1.msra.mxu0 0.0
  %1598 = vmatprep.subr.mxu0 0.0
  %1599 = vmatpush1.msra.mxu0 0.0
  %1600 = vmatprep.subr.mxu0 0.0
  %1601 = vmatpush1.msra.mxu0 0.0
  %1602 = vmatprep.subr.mxu0 0.0
  %1603 = vmatpush1.msra.mxu0 0.0
  %1604 = vmatprep.subr.mxu0 0.0
  %1605 = vmatpush1.msra.mxu0 0.0
  %1606 = vmatprep.subr.mxu0 0.0
  %1607 = vmatpush1.msra.mxu0 0.0
  %1608 = vmatprep.subr.mxu0 0.0
  %1609 = vmatpush1.msra.mxu0 0.0
  %1610 = vmatprep.subr.mxu0 0.0
  %1611 = vmatpush1.msra.mxu0 0.0
  %1612 = vmatprep.subr.mxu0 0.0
  %1613 = vmatpush1.msra.mxu0 0.0
  %1614 = vmatprep.subr.mxu0 0.0
  %1615 = vmatpush1.msra.mxu0 0.0
  %1616 = vmatprep.subr.mxu0 0.0
  %1617 = vmatpush1.msra.mxu0 0.0
  %1618 = vmatprep.subr.mxu0 0.0
  %1619 = vmatpush1.msra.mxu0 0.0
  %1620 = vmatprep.subr.mxu0 0.0
  %1621 = vmatpush1.msra.mxu0 0.0
  %1622 = vmatprep.subr.mxu0 0.0
  %1623 = vmatpush1.msra.mxu0 0.0
  %1624 = vmatprep.subr.mxu0 0.0
  %1625 = vmatpush1.msra.mxu0 0.0
  %1626 = vmatprep.subr.mxu0 0.0
  %1627 = vmatpush1.msra.mxu0 %v1591
  %1628 = vmatprep.subr.mxu0 0.0
  %1629 = vmatpush2.msra.mxu0 0.0
  %1630 = vmatprep.subr.mxu0 0.0
  %1631 = vmatpush2.msra.mxu0 0.0
  %1632 = vmatprep.subr.mxu0 0.0
  %1633 = vmatpush2.msra.mxu0 0.0
  %1634 = vmatprep.subr.mxu0 0.0
  %1635 = vmatpush2.msra.mxu0 0.0
  %1636 = vmatprep.subr.mxu0 0.0
  %1637 = vmatpush2.msra.mxu0 0.0
  %1638 = vmatprep.subr.mxu0 0.0
  %1639 = vmatpush2.msra.mxu0 0.0
  %1640 = vmatprep.subr.mxu0 0.0
  %1641 = vmatpush2.msra.mxu0 0.0
  %1642 = vmatprep.subr.mxu0 0.0
  %1643 = vmatpush2.msra.mxu0 0.0
  %1644 = vmatprep.subr.mxu0 0.0
  %1645 = vmatpush2.msra.mxu0 0.0
  %1646 = vmatprep.subr.mxu0 0.0
  %1647 = vmatpush2.msra.mxu0 0.0
  %1648 = vmatprep.subr.mxu0 0.0
  %1649 = vmatpush2.msra.mxu0 0.0
  %1650 = vmatprep.subr.mxu0 0.0
  %1651 = vmatpush2.msra.mxu0 0.0
  %1652 = vmatprep.subr.mxu0 0.0
  %1653 = vmatpush2.msra.mxu0 0.0
  %1654 = vmatprep.subr.mxu0 0.0
  %1655 = vmatpush2.msra.mxu0 0.0
  %1656 = vmatprep.subr.mxu0 0.0
  %1657 = vmatpush2.msra.mxu0 0.0
  %1658 = vmatprep.subr.mxu0 0.0
  %1659 = vmatpush2.msra.mxu0 0.0
  %1660 = vmatprep.mubr.f32.mxu0 0.0
  %1661 = vmatmul.mubr.f32.gmra.mxu0 %v1594
  %v1662 = vpop.f32.mrf.mxu0
  %v1663 = vadd.f32 0.0, %v1662
  %v1664 = vpop.f32.mrf.mxu0
  %1665 = vdwg.mxu0
  %1666 = vrot.lane.b32.xlu0 %v327, 40
  %v1667 = vpop.permute.xlu0 %1666
  %v1670 = vsel %vm416, %v1589, 0
  %1672 = vmatprep.subr.mxu0 0.0
  %1673 = vmatpush1.msra.mxu0 0.0
  %1674 = vmatprep.subr.mxu0 0.0
  %1675 = vmatpush1.msra.mxu0 0.0
  %1676 = vmatprep.subr.mxu0 0.0
  %1677 = vmatpush1.msra.mxu0 0.0
  %1678 = vmatprep.subr.mxu0 0.0
  %1679 = vmatpush1.msra.mxu0 0.0
  %1680 = vmatprep.subr.mxu0 0.0
  %1681 = vmatpush1.msra.mxu0 0.0
  %1682 = vmatprep.subr.mxu0 0.0
  %1683 = vmatpush1.msra.mxu0 0.0
  %1684 = vmatprep.subr.mxu0 0.0
  %1685 = vmatpush1.msra.mxu0 0.0
  %1686 = vmatprep.subr.mxu0 0.0
  %1687 = vmatpush1.msra.mxu0 0.0
  %1688 = vmatprep.subr.mxu0 0.0
  %1689 = vmatpush1.msra.mxu0 0.0
  %1690 = vmatprep.subr.mxu0 0.0
  %1691 = vmatpush1.msra.mxu0 0.0
  %1692 = vmatprep.subr.mxu0 0.0
  %1693 = vmatpush1.msra.mxu0 0.0
  %1694 = vmatprep.subr.mxu0 0.0
  %1695 = vmatpush1.msra.mxu0 0.0
  %1696 = vmatprep.subr.mxu0 0.0
  %1697 = vmatpush1.msra.mxu0 0.0
  %1698 = vmatprep.subr.mxu0 0.0
  %1699 = vmatpush1.msra.mxu0 0.0
  %1700 = vmatprep.subr.mxu0 0.0
  %1701 = vmatpush1.msra.mxu0 0.0
  %1702 = vmatprep.subr.mxu0 0.0
  %1703 = vmatpush1.msra.mxu0 %v1667
  %1704 = vmatprep.subr.mxu0 0.0
  %1705 = vmatpush2.msra.mxu0 0.0
  %1706 = vmatprep.subr.mxu0 0.0
  %1707 = vmatpush2.msra.mxu0 0.0
  %1708 = vmatprep.subr.mxu0 0.0
  %1709 = vmatpush2.msra.mxu0 0.0
  %1710 = vmatprep.subr.mxu0 0.0
  %1711 = vmatpush2.msra.mxu0 0.0
  %1712 = vmatprep.subr.mxu0 0.0
  %1713 = vmatpush2.msra.mxu0 0.0
  %1714 = vmatprep.subr.mxu0 0.0
  %1715 = vmatpush2.msra.mxu0 0.0
  %1716 = vmatprep.subr.mxu0 0.0
  %1717 = vmatpush2.msra.mxu0 0.0
  %1718 = vmatprep.subr.mxu0 0.0
  %1719 = vmatpush2.msra.mxu0 0.0
  %1720 = vmatprep.subr.mxu0 0.0
  %1721 = vmatpush2.msra.mxu0 0.0
  %1722 = vmatprep.subr.mxu0 0.0
  %1723 = vmatpush2.msra.mxu0 0.0
  %1724 = vmatprep.subr.mxu0 0.0
  %1725 = vmatpush2.msra.mxu0 0.0
  %1726 = vmatprep.subr.mxu0 0.0
  %1727 = vmatpush2.msra.mxu0 0.0
  %1728 = vmatprep.subr.mxu0 0.0
  %1729 = vmatpush2.msra.mxu0 0.0
  %1730 = vmatprep.subr.mxu0 0.0
  %1731 = vmatpush2.msra.mxu0 0.0
  %1732 = vmatprep.subr.mxu0 0.0
  %1733 = vmatpush2.msra.mxu0 0.0
  %1734 = vmatprep.subr.mxu0 0.0
  %1735 = vmatpush2.msra.mxu0 0.0
  %1736 = vmatprep.mubr.f32.mxu0 0.0
  %1737 = vmatmul.mubr.f32.gmra.mxu0 %v1670
  %v1738 = vpop.f32.mrf.mxu0
  %v1739 = vadd.f32 0.0, %v1738
  %v1740 = vpop.f32.mrf.mxu0
  %1741 = vdwg.mxu0
  %1744 = vrot.lane.b32.xlu0 %v999, 8
  %v1745 = vpop.permute.xlu0 %1744
  %1746 = vrot.lane.b32.xlu0 %v1075, 8
  %v1747 = vpop.permute.xlu0 %1746
  %1752 = vrot.lane.b32.xlu0 %v1331, 16
  %v1753 = vpop.permute.xlu0 %1752
  %1754 = vrot.lane.b32.xlu0 %v1407, 16
  %v1755 = vpop.permute.xlu0 %1754
  %1760 = vrot.lane.b32.xlu0 %v1663, 24
  %v1761 = vpop.permute.xlu0 %1760
  %1762 = vrot.lane.b32.xlu0 %v1739, 24
  %v1763 = vpop.permute.xlu0 %1762
  %v1766 = vsel %vm416, %v666, %v1745
  %v1767 = vsel %vm416, %v743, %v1747
  %vm1768 = vcmask 130048
  %v1769 = vsel %vm1768, %v1766, %v1753
  %v1770 = vsel %vm1768, %v1767, %v1755
  %vm1771 = vcmask 195584
  %v1772 = vsel %vm1771, %v1769, %v1761
  %v1773 = vsel %vm1771, %v1770, %v1763
  %v1774 = vld [vmem:[%s1 + $0x28] sm:$0xff]
  %v1775 = vld [vmem:[%s1 + $0x30] sm:$0xff]
  %v1776 = vld [vmem:[%s1 + $0x38] sm:$0xff]
  %v1777 = vld [vmem:[%s1 + $0x40] sm:$0xff]
  %v1778 = vld [vmem:[%s1 + $0x48] sm:$0x1]
  %v1779 = vlaneseq
  %v1780 = vshrl.u32 %v1779, 7
  %v1781 = vsub.s32 0, %v1780
  %v1782 = vrot.slane %v1778, %v1781
  %v1784 = vsel %vm36, %v1772, 0
  %v1787 = vsel %vm36, %v1773, 0
  %1789 = vmatprep.subr.mxu0 0.0
  %1790 = vmatpush1.msra.mxu0 0.0
  %1791 = vmatprep.subr.mxu0 0.0
  %1792 = vmatpush1.msra.mxu0 0.0
  %1793 = vmatprep.subr.mxu0 0.0
  %1794 = vmatpush1.msra.mxu0 0.0
  %1795 = vmatprep.subr.mxu0 0.0
  %1796 = vmatpush1.msra.mxu0 0.0
  %1797 = vmatprep.subr.mxu0 0.0
  %1798 = vmatpush1.msra.mxu0 0.0
  %1799 = vmatprep.subr.mxu0 0.0
  %1800 = vmatpush1.msra.mxu0 0.0
  %1801 = vmatprep.subr.mxu0 0.0
  %1802 = vmatpush1.msra.mxu0 0.0
  %1803 = vmatprep.subr.mxu0 0.0
  %1804 = vmatpush1.msra.mxu0 0.0
  %1805 = vmatprep.subr.mxu0 0.0
  %1806 = vmatpush1.msra.mxu0 0.0
  %1807 = vmatprep.subr.mxu0 0.0
  %1808 = vmatpush1.msra.mxu0 0.0
  %1809 = vmatprep.subr.mxu0 0.0
  %1810 = vmatpush1.msra.mxu0 0.0
  %1811 = vmatprep.subr.mxu0 0.0
  %1812 = vmatpush1.msra.mxu0 0.0
  %1813 = vmatprep.subr.mxu0 0.0
  %1814 = vmatpush1.msra.mxu0 %v1777
  %1815 = vmatprep.subr.mxu0 0.0
  %1816 = vmatpush1.msra.mxu0 %v1776
  %1817 = vmatprep.subr.mxu0 0.0
  %1818 = vmatpush1.msra.mxu0 %v1775
  %1819 = vmatprep.subr.mxu0 0.0
  %1820 = vmatpush1.msra.mxu0 %v1774
  %1821 = vmatprep.subr.mxu0 0.0
  %1822 = vmatpush2.msra.mxu0 0.0
  %1823 = vmatprep.subr.mxu0 0.0
  %1824 = vmatpush2.msra.mxu0 0.0
  %1825 = vmatprep.subr.mxu0 0.0
  %1826 = vmatpush2.msra.mxu0 0.0
  %1827 = vmatprep.subr.mxu0 0.0
  %1828 = vmatpush2.msra.mxu0 0.0
  %1829 = vmatprep.subr.mxu0 0.0
  %1830 = vmatpush2.msra.mxu0 0.0
  %1831 = vmatprep.subr.mxu0 0.0
  %1832 = vmatpush2.msra.mxu0 0.0
  %1833 = vmatprep.subr.mxu0 0.0
  %1834 = vmatpush2.msra.mxu0 0.0
  %1835 = vmatprep.subr.mxu0 0.0
  %1836 = vmatpush2.msra.mxu0 0.0
  %1837 = vmatprep.subr.mxu0 0.0
  %1838 = vmatpush2.msra.mxu0 0.0
  %1839 = vmatprep.subr.mxu0 0.0
  %1840 = vmatpush2.msra.mxu0 0.0
  %1841 = vmatprep.subr.mxu0 0.0
  %1842 = vmatpush2.msra.mxu0 0.0
  %1843 = vmatprep.subr.mxu0 0.0
  %1844 = vmatpush2.msra.mxu0 0.0
  %1845 = vmatprep.subr.mxu0 0.0
  %1846 = vmatpush2.msra.mxu0 0.0
  %1847 = vmatprep.subr.mxu0 0.0
  %1848 = vmatpush2.msra.mxu0 0.0
  %1849 = vmatprep.subr.mxu0 0.0
  %1850 = vmatpush2.msra.mxu0 0.0
  %1851 = vmatprep.subr.mxu0 0.0
  %1852 = vmatpush2.msra.mxu0 0.0
  %1853 = vmatprep.mubr.f32.mxu0 0.0
  %1854 = vmatmul.mubr.f32.gmra.mxu0 %v1784
  %v1855 = vpop.f32.mrf.mxu0
  %v1856 = vadd.f32 %v1782, %v1855
  %v1857 = vpop.f32.mrf.mxu0
  %1858 = vmatprep.mubr.f32.mxu0 0.0
  %1859 = vmatmul.mubr.f32.gmra.mxu0 %v1787
  %v1860 = vpop.f32.mrf.mxu0
  %v1861 = vadd.f32 %v1782, %v1860
  %v1862 = vpop.f32.mrf.mxu0
  %1863 = vdwg.mxu0
  %v1864 = vadd.f32 %v11, %v1856
  %v1865 = vadd.f32 %v12, %v1861
  %v1866 = vld [vmem:[%s1 + $0x110] sm:$0x1]
  %v1867 = vld [vmem:[%s1 + $0x118] sm:$0x1]
  %v1868 = vsel %vm36, %v1864, 0.0
  %1869 = vadd.xlane.f32.xlu0 %v1868
  %v1870 = vpop.xlane.xlu0 %1869
  %v1871 = vsel %vm36, %v1865, 0.0
  %1872 = vadd.xlane.f32.xlu0 %v1871
  %v1873 = vpop.xlane.xlu0 %1872
  %v1874 = vrcp.pop 32.0
  %v1875 = vmul.f32 %v1870, %v1874
  %v1876 = vmul.f32 %v1873, %v1874
  %v1877 = vsub.f32 %v1864, %v1875
  %v1878 = vsub.f32 %v1865, %v1876
  %v1879 = vmul.f32 %v1877, %v1877
  %v1880 = vmul.f32 %v1878, %v1878
  %v1881 = vsel %vm36, %v1879, 0.0
  %1882 = vadd.xlane.f32.xlu0 %v1881
  %v1883 = vpop.xlane.xlu0 %1882
  %v1884 = vsel %vm36, %v1880, 0.0
  %1885 = vadd.xlane.f32.xlu0 %v1884
  %v1886 = vpop.xlane.xlu0 %1885
  %v1887 = vmul.f32 %v1883, %v1874
  %v1888 = vmul.f32 %v1886, %v1874
  %v1889 = vadd.f32 %v1887, 1e-05
  %v1890 = vadd.f32 %v1888, 1e-05
  %v1891 = vrsqrt.pop %v1889
  %v1892 = vrsqrt.pop %v1890
  %v1893 = vmul.f32 %v1877, %v1891
  %v1894 = vmul.f32 %v1878, %v1892
  %v1895 = vlaneseq
  %v1896 = vshrl.u32 %v1895, 7
  %v1897 = vsub.s32 0, %v1896
  %v1898 = vrot.slane %v1866, %v1897
  %v1899 = vmul.f32 %v1893, %v1898
  %v1900 = vmul.f32 %v1894, %v1898
  %v1901 = vlaneseq
  %v1902 = vshrl.u32 %v1901, 7
  %v1903 = vsub.s32 0, %v1902
  %v1904 = vrot.slane %v1867, %v1903
  %v1905 = vadd.f32 %v1899, %v1904
  %v1906 = vadd.f32 %v1900, %v1904
  %v1907 = vadd.f32 %v1905, %v13
  %v1908 = vadd.f32 %v1906, %v14
  %v1909 = vld [vmem:[%s1 + $0x50] sm:$0xff]
  %v1910 = vld [vmem:[%s1 + $0x58] sm:$0xff]
  %v1911 = vld [vmem:[%s1 + $0x60] sm:$0xff]
  %v1912 = vld [vmem:[%s1 + $0x68] sm:$0xff]
  %v1913 = vld [vmem:[%s1 + $0x70] sm:$0x1]
  %v1914 = vlaneseq
  %v1915 = vshrl.u32 %v1914, 7
  %v1916 = vsub.s32 0, %v1915
  %v1917 = vrot.slane %v1913, %v1916
  %v1919 = vsel %vm36, %v1907, 0
  %v1922 = vsel %vm36, %v1908, 0
  %1924 = vmatprep.subr.mxu0 0.0
  %1925 = vmatpush1.msra.mxu0 0.0
  %1926 = vmatprep.subr.mxu0 0.0
  %1927 = vmatpush1.msra.mxu0 0.0
  %1928 = vmatprep.subr.mxu0 0.0
  %1929 = vmatpush1.msra.mxu0 0.0
  %1930 = vmatprep.subr.mxu0 0.0
  %1931 = vmatpush1.msra.mxu0 0.0
  %1932 = vmatprep.subr.mxu0 0.0
  %1933 = vmatpush1.msra.mxu0 0.0
  %1934 = vmatprep.subr.mxu0 0.0
  %1935 = vmatpush1.msra.mxu0 0.0
  %1936 = vmatprep.subr.mxu0 0.0
  %1937 = vmatpush1.msra.mxu0 0.0
  %1938 = vmatprep.subr.mxu0 0.0
  %1939 = vmatpush1.msra.mxu0 0.0
  %1940 = vmatprep.subr.mxu0 0.0
  %1941 = vmatpush1.msra.mxu0 0.0
  %1942 = vmatprep.subr.mxu0 0.0
  %1943 = vmatpush1.msra.mxu0 0.0
  %1944 = vmatprep.subr.mxu0 0.0
  %1945 = vmatpush1.msra.mxu0 0.0
  %1946 = vmatprep.subr.mxu0 0.0
  %1947 = vmatpush1.msra.mxu0 0.0
  %1948 = vmatprep.subr.mxu0 0.0
  %1949 = vmatpush1.msra.mxu0 %v1912
  %1950 = vmatprep.subr.mxu0 0.0
  %1951 = vmatpush1.msra.mxu0 %v1911
  %1952 = vmatprep.subr.mxu0 0.0
  %1953 = vmatpush1.msra.mxu0 %v1910
  %1954 = vmatprep.subr.mxu0 0.0
  %1955 = vmatpush1.msra.mxu0 %v1909
  %1956 = vmatprep.subr.mxu0 0.0
  %1957 = vmatpush2.msra.mxu0 0.0
  %1958 = vmatprep.subr.mxu0 0.0
  %1959 = vmatpush2.msra.mxu0 0.0
  %1960 = vmatprep.subr.mxu0 0.0
  %1961 = vmatpush2.msra.mxu0 0.0
  %1962 = vmatprep.subr.mxu0 0.0
  %1963 = vmatpush2.msra.mxu0 0.0
  %1964 = vmatprep.subr.mxu0 0.0
  %1965 = vmatpush2.msra.mxu0 0.0
  %1966 = vmatprep.subr.mxu0 0.0
  %1967 = vmatpush2.msra.mxu0 0.0
  %1968 = vmatprep.subr.mxu0 0.0
  %1969 = vmatpush2.msra.mxu0 0.0
  %1970 = vmatprep.subr.mxu0 0.0
  %1971 = vmatpush2.msra.mxu0 0.0
  %1972 = vmatprep.subr.mxu0 0.0
  %1973 = vmatpush2.msra.mxu0 0.0
  %1974 = vmatprep.subr.mxu0 0.0
  %1975 = vmatpush2.msra.mxu0 0.0
  %1976 = vmatprep.subr.mxu0 0.0
  %1977 = vmatpush2.msra.mxu0 0.0
  %1978 = vmatprep.subr.mxu0 0.0
  %1979 = vmatpush2.msra.mxu0 0.0
  %1980 = vmatprep.subr.mxu0 0.0
  %1981 = vmatpush2.msra.mxu0 0.0
  %1982 = vmatprep.subr.mxu0 0.0
  %1983 = vmatpush2.msra.mxu0 0.0
  %1984 = vmatprep.subr.mxu0 0.0
  %1985 = vmatpush2.msra.mxu0 0.0
  %1986 = vmatprep.subr.mxu0 0.0
  %1987 = vmatpush2.msra.mxu0 0.0
  %1988 = vmatprep.mubr.f32.mxu0 0.0
  %1989 = vmatmul.mubr.f32.gmra.mxu0 %v1919
  %v1990 = vpop.f32.mrf.mxu0
  %v1991 = vadd.f32 %v1917, %v1990
  %v1992 = vpop.f32.mrf.mxu0
  %1993 = vmatprep.mubr.f32.mxu0 0.0
  %1994 = vmatmul.mubr.f32.gmra.mxu0 %v1922
  %v1995 = vpop.f32.mrf.mxu0
  %v1996 = vadd.f32 %v1917, %v1995
  %v1997 = vpop.f32.mrf.mxu0
  %1998 = vdwg.mxu0
  %v2000 = vsel %vm416, %v1991, 0
  %v2003 = vsel %vm416, %v116, 0
  %v2006 = vsel %vm416, %v121, 0
  %2008 = vmatprep.subr.mxu0 0.0
  %2009 = vmatpush1.xpose.msra.mxu0 0.0
  %2010 = vmatprep.subr.mxu0 0.0
  %2011 = vmatpush1.xpose.msra.mxu0 0.0
  %2012 = vmatprep.subr.mxu0 0.0
  %2013 = vmatpush1.xpose.msra.mxu0 0.0
  %2014 = vmatprep.subr.mxu0 0.0
  %2015 = vmatpush1.xpose.msra.mxu0 0.0
  %2016 = vmatprep.subr.mxu0 0.0
  %2017 = vmatpush1.xpose.msra.mxu0 0.0
  %2018 = vmatprep.subr.mxu0 0.0
  %2019 = vmatpush1.xpose.msra.mxu0 0.0
  %2020 = vmatprep.subr.mxu0 0.0
  %2021 = vmatpush1.xpose.msra.mxu0 0.0
  %2022 = vmatprep.subr.mxu0 0.0
  %2023 = vmatpush1.xpose.msra.mxu0 0.0
  %2024 = vmatprep.subr.mxu0 0.0
  %2025 = vmatpush1.xpose.msra.mxu0 0.0
  %2026 = vmatprep.subr.mxu0 0.0
  %2027 = vmatpush1.xpose.msra.mxu0 0.0
  %2028 = vmatprep.subr.mxu0 0.0
  %2029 = vmatpush1.xpose.msra.mxu0 0.0
  %2030 = vmatprep.subr.mxu0 0.0
  %2031 = vmatpush1.xpose.msra.mxu0 0.0
  %2032 = vmatprep.subr.mxu0 0.0
  %2033 = vmatpush1.xpose.msra.mxu0 0.0
  %2034 = vmatprep.subr.mxu0 0.0
  %2035 = vmatpush1.xpose.msra.mxu0 0.0
  %2036 = vmatprep.subr.mxu0 0.0
  %2037 = vmatpush1.xpose.msra.mxu0 %v2006
  %2038 = vmatprep.subr.mxu0 0.0
  %2039 = vmatpush1.xpose.msra.mxu0 %v2003
  %2040 = vmatprep.subr.mxu0 0.0
  %2041 = vmatpush2.xpose.msra.mxu0 0.0
  %2042 = vmatprep.subr.mxu0 0.0
  %2043 = vmatpush2.xpose.msra.mxu0 0.0
  %2044 = vmatprep.subr.mxu0 0.0
  %2045 = vmatpush2.xpose.msra.mxu0 0.0
  %2046 = vmatprep.subr.mxu0 0.0
  %2047 = vmatpush2.xpose.msra.mxu0 0.0
  %2048 = vmatprep.subr.mxu0 0.0
  %2049 = vmatpush2.xpose.msra.mxu0 0.0
  %2050 = vmatprep.subr.mxu0 0.0
  %2051 = vmatpush2.xpose.msra.mxu0 0.0
  %2052 = vmatprep.subr.mxu0 0.0
  %2053 = vmatpush2.xpose.msra.mxu0 0.0
  %2054 = vmatprep.subr.mxu0 0.0
  %2055 = vmatpush2.xpose.msra.mxu0 0.0
  %2056 = vmatprep.subr.mxu0 0.0
  %2057 = vmatpush2.xpose.msra.mxu0 0.0
  %2058 = vmatprep.subr.mxu0 0.0
  %2059 = vmatpush2.xpose.msra.mxu0 0.0
  %2060 = vmatprep.subr.mxu0 0.0
  %2061 = vmatpush2.xpose.msra.mxu0 0.0
  %2062 = vmatprep.subr.mxu0 0.0
  %2063 = vmatpush2.xpose.msra.mxu0 0.0
  %2064 = vmatprep.subr.mxu0 0.0
  %2065 = vmatpush2.xpose.msra.mxu0 0.0
  %2066 = vmatprep.subr.mxu0 0.0
  %2067 = vmatpush2.xpose.msra.mxu0 0.0
  %2068 = vmatprep.subr.mxu0 0.0
  %2069 = vmatpush2.xpose.msra.mxu0 0.0
  %2070 = vmatprep.subr.mxu0 0.0
  %2071 = vmatpush2.xpose.msra.mxu0 0.0
  %2072 = vmatprep.mubr.f32.mxu0 0.0
  %2073 = vmatmul.mubr.f32.gmra.mxu0 %v2000
  %v2074 = vpop.f32.mrf.mxu0
  %v2075 = vadd.f32 0.0, %v2074
  %v2076 = vpop.f32.mrf.mxu0
  %2077 = vdwg.mxu0
  %v2079 = vsel %vm416, %v1996, 0
  %v2082 = vsel %vm416, %v126, 0
  %v2085 = vsel %vm416, %v131, 0
  %2087 = vmatprep.subr.mxu0 0.0
  %2088 = vmatpush1.xpose.msra.mxu0 0.0
  %2089 = vmatprep.subr.mxu0 0.0
  %2090 = vmatpush1.xpose.msra.mxu0 0.0
  %2091 = vmatprep.subr.mxu0 0.0
  %2092 = vmatpush1.xpose.msra.mxu0 0.0
  %2093 = vmatprep.subr.mxu0 0.0
  %2094 = vmatpush1.xpose.msra.mxu0 0.0
  %2095 = vmatprep.subr.mxu0 0.0
  %2096 = vmatpush1.xpose.msra.mxu0 0.0
  %2097 = vmatprep.subr.mxu0 0.0
  %2098 = vmatpush1.xpose.msra.mxu0 0.0
  %2099 = vmatprep.subr.mxu0 0.0
  %2100 = vmatpush1.xpose.msra.mxu0 0.0
  %2101 = vmatprep.subr.mxu0 0.0
  %2102 = vmatpush1.xpose.msra.mxu0 0.0
  %2103 = vmatprep.subr.mxu0 0.0
  %2104 = vmatpush1.xpose.msra.mxu0 0.0
  %2105 = vmatprep.subr.mxu0 0.0
  %2106 = vmatpush1.xpose.msra.mxu0 0.0
  %2107 = vmatprep.subr.mxu0 0.0
  %2108 = vmatpush1.xpose.msra.mxu0 0.0
  %2109 = vmatprep.subr.mxu0 0.0
  %2110 = vmatpush1.xpose.msra.mxu0 0.0
  %2111 = vmatprep.subr.mxu0 0.0
  %2112 = vmatpush1.xpose.msra.mxu0 0.0
  %2113 = vmatprep.subr.mxu0 0.0
  %2114 = vmatpush1.xpose.msra.mxu0 0.0
  %2115 = vmatprep.subr.mxu0 0.0
  %2116 = vmatpush1.xpose.msra.mxu0 %v2085
  %2117 = vmatprep.subr.mxu0 0.0
  %2118 = vmatpush1.xpose.msra.mxu0 %v2082
  %2119 = vmatprep.subr.mxu0 0.0
  %2120 = vmatpush2.xpose.msra.mxu0 0.0
  %2121 = vmatprep.subr.mxu0 0.0
  %2122 = vmatpush2.xpose.msra.mxu0 0.0
  %2123 = vmatprep.subr.mxu0 0.0
  %2124 = vmatpush2.xpose.msra.mxu0 0.0
  %2125 = vmatprep.subr.mxu0 0.0
  %2126 = vmatpush2.xpose.msra.mxu0 0.0
  %2127 = vmatprep.subr.mxu0 0.0
  %2128 = vmatpush2.xpose.msra.mxu0 0.0
  %2129 = vmatprep.subr.mxu0 0.0
  %2130 = vmatpush2.xpose.msra.mxu0 0.0
  %2131 = vmatprep.subr.mxu0 0.0
  %2132 = vmatpush2.xpose.msra.mxu0 0.0
  %2133 = vmatprep.subr.mxu0 0.0
  %2134 = vmatpush2.xpose.msra.mxu0 0.0
  %2135 = vmatprep.subr.mxu0 0.0
  %2136 = vmatpush2.xpose.msra.mxu0 0.0
  %2137 = vmatprep.subr.mxu0 0.0
  %2138 = vmatpush2.xpose.msra.mxu0 0.0
  %2139 = vmatprep.subr.mxu0 0.0
  %2140 = vmatpush2.xpose.msra.mxu0 0.0
  %2141 = vmatprep.subr.mxu0 0.0
  %2142 = vmatpush2.xpose.msra.mxu0 0.0
  %2143 = vmatprep.subr.mxu0 0.0
  %2144 = vmatpush2.xpose.msra.mxu0 0.0
  %2145 = vmatprep.subr.mxu0 0.0
  %2146 = vmatpush2.xpose.msra.mxu0 0.0
  %2147 = vmatprep.subr.mxu0 0.0
  %2148 = vmatpush2.xpose.msra.mxu0 0.0
  %2149 = vmatprep.subr.mxu0 0.0
  %2150 = vmatpush2.xpose.msra.mxu0 0.0
  %2151 = vmatprep.mubr.f32.mxu0 0.0
  %2152 = vmatmul.mubr.f32.gmra.mxu0 %v2079
  %v2153 = vpop.f32.mrf.mxu0
  %v2154 = vadd.f32 0.0, %v2153
  %v2155 = vpop.f32.mrf.mxu0
  %2156 = vdwg.mxu0
  %v2157 = vmul.f32 %v2075, 0.35355338
  %v2158 = vmul.f32 %v2154, 0.35355338
  %v2159 = vsel %vm1768, %v2157, -inf
  %2160 = vmax.xlane.f32.xlu0 %v2159
  %v2161 = vpop.xlane.xlu0 %2160
  %v2162 = vsel %vm1768, %v2158, -inf
  %2163 = vmax.xlane.f32.xlu0 %v2162
  %v2164 = vpop.xlane.xlu0 %2163
  %v2165 = vsub.f32 %v2157, %v2161
  %v2166 = vsub.f32 %v2158, %v2164
  %v2167 = vmul.f32 %v2165, 1.442695
  %v2168 = vpow.pop %v2167
  %v2169 = vmul.f32 %v2166, 1.442695
  %v2170 = vpow.pop %v2169
  %v2171 = vsel %vm1768, %v2168, 0.0
  %2172 = vadd.xlane.f32.xlu0 %v2171
  %v2173 = vpop.xlane.xlu0 %2172
  %v2174 = vsel %vm1768, %v2170, 0.0
  %2175 = vadd.xlane.f32.xlu0 %v2174
  %v2176 = vpop.xlane.xlu0 %2175
  %v2177 = vrcp.pop %v2173
  %v2178 = vmul.f32 %v2168, %v2177
  %v2179 = vrcp.pop %v2176
  %v2180 = vmul.f32 %v2170, %v2179
  %v2182 = vsel %vm1768, %v2178, 0
  %2184 = vmatprep.subr.mxu0 0.0
  %2185 = vmatpush1.msra.mxu0 0.0
  %2186 = vmatprep.subr.mxu0 0.0
  %2187 = vmatpush1.msra.mxu0 0.0
  %2188 = vmatprep.subr.mxu0 0.0
  %2189 = vmatpush1.msra.mxu0 0.0
  %2190 = vmatprep.subr.mxu0 0.0
  %2191 = vmatpush1.msra.mxu0 0.0
  %2192 = vmatprep.subr.mxu0 0.0
  %2193 = vmatpush1.msra.mxu0 0.0
  %2194 = vmatprep.subr.mxu0 0.0
  %2195 = vmatpush1.msra.mxu0 0.0
  %2196 = vmatprep.subr.mxu0 0.0
  %2197 = vmatpush1.msra.mxu0 0.0
  %2198 = vmatprep.subr.mxu0 0.0
  %2199 = vmatpush1.msra.mxu0 0.0
  %2200 = vmatprep.subr.mxu0 0.0
  %2201 = vmatpush1.msra.mxu0 0.0
  %2202 = vmatprep.subr.mxu0 0.0
  %2203 = vmatpush1.msra.mxu0 0.0
  %2204 = vmatprep.subr.mxu0 0.0
  %2205 = vmatpush1.msra.mxu0 0.0
  %2206 = vmatprep.subr.mxu0 0.0
  %2207 = vmatpush1.msra.mxu0 0.0
  %2208 = vmatprep.subr.mxu0 0.0
  %2209 = vmatpush1.msra.mxu0 0.0
  %2210 = vmatprep.subr.mxu0 0.0
  %2211 = vmatpush1.msra.mxu0 0.0
  %2212 = vmatprep.subr.mxu0 0.0
  %2213 = vmatpush1.msra.mxu0 %v227
  %2214 = vmatprep.subr.mxu0 0.0
  %2215 = vmatpush1.msra.mxu0 %v222
  %2216 = vmatprep.subr.mxu0 0.0
  %2217 = vmatpush2.msra.mxu0 0.0
  %2218 = vmatprep.subr.mxu0 0.0
  %2219 = vmatpush2.msra.mxu0 0.0
  %2220 = vmatprep.subr.mxu0 0.0
  %2221 = vmatpush2.msra.mxu0 0.0
  %2222 = vmatprep.subr.mxu0 0.0
  %2223 = vmatpush2.msra.mxu0 0.0
  %2224 = vmatprep.subr.mxu0 0.0
  %2225 = vmatpush2.msra.mxu0 0.0
  %2226 = vmatprep.subr.mxu0 0.0
  %2227 = vmatpush2.msra.mxu0 0.0
  %2228 = vmatprep.subr.mxu0 0.0
  %2229 = vmatpush2.msra.mxu0 0.0
  %2230 = vmatprep.subr.mxu0 0.0
  %2231 = vmatpush2.msra.mxu0 0.0
  %2232 = vmatprep.subr.mxu0 0.0
  %2233 = vmatpush2.msra.mxu0 0.0
  %2234 = vmatprep.subr.mxu0 0.0
  %2235 = vmatpush2.msra.mxu0 0.0
  %2236 = vmatprep.subr.mxu0 0.0
  %2237 = vmatpush2.msra.mxu0 0.0
  %2238 = vmatprep.subr.mxu0 0.0
  %2239 = vmatpush2.msra.mxu0 0.0
  %2240 = vmatprep.subr.mxu0 0.0
  %2241 = vmatpush2.msra.mxu0 0.0
  %2242 = vmatprep.subr.mxu0 0.0
  %2243 = vmatpush2.msra.mxu0 0.0
  %2244 = vmatprep.subr.mxu0 0.0
  %2245 = vmatpush2.msra.mxu0 0.0
  %2246 = vmatprep.subr.mxu0 0.0
  %2247 = vmatpush2.msra.mxu0 0.0
  %2248 = vmatprep.mubr.f32.mxu0 0.0
  %2249 = vmatmul.mubr.f32.gmra.mxu0 %v2182
  %v2250 = vpop.f32.mrf.mxu0
  %v2251 = vadd.f32 0.0, %v2250
  %v2252 = vpop.f32.mrf.mxu0
  %2253 = vdwg.mxu0
  %v2255 = vsel %vm1768, %v2180, 0
  %2257 = vmatprep.subr.mxu0 0.0
  %2258 = vmatpush1.msra.mxu0 0.0
  %2259 = vmatprep.subr.mxu0 0.0
  %2260 = vmatpush1.msra.mxu0 0.0
  %2261 = vmatprep.subr.mxu0 0.0
  %2262 = vmatpush1.msra.mxu0 0.0
  %2263 = vmatprep.subr.mxu0 0.0
  %2264 = vmatpush1.msra.mxu0 0.0
  %2265 = vmatprep.subr.mxu0 0.0
  %2266 = vmatpush1.msra.mxu0 0.0
  %2267 = vmatprep.subr.mxu0 0.0
  %2268 = vmatpush1.msra.mxu0 0.0
  %2269 = vmatprep.subr.mxu0 0.0
  %2270 = vmatpush1.msra.mxu0 0.0
  %2271 = vmatprep.subr.mxu0 0.0
  %2272 = vmatpush1.msra.mxu0 0.0
  %2273 = vmatprep.subr.mxu0 0.0
  %2274 = vmatpush1.msra.mxu0 0.0
  %2275 = vmatprep.subr.mxu0 0.0
  %2276 = vmatpush1.msra.mxu0 0.0
  %2277 = vmatprep.subr.mxu0 0.0
  %2278 = vmatpush1.msra.mxu0 0.0
  %2279 = vmatprep.subr.mxu0 0.0
  %2280 = vmatpush1.msra.mxu0 0.0
  %2281 = vmatprep.subr.mxu0 0.0
  %2282 = vmatpush1.msra.mxu0 0.0
  %2283 = vmatprep.subr.mxu0 0.0
  %2284 = vmatpush1.msra.mxu0 0.0
  %2285 = vmatprep.subr.mxu0 0.0
  %2286 = vmatpush1.msra.mxu0 %v237
  %2287 = vmatprep.subr.mxu0 0.0
  %2288 = vmatpush1.msra.mxu0 %v232
  %2289 = vmatprep.subr.mxu0 0.0
  %2290 = vmatpush2.msra.mxu0 0.0
  %2291 = vmatprep.subr.mxu0 0.0
  %2292 = vmatpush2.msra.mxu0 0.0
  %2293 = vmatprep.subr.mxu0 0.0
  %2294 = vmatpush2.msra.mxu0 0.0
  %2295 = vmatprep.subr.mxu0 0.0
  %2296 = vmatpush2.msra.mxu0 0.0
  %2297 = vmatprep.subr.mxu0 0.0
  %2298 = vmatpush2.msra.mxu0 0.0
  %2299 = vmatprep.subr.mxu0 0.0
  %2300 = vmatpush2.msra.mxu0 0.0
  %2301 = vmatprep.subr.mxu0 0.0
  %2302 = vmatpush2.msra.mxu0 0.0
  %2303 = vmatprep.subr.mxu0 0.0
  %2304 = vmatpush2.msra.mxu0 0.0
  %2305 = vmatprep.subr.mxu0 0.0
  %2306 = vmatpush2.msra.mxu0 0.0
  %2307 = vmatprep.subr.mxu0 0.0
  %2308 = vmatpush2.msra.mxu0 0.0
  %2309 = vmatprep.subr.mxu0 0.0
  %2310 = vmatpush2.msra.mxu0 0.0
  %2311 = vmatprep.subr.mxu0 0.0
  %2312 = vmatpush2.msra.mxu0 0.0
  %2313 = vmatprep.subr.mxu0 0.0
  %2314 = vmatpush2.msra.mxu0 0.0
  %2315 = vmatprep.subr.mxu0 0.0
  %2316 = vmatpush2.msra.mxu0 0.0
  %2317 = vmatprep.subr.mxu0 0.0
  %2318 = vmatpush2.msra.mxu0 0.0
  %2319 = vmatprep.subr.mxu0 0.0
  %2320 = vmatpush2.msra.mxu0 0.0
  %2321 = vmatprep.mubr.f32.mxu0 0.0
  %2322 = vmatmul.mubr.f32.gmra.mxu0 %v2255
  %v2323 = vpop.f32.mrf.mxu0
  %v2324 = vadd.f32 0.0, %v2323
  %v2325 = vpop.f32.mrf.mxu0
  %2326 = vdwg.mxu0
  %2327 = vrot.lane.b32.xlu0 %v1991, 120
  %v2328 = vpop.permute.xlu0 %2327
  %2329 = vrot.lane.b32.xlu0 %v116, 120
  %v2330 = vpop.permute.xlu0 %2329
  %2331 = vrot.lane.b32.xlu0 %v121, 120
  %v2332 = vpop.permute.xlu0 %2331
  %v2333 = vsel %vm416, %v2328, 0
  %v2335 = vsel %vm416, %v2330, 0
  %v2337 = vsel %vm416, %v2332, 0
  %2339 = vmatprep.subr.mxu0 0.0
  %2340 = vmatpush1.xpose.msra.mxu0 0.0
  %2341 = vmatprep.subr.mxu0 0.0
  %2342 = vmatpush1.xpose.msra.mxu0 0.0
  %2343 = vmatprep.subr.mxu0 0.0
  %2344 = vmatpush1.xpose.msra.mxu0 0.0
  %2345 = vmatprep.subr.mxu0 0.0
  %2346 = vmatpush1.xpose.msra.mxu0 0.0
  %2347 = vmatprep.subr.mxu0 0.0
  %2348 = vmatpush1.xpose.msra.mxu0 0.0
  %2349 = vmatprep.subr.mxu0 0.0
  %2350 = vmatpush1.xpose.msra.mxu0 0.0
  %2351 = vmatprep.subr.mxu0 0.0
  %2352 = vmatpush1.xpose.msra.mxu0 0.0
  %2353 = vmatprep.subr.mxu0 0.0
  %2354 = vmatpush1.xpose.msra.mxu0 0.0
  %2355 = vmatprep.subr.mxu0 0.0
  %2356 = vmatpush1.xpose.msra.mxu0 0.0
  %2357 = vmatprep.subr.mxu0 0.0
  %2358 = vmatpush1.xpose.msra.mxu0 0.0
  %2359 = vmatprep.subr.mxu0 0.0
  %2360 = vmatpush1.xpose.msra.mxu0 0.0
  %2361 = vmatprep.subr.mxu0 0.0
  %2362 = vmatpush1.xpose.msra.mxu0 0.0
  %2363 = vmatprep.subr.mxu0 0.0
  %2364 = vmatpush1.xpose.msra.mxu0 0.0
  %2365 = vmatprep.subr.mxu0 0.0
  %2366 = vmatpush1.xpose.msra.mxu0 0.0
  %2367 = vmatprep.subr.mxu0 0.0
  %2368 = vmatpush1.xpose.msra.mxu0 %v2337
  %2369 = vmatprep.subr.mxu0 0.0
  %2370 = vmatpush1.xpose.msra.mxu0 %v2335
  %2371 = vmatprep.subr.mxu0 0.0
  %2372 = vmatpush2.xpose.msra.mxu0 0.0
  %2373 = vmatprep.subr.mxu0 0.0
  %2374 = vmatpush2.xpose.msra.mxu0 0.0
  %2375 = vmatprep.subr.mxu0 0.0
  %2376 = vmatpush2.xpose.msra.mxu0 0.0
  %2377 = vmatprep.subr.mxu0 0.0
  %2378 = vmatpush2.xpose.msra.mxu0 0.0
  %2379 = vmatprep.subr.mxu0 0.0
  %2380 = vmatpush2.xpose.msra.mxu0 0.0
  %2381 = vmatprep.subr.mxu0 0.0
  %2382 = vmatpush2.xpose.msra.mxu0 0.0
  %2383 = vmatprep.subr.mxu0 0.0
  %2384 = vmatpush2.xpose.msra.mxu0 0.0
  %2385 = vmatprep.subr.mxu0 0.0
  %2386 = vmatpush2.xpose.msra.mxu0 0.0
  %2387 = vmatprep.subr.mxu0 0.0
  %2388 = vmatpush2.xpose.msra.mxu0 0.0
  %2389 = vmatprep.subr.mxu0 0.0
  %2390 = vmatpush2.xpose.msra.mxu0 0.0
  %2391 = vmatprep.subr.mxu0 0.0
  %2392 = vmatpush2.xpose.msra.mxu0 0.0
  %2393 = vmatprep.subr.mxu0 0.0
  %2394 = vmatpush2.xpose.msra.mxu0 0.0
  %2395 = vmatprep.subr.mxu0 0.0
  %2396 = vmatpush2.xpose.msra.mxu0 0.0
  %2397 = vmatprep.subr.mxu0 0.0
  %2398 = vmatpush2.xpose.msra.mxu0 0.0
  %2399 = vmatprep.subr.mxu0 0.0
  %2400 = vmatpush2.xpose.msra.mxu0 0.0
  %2401 = vmatprep.subr.mxu0 0.0
  %2402 = vmatpush2.xpose.msra.mxu0 0.0
  %2403 = vmatprep.mubr.f32.mxu0 0.0
  %2404 = vmatmul.mubr.f32.gmra.mxu0 %v2333
  %v2405 = vpop.f32.mrf.mxu0
  %v2406 = vadd.f32 0.0, %v2405
  %v2407 = vpop.f32.mrf.mxu0
  %2408 = vdwg.mxu0
  %2409 = vrot.lane.b32.xlu0 %v1996, 120
  %v2410 = vpop.permute.xlu0 %2409
  %2411 = vrot.lane.b32.xlu0 %v126, 120
  %v2412 = vpop.permute.xlu0 %2411
  %2413 = vrot.lane.b32.xlu0 %v131, 120
  %v2414 = vpop.permute.xlu0 %2413
  %v2415 = vsel %vm416, %v2410, 0
  %v2417 = vsel %vm416, %v2412, 0
  %v2419 = vsel %vm416, %v2414, 0
  %2421 = vmatprep.subr.mxu0 0.0
  %2422 = vmatpush1.xpose.msra.mxu0 0.0
  %2423 = vmatprep.subr.mxu0 0.0
  %2424 = vmatpush1.xpose.msra.mxu0 0.0
  %2425 = vmatprep.subr.mxu0 0.0
  %2426 = vmatpush1.xpose.msra.mxu0 0.0
  %2427 = vmatprep.subr.mxu0 0.0
  %2428 = vmatpush1.xpose.msra.mxu0 0.0
  %2429 = vmatprep.subr.mxu0 0.0
  %2430 = vmatpush1.xpose.msra.mxu0 0.0
  %2431 = vmatprep.subr.mxu0 0.0
  %2432 = vmatpush1.xpose.msra.mxu0 0.0
  %2433 = vmatprep.subr.mxu0 0.0
  %2434 = vmatpush1.xpose.msra.mxu0 0.0
  %2435 = vmatprep.subr.mxu0 0.0
  %2436 = vmatpush1.xpose.msra.mxu0 0.0
  %2437 = vmatprep.subr.mxu0 0.0
  %2438 = vmatpush1.xpose.msra.mxu0 0.0
  %2439 = vmatprep.subr.mxu0 0.0
  %2440 = vmatpush1.xpose.msra.mxu0 0.0
  %2441 = vmatprep.subr.mxu0 0.0
  %2442 = vmatpush1.xpose.msra.mxu0 0.0
  %2443 = vmatprep.subr.mxu0 0.0
  %2444 = vmatpush1.xpose.msra.mxu0 0.0
  %2445 = vmatprep.subr.mxu0 0.0
  %2446 = vmatpush1.xpose.msra.mxu0 0.0
  %2447 = vmatprep.subr.mxu0 0.0
  %2448 = vmatpush1.xpose.msra.mxu0 0.0
  %2449 = vmatprep.subr.mxu0 0.0
  %2450 = vmatpush1.xpose.msra.mxu0 %v2419
  %2451 = vmatprep.subr.mxu0 0.0
  %2452 = vmatpush1.xpose.msra.mxu0 %v2417
  %2453 = vmatprep.subr.mxu0 0.0
  %2454 = vmatpush2.xpose.msra.mxu0 0.0
  %2455 = vmatprep.subr.mxu0 0.0
  %2456 = vmatpush2.xpose.msra.mxu0 0.0
  %2457 = vmatprep.subr.mxu0 0.0
  %2458 = vmatpush2.xpose.msra.mxu0 0.0
  %2459 = vmatprep.subr.mxu0 0.0
  %2460 = vmatpush2.xpose.msra.mxu0 0.0
  %2461 = vmatprep.subr.mxu0 0.0
  %2462 = vmatpush2.xpose.msra.mxu0 0.0
  %2463 = vmatprep.subr.mxu0 0.0
  %2464 = vmatpush2.xpose.msra.mxu0 0.0
  %2465 = vmatprep.subr.mxu0 0.0
  %2466 = vmatpush2.xpose.msra.mxu0 0.0
  %2467 = vmatprep.subr.mxu0 0.0
  %2468 = vmatpush2.xpose.msra.mxu0 0.0
  %2469 = vmatprep.subr.mxu0 0.0
  %2470 = vmatpush2.xpose.msra.mxu0 0.0
  %2471 = vmatprep.subr.mxu0 0.0
  %2472 = vmatpush2.xpose.msra.mxu0 0.0
  %2473 = vmatprep.subr.mxu0 0.0
  %2474 = vmatpush2.xpose.msra.mxu0 0.0
  %2475 = vmatprep.subr.mxu0 0.0
  %2476 = vmatpush2.xpose.msra.mxu0 0.0
  %2477 = vmatprep.subr.mxu0 0.0
  %2478 = vmatpush2.xpose.msra.mxu0 0.0
  %2479 = vmatprep.subr.mxu0 0.0
  %2480 = vmatpush2.xpose.msra.mxu0 0.0
  %2481 = vmatprep.subr.mxu0 0.0
  %2482 = vmatpush2.xpose.msra.mxu0 0.0
  %2483 = vmatprep.subr.mxu0 0.0
  %2484 = vmatpush2.xpose.msra.mxu0 0.0
  %2485 = vmatprep.mubr.f32.mxu0 0.0
  %2486 = vmatmul.mubr.f32.gmra.mxu0 %v2415
  %v2487 = vpop.f32.mrf.mxu0
  %v2488 = vadd.f32 0.0, %v2487
  %v2489 = vpop.f32.mrf.mxu0
  %2490 = vdwg.mxu0
  %v2491 = vmul.f32 %v2406, 0.35355338
  %v2492 = vmul.f32 %v2488, 0.35355338
  %v2493 = vsel %vm1768, %v2491, -inf
  %2494 = vmax.xlane.f32.xlu0 %v2493
  %v2495 = vpop.xlane.xlu0 %2494
  %v2496 = vsel %vm1768, %v2492, -inf
  %2497 = vmax.xlane.f32.xlu0 %v2496
  %v2498 = vpop.xlane.xlu0 %2497
  %v2499 = vsub.f32 %v2491, %v2495
  %v2500 = vsub.f32 %v2492, %v2498
  %v2501 = vmul.f32 %v2499, 1.442695
  %v2502 = vpow.pop %v2501
  %v2503 = vmul.f32 %v2500, 1.442695
  %v2504 = vpow.pop %v2503
  %v2505 = vsel %vm1768, %v2502, 0.0
  %2506 = vadd.xlane.f32.xlu0 %v2505
  %v2507 = vpop.xlane.xlu0 %2506
  %v2508 = vsel %vm1768, %v2504, 0.0
  %2509 = vadd.xlane.f32.xlu0 %v2508
  %v2510 = vpop.xlane.xlu0 %2509
  %v2511 = vrcp.pop %v2507
  %v2512 = vmul.f32 %v2502, %v2511
  %v2513 = vrcp.pop %v2510
  %v2514 = vmul.f32 %v2504, %v2513
  %2517 = vrot.lane.b32.xlu0 %v222, 120
  %v2518 = vpop.permute.xlu0 %2517
  %2519 = vrot.lane.b32.xlu0 %v227, 120
  %v2520 = vpop.permute.xlu0 %2519
  %v2524 = vsel %vm1768, %v2512, 0
  %2526 = vmatprep.subr.mxu0 0.0
  %2527 = vmatpush1.msra.mxu0 0.0
  %2528 = vmatprep.subr.mxu0 0.0
  %2529 = vmatpush1.msra.mxu0 0.0
  %2530 = vmatprep.subr.mxu0 0.0
  %2531 = vmatpush1.msra.mxu0 0.0
  %2532 = vmatprep.subr.mxu0 0.0
  %2533 = vmatpush1.msra.mxu0 0.0
  %2534 = vmatprep.subr.mxu0 0.0
  %2535 = vmatpush1.msra.mxu0 0.0
  %2536 = vmatprep.subr.mxu0 0.0
  %2537 = vmatpush1.msra.mxu0 0.0
  %2538 = vmatprep.subr.mxu0 0.0
  %2539 = vmatpush1.msra.mxu0 0.0
  %2540 = vmatprep.subr.mxu0 0.0
  %2541 = vmatpush1.msra.mxu0 0.0
  %2542 = vmatprep.subr.mxu0 0.0
  %2543 = vmatpush1.msra.mxu0 0.0
  %2544 = vmatprep.subr.mxu0 0.0
  %2545 = vmatpush1.msra.mxu0 0.0
  %2546 = vmatprep.subr.mxu0 0.0
  %2547 = vmatpush1.msra.mxu0 0.0
  %2548 = vmatprep.subr.mxu0 0.0
  %2549 = vmatpush1.msra.mxu0 0.0
  %2550 = vmatprep.subr.mxu0 0.0
  %2551 = vmatpush1.msra.mxu0 0.0
  %2552 = vmatprep.subr.mxu0 0.0
  %2553 = vmatpush1.msra.mxu0 0.0
  %2554 = vmatprep.subr.mxu0 0.0
  %2555 = vmatpush1.msra.mxu0 %v2520
  %2556 = vmatprep.subr.mxu0 0.0
  %2557 = vmatpush1.msra.mxu0 %v2518
  %2558 = vmatprep.subr.mxu0 0.0
  %2559 = vmatpush2.msra.mxu0 0.0
  %2560 = vmatprep.subr.mxu0 0.0
  %2561 = vmatpush2.msra.mxu0 0.0
  %2562 = vmatprep.subr.mxu0 0.0
  %2563 = vmatpush2.msra.mxu0 0.0
  %2564 = vmatprep.subr.mxu0 0.0
  %2565 = vmatpush2.msra.mxu0 0.0
  %2566 = vmatprep.subr.mxu0 0.0
  %2567 = vmatpush2.msra.mxu0 0.0
  %2568 = vmatprep.subr.mxu0 0.0
  %2569 = vmatpush2.msra.mxu0 0.0
  %2570 = vmatprep.subr.mxu0 0.0
  %2571 = vmatpush2.msra.mxu0 0.0
  %2572 = vmatprep.subr.mxu0 0.0
  %2573 = vmatpush2.msra.mxu0 0.0
  %2574 = vmatprep.subr.mxu0 0.0
  %2575 = vmatpush2.msra.mxu0 0.0
  %2576 = vmatprep.subr.mxu0 0.0
  %2577 = vmatpush2.msra.mxu0 0.0
  %2578 = vmatprep.subr.mxu0 0.0
  %2579 = vmatpush2.msra.mxu0 0.0
  %2580 = vmatprep.subr.mxu0 0.0
  %2581 = vmatpush2.msra.mxu0 0.0
  %2582 = vmatprep.subr.mxu0 0.0
  %2583 = vmatpush2.msra.mxu0 0.0
  %2584 = vmatprep.subr.mxu0 0.0
  %2585 = vmatpush2.msra.mxu0 0.0
  %2586 = vmatprep.subr.mxu0 0.0
  %2587 = vmatpush2.msra.mxu0 0.0
  %2588 = vmatprep.subr.mxu0 0.0
  %2589 = vmatpush2.msra.mxu0 0.0
  %2590 = vmatprep.mubr.f32.mxu0 0.0
  %2591 = vmatmul.mubr.f32.gmra.mxu0 %v2524
  %v2592 = vpop.f32.mrf.mxu0
  %v2593 = vadd.f32 0.0, %v2592
  %v2594 = vpop.f32.mrf.mxu0
  %2595 = vdwg.mxu0
  %2598 = vrot.lane.b32.xlu0 %v232, 120
  %v2599 = vpop.permute.xlu0 %2598
  %2600 = vrot.lane.b32.xlu0 %v237, 120
  %v2601 = vpop.permute.xlu0 %2600
  %v2605 = vsel %vm1768, %v2514, 0
  %2607 = vmatprep.subr.mxu0 0.0
  %2608 = vmatpush1.msra.mxu0 0.0
  %2609 = vmatprep.subr.mxu0 0.0
  %2610 = vmatpush1.msra.mxu0 0.0
  %2611 = vmatprep.subr.mxu0 0.0
  %2612 = vmatpush1.msra.mxu0 0.0
  %2613 = vmatprep.subr.mxu0 0.0
  %2614 = vmatpush1.msra.mxu0 0.0
  %2615 = vmatprep.subr.mxu0 0.0
  %2616 = vmatpush1.msra.mxu0 0.0
  %2617 = vmatprep.subr.mxu0 0.0
  %2618 = vmatpush1.msra.mxu0 0.0
  %2619 = vmatprep.subr.mxu0 0.0
  %2620 = vmatpush1.msra.mxu0 0.0
  %2621 = vmatprep.subr.mxu0 0.0
  %2622 = vmatpush1.msra.mxu0 0.0
  %2623 = vmatprep.subr.mxu0 0.0
  %2624 = vmatpush1.msra.mxu0 0.0
  %2625 = vmatprep.subr.mxu0 0.0
  %2626 = vmatpush1.msra.mxu0 0.0
  %2627 = vmatprep.subr.mxu0 0.0
  %2628 = vmatpush1.msra.mxu0 0.0
  %2629 = vmatprep.subr.mxu0 0.0
  %2630 = vmatpush1.msra.mxu0 0.0
  %2631 = vmatprep.subr.mxu0 0.0
  %2632 = vmatpush1.msra.mxu0 0.0
  %2633 = vmatprep.subr.mxu0 0.0
  %2634 = vmatpush1.msra.mxu0 0.0
  %2635 = vmatprep.subr.mxu0 0.0
  %2636 = vmatpush1.msra.mxu0 %v2601
  %2637 = vmatprep.subr.mxu0 0.0
  %2638 = vmatpush1.msra.mxu0 %v2599
  %2639 = vmatprep.subr.mxu0 0.0
  %2640 = vmatpush2.msra.mxu0 0.0
  %2641 = vmatprep.subr.mxu0 0.0
  %2642 = vmatpush2.msra.mxu0 0.0
  %2643 = vmatprep.subr.mxu0 0.0
  %2644 = vmatpush2.msra.mxu0 0.0
  %2645 = vmatprep.subr.mxu0 0.0
  %2646 = vmatpush2.msra.mxu0 0.0
  %2647 = vmatprep.subr.mxu0 0.0
  %2648 = vmatpush2.msra.mxu0 0.0
  %2649 = vmatprep.subr.mxu0 0.0
  %2650 = vmatpush2.msra.mxu0 0.0
  %2651 = vmatprep.subr.mxu0 0.0
  %2652 = vmatpush2.msra.mxu0 0.0
  %2653 = vmatprep.subr.mxu0 0.0
  %2654 = vmatpush2.msra.mxu0 0.0
  %2655 = vmatprep.subr.mxu0 0.0
  %2656 = vmatpush2.msra.mxu0 0.0
  %2657 = vmatprep.subr.mxu0 0.0
  %2658 = vmatpush2.msra.mxu0 0.0
  %2659 = vmatprep.subr.mxu0 0.0
  %2660 = vmatpush2.msra.mxu0 0.0
  %2661 = vmatprep.subr.mxu0 0.0
  %2662 = vmatpush2.msra.mxu0 0.0
  %2663 = vmatprep.subr.mxu0 0.0
  %2664 = vmatpush2.msra.mxu0 0.0
  %2665 = vmatprep.subr.mxu0 0.0
  %2666 = vmatpush2.msra.mxu0 0.0
  %2667 = vmatprep.subr.mxu0 0.0
  %2668 = vmatpush2.msra.mxu0 0.0
  %2669 = vmatprep.subr.mxu0 0.0
  %2670 = vmatpush2.msra.mxu0 0.0
  %2671 = vmatprep.mubr.f32.mxu0 0.0
  %2672 = vmatmul.mubr.f32.gmra.mxu0 %v2605
  %v2673 = vpop.f32.mrf.mxu0
  %v2674 = vadd.f32 0.0, %v2673
  %v2675 = vpop.f32.mrf.mxu0
  %2676 = vdwg.mxu0
  %2677 = vrot.lane.b32.xlu0 %v1991, 112
  %v2678 = vpop.permute.xlu0 %2677
  %2679 = vrot.lane.b32.xlu0 %v116, 112
  %v2680 = vpop.permute.xlu0 %2679
  %2681 = vrot.lane.b32.xlu0 %v121, 112
  %v2682 = vpop.permute.xlu0 %2681
  %v2683 = vsel %vm416, %v2678, 0
  %v2685 = vsel %vm416, %v2680, 0
  %v2687 = vsel %vm416, %v2682, 0
  %2689 = vmatprep.subr.mxu0 0.0
  %2690 = vmatpush1.xpose.msra.mxu0 0.0
  %2691 = vmatprep.subr.mxu0 0.0
  %2692 = vmatpush1.xpose.msra.mxu0 0.0
  %2693 = vmatprep.subr.mxu0 0.0
  %2694 = vmatpush1.xpose.msra.mxu0 0.0
  %2695 = vmatprep.subr.mxu0 0.0
  %2696 = vmatpush1.xpose.msra.mxu0 0.0
  %2697 = vmatprep.subr.mxu0 0.0
  %2698 = vmatpush1.xpose.msra.mxu0 0.0
  %2699 = vmatprep.subr.mxu0 0.0
  %2700 = vmatpush1.xpose.msra.mxu0 0.0
  %2701 = vmatprep.subr.mxu0 0.0
  %2702 = vmatpush1.xpose.msra.mxu0 0.0
  %2703 = vmatprep.subr.mxu0 0.0
  %2704 = vmatpush1.xpose.msra.mxu0 0.0
  %2705 = vmatprep.subr.mxu0 0.0
  %2706 = vmatpush1.xpose.msra.mxu0 0.0
  %2707 = vmatprep.subr.mxu0 0.0
  %2708 = vmatpush1.xpose.msra.mxu0 0.0
  %2709 = vmatprep.subr.mxu0 0.0
  %2710 = vmatpush1.xpose.msra.mxu0 0.0
  %2711 = vmatprep.subr.mxu0 0.0
  %2712 = vmatpush1.xpose.msra.mxu0 0.0
  %2713 = vmatprep.subr.mxu0 0.0
  %2714 = vmatpush1.xpose.msra.mxu0 0.0
  %2715 = vmatprep.subr.mxu0 0.0
  %2716 = vmatpush1.xpose.msra.mxu0 0.0
  %2717 = vmatprep.subr.mxu0 0.0
  %2718 = vmatpush1.xpose.msra.mxu0 %v2687
  %2719 = vmatprep.subr.mxu0 0.0
  %2720 = vmatpush1.xpose.msra.mxu0 %v2685
  %2721 = vmatprep.subr.mxu0 0.0
  %2722 = vmatpush2.xpose.msra.mxu0 0.0
  %2723 = vmatprep.subr.mxu0 0.0
  %2724 = vmatpush2.xpose.msra.mxu0 0.0
  %2725 = vmatprep.subr.mxu0 0.0
  %2726 = vmatpush2.xpose.msra.mxu0 0.0
  %2727 = vmatprep.subr.mxu0 0.0
  %2728 = vmatpush2.xpose.msra.mxu0 0.0
  %2729 = vmatprep.subr.mxu0 0.0
  %2730 = vmatpush2.xpose.msra.mxu0 0.0
  %2731 = vmatprep.subr.mxu0 0.0
  %2732 = vmatpush2.xpose.msra.mxu0 0.0
  %2733 = vmatprep.subr.mxu0 0.0
  %2734 = vmatpush2.xpose.msra.mxu0 0.0
  %2735 = vmatprep.subr.mxu0 0.0
  %2736 = vmatpush2.xpose.msra.mxu0 0.0
  %2737 = vmatprep.subr.mxu0 0.0
  %2738 = vmatpush2.xpose.msra.mxu0 0.0
  %2739 = vmatprep.subr.mxu0 0.0
  %2740 = vmatpush2.xpose.msra.mxu0 0.0
  %2741 = vmatprep.subr.mxu0 0.0
  %2742 = vmatpush2.xpose.msra.mxu0 0.0
  %2743 = vmatprep.subr.mxu0 0.0
  %2744 = vmatpush2.xpose.msra.mxu0 0.0
  %2745 = vmatprep.subr.mxu0 0.0
  %2746 = vmatpush2.xpose.msra.mxu0 0.0
  %2747 = vmatprep.subr.mxu0 0.0
  %2748 = vmatpush2.xpose.msra.mxu0 0.0
  %2749 = vmatprep.subr.mxu0 0.0
  %2750 = vmatpush2.xpose.msra.mxu0 0.0
  %2751 = vmatprep.subr.mxu0 0.0
  %2752 = vmatpush2.xpose.msra.mxu0 0.0
  %2753 = vmatprep.mubr.f32.mxu0 0.0
  %2754 = vmatmul.mubr.f32.gmra.mxu0 %v2683
  %v2755 = vpop.f32.mrf.mxu0
  %v2756 = vadd.f32 0.0, %v2755
  %v2757 = vpop.f32.mrf.mxu0
  %2758 = vdwg.mxu0
  %2759 = vrot.lane.b32.xlu0 %v1996, 112
  %v2760 = vpop.permute.xlu0 %2759
  %2761 = vrot.lane.b32.xlu0 %v126, 112
  %v2762 = vpop.permute.xlu0 %2761
  %2763 = vrot.lane.b32.xlu0 %v131, 112
  %v2764 = vpop.permute.xlu0 %2763
  %v2765 = vsel %vm416, %v2760, 0
  %v2767 = vsel %vm416, %v2762, 0
  %v2769 = vsel %vm416, %v2764, 0
  %2771 = vmatprep.subr.mxu0 0.0
  %2772 = vmatpush1.xpose.msra.mxu0 0.0
  %2773 = vmatprep.subr.mxu0 0.0
  %2774 = vmatpush1.xpose.msra.mxu0 0.0
  %2775 = vmatprep.subr.mxu0 0.0
  %2776 = vmatpush1.xpose.msra.mxu0 0.0
  %2777 = vmatprep.subr.mxu0 0.0
  %2778 = vmatpush1.xpose.msra.mxu0 0.0
  %2779 = vmatprep.subr.mxu0 0.0
  %2780 = vmatpush1.xpose.msra.mxu0 0.0
  %2781 = vmatprep.subr.mxu0 0.0
  %2782 = vmatpush1.xpose.msra.mxu0 0.0
  %2783 = vmatprep.subr.mxu0 0.0
  %2784 = vmatpush1.xpose.msra.mxu0 0.0
  %2785 = vmatprep.subr.mxu0 0.0
  %2786 = vmatpush1.xpose.msra.mxu0 0.0
  %2787 = vmatprep.subr.mxu0 0.0
  %2788 = vmatpush1.xpose.msra.mxu0 0.0
  %2789 = vmatprep.subr.mxu0 0.0
  %2790 = vmatpush1.xpose.msra.mxu0 0.0
  %2791 = vmatprep.subr.mxu0 0.0
  %2792 = vmatpush1.xpose.msra.mxu0 0.0
  %2793 = vmatprep.subr.mxu0 0.0
  %2794 = vmatpush1.xpose.msra.mxu0 0.0
  %2795 = vmatprep.subr.mxu0 0.0
  %2796 = vmatpush1.xpose.msra.mxu0 0.0
  %2797 = vmatprep.subr.mxu0 0.0
  %2798 = vmatpush1.xpose.msra.mxu0 0.0
  %2799 = vmatprep.subr.mxu0 0.0
  %2800 = vmatpush1.xpose.msra.mxu0 %v2769
  %2801 = vmatprep.subr.mxu0 0.0
  %2802 = vmatpush1.xpose.msra.mxu0 %v2767
  %2803 = vmatprep.subr.mxu0 0.0
  %2804 = vmatpush2.xpose.msra.mxu0 0.0
  %2805 = vmatprep.subr.mxu0 0.0
  %2806 = vmatpush2.xpose.msra.mxu0 0.0
  %2807 = vmatprep.subr.mxu0 0.0
  %2808 = vmatpush2.xpose.msra.mxu0 0.0
  %2809 = vmatprep.subr.mxu0 0.0
  %2810 = vmatpush2.xpose.msra.mxu0 0.0
  %2811 = vmatprep.subr.mxu0 0.0
  %2812 = vmatpush2.xpose.msra.mxu0 0.0
  %2813 = vmatprep.subr.mxu0 0.0
  %2814 = vmatpush2.xpose.msra.mxu0 0.0
  %2815 = vmatprep.subr.mxu0 0.0
  %2816 = vmatpush2.xpose.msra.mxu0 0.0
  %2817 = vmatprep.subr.mxu0 0.0
  %2818 = vmatpush2.xpose.msra.mxu0 0.0
  %2819 = vmatprep.subr.mxu0 0.0
  %2820 = vmatpush2.xpose.msra.mxu0 0.0
  %2821 = vmatprep.subr.mxu0 0.0
  %2822 = vmatpush2.xpose.msra.mxu0 0.0
  %2823 = vmatprep.subr.mxu0 0.0
  %2824 = vmatpush2.xpose.msra.mxu0 0.0
  %2825 = vmatprep.subr.mxu0 0.0
  %2826 = vmatpush2.xpose.msra.mxu0 0.0
  %2827 = vmatprep.subr.mxu0 0.0
  %2828 = vmatpush2.xpose.msra.mxu0 0.0
  %2829 = vmatprep.subr.mxu0 0.0
  %2830 = vmatpush2.xpose.msra.mxu0 0.0
  %2831 = vmatprep.subr.mxu0 0.0
  %2832 = vmatpush2.xpose.msra.mxu0 0.0
  %2833 = vmatprep.subr.mxu0 0.0
  %2834 = vmatpush2.xpose.msra.mxu0 0.0
  %2835 = vmatprep.mubr.f32.mxu0 0.0
  %2836 = vmatmul.mubr.f32.gmra.mxu0 %v2765
  %v2837 = vpop.f32.mrf.mxu0
  %v2838 = vadd.f32 0.0, %v2837
  %v2839 = vpop.f32.mrf.mxu0
  %2840 = vdwg.mxu0
  %v2841 = vmul.f32 %v2756, 0.35355338
  %v2842 = vmul.f32 %v2838, 0.35355338
  %v2843 = vsel %vm1768, %v2841, -inf
  %2844 = vmax.xlane.f32.xlu0 %v2843
  %v2845 = vpop.xlane.xlu0 %2844
  %v2846 = vsel %vm1768, %v2842, -inf
  %2847 = vmax.xlane.f32.xlu0 %v2846
  %v2848 = vpop.xlane.xlu0 %2847
  %v2849 = vsub.f32 %v2841, %v2845
  %v2850 = vsub.f32 %v2842, %v2848
  %v2851 = vmul.f32 %v2849, 1.442695
  %v2852 = vpow.pop %v2851
  %v2853 = vmul.f32 %v2850, 1.442695
  %v2854 = vpow.pop %v2853
  %v2855 = vsel %vm1768, %v2852, 0.0
  %2856 = vadd.xlane.f32.xlu0 %v2855
  %v2857 = vpop.xlane.xlu0 %2856
  %v2858 = vsel %vm1768, %v2854, 0.0
  %2859 = vadd.xlane.f32.xlu0 %v2858
  %v2860 = vpop.xlane.xlu0 %2859
  %v2861 = vrcp.pop %v2857
  %v2862 = vmul.f32 %v2852, %v2861
  %v2863 = vrcp.pop %v2860
  %v2864 = vmul.f32 %v2854, %v2863
  %2865 = vrot.lane.b32.xlu0 %v222, 112
  %v2866 = vpop.permute.xlu0 %2865
  %2867 = vrot.lane.b32.xlu0 %v227, 112
  %v2868 = vpop.permute.xlu0 %2867
  %v2872 = vsel %vm1768, %v2862, 0
  %2874 = vmatprep.subr.mxu0 0.0
  %2875 = vmatpush1.msra.mxu0 0.0
  %2876 = vmatprep.subr.mxu0 0.0
  %2877 = vmatpush1.msra.mxu0 0.0
  %2878 = vmatprep.subr.mxu0 0.0
  %2879 = vmatpush1.msra.mxu0 0.0
  %2880 = vmatprep.subr.mxu0 0.0
  %2881 = vmatpush1.msra.mxu0 0.0
  %2882 = vmatprep.subr.mxu0 0.0
  %2883 = vmatpush1.msra.mxu0 0.0
  %2884 = vmatprep.subr.mxu0 0.0
  %2885 = vmatpush1.msra.mxu0 0.0
  %2886 = vmatprep.subr.mxu0 0.0
  %2887 = vmatpush1.msra.mxu0 0.0
  %2888 = vmatprep.subr.mxu0 0.0
  %2889 = vmatpush1.msra.mxu0 0.0
  %2890 = vmatprep.subr.mxu0 0.0
  %2891 = vmatpush1.msra.mxu0 0.0
  %2892 = vmatprep.subr.mxu0 0.0
  %2893 = vmatpush1.msra.mxu0 0.0
  %2894 = vmatprep.subr.mxu0 0.0
  %2895 = vmatpush1.msra.mxu0 0.0
  %2896 = vmatprep.subr.mxu0 0.0
  %2897 = vmatpush1.msra.mxu0 0.0
  %2898 = vmatprep.subr.mxu0 0.0
  %2899 = vmatpush1.msra.mxu0 0.0
  %2900 = vmatprep.subr.mxu0 0.0
  %2901 = vmatpush1.msra.mxu0 0.0
  %2902 = vmatprep.subr.mxu0 0.0
  %2903 = vmatpush1.msra.mxu0 %v2868
  %2904 = vmatprep.subr.mxu0 0.0
  %2905 = vmatpush1.msra.mxu0 %v2866
  %2906 = vmatprep.subr.mxu0 0.0
  %2907 = vmatpush2.msra.mxu0 0.0
  %2908 = vmatprep.subr.mxu0 0.0
  %2909 = vmatpush2.msra.mxu0 0.0
  %2910 = vmatprep.subr.mxu0 0.0
  %2911 = vmatpush2.msra.mxu0 0.0
  %2912 = vmatprep.subr.mxu0 0.0
  %2913 = vmatpush2.msra.mxu0 0.0
  %2914 = vmatprep.subr.mxu0 0.0
  %2915 = vmatpush2.msra.mxu0 0.0
  %2916 = vmatprep.subr.mxu0 0.0
  %2917 = vmatpush2.msra.mxu0 0.0
  %2918 = vmatprep.subr.mxu0 0.0
  %2919 = vmatpush2.msra.mxu0 0.0
  %2920 = vmatprep.subr.mxu0 0.0
  %2921 = vmatpush2.msra.mxu0 0.0
  %2922 = vmatprep.subr.mxu0 0.0
  %2923 = vmatpush2.msra.mxu0 0.0
  %2924 = vmatprep.subr.mxu0 0.0
  %2925 = vmatpush2.msra.mxu0 0.0
  %2926 = vmatprep.subr.mxu0 0.0
  %2927 = vmatpush2.msra.mxu0 0.0
  %2928 = vmatprep.subr.mxu0 0.0
  %2929 = vmatpush2.msra.mxu0 0.0
  %2930 = vmatprep.subr.mxu0 0.0
  %2931 = vmatpush2.msra.mxu0 0.0
  %2932 = vmatprep.subr.mxu0 0.0
  %2933 = vmatpush2.msra.mxu0 0.0
  %2934 = vmatprep.subr.mxu0 0.0
  %2935 = vmatpush2.msra.mxu0 0.0
  %2936 = vmatprep.subr.mxu0 0.0
  %2937 = vmatpush2.msra.mxu0 0.0
  %2938 = vmatprep.mubr.f32.mxu0 0.0
  %2939 = vmatmul.mubr.f32.gmra.mxu0 %v2872
  %v2940 = vpop.f32.mrf.mxu0
  %v2941 = vadd.f32 0.0, %v2940
  %v2942 = vpop.f32.mrf.mxu0
  %2943 = vdwg.mxu0
  %2944 = vrot.lane.b32.xlu0 %v232, 112
  %v2945 = vpop.permute.xlu0 %2944
  %2946 = vrot.lane.b32.xlu0 %v237, 112
  %v2947 = vpop.permute.xlu0 %2946
  %v2951 = vsel %vm1768, %v2864, 0
  %2953 = vmatprep.subr.mxu0 0.0
  %2954 = vmatpush1.msra.mxu0 0.0
  %2955 = vmatprep.subr.mxu0 0.0
  %2956 = vmatpush1.msra.mxu0 0.0
  %2957 = vmatprep.subr.mxu0 0.0
  %2958 = vmatpush1.msra.mxu0 0.0
  %2959 = vmatprep.subr.mxu0 0.0
  %2960 = vmatpush1.msra.mxu0 0.0
  %2961 = vmatprep.subr.mxu0 0.0
  %2962 = vmatpush1.msra.mxu0 0.0
  %2963 = vmatprep.subr.mxu0 0.0
  %2964 = vmatpush1.msra.mxu0 0.0
  %2965 = vmatprep.subr.mxu0 0.0
  %2966 = vmatpush1.msra.mxu0 0.0
  %2967 = vmatprep.subr.mxu0 0.0
  %2968 = vmatpush1.msra.mxu0 0.0
  %2969 = vmatprep.subr.mxu0 0.0
  %2970 = vmatpush1.msra.mxu0 0.0
  %2971 = vmatprep.subr.mxu0 0.0
  %2972 = vmatpush1.msra.mxu0 0.0
  %2973 = vmatprep.subr.mxu0 0.0
  %2974 = vmatpush1.msra.mxu0 0.0
  %2975 = vmatprep.subr.mxu0 0.0
  %2976 = vmatpush1.msra.mxu0 0.0
  %2977 = vmatprep.subr.mxu0 0.0
  %2978 = vmatpush1.msra.mxu0 0.0
  %2979 = vmatprep.subr.mxu0 0.0
  %2980 = vmatpush1.msra.mxu0 0.0
  %2981 = vmatprep.subr.mxu0 0.0
  %2982 = vmatpush1.msra.mxu0 %v2947
  %2983 = vmatprep.subr.mxu0 0.0
  %2984 = vmatpush1.msra.mxu0 %v2945
  %2985 = vmatprep.subr.mxu0 0.0
  %2986 = vmatpush2.msra.mxu0 0.0
  %2987 = vmatprep.subr.mxu0 0.0
  %2988 = vmatpush2.msra.mxu0 0.0
  %2989 = vmatprep.subr.mxu0 0.0
  %2990 = vmatpush2.msra.mxu0 0.0
  %2991 = vmatprep.subr.mxu0 0.0
  %2992 = vmatpush2.msra.mxu0 0.0
  %2993 = vmatprep.subr.mxu0 0.0
  %2994 = vmatpush2.msra.mxu0 0.0
  %2995 = vmatprep.subr.mxu0 0.0
  %2996 = vmatpush2.msra.mxu0 0.0
  %2997 = vmatprep.subr.mxu0 0.0
  %2998 = vmatpush2.msra.mxu0 0.0
  %2999 = vmatprep.subr.mxu0 0.0
  %3000 = vmatpush2.msra.mxu0 0.0
  %3001 = vmatprep.subr.mxu0 0.0
  %3002 = vmatpush2.msra.mxu0 0.0
  %3003 = vmatprep.subr.mxu0 0.0
  %3004 = vmatpush2.msra.mxu0 0.0
  %3005 = vmatprep.subr.mxu0 0.0
  %3006 = vmatpush2.msra.mxu0 0.0
  %3007 = vmatprep.subr.mxu0 0.0
  %3008 = vmatpush2.msra.mxu0 0.0
  %3009 = vmatprep.subr.mxu0 0.0
  %3010 = vmatpush2.msra.mxu0 0.0
  %3011 = vmatprep.subr.mxu0 0.0
  %3012 = vmatpush2.msra.mxu0 0.0
  %3013 = vmatprep.subr.mxu0 0.0
  %3014 = vmatpush2.msra.mxu0 0.0
  %3015 = vmatprep.subr.mxu0 0.0
  %3016 = vmatpush2.msra.mxu0 0.0
  %3017 = vmatprep.mubr.f32.mxu0 0.0
  %3018 = vmatmul.mubr.f32.gmra.mxu0 %v2951
  %v3019 = vpop.f32.mrf.mxu0
  %v3020 = vadd.f32 0.0, %v3019
  %v3021 = vpop.f32.mrf.mxu0
  %3022 = vdwg.mxu0
  %3023 = vrot.lane.b32.xlu0 %v1991, 104
  %v3024 = vpop.permute.xlu0 %3023
  %3025 = vrot.lane.b32.xlu0 %v116, 104
  %v3026 = vpop.permute.xlu0 %3025
  %3027 = vrot.lane.b32.xlu0 %v121, 104
  %v3028 = vpop.permute.xlu0 %3027
  %v3029 = vsel %vm416, %v3024, 0
  %v3031 = vsel %vm416, %v3026, 0
  %v3033 = vsel %vm416, %v3028, 0
  %3035 = vmatprep.subr.mxu0 0.0
  %3036 = vmatpush1.xpose.msra.mxu0 0.0
  %3037 = vmatprep.subr.mxu0 0.0
  %3038 = vmatpush1.xpose.msra.mxu0 0.0
  %3039 = vmatprep.subr.mxu0 0.0
  %3040 = vmatpush1.xpose.msra.mxu0 0.0
  %3041 = vmatprep.subr.mxu0 0.0
  %3042 = vmatpush1.xpose.msra.mxu0 0.0
  %3043 = vmatprep.subr.mxu0 0.0
  %3044 = vmatpush1.xpose.msra.mxu0 0.0
  %3045 = vmatprep.subr.mxu0 0.0
  %3046 = vmatpush1.xpose.msra.mxu0 0.0
  %3047 = vmatprep.subr.mxu0 0.0
  %3048 = vmatpush1.xpose.msra.mxu0 0.0
  %3049 = vmatprep.subr.mxu0 0.0
  %3050 = vmatpush1.xpose.msra.mxu0 0.0
  %3051 = vmatprep.subr.mxu0 0.0
  %3052 = vmatpush1.xpose.msra.mxu0 0.0
  %3053 = vmatprep.subr.mxu0 0.0
  %3054 = vmatpush1.xpose.msra.mxu0 0.0
  %3055 = vmatprep.subr.mxu0 0.0
  %3056 = vmatpush1.xpose.msra.mxu0 0.0
  %3057 = vmatprep.subr.mxu0 0.0
  %3058 = vmatpush1.xpose.msra.mxu0 0.0
  %3059 = vmatprep.subr.mxu0 0.0
  %3060 = vmatpush1.xpose.msra.mxu0 0.0
  %3061 = vmatprep.subr.mxu0 0.0
  %3062 = vmatpush1.xpose.msra.mxu0 0.0
  %3063 = vmatprep.subr.mxu0 0.0
  %3064 = vmatpush1.xpose.msra.mxu0 %v3033
  %3065 = vmatprep.subr.mxu0 0.0
  %3066 = vmatpush1.xpose.msra.mxu0 %v3031
  %3067 = vmatprep.subr.mxu0 0.0
  %3068 = vmatpush2.xpose.msra.mxu0 0.0
  %3069 = vmatprep.subr.mxu0 0.0
  %3070 = vmatpush2.xpose.msra.mxu0 0.0
  %3071 = vmatprep.subr.mxu0 0.0
  %3072 = vmatpush2.xpose.msra.mxu0 0.0
  %3073 = vmatprep.subr.mxu0 0.0
  %3074 = vmatpush2.xpose.msra.mxu0 0.0
  %3075 = vmatprep.subr.mxu0 0.0
  %3076 = vmatpush2.xpose.msra.mxu0 0.0
  %3077 = vmatprep.subr.mxu0 0.0
  %3078 = vmatpush2.xpose.msra.mxu0 0.0
  %3079 = vmatprep.subr.mxu0 0.0
  %3080 = vmatpush2.xpose.msra.mxu0 0.0
  %3081 = vmatprep.subr.mxu0 0.0
  %3082 = vmatpush2.xpose.msra.mxu0 0.0
  %3083 = vmatprep.subr.mxu0 0.0
  %3084 = vmatpush2.xpose.msra.mxu0 0.0
  %3085 = vmatprep.subr.mxu0 0.0
  %3086 = vmatpush2.xpose.msra.mxu0 0.0
  %3087 = vmatprep.subr.mxu0 0.0
  %3088 = vmatpush2.xpose.msra.mxu0 0.0
  %3089 = vmatprep.subr.mxu0 0.0
  %3090 = vmatpush2.xpose.msra.mxu0 0.0
  %3091 = vmatprep.subr.mxu0 0.0
  %3092 = vmatpush2.xpose.msra.mxu0 0.0
  %3093 = vmatprep.subr.mxu0 0.0
  %3094 = vmatpush2.xpose.msra.mxu0 0.0
  %3095 = vmatprep.subr.mxu0 0.0
  %3096 = vmatpush2.xpose.msra.mxu0 0.0
  %3097 = vmatprep.subr.mxu0 0.0
  %3098 = vmatpush2.xpose.msra.mxu0 0.0
  %3099 = vmatprep.mubr.f32.mxu0 0.0
  %3100 = vmatmul.mubr.f32.gmra.mxu0 %v3029
  %v3101 = vpop.f32.mrf.mxu0
  %v3102 = vadd.f32 0.0, %v3101
  %v3103 = vpop.f32.mrf.mxu0
  %3104 = vdwg.mxu0
  %3105 = vrot.lane.b32.xlu0 %v1996, 104
  %v3106 = vpop.permute.xlu0 %3105
  %3107 = vrot.lane.b32.xlu0 %v126, 104
  %v3108 = vpop.permute.xlu0 %3107
  %3109 = vrot.lane.b32.xlu0 %v131, 104
  %v3110 = vpop.permute.xlu0 %3109
  %v3111 = vsel %vm416, %v3106, 0
  %v3113 = vsel %vm416, %v3108, 0
  %v3115 = vsel %vm416, %v3110, 0
  %3117 = vmatprep.subr.mxu0 0.0
  %3118 = vmatpush1.xpose.msra.mxu0 0.0
  %3119 = vmatprep.subr.mxu0 0.0
  %3120 = vmatpush1.xpose.msra.mxu0 0.0
  %3121 = vmatprep.subr.mxu0 0.0
  %3122 = vmatpush1.xpose.msra.mxu0 0.0
  %3123 = vmatprep.subr.mxu0 0.0
  %3124 = vmatpush1.xpose.msra.mxu0 0.0
  %3125 = vmatprep.subr.mxu0 0.0
  %3126 = vmatpush1.xpose.msra.mxu0 0.0
  %3127 = vmatprep.subr.mxu0 0.0
  %3128 = vmatpush1.xpose.msra.mxu0 0.0
  %3129 = vmatprep.subr.mxu0 0.0
  %3130 = vmatpush1.xpose.msra.mxu0 0.0
  %3131 = vmatprep.subr.mxu0 0.0
  %3132 = vmatpush1.xpose.msra.mxu0 0.0
  %3133 = vmatprep.subr.mxu0 0.0
  %3134 = vmatpush1.xpose.msra.mxu0 0.0
  %3135 = vmatprep.subr.mxu0 0.0
  %3136 = vmatpush1.xpose.msra.mxu0 0.0
  %3137 = vmatprep.subr.mxu0 0.0
  %3138 = vmatpush1.xpose.msra.mxu0 0.0
  %3139 = vmatprep.subr.mxu0 0.0
  %3140 = vmatpush1.xpose.msra.mxu0 0.0
  %3141 = vmatprep.subr.mxu0 0.0
  %3142 = vmatpush1.xpose.msra.mxu0 0.0
  %3143 = vmatprep.subr.mxu0 0.0
  %3144 = vmatpush1.xpose.msra.mxu0 0.0
  %3145 = vmatprep.subr.mxu0 0.0
  %3146 = vmatpush1.xpose.msra.mxu0 %v3115
  %3147 = vmatprep.subr.mxu0 0.0
  %3148 = vmatpush1.xpose.msra.mxu0 %v3113
  %3149 = vmatprep.subr.mxu0 0.0
  %3150 = vmatpush2.xpose.msra.mxu0 0.0
  %3151 = vmatprep.subr.mxu0 0.0
  %3152 = vmatpush2.xpose.msra.mxu0 0.0
  %3153 = vmatprep.subr.mxu0 0.0
  %3154 = vmatpush2.xpose.msra.mxu0 0.0
  %3155 = vmatprep.subr.mxu0 0.0
  %3156 = vmatpush2.xpose.msra.mxu0 0.0
  %3157 = vmatprep.subr.mxu0 0.0
  %3158 = vmatpush2.xpose.msra.mxu0 0.0
  %3159 = vmatprep.subr.mxu0 0.0
  %3160 = vmatpush2.xpose.msra.mxu0 0.0
  %3161 = vmatprep.subr.mxu0 0.0
  %3162 = vmatpush2.xpose.msra.mxu0 0.0
  %3163 = vmatprep.subr.mxu0 0.0
  %3164 = vmatpush2.xpose.msra.mxu0 0.0
  %3165 = vmatprep.subr.mxu0 0.0
  %3166 = vmatpush2.xpose.msra.mxu0 0.0
  %3167 = vmatprep.subr.mxu0 0.0
  %3168 = vmatpush2.xpose.msra.mxu0 0.0
  %3169 = vmatprep.subr.mxu0 0.0
  %3170 = vmatpush2.xpose.msra.mxu0 0.0
  %3171 = vmatprep.subr.mxu0 0.0
  %3172 = vmatpush2.xpose.msra.mxu0 0.0
  %3173 = vmatprep.subr.mxu0 0.0
  %3174 = vmatpush2.xpose.msra.mxu0 0.0
  %3175 = vmatprep.subr.mxu0 0.0
  %3176 = vmatpush2.xpose.msra.mxu0 0.0
  %3177 = vmatprep.subr.mxu0 0.0
  %3178 = vmatpush2.xpose.msra.mxu0 0.0
  %3179 = vmatprep.subr.mxu0 0.0
  %3180 = vmatpush2.xpose.msra.mxu0 0.0
  %3181 = vmatprep.mubr.f32.mxu0 0.0
  %3182 = vmatmul.mubr.f32.gmra.mxu0 %v3111
  %v3183 = vpop.f32.mrf.mxu0
  %v3184 = vadd.f32 0.0, %v3183
  %v3185 = vpop.f32.mrf.mxu0
  %3186 = vdwg.mxu0
  %v3187 = vmul.f32 %v3102, 0.35355338
  %v3188 = vmul.f32 %v3184, 0.35355338
  %v3189 = vsel %vm1768, %v3187, -inf
  %3190 = vmax.xlane.f32.xlu0 %v3189
  %v3191 = vpop.xlane.xlu0 %3190
  %v3192 = vsel %vm1768, %v3188, -inf
  %3193 = vmax.xlane.f32.xlu0 %v3192
  %v3194 = vpop.xlane.xlu0 %3193
  %v3195 = vsub.f32 %v3187, %v3191
  %v3196 = vsub.f32 %v3188, %v3194
  %v3197 = vmul.f32 %v3195, 1.442695
  %v3198 = vpow.pop %v3197
  %v3199 = vmul.f32 %v3196, 1.442695
  %v3200 = vpow.pop %v3199
  %v3201 = vsel %vm1768, %v3198, 0.0
  %3202 = vadd.xlane.f32.xlu0 %v3201
  %v3203 = vpop.xlane.xlu0 %3202
  %v3204 = vsel %vm1768, %v3200, 0.0
  %3205 = vadd.xlane.f32.xlu0 %v3204
  %v3206 = vpop.xlane.xlu0 %3205
  %v3207 = vrcp.pop %v3203
  %v3208 = vmul.f32 %v3198, %v3207
  %v3209 = vrcp.pop %v3206
  %v3210 = vmul.f32 %v3200, %v3209
  %3211 = vrot.lane.b32.xlu0 %v222, 104
  %v3212 = vpop.permute.xlu0 %3211
  %3213 = vrot.lane.b32.xlu0 %v227, 104
  %v3214 = vpop.permute.xlu0 %3213
  %v3218 = vsel %vm1768, %v3208, 0
  %3220 = vmatprep.subr.mxu0 0.0
  %3221 = vmatpush1.msra.mxu0 0.0
  %3222 = vmatprep.subr.mxu0 0.0
  %3223 = vmatpush1.msra.mxu0 0.0
  %3224 = vmatprep.subr.mxu0 0.0
  %3225 = vmatpush1.msra.mxu0 0.0
  %3226 = vmatprep.subr.mxu0 0.0
  %3227 = vmatpush1.msra.mxu0 0.0
  %3228 = vmatprep.subr.mxu0 0.0
  %3229 = vmatpush1.msra.mxu0 0.0
  %3230 = vmatprep.subr.mxu0 0.0
  %3231 = vmatpush1.msra.mxu0 0.0
  %3232 = vmatprep.subr.mxu0 0.0
  %3233 = vmatpush1.msra.mxu0 0.0
  %3234 = vmatprep.subr.mxu0 0.0
  %3235 = vmatpush1.msra.mxu0 0.0
  %3236 = vmatprep.subr.mxu0 0.0
  %3237 = vmatpush1.msra.mxu0 0.0
  %3238 = vmatprep.subr.mxu0 0.0
  %3239 = vmatpush1.msra.mxu0 0.0
  %3240 = vmatprep.subr.mxu0 0.0
  %3241 = vmatpush1.msra.mxu0 0.0
  %3242 = vmatprep.subr.mxu0 0.0
  %3243 = vmatpush1.msra.mxu0 0.0
  %3244 = vmatprep.subr.mxu0 0.0
  %3245 = vmatpush1.msra.mxu0 0.0
  %3246 = vmatprep.subr.mxu0 0.0
  %3247 = vmatpush1.msra.mxu0 0.0
  %3248 = vmatprep.subr.mxu0 0.0
  %3249 = vmatpush1.msra.mxu0 %v3214
  %3250 = vmatprep.subr.mxu0 0.0
  %3251 = vmatpush1.msra.mxu0 %v3212
  %3252 = vmatprep.subr.mxu0 0.0
  %3253 = vmatpush2.msra.mxu0 0.0
  %3254 = vmatprep.subr.mxu0 0.0
  %3255 = vmatpush2.msra.mxu0 0.0
  %3256 = vmatprep.subr.mxu0 0.0
  %3257 = vmatpush2.msra.mxu0 0.0
  %3258 = vmatprep.subr.mxu0 0.0
  %3259 = vmatpush2.msra.mxu0 0.0
  %3260 = vmatprep.subr.mxu0 0.0
  %3261 = vmatpush2.msra.mxu0 0.0
  %3262 = vmatprep.subr.mxu0 0.0
  %3263 = vmatpush2.msra.mxu0 0.0
  %3264 = vmatprep.subr.mxu0 0.0
  %3265 = vmatpush2.msra.mxu0 0.0
  %3266 = vmatprep.subr.mxu0 0.0
  %3267 = vmatpush2.msra.mxu0 0.0
  %3268 = vmatprep.subr.mxu0 0.0
  %3269 = vmatpush2.msra.mxu0 0.0
  %3270 = vmatprep.subr.mxu0 0.0
  %3271 = vmatpush2.msra.mxu0 0.0
  %3272 = vmatprep.subr.mxu0 0.0
  %3273 = vmatpush2.msra.mxu0 0.0
  %3274 = vmatprep.subr.mxu0 0.0
  %3275 = vmatpush2.msra.mxu0 0.0
  %3276 = vmatprep.subr.mxu0 0.0
  %3277 = vmatpush2.msra.mxu0 0.0
  %3278 = vmatprep.subr.mxu0 0.0
  %3279 = vmatpush2.msra.mxu0 0.0
  %3280 = vmatprep.subr.mxu0 0.0
  %3281 = vmatpush2.msra.mxu0 0.0
  %3282 = vmatprep.subr.mxu0 0.0
  %3283 = vmatpush2.msra.mxu0 0.0
  %3284 = vmatprep.mubr.f32.mxu0 0.0
  %3285 = vmatmul.mubr.f32.gmra.mxu0 %v3218
  %v3286 = vpop.f32.mrf.mxu0
  %v3287 = vadd.f32 0.0, %v3286
  %v3288 = vpop.f32.mrf.mxu0
  %3289 = vdwg.mxu0
  %3290 = vrot.lane.b32.xlu0 %v232, 104
  %v3291 = vpop.permute.xlu0 %3290
  %3292 = vrot.lane.b32.xlu0 %v237, 104
  %v3293 = vpop.permute.xlu0 %3292
  %v3297 = vsel %vm1768, %v3210, 0
  %3299 = vmatprep.subr.mxu0 0.0
  %3300 = vmatpush1.msra.mxu0 0.0
  %3301 = vmatprep.subr.mxu0 0.0
  %3302 = vmatpush1.msra.mxu0 0.0
  %3303 = vmatprep.subr.mxu0 0.0
  %3304 = vmatpush1.msra.mxu0 0.0
  %3305 = vmatprep.subr.mxu0 0.0
  %3306 = vmatpush1.msra.mxu0 0.0
  %3307 = vmatprep.subr.mxu0 0.0
  %3308 = vmatpush1.msra.mxu0 0.0
  %3309 = vmatprep.subr.mxu0 0.0
  %3310 = vmatpush1.msra.mxu0 0.0
  %3311 = vmatprep.subr.mxu0 0.0
  %3312 = vmatpush1.msra.mxu0 0.0
  %3313 = vmatprep.subr.mxu0 0.0
  %3314 = vmatpush1.msra.mxu0 0.0
  %3315 = vmatprep.subr.mxu0 0.0
  %3316 = vmatpush1.msra.mxu0 0.0
  %3317 = vmatprep.subr.mxu0 0.0
  %3318 = vmatpush1.msra.mxu0 0.0
  %3319 = vmatprep.subr.mxu0 0.0
  %3320 = vmatpush1.msra.mxu0 0.0
  %3321 = vmatprep.subr.mxu0 0.0
  %3322 = vmatpush1.msra.mxu0 0.0
  %3323 = vmatprep.subr.mxu0 0.0
  %3324 = vmatpush1.msra.mxu0 0.0
  %3325 = vmatprep.subr.mxu0 0.0
  %3326 = vmatpush1.msra.mxu0 0.0
  %3327 = vmatprep.subr.mxu0 0.0
  %3328 = vmatpush1.msra.mxu0 %v3293
  %3329 = vmatprep.subr.mxu0 0.0
  %3330 = vmatpush1.msra.mxu0 %v3291
  %3331 = vmatprep.subr.mxu0 0.0
  %3332 = vmatpush2.msra.mxu0 0.0
  %3333 = vmatprep.subr.mxu0 0.0
  %3334 = vmatpush2.msra.mxu0 0.0
  %3335 = vmatprep.subr.mxu0 0.0
  %3336 = vmatpush2.msra.mxu0 0.0
  %3337 = vmatprep.subr.mxu0 0.0
  %3338 = vmatpush2.msra.mxu0 0.0
  %3339 = vmatprep.subr.mxu0 0.0
  %3340 = vmatpush2.msra.mxu0 0.0
  %3341 = vmatprep.subr.mxu0 0.0
  %3342 = vmatpush2.msra.mxu0 0.0
  %3343 = vmatprep.subr.mxu0 0.0
  %3344 = vmatpush2.msra.mxu0 0.0
  %3345 = vmatprep.subr.mxu0 0.0
  %3346 = vmatpush2.msra.mxu0 0.0
  %3347 = vmatprep.subr.mxu0 0.0
  %3348 = vmatpush2.msra.mxu0 0.0
  %3349 = vmatprep.subr.mxu0 0.0
  %3350 = vmatpush2.msra.mxu0 0.0
  %3351 = vmatprep.subr.mxu0 0.0
  %3352 = vmatpush2.msra.mxu0 0.0
  %3353 = vmatprep.subr.mxu0 0.0
  %3354 = vmatpush2.msra.mxu0 0.0
  %3355 = vmatprep.subr.mxu0 0.0
  %3356 = vmatpush2.msra.mxu0 0.0
  %3357 = vmatprep.subr.mxu0 0.0
  %3358 = vmatpush2.msra.mxu0 0.0
  %3359 = vmatprep.subr.mxu0 0.0
  %3360 = vmatpush2.msra.mxu0 0.0
  %3361 = vmatprep.subr.mxu0 0.0
  %3362 = vmatpush2.msra.mxu0 0.0
  %3363 = vmatprep.mubr.f32.mxu0 0.0
  %3364 = vmatmul.mubr.f32.gmra.mxu0 %v3297
  %v3365 = vpop.f32.mrf.mxu0
  %v3366 = vadd.f32 0.0, %v3365
  %v3367 = vpop.f32.mrf.mxu0
  %3368 = vdwg.mxu0
  %3371 = vrot.lane.b32.xlu0 %v2593, 8
  %v3372 = vpop.permute.xlu0 %3371
  %3373 = vrot.lane.b32.xlu0 %v2674, 8
  %v3374 = vpop.permute.xlu0 %3373
  %3379 = vrot.lane.b32.xlu0 %v2941, 16
  %v3380 = vpop.permute.xlu0 %3379
  %3381 = vrot.lane.b32.xlu0 %v3020, 16
  %v3382 = vpop.permute.xlu0 %3381
  %3387 = vrot.lane.b32.xlu0 %v3287, 24
  %v3388 = vpop.permute.xlu0 %3387
  %3389 = vrot.lane.b32.xlu0 %v3366, 24
  %v3390 = vpop.permute.xlu0 %3389
  %v3393 = vsel %vm416, %v2251, %v3372
  %v3394 = vsel %vm416, %v2324, %v3374
  %v3395 = vsel %vm1768, %v3393, %v3380
  %v3396 = vsel %vm1768, %v3394, %v3382
  %v3397 = vsel %vm1771, %v3395, %v3388
  %v3398 = vsel %vm1771, %v3396, %v3390
  %v3399 = vld [vmem:[%s1 + $0x78] sm:$0xff]
  %v3400 = vld [vmem:[%s1 + $0x80] sm:$0xff]
  %v3401 = vld [vmem:[%s1 + $0x88] sm:$0xff]
  %v3402 = vld [vmem:[%s1 + $0x90] sm:$0xff]
  %v3403 = vld [vmem:[%s1 + $0x98] sm:$0x1]
  %v3404 = vlaneseq
  %v3405 = vshrl.u32 %v3404, 7
  %v3406 = vsub.s32 0, %v3405
  %v3407 = vrot.slane %v3403, %v3406
  %v3409 = vsel %vm36, %v3397, 0
  %v3412 = vsel %vm36, %v3398, 0
  %3414 = vmatprep.subr.mxu0 0.0
  %3415 = vmatpush1.msra.mxu0 0.0
  %3416 = vmatprep.subr.mxu0 0.0
  %3417 = vmatpush1.msra.mxu0 0.0
  %3418 = vmatprep.subr.mxu0 0.0
  %3419 = vmatpush1.msra.mxu0 0.0
  %3420 = vmatprep.subr.mxu0 0.0
  %3421 = vmatpush1.msra.mxu0 0.0
  %3422 = vmatprep.subr.mxu0 0.0
  %3423 = vmatpush1.msra.mxu0 0.0
  %3424 = vmatprep.subr.mxu0 0.0
  %3425 = vmatpush1.msra.mxu0 0.0
  %3426 = vmatprep.subr.mxu0 0.0
  %3427 = vmatpush1.msra.mxu0 0.0
  %3428 = vmatprep.subr.mxu0 0.0
  %3429 = vmatpush1.msra.mxu0 0.0
  %3430 = vmatprep.subr.mxu0 0.0
  %3431 = vmatpush1.msra.mxu0 0.0
  %3432 = vmatprep.subr.mxu0 0.0
  %3433 = vmatpush1.msra.mxu0 0.0
  %3434 = vmatprep.subr.mxu0 0.0
  %3435 = vmatpush1.msra.mxu0 0.0
  %3436 = vmatprep.subr.mxu0 0.0
  %3437 = vmatpush1.msra.mxu0 0.0
  %3438 = vmatprep.subr.mxu0 0.0
  %3439 = vmatpush1.msra.mxu0 %v3402
  %3440 = vmatprep.subr.mxu0 0.0
  %3441 = vmatpush1.msra.mxu0 %v3401
  %3442 = vmatprep.subr.mxu0 0.0
  %3443 = vmatpush1.msra.mxu0 %v3400
  %3444 = vmatprep.subr.mxu0 0.0
  %3445 = vmatpush1.msra.mxu0 %v3399
  %3446 = vmatprep.subr.mxu0 0.0
  %3447 = vmatpush2.msra.mxu0 0.0
  %3448 = vmatprep.subr.mxu0 0.0
  %3449 = vmatpush2.msra.mxu0 0.0
  %3450 = vmatprep.subr.mxu0 0.0
  %3451 = vmatpush2.msra.mxu0 0.0
  %3452 = vmatprep.subr.mxu0 0.0
  %3453 = vmatpush2.msra.mxu0 0.0
  %3454 = vmatprep.subr.mxu0 0.0
  %3455 = vmatpush2.msra.mxu0 0.0
  %3456 = vmatprep.subr.mxu0 0.0
  %3457 = vmatpush2.msra.mxu0 0.0
  %3458 = vmatprep.subr.mxu0 0.0
  %3459 = vmatpush2.msra.mxu0 0.0
  %3460 = vmatprep.subr.mxu0 0.0
  %3461 = vmatpush2.msra.mxu0 0.0
  %3462 = vmatprep.subr.mxu0 0.0
  %3463 = vmatpush2.msra.mxu0 0.0
  %3464 = vmatprep.subr.mxu0 0.0
  %3465 = vmatpush2.msra.mxu0 0.0
  %3466 = vmatprep.subr.mxu0 0.0
  %3467 = vmatpush2.msra.mxu0 0.0
  %3468 = vmatprep.subr.mxu0 0.0
  %3469 = vmatpush2.msra.mxu0 0.0
  %3470 = vmatprep.subr.mxu0 0.0
  %3471 = vmatpush2.msra.mxu0 0.0
  %3472 = vmatprep.subr.mxu0 0.0
  %3473 = vmatpush2.msra.mxu0 0.0
  %3474 = vmatprep.subr.mxu0 0.0
  %3475 = vmatpush2.msra.mxu0 0.0
  %3476 = vmatprep.subr.mxu0 0.0
  %3477 = vmatpush2.msra.mxu0 0.0
  %3478 = vmatprep.mubr.f32.mxu0 0.0
  %3479 = vmatmul.mubr.f32.gmra.mxu0 %v3409
  %v3480 = vpop.f32.mrf.mxu0
  %v3481 = vadd.f32 %v3407, %v3480
  %v3482 = vpop.f32.mrf.mxu0
  %3483 = vmatprep.mubr.f32.mxu0 0.0
  %3484 = vmatmul.mubr.f32.gmra.mxu0 %v3412
  %v3485 = vpop.f32.mrf.mxu0
  %v3486 = vadd.f32 %v3407, %v3485
  %v3487 = vpop.f32.mrf.mxu0
  %3488 = vdwg.mxu0
  %v3489 = vadd.f32 %v1905, %v3481
  %v3490 = vadd.f32 %v1906, %v3486
  %v3491 = vld [vmem:[%s1 + $0x120] sm:$0x1]
  %v3492 = vld [vmem:[%s1 + $0x128] sm:$0x1]
  %v3493 = vsel %vm36, %v3489, 0.0
  %3494 = vadd.xlane.f32.xlu0 %v3493
  %v3495 = vpop.xlane.xlu0 %3494
  %v3496 = vsel %vm36, %v3490, 0.0
  %3497 = vadd.xlane.f32.xlu0 %v3496
  %v3498 = vpop.xlane.xlu0 %3497
  %v3499 = vmul.f32 %v3495, %v1874
  %v3500 = vmul.f32 %v3498, %v1874
  %v3501 = vsub.f32 %v3489, %v3499
  %v3502 = vsub.f32 %v3490, %v3500
  %v3503 = vmul.f32 %v3501, %v3501
  %v3504 = vmul.f32 %v3502, %v3502
  %v3505 = vsel %vm36, %v3503, 0.0
  %3506 = vadd.xlane.f32.xlu0 %v3505
  %v3507 = vpop.xlane.xlu0 %3506
  %v3508 = vsel %vm36, %v3504, 0.0
  %3509 = vadd.xlane.f32.xlu0 %v3508
  %v3510 = vpop.xlane.xlu0 %3509
  %v3511 = vmul.f32 %v3507, %v1874
  %v3512 = vmul.f32 %v3510, %v1874
  %v3513 = vadd.f32 %v3511, 1e-05
  %v3514 = vadd.f32 %v3512, 1e-05
  %v3515 = vrsqrt.pop %v3513
  %v3516 = vrsqrt.pop %v3514
  %v3517 = vmul.f32 %v3501, %v3515
  %v3518 = vmul.f32 %v3502, %v3516
  %v3519 = vlaneseq
  %v3520 = vshrl.u32 %v3519, 7
  %v3521 = vsub.s32 0, %v3520
  %v3522 = vrot.slane %v3491, %v3521
  %v3523 = vmul.f32 %v3517, %v3522
  %v3524 = vmul.f32 %v3518, %v3522
  %v3525 = vlaneseq
  %v3526 = vshrl.u32 %v3525, 7
  %v3527 = vsub.s32 0, %v3526
  %v3528 = vrot.slane %v3492, %v3527
  %v3529 = vadd.f32 %v3523, %v3528
  %v3530 = vadd.f32 %v3524, %v3528
  %v3531 = vld [vmem:[%s1 + $0xa0] sm:$0xff]
  %v3532 = vld [vmem:[%s1 + $0xa8] sm:$0xff]
  %v3533 = vld [vmem:[%s1 + $0xb0] sm:$0xff]
  %v3534 = vld [vmem:[%s1 + $0xb8] sm:$0xff]
  %v3535 = vld [vmem:[%s1 + $0xc0] sm:$0x1]
  %v3536 = vlaneseq
  %v3537 = vshrl.u32 %v3536, 7
  %v3538 = vsub.s32 0, %v3537
  %v3539 = vrot.slane %v3535, %v3538
  %v3541 = vsel %vm36, %v3529, 0
  %v3544 = vsel %vm36, %v3530, 0
  %3546 = vmatprep.subr.mxu0 0.0
  %3547 = vmatpush1.msra.mxu0 0.0
  %3548 = vmatprep.subr.mxu0 0.0
  %3549 = vmatpush1.msra.mxu0 0.0
  %3550 = vmatprep.subr.mxu0 0.0
  %3551 = vmatpush1.msra.mxu0 0.0
  %3552 = vmatprep.subr.mxu0 0.0
  %3553 = vmatpush1.msra.mxu0 0.0
  %3554 = vmatprep.subr.mxu0 0.0
  %3555 = vmatpush1.msra.mxu0 0.0
  %3556 = vmatprep.subr.mxu0 0.0
  %3557 = vmatpush1.msra.mxu0 0.0
  %3558 = vmatprep.subr.mxu0 0.0
  %3559 = vmatpush1.msra.mxu0 0.0
  %3560 = vmatprep.subr.mxu0 0.0
  %3561 = vmatpush1.msra.mxu0 0.0
  %3562 = vmatprep.subr.mxu0 0.0
  %3563 = vmatpush1.msra.mxu0 0.0
  %3564 = vmatprep.subr.mxu0 0.0
  %3565 = vmatpush1.msra.mxu0 0.0
  %3566 = vmatprep.subr.mxu0 0.0
  %3567 = vmatpush1.msra.mxu0 0.0
  %3568 = vmatprep.subr.mxu0 0.0
  %3569 = vmatpush1.msra.mxu0 0.0
  %3570 = vmatprep.subr.mxu0 0.0
  %3571 = vmatpush1.msra.mxu0 %v3534
  %3572 = vmatprep.subr.mxu0 0.0
  %3573 = vmatpush1.msra.mxu0 %v3533
  %3574 = vmatprep.subr.mxu0 0.0
  %3575 = vmatpush1.msra.mxu0 %v3532
  %3576 = vmatprep.subr.mxu0 0.0
  %3577 = vmatpush1.msra.mxu0 %v3531
  %3578 = vmatprep.subr.mxu0 0.0
  %3579 = vmatpush2.msra.mxu0 0.0
  %3580 = vmatprep.subr.mxu0 0.0
  %3581 = vmatpush2.msra.mxu0 0.0
  %3582 = vmatprep.subr.mxu0 0.0
  %3583 = vmatpush2.msra.mxu0 0.0
  %3584 = vmatprep.subr.mxu0 0.0
  %3585 = vmatpush2.msra.mxu0 0.0
  %3586 = vmatprep.subr.mxu0 0.0
  %3587 = vmatpush2.msra.mxu0 0.0
  %3588 = vmatprep.subr.mxu0 0.0
  %3589 = vmatpush2.msra.mxu0 0.0
  %3590 = vmatprep.subr.mxu0 0.0
  %3591 = vmatpush2.msra.mxu0 0.0
  %3592 = vmatprep.subr.mxu0 0.0
  %3593 = vmatpush2.msra.mxu0 0.0
  %3594 = vmatprep.subr.mxu0 0.0
  %3595 = vmatpush2.msra.mxu0 0.0
  %3596 = vmatprep.subr.mxu0 0.0
  %3597 = vmatpush2.msra.mxu0 0.0
  %3598 = vmatprep.subr.mxu0 0.0
  %3599 = vmatpush2.msra.mxu0 0.0
  %3600 = vmatprep.subr.mxu0 0.0
  %3601 = vmatpush2.msra.mxu0 0.0
  %3602 = vmatprep.subr.mxu0 0.0
  %3603 = vmatpush2.msra.mxu0 0.0
  %3604 = vmatprep.subr.mxu0 0.0
  %3605 = vmatpush2.msra.mxu0 0.0
  %3606 = vmatprep.subr.mxu0 0.0
  %3607 = vmatpush2.msra.mxu0 0.0
  %3608 = vmatprep.subr.mxu0 0.0
  %3609 = vmatpush2.msra.mxu0 0.0
  %3610 = vmatprep.mubr.f32.mxu0 0.0
  %3611 = vmatmul.mubr.f32.gmra.mxu0 %v3541
  %v3612 = vpop.f32.mrf.mxu0
  %v3613 = vadd.f32 %v3539, %v3612
  %v3614 = vpop.f32.mrf.mxu0
  %3615 = vmatprep.mubr.f32.mxu0 0.0
  %3616 = vmatmul.mubr.f32.gmra.mxu0 %v3544
  %v3617 = vpop.f32.mrf.mxu0
  %v3618 = vadd.f32 %v3539, %v3617
  %v3619 = vpop.f32.mrf.mxu0
  %3620 = vdwg.mxu0
  %v3621 = vmax.f32 %v3613, 0.0
  %v3622 = vmax.f32 %v3618, 0.0
  %v3623 = vld [vmem:[%s1 + $0xc8] sm:$0xff]
  %v3624 = vld [vmem:[%s1 + $0xd0] sm:$0xff]
  %v3625 = vld [vmem:[%s1 + $0xd8] sm:$0xff]
  %v3626 = vld [vmem:[%s1 + $0xe0] sm:$0xff]
  %v3627 = vld [vmem:[%s1 + $0xe8] sm:$0xff]
  %v3628 = vld [vmem:[%s1 + $0xf0] sm:$0xff]
  %v3629 = vld [vmem:[%s1 + $0xf8] sm:$0xff]
  %v3630 = vld [vmem:[%s1 + $0x100] sm:$0xff]
  %vm3631 = vcmask 523264
  %v3633 = vsel %vm3631, %v3621, 0
  %v3636 = vsel %vm3631, %v3622, 0
  %3638 = vmatprep.subr.mxu0 0.0
  %3639 = vmatpush1.msra.mxu0 0.0
  %3640 = vmatprep.subr.mxu0 0.0
  %3641 = vmatpush1.msra.mxu0 0.0
  %3642 = vmatprep.subr.mxu0 0.0
  %3643 = vmatpush1.msra.mxu0 0.0
  %3644 = vmatprep.subr.mxu0 0.0
  %3645 = vmatpush1.msra.mxu0 0.0
  %3646 = vmatprep.subr.mxu0 0.0
  %3647 = vmatpush1.msra.mxu0 0.0
  %3648 = vmatprep.subr.mxu0 0.0
  %3649 = vmatpush1.msra.mxu0 0.0
  %3650 = vmatprep.subr.mxu0 0.0
  %3651 = vmatpush1.msra.mxu0 0.0
  %3652 = vmatprep.subr.mxu0 0.0
  %3653 = vmatpush1.msra.mxu0 0.0
  %3654 = vmatprep.subr.mxu0 0.0
  %3655 = vmatpush1.msra.mxu0 %v3630
  %3656 = vmatprep.subr.mxu0 0.0
  %3657 = vmatpush1.msra.mxu0 %v3629
  %3658 = vmatprep.subr.mxu0 0.0
  %3659 = vmatpush1.msra.mxu0 %v3628
  %3660 = vmatprep.subr.mxu0 0.0
  %3661 = vmatpush1.msra.mxu0 %v3627
  %3662 = vmatprep.subr.mxu0 0.0
  %3663 = vmatpush1.msra.mxu0 %v3626
  %3664 = vmatprep.subr.mxu0 0.0
  %3665 = vmatpush1.msra.mxu0 %v3625
  %3666 = vmatprep.subr.mxu0 0.0
  %3667 = vmatpush1.msra.mxu0 %v3624
  %3668 = vmatprep.subr.mxu0 0.0
  %3669 = vmatpush1.msra.mxu0 %v3623
  %3670 = vmatprep.subr.mxu0 0.0
  %3671 = vmatpush2.msra.mxu0 0.0
  %3672 = vmatprep.subr.mxu0 0.0
  %3673 = vmatpush2.msra.mxu0 0.0
  %3674 = vmatprep.subr.mxu0 0.0
  %3675 = vmatpush2.msra.mxu0 0.0
  %3676 = vmatprep.subr.mxu0 0.0
  %3677 = vmatpush2.msra.mxu0 0.0
  %3678 = vmatprep.subr.mxu0 0.0
  %3679 = vmatpush2.msra.mxu0 0.0
  %3680 = vmatprep.subr.mxu0 0.0
  %3681 = vmatpush2.msra.mxu0 0.0
  %3682 = vmatprep.subr.mxu0 0.0
  %3683 = vmatpush2.msra.mxu0 0.0
  %3684 = vmatprep.subr.mxu0 0.0
  %3685 = vmatpush2.msra.mxu0 0.0
  %3686 = vmatprep.subr.mxu0 0.0
  %3687 = vmatpush2.msra.mxu0 0.0
  %3688 = vmatprep.subr.mxu0 0.0
  %3689 = vmatpush2.msra.mxu0 0.0
  %3690 = vmatprep.subr.mxu0 0.0
  %3691 = vmatpush2.msra.mxu0 0.0
  %3692 = vmatprep.subr.mxu0 0.0
  %3693 = vmatpush2.msra.mxu0 0.0
  %3694 = vmatprep.subr.mxu0 0.0
  %3695 = vmatpush2.msra.mxu0 0.0
  %3696 = vmatprep.subr.mxu0 0.0
  %3697 = vmatpush2.msra.mxu0 0.0
  %3698 = vmatprep.subr.mxu0 0.0
  %3699 = vmatpush2.msra.mxu0 0.0
  %3700 = vmatprep.subr.mxu0 0.0
  %3701 = vmatpush2.msra.mxu0 0.0
  %3702 = vmatprep.mubr.f32.mxu0 0.0
  %3703 = vmatmul.mubr.f32.gmra.mxu0 %v3633
  %v3704 = vpop.f32.mrf.mxu0
  %v3705 = vadd.f32 0.0, %v3704
  %v3706 = vpop.f32.mrf.mxu0
  %3707 = vmatprep.mubr.f32.mxu0 0.0
  %3708 = vmatmul.mubr.f32.gmra.mxu0 %v3636
  %v3709 = vpop.f32.mrf.mxu0
  %v3710 = vadd.f32 0.0, %v3709
  %v3711 = vpop.f32.mrf.mxu0
  %3712 = vdwg.mxu0
  %v3713 = vadd.f32 %v3529, %v3705
  %v3714 = vadd.f32 %v3530, %v3710
  %v3715 = vld [vmem:[%s1 + $0x108] sm:$0x1]
  %v3716 = vlaneseq
  %v3717 = vshrl.u32 %v3716, 7
  %v3718 = vsub.s32 0, %v3717
  %v3719 = vrot.slane %v3715, %v3718
  %v3720 = vadd.f32 %v3713, %v3719
  %v3721 = vadd.f32 %v3714, %v3719
  %v3722 = vld [vmem:[%s1 + $0x130] sm:$0x1]
  %v3723 = vld [vmem:[%s1 + $0x138] sm:$0x1]
  %v3724 = vsel %vm36, %v3720, 0.0
  %3725 = vadd.xlane.f32.xlu0 %v3724
  %v3726 = vpop.xlane.xlu0 %3725
  %v3727 = vsel %vm36, %v3721, 0.0
  %3728 = vadd.xlane.f32.xlu0 %v3727
  %v3729 = vpop.xlane.xlu0 %3728
  %v3730 = vmul.f32 %v3726, %v1874
  %v3731 = vmul.f32 %v3729, %v1874
  %v3732 = vsub.f32 %v3720, %v3730
  %v3733 = vsub.f32 %v3721, %v3731
  %v3734 = vmul.f32 %v3732, %v3732
  %v3735 = vmul.f32 %v3733, %v3733
  %v3736 = vsel %vm36, %v3734, 0.0
  %3737 = vadd.xlane.f32.xlu0 %v3736
  %v3738 = vpop.xlane.xlu0 %3737
  %v3739 = vsel %vm36, %v3735, 0.0
  %3740 = vadd.xlane.f32.xlu0 %v3739
  %v3741 = vpop.xlane.xlu0 %3740
  %v3742 = vmul.f32 %v3738, %v1874
  %v3743 = vmul.f32 %v3741, %v1874
  %v3744 = vadd.f32 %v3742, 1e-05
  %v3745 = vadd.f32 %v3743, 1e-05
  %v3746 = vrsqrt.pop %v3744
  %v3747 = vrsqrt.pop %v3745
  %v3748 = vmul.f32 %v3732, %v3746
  %v3749 = vmul.f32 %v3733, %v3747
  %v3750 = vlaneseq
  %v3751 = vshrl.u32 %v3750, 7
  %v3752 = vsub.s32 0, %v3751
  %v3753 = vrot.slane %v3722, %v3752
  %v3754 = vmul.f32 %v3748, %v3753
  %v3755 = vmul.f32 %v3749, %v3753
  %v3756 = vlaneseq
  %v3757 = vshrl.u32 %v3756, 7
  %v3758 = vsub.s32 0, %v3757
  %v3759 = vrot.slane %v3723, %v3758
  %v3760 = vadd.f32 %v3754, %v3759
  %v3761 = vadd.f32 %v3755, %v3759
  %v3762 = vld [vmem:[%s1 + $0x140] sm:$0xff]
  %v3763 = vld [vmem:[%s1 + $0x148] sm:$0xff]
  %v3764 = vld [vmem:[%s1 + $0x150] sm:$0xff]
  %v3765 = vld [vmem:[%s1 + $0x158] sm:$0xff]
  %v3766 = vld [vmem:[%s1 + $0x160] sm:$0x1]
  %v3767 = vlaneseq
  %v3768 = vshrl.u32 %v3767, 7
  %v3769 = vsub.s32 0, %v3768
  %v3770 = vrot.slane %v3766, %v3769
  %v3772 = vsel %vm36, %v3760, 0
  %v3775 = vsel %vm36, %v3761, 0
  %3777 = vmatprep.subr.mxu0 0.0
  %3778 = vmatpush1.msra.mxu0 0.0
  %3779 = vmatprep.subr.mxu0 0.0
  %3780 = vmatpush1.msra.mxu0 0.0
  %3781 = vmatprep.subr.mxu0 0.0
  %3782 = vmatpush1.msra.mxu0 0.0
  %3783 = vmatprep.subr.mxu0 0.0
  %3784 = vmatpush1.msra.mxu0 0.0
  %3785 = vmatprep.subr.mxu0 0.0
  %3786 = vmatpush1.msra.mxu0 0.0
  %3787 = vmatprep.subr.mxu0 0.0
  %3788 = vmatpush1.msra.mxu0 0.0
  %3789 = vmatprep.subr.mxu0 0.0
  %3790 = vmatpush1.msra.mxu0 0.0
  %3791 = vmatprep.subr.mxu0 0.0
  %3792 = vmatpush1.msra.mxu0 0.0
  %3793 = vmatprep.subr.mxu0 0.0
  %3794 = vmatpush1.msra.mxu0 0.0
  %3795 = vmatprep.subr.mxu0 0.0
  %3796 = vmatpush1.msra.mxu0 0.0
  %3797 = vmatprep.subr.mxu0 0.0
  %3798 = vmatpush1.msra.mxu0 0.0
  %3799 = vmatprep.subr.mxu0 0.0
  %3800 = vmatpush1.msra.mxu0 0.0
  %3801 = vmatprep.subr.mxu0 0.0
  %3802 = vmatpush1.msra.mxu0 %v3765
  %3803 = vmatprep.subr.mxu0 0.0
  %3804 = vmatpush1.msra.mxu0 %v3764
  %3805 = vmatprep.subr.mxu0 0.0
  %3806 = vmatpush1.msra.mxu0 %v3763
  %3807 = vmatprep.subr.mxu0 0.0
  %3808 = vmatpush1.msra.mxu0 %v3762
  %3809 = vmatprep.subr.mxu0 0.0
  %3810 = vmatpush2.msra.mxu0 0.0
  %3811 = vmatprep.subr.mxu0 0.0
  %3812 = vmatpush2.msra.mxu0 0.0
  %3813 = vmatprep.subr.mxu0 0.0
  %3814 = vmatpush2.msra.mxu0 0.0
  %3815 = vmatprep.subr.mxu0 0.0
  %3816 = vmatpush2.msra.mxu0 0.0
  %3817 = vmatprep.subr.mxu0 0.0
  %3818 = vmatpush2.msra.mxu0 0.0
  %3819 = vmatprep.subr.mxu0 0.0
  %3820 = vmatpush2.msra.mxu0 0.0
  %3821 = vmatprep.subr.mxu0 0.0
  %3822 = vmatpush2.msra.mxu0 0.0
  %3823 = vmatprep.subr.mxu0 0.0
  %3824 = vmatpush2.msra.mxu0 0.0
  %3825 = vmatprep.subr.mxu0 0.0
  %3826 = vmatpush2.msra.mxu0 0.0
  %3827 = vmatprep.subr.mxu0 0.0
  %3828 = vmatpush2.msra.mxu0 0.0
  %3829 = vmatprep.subr.mxu0 0.0
  %3830 = vmatpush2.msra.mxu0 0.0
  %3831 = vmatprep.subr.mxu0 0.0
  %3832 = vmatpush2.msra.mxu0 0.0
  %3833 = vmatprep.subr.mxu0 0.0
  %3834 = vmatpush2.msra.mxu0 0.0
  %3835 = vmatprep.subr.mxu0 0.0
  %3836 = vmatpush2.msra.mxu0 0.0
  %3837 = vmatprep.subr.mxu0 0.0
  %3838 = vmatpush2.msra.mxu0 0.0
  %3839 = vmatprep.subr.mxu0 0.0
  %3840 = vmatpush2.msra.mxu0 0.0
  %3841 = vmatprep.mubr.f32.mxu0 0.0
  %3842 = vmatmul.mubr.f32.gmra.mxu0 %v3772
  %v3843 = vpop.f32.mrf.mxu0
  %v3844 = vadd.f32 %v3770, %v3843
  %v3845 = vpop.f32.mrf.mxu0
  %3846 = vmatprep.mubr.f32.mxu0 0.0
  %3847 = vmatmul.mubr.f32.gmra.mxu0 %v3775
  %v3848 = vpop.f32.mrf.mxu0
  %v3849 = vadd.f32 %v3770, %v3848
  %v3850 = vpop.f32.mrf.mxu0
  %3851 = vdwg.mxu0
  %3852 = vmatprep.subr.mxu0 0.0
  %3853 = vmatpush1.msra.mxu0 0.0
  %3854 = vmatprep.subr.mxu0 0.0
  %3855 = vmatpush1.msra.mxu0 0.0
  %3856 = vmatprep.subr.mxu0 0.0
  %3857 = vmatpush1.msra.mxu0 0.0
  %3858 = vmatprep.subr.mxu0 0.0
  %3859 = vmatpush1.msra.mxu0 0.0
  %3860 = vmatprep.subr.mxu0 0.0
  %3861 = vmatpush1.msra.mxu0 0.0
  %3862 = vmatprep.subr.mxu0 0.0
  %3863 = vmatpush1.msra.mxu0 0.0
  %3864 = vmatprep.subr.mxu0 0.0
  %3865 = vmatpush1.msra.mxu0 0.0
  %3866 = vmatprep.subr.mxu0 0.0
  %3867 = vmatpush1.msra.mxu0 0.0
  %3868 = vmatprep.subr.mxu0 0.0
  %3869 = vmatpush1.msra.mxu0 0.0
  %3870 = vmatprep.subr.mxu0 0.0
  %3871 = vmatpush1.msra.mxu0 0.0
  %3872 = vmatprep.subr.mxu0 0.0
  %3873 = vmatpush1.msra.mxu0 0.0
  %3874 = vmatprep.subr.mxu0 0.0
  %3875 = vmatpush1.msra.mxu0 0.0
  %3876 = vmatprep.subr.mxu0 0.0
  %3877 = vmatpush1.msra.mxu0 %v3765
  %3878 = vmatprep.subr.mxu0 0.0
  %3879 = vmatpush1.msra.mxu0 %v3764
  %3880 = vmatprep.subr.mxu0 0.0
  %3881 = vmatpush1.msra.mxu0 %v3763
  %3882 = vmatprep.subr.mxu0 0.0
  %3883 = vmatpush1.msra.mxu0 %v3762
  %3884 = vmatprep.subr.mxu0 0.0
  %3885 = vmatpush2.msra.mxu0 0.0
  %3886 = vmatprep.subr.mxu0 0.0
  %3887 = vmatpush2.msra.mxu0 0.0
  %3888 = vmatprep.subr.mxu0 0.0
  %3889 = vmatpush2.msra.mxu0 0.0
  %3890 = vmatprep.subr.mxu0 0.0
  %3891 = vmatpush2.msra.mxu0 0.0
  %3892 = vmatprep.subr.mxu0 0.0
  %3893 = vmatpush2.msra.mxu0 0.0
  %3894 = vmatprep.subr.mxu0 0.0
  %3895 = vmatpush2.msra.mxu0 0.0
  %3896 = vmatprep.subr.mxu0 0.0
  %3897 = vmatpush2.msra.mxu0 0.0
  %3898 = vmatprep.subr.mxu0 0.0
  %3899 = vmatpush2.msra.mxu0 0.0
  %3900 = vmatprep.subr.mxu0 0.0
  %3901 = vmatpush2.msra.mxu0 0.0
  %3902 = vmatprep.subr.mxu0 0.0
  %3903 = vmatpush2.msra.mxu0 0.0
  %3904 = vmatprep.subr.mxu0 0.0
  %3905 = vmatpush2.msra.mxu0 0.0
  %3906 = vmatprep.subr.mxu0 0.0
  %3907 = vmatpush2.msra.mxu0 0.0
  %3908 = vmatprep.subr.mxu0 0.0
  %3909 = vmatpush2.msra.mxu0 0.0
  %3910 = vmatprep.subr.mxu0 0.0
  %3911 = vmatpush2.msra.mxu0 0.0
  %3912 = vmatprep.subr.mxu0 0.0
  %3913 = vmatpush2.msra.mxu0 0.0
  %3914 = vmatprep.subr.mxu0 0.0
  %3915 = vmatpush2.msra.mxu0 0.0
  %3916 = vmatprep.mubr.f32.mxu0 0.0
  %3917 = vmatmul.mubr.f32.gmra.mxu0 %v331
  %v3918 = vpop.f32.mrf.mxu0
  %v3919 = vadd.f32 0.0, %v3918
  %v3920 = vpop.f32.mrf.mxu0
  %3921 = vmatprep.mubr.f32.mxu0 0.0
  %3922 = vmatmul.mubr.f32.gmra.mxu0 %v334
  %v3923 = vpop.f32.mrf.mxu0
  %v3924 = vadd.f32 0.0, %v3923
  %v3925 = vpop.f32.mrf.mxu0
  %3926 = vdwg.mxu0
  %v3927 = vadd.f32 %v3844, %v3919
  %v3928 = vadd.f32 %v3849, %v3924
  %3930 = vrot.lane.b32.xlu0 %v3927, 96
  %v3931 = vpop.permute.xlu0 %3930
  %v3932 = vsel %vm416, %v3927, 0
  %v3934 = vsel %vm416, %v3931, 0
  %3936 = vmatprep.subr.mxu0 0.0
  %3937 = vmatpush1.xpose.msra.mxu0 0.0
  %3938 = vmatprep.subr.mxu0 0.0
  %3939 = vmatpush1.xpose.msra.mxu0 0.0
  %3940 = vmatprep.subr.mxu0 0.0
  %3941 = vmatpush1.xpose.msra.mxu0 0.0
  %3942 = vmatprep.subr.mxu0 0.0
  %3943 = vmatpush1.xpose.msra.mxu0 0.0
  %3944 = vmatprep.subr.mxu0 0.0
  %3945 = vmatpush1.xpose.msra.mxu0 0.0
  %3946 = vmatprep.subr.mxu0 0.0
  %3947 = vmatpush1.xpose.msra.mxu0 0.0
  %3948 = vmatprep.subr.mxu0 0.0
  %3949 = vmatpush1.xpose.msra.mxu0 0.0
  %3950 = vmatprep.subr.mxu0 0.0
  %3951 = vmatpush1.xpose.msra.mxu0 0.0
  %3952 = vmatprep.subr.mxu0 0.0
  %3953 = vmatpush1.xpose.msra.mxu0 0.0
  %3954 = vmatprep.subr.mxu0 0.0
  %3955 = vmatpush1.xpose.msra.mxu0 0.0
  %3956 = vmatprep.subr.mxu0 0.0
  %3957 = vmatpush1.xpose.msra.mxu0 0.0
  %3958 = vmatprep.subr.mxu0 0.0
  %3959 = vmatpush1.xpose.msra.mxu0 0.0
  %3960 = vmatprep.subr.mxu0 0.0
  %3961 = vmatpush1.xpose.msra.mxu0 0.0
  %3962 = vmatprep.subr.mxu0 0.0
  %3963 = vmatpush1.xpose.msra.mxu0 0.0
  %3964 = vmatprep.subr.mxu0 0.0
  %3965 = vmatpush1.xpose.msra.mxu0 0.0
  %3966 = vmatprep.subr.mxu0 0.0
  %3967 = vmatpush1.xpose.msra.mxu0 %v3934
  %3968 = vmatprep.subr.mxu0 0.0
  %3969 = vmatpush2.xpose.msra.mxu0 0.0
  %3970 = vmatprep.subr.mxu0 0.0
  %3971 = vmatpush2.xpose.msra.mxu0 0.0
  %3972 = vmatprep.subr.mxu0 0.0
  %3973 = vmatpush2.xpose.msra.mxu0 0.0
  %3974 = vmatprep.subr.mxu0 0.0
  %3975 = vmatpush2.xpose.msra.mxu0 0.0
  %3976 = vmatprep.subr.mxu0 0.0
  %3977 = vmatpush2.xpose.msra.mxu0 0.0
  %3978 = vmatprep.subr.mxu0 0.0
  %3979 = vmatpush2.xpose.msra.mxu0 0.0
  %3980 = vmatprep.subr.mxu0 0.0
  %3981 = vmatpush2.xpose.msra.mxu0 0.0
  %3982 = vmatprep.subr.mxu0 0.0
  %3983 = vmatpush2.xpose.msra.mxu0 0.0
  %3984 = vmatprep.subr.mxu0 0.0
  %3985 = vmatpush2.xpose.msra.mxu0 0.0
  %3986 = vmatprep.subr.mxu0 0.0
  %3987 = vmatpush2.xpose.msra.mxu0 0.0
  %3988 = vmatprep.subr.mxu0 0.0
  %3989 = vmatpush2.xpose.msra.mxu0 0.0
  %3990 = vmatprep.subr.mxu0 0.0
  %3991 = vmatpush2.xpose.msra.mxu0 0.0
  %3992 = vmatprep.subr.mxu0 0.0
  %3993 = vmatpush2.xpose.msra.mxu0 0.0
  %3994 = vmatprep.subr.mxu0 0.0
  %3995 = vmatpush2.xpose.msra.mxu0 0.0
  %3996 = vmatprep.subr.mxu0 0.0
  %3997 = vmatpush2.xpose.msra.mxu0 0.0
  %3998 = vmatprep.subr.mxu0 0.0
  %3999 = vmatpush2.xpose.msra.mxu0 0.0
  %4000 = vmatprep.mubr.f32.mxu0 0.0
  %4001 = vmatmul.mubr.f32.gmra.mxu0 %v3932
  %v4002 = vpop.f32.mrf.mxu0
  %v4003 = vadd.f32 0.0, %v4002
  %v4004 = vpop.f32.mrf.mxu0
  %4005 = vdwg.mxu0
  %4007 = vrot.lane.b32.xlu0 %v3928, 96
  %v4008 = vpop.permute.xlu0 %4007
  %v4009 = vsel %vm416, %v3928, 0
  %v4011 = vsel %vm416, %v4008, 0
  %4013 = vmatprep.subr.mxu0 0.0
  %4014 = vmatpush1.xpose.msra.mxu0 0.0
  %4015 = vmatprep.subr.mxu0 0.0
  %4016 = vmatpush1.xpose.msra.mxu0 0.0
  %4017 = vmatprep.subr.mxu0 0.0
  %4018 = vmatpush1.xpose.msra.mxu0 0.0
  %4019 = vmatprep.subr.mxu0 0.0
  %4020 = vmatpush1.xpose.msra.mxu0 0.0
  %4021 = vmatprep.subr.mxu0 0.0
  %4022 = vmatpush1.xpose.msra.mxu0 0.0
  %4023 = vmatprep.subr.mxu0 0.0
  %4024 = vmatpush1.xpose.msra.mxu0 0.0
  %4025 = vmatprep.subr.mxu0 0.0
  %4026 = vmatpush1.xpose.msra.mxu0 0.0
  %4027 = vmatprep.subr.mxu0 0.0
  %4028 = vmatpush1.xpose.msra.mxu0 0.0
  %4029 = vmatprep.subr.mxu0 0.0
  %4030 = vmatpush1.xpose.msra.mxu0 0.0
  %4031 = vmatprep.subr.mxu0 0.0
  %4032 = vmatpush1.xpose.msra.mxu0 0.0
  %4033 = vmatprep.subr.mxu0 0.0
  %4034 = vmatpush1.xpose.msra.mxu0 0.0
  %4035 = vmatprep.subr.mxu0 0.0
  %4036 = vmatpush1.xpose.msra.mxu0 0.0
  %4037 = vmatprep.subr.mxu0 0.0
  %4038 = vmatpush1.xpose.msra.mxu0 0.0
  %4039 = vmatprep.subr.mxu0 0.0
  %4040 = vmatpush1.xpose.msra.mxu0 0.0
  %4041 = vmatprep.subr.mxu0 0.0
  %4042 = vmatpush1.xpose.msra.mxu0 0.0
  %4043 = vmatprep.subr.mxu0 0.0
  %4044 = vmatpush1.xpose.msra.mxu0 %v4011
  %4045 = vmatprep.subr.mxu0 0.0
  %4046 = vmatpush2.xpose.msra.mxu0 0.0
  %4047 = vmatprep.subr.mxu0 0.0
  %4048 = vmatpush2.xpose.msra.mxu0 0.0
  %4049 = vmatprep.subr.mxu0 0.0
  %4050 = vmatpush2.xpose.msra.mxu0 0.0
  %4051 = vmatprep.subr.mxu0 0.0
  %4052 = vmatpush2.xpose.msra.mxu0 0.0
  %4053 = vmatprep.subr.mxu0 0.0
  %4054 = vmatpush2.xpose.msra.mxu0 0.0
  %4055 = vmatprep.subr.mxu0 0.0
  %4056 = vmatpush2.xpose.msra.mxu0 0.0
  %4057 = vmatprep.subr.mxu0 0.0
  %4058 = vmatpush2.xpose.msra.mxu0 0.0
  %4059 = vmatprep.subr.mxu0 0.0
  %4060 = vmatpush2.xpose.msra.mxu0 0.0
  %4061 = vmatprep.subr.mxu0 0.0
  %4062 = vmatpush2.xpose.msra.mxu0 0.0
  %4063 = vmatprep.subr.mxu0 0.0
  %4064 = vmatpush2.xpose.msra.mxu0 0.0
  %4065 = vmatprep.subr.mxu0 0.0
  %4066 = vmatpush2.xpose.msra.mxu0 0.0
  %4067 = vmatprep.subr.mxu0 0.0
  %4068 = vmatpush2.xpose.msra.mxu0 0.0
  %4069 = vmatprep.subr.mxu0 0.0
  %4070 = vmatpush2.xpose.msra.mxu0 0.0
  %4071 = vmatprep.subr.mxu0 0.0
  %4072 = vmatpush2.xpose.msra.mxu0 0.0
  %4073 = vmatprep.subr.mxu0 0.0
  %4074 = vmatpush2.xpose.msra.mxu0 0.0
  %4075 = vmatprep.subr.mxu0 0.0
  %4076 = vmatpush2.xpose.msra.mxu0 0.0
  %4077 = vmatprep.mubr.f32.mxu0 0.0
  %4078 = vmatmul.mubr.f32.gmra.mxu0 %v4009
  %v4079 = vpop.f32.mrf.mxu0
  %v4080 = vadd.f32 0.0, %v4079
  %v4081 = vpop.f32.mrf.mxu0
  %4082 = vdwg.mxu0
  %v4083 = vmul.f32 %v4003, 0.35355338
  %v4084 = vmul.f32 %v4080, 0.35355338
  %v4085 = vsel %vm416, %v4083, -inf
  %4086 = vmax.xlane.f32.xlu0 %v4085
  %v4087 = vpop.xlane.xlu0 %4086
  %v4088 = vsel %vm416, %v4084, -inf
  %4089 = vmax.xlane.f32.xlu0 %v4088
  %v4090 = vpop.xlane.xlu0 %4089
  %v4091 = vsub.f32 %v4083, %v4087
  %v4092 = vsub.f32 %v4084, %v4090
  %v4093 = vmul.f32 %v4091, 1.442695
  %v4094 = vpow.pop %v4093
  %v4095 = vmul.f32 %v4092, 1.442695
  %v4096 = vpow.pop %v4095
  %v4097 = vsel %vm416, %v4094, 0.0
  %4098 = vadd.xlane.f32.xlu0 %v4097
  %v4099 = vpop.xlane.xlu0 %4098
  %v4100 = vsel %vm416, %v4096, 0.0
  %4101 = vadd.xlane.f32.xlu0 %v4100
  %v4102 = vpop.xlane.xlu0 %4101
  %v4103 = vrcp.pop %v4099
  %v4104 = vmul.f32 %v4094, %v4103
  %v4105 = vrcp.pop %v4102
  %v4106 = vmul.f32 %v4096, %v4105
  %4108 = vrot.lane.b32.xlu0 %v3844, 64
  %v4109 = vpop.permute.xlu0 %4108
  %v4112 = vsel %vm416, %v4104, 0
  %4114 = vmatprep.subr.mxu0 0.0
  %4115 = vmatpush1.msra.mxu0 0.0
  %4116 = vmatprep.subr.mxu0 0.0
  %4117 = vmatpush1.msra.mxu0 0.0
  %4118 = vmatprep.subr.mxu0 0.0
  %4119 = vmatpush1.msra.mxu0 0.0
  %4120 = vmatprep.subr.mxu0 0.0
  %4121 = vmatpush1.msra.mxu0 0.0
  %4122 = vmatprep.subr.mxu0 0.0
  %4123 = vmatpush1.msra.mxu0 0.0
  %4124 = vmatprep.subr.mxu0 0.0
  %4125 = vmatpush1.msra.mxu0 0.0
  %4126 = vmatprep.subr.mxu0 0.0
  %4127 = vmatpush1.msra.mxu0 0.0
  %4128 = vmatprep.subr.mxu0 0.0
  %4129 = vmatpush1.msra.mxu0 0.0
  %4130 = vmatprep.subr.mxu0 0.0
  %4131 = vmatpush1.msra.mxu0 0.0
  %4132 = vmatprep.subr.mxu0 0.0
  %4133 = vmatpush1.msra.mxu0 0.0
  %4134 = vmatprep.subr.mxu0 0.0
  %4135 = vmatpush1.msra.mxu0 0.0
  %4136 = vmatprep.subr.mxu0 0.0
  %4137 = vmatpush1.msra.mxu0 0.0
  %4138 = vmatprep.subr.mxu0 0.0
  %4139 = vmatpush1.msra.mxu0 0.0
  %4140 = vmatprep.subr.mxu0 0.0
  %4141 = vmatpush1.msra.mxu0 0.0
  %4142 = vmatprep.subr.mxu0 0.0
  %4143 = vmatpush1.msra.mxu0 0.0
  %4144 = vmatprep.subr.mxu0 0.0
  %4145 = vmatpush1.msra.mxu0 %v4109
  %4146 = vmatprep.subr.mxu0 0.0
  %4147 = vmatpush2.msra.mxu0 0.0
  %4148 = vmatprep.subr.mxu0 0.0
  %4149 = vmatpush2.msra.mxu0 0.0
  %4150 = vmatprep.subr.mxu0 0.0
  %4151 = vmatpush2.msra.mxu0 0.0
  %4152 = vmatprep.subr.mxu0 0.0
  %4153 = vmatpush2.msra.mxu0 0.0
  %4154 = vmatprep.subr.mxu0 0.0
  %4155 = vmatpush2.msra.mxu0 0.0
  %4156 = vmatprep.subr.mxu0 0.0
  %4157 = vmatpush2.msra.mxu0 0.0
  %4158 = vmatprep.subr.mxu0 0.0
  %4159 = vmatpush2.msra.mxu0 0.0
  %4160 = vmatprep.subr.mxu0 0.0
  %4161 = vmatpush2.msra.mxu0 0.0
  %4162 = vmatprep.subr.mxu0 0.0
  %4163 = vmatpush2.msra.mxu0 0.0
  %4164 = vmatprep.subr.mxu0 0.0
  %4165 = vmatpush2.msra.mxu0 0.0
  %4166 = vmatprep.subr.mxu0 0.0
  %4167 = vmatpush2.msra.mxu0 0.0
  %4168 = vmatprep.subr.mxu0 0.0
  %4169 = vmatpush2.msra.mxu0 0.0
  %4170 = vmatprep.subr.mxu0 0.0
  %4171 = vmatpush2.msra.mxu0 0.0
  %4172 = vmatprep.subr.mxu0 0.0
  %4173 = vmatpush2.msra.mxu0 0.0
  %4174 = vmatprep.subr.mxu0 0.0
  %4175 = vmatpush2.msra.mxu0 0.0
  %4176 = vmatprep.subr.mxu0 0.0
  %4177 = vmatpush2.msra.mxu0 0.0
  %4178 = vmatprep.mubr.f32.mxu0 0.0
  %4179 = vmatmul.mubr.f32.gmra.mxu0 %v4112
  %v4180 = vpop.f32.mrf.mxu0
  %v4181 = vadd.f32 0.0, %v4180
  %v4182 = vpop.f32.mrf.mxu0
  %4183 = vdwg.mxu0
  %4185 = vrot.lane.b32.xlu0 %v3849, 64
  %v4186 = vpop.permute.xlu0 %4185
  %v4189 = vsel %vm416, %v4106, 0
  %4191 = vmatprep.subr.mxu0 0.0
  %4192 = vmatpush1.msra.mxu0 0.0
  %4193 = vmatprep.subr.mxu0 0.0
  %4194 = vmatpush1.msra.mxu0 0.0
  %4195 = vmatprep.subr.mxu0 0.0
  %4196 = vmatpush1.msra.mxu0 0.0
  %4197 = vmatprep.subr.mxu0 0.0
  %4198 = vmatpush1.msra.mxu0 0.0
  %4199 = vmatprep.subr.mxu0 0.0
  %4200 = vmatpush1.msra.mxu0 0.0
  %4201 = vmatprep.subr.mxu0 0.0
  %4202 = vmatpush1.msra.mxu0 0.0
  %4203 = vmatprep.subr.mxu0 0.0
  %4204 = vmatpush1.msra.mxu0 0.0
  %4205 = vmatprep.subr.mxu0 0.0
  %4206 = vmatpush1.msra.mxu0 0.0
  %4207 = vmatprep.subr.mxu0 0.0
  %4208 = vmatpush1.msra.mxu0 0.0
  %4209 = vmatprep.subr.mxu0 0.0
  %4210 = vmatpush1.msra.mxu0 0.0
  %4211 = vmatprep.subr.mxu0 0.0
  %4212 = vmatpush1.msra.mxu0 0.0
  %4213 = vmatprep.subr.mxu0 0.0
  %4214 = vmatpush1.msra.mxu0 0.0
  %4215 = vmatprep.subr.mxu0 0.0
  %4216 = vmatpush1.msra.mxu0 0.0
  %4217 = vmatprep.subr.mxu0 0.0
  %4218 = vmatpush1.msra.mxu0 0.0
  %4219 = vmatprep.subr.mxu0 0.0
  %4220 = vmatpush1.msra.mxu0 0.0
  %4221 = vmatprep.subr.mxu0 0.0
  %4222 = vmatpush1.msra.mxu0 %v4186
  %4223 = vmatprep.subr.mxu0 0.0
  %4224 = vmatpush2.msra.mxu0 0.0
  %4225 = vmatprep.subr.mxu0 0.0
  %4226 = vmatpush2.msra.mxu0 0.0
  %4227 = vmatprep.subr.mxu0 0.0
  %4228 = vmatpush2.msra.mxu0 0.0
  %4229 = vmatprep.subr.mxu0 0.0
  %4230 = vmatpush2.msra.mxu0 0.0
  %4231 = vmatprep.subr.mxu0 0.0
  %4232 = vmatpush2.msra.mxu0 0.0
  %4233 = vmatprep.subr.mxu0 0.0
  %4234 = vmatpush2.msra.mxu0 0.0
  %4235 = vmatprep.subr.mxu0 0.0
  %4236 = vmatpush2.msra.mxu0 0.0
  %4237 = vmatprep.subr.mxu0 0.0
  %4238 = vmatpush2.msra.mxu0 0.0
  %4239 = vmatprep.subr.mxu0 0.0
  %4240 = vmatpush2.msra.mxu0 0.0
  %4241 = vmatprep.subr.mxu0 0.0
  %4242 = vmatpush2.msra.mxu0 0.0
  %4243 = vmatprep.subr.mxu0 0.0
  %4244 = vmatpush2.msra.mxu0 0.0
  %4245 = vmatprep.subr.mxu0 0.0
  %4246 = vmatpush2.msra.mxu0 0.0
  %4247 = vmatprep.subr.mxu0 0.0
  %4248 = vmatpush2.msra.mxu0 0.0
  %4249 = vmatprep.subr.mxu0 0.0
  %4250 = vmatpush2.msra.mxu0 0.0
  %4251 = vmatprep.subr.mxu0 0.0
  %4252 = vmatpush2.msra.mxu0 0.0
  %4253 = vmatprep.subr.mxu0 0.0
  %4254 = vmatpush2.msra.mxu0 0.0
  %4255 = vmatprep.mubr.f32.mxu0 0.0
  %4256 = vmatmul.mubr.f32.gmra.mxu0 %v4189
  %v4257 = vpop.f32.mrf.mxu0
  %v4258 = vadd.f32 0.0, %v4257
  %v4259 = vpop.f32.mrf.mxu0
  %4260 = vdwg.mxu0
  %4261 = vrot.lane.b32.xlu0 %v3927, 120
  %v4262 = vpop.permute.xlu0 %4261
  %4263 = vrot.lane.b32.xlu0 %v3927, 88
  %v4264 = vpop.permute.xlu0 %4263
  %v4265 = vsel %vm416, %v4262, 0
  %v4267 = vsel %vm416, %v4264, 0
  %4269 = vmatprep.subr.mxu0 0.0
  %4270 = vmatpush1.xpose.msra.mxu0 0.0
  %4271 = vmatprep.subr.mxu0 0.0
  %4272 = vmatpush1.xpose.msra.mxu0 0.0
  %4273 = vmatprep.subr.mxu0 0.0
  %4274 = vmatpush1.xpose.msra.mxu0 0.0
  %4275 = vmatprep.subr.mxu0 0.0
  %4276 = vmatpush1.xpose.msra.mxu0 0.0
  %4277 = vmatprep.subr.mxu0 0.0
  %4278 = vmatpush1.xpose.msra.mxu0 0.0
  %4279 = vmatprep.subr.mxu0 0.0
  %4280 = vmatpush1.xpose.msra.mxu0 0.0
  %4281 = vmatprep.subr.mxu0 0.0
  %4282 = vmatpush1.xpose.msra.mxu0 0.0
  %4283 = vmatprep.subr.mxu0 0.0
  %4284 = vmatpush1.xpose.msra.mxu0 0.0
  %4285 = vmatprep.subr.mxu0 0.0
  %4286 = vmatpush1.xpose.msra.mxu0 0.0
  %4287 = vmatprep.subr.mxu0 0.0
  %4288 = vmatpush1.xpose.msra.mxu0 0.0
  %4289 = vmatprep.subr.mxu0 0.0
  %4290 = vmatpush1.xpose.msra.mxu0 0.0
  %4291 = vmatprep.subr.mxu0 0.0
  %4292 = vmatpush1.xpose.msra.mxu0 0.0
  %4293 = vmatprep.subr.mxu0 0.0
  %4294 = vmatpush1.xpose.msra.mxu0 0.0
  %4295 = vmatprep.subr.mxu0 0.0
  %4296 = vmatpush1.xpose.msra.mxu0 0.0
  %4297 = vmatprep.subr.mxu0 0.0
  %4298 = vmatpush1.xpose.msra.mxu0 0.0
  %4299 = vmatprep.subr.mxu0 0.0
  %4300 = vmatpush1.xpose.msra.mxu0 %v4267
  %4301 = vmatprep.subr.mxu0 0.0
  %4302 = vmatpush2.xpose.msra.mxu0 0.0
  %4303 = vmatprep.subr.mxu0 0.0
  %4304 = vmatpush2.xpose.msra.mxu0 0.0
  %4305 = vmatprep.subr.mxu0 0.0
  %4306 = vmatpush2.xpose.msra.mxu0 0.0
  %4307 = vmatprep.subr.mxu0 0.0
  %4308 = vmatpush2.xpose.msra.mxu0 0.0
  %4309 = vmatprep.subr.mxu0 0.0
  %4310 = vmatpush2.xpose.msra.mxu0 0.0
  %4311 = vmatprep.subr.mxu0 0.0
  %4312 = vmatpush2.xpose.msra.mxu0 0.0
  %4313 = vmatprep.subr.mxu0 0.0
  %4314 = vmatpush2.xpose.msra.mxu0 0.0
  %4315 = vmatprep.subr.mxu0 0.0
  %4316 = vmatpush2.xpose.msra.mxu0 0.0
  %4317 = vmatprep.subr.mxu0 0.0
  %4318 = vmatpush2.xpose.msra.mxu0 0.0
  %4319 = vmatprep.subr.mxu0 0.0
  %4320 = vmatpush2.xpose.msra.mxu0 0.0
  %4321 = vmatprep.subr.mxu0 0.0
  %4322 = vmatpush2.xpose.msra.mxu0 0.0
  %4323 = vmatprep.subr.mxu0 0.0
  %4324 = vmatpush2.xpose.msra.mxu0 0.0
  %4325 = vmatprep.subr.mxu0 0.0
  %4326 = vmatpush2.xpose.msra.mxu0 0.0
  %4327 = vmatprep.subr.mxu0 0.0
  %4328 = vmatpush2.xpose.msra.mxu0 0.0
  %4329 = vmatprep.subr.mxu0 0.0
  %4330 = vmatpush2.xpose.msra.mxu0 0.0
  %4331 = vmatprep.subr.mxu0 0.0
  %4332 = vmatpush2.xpose.msra.mxu0 0.0
  %4333 = vmatprep.mubr.f32.mxu0 0.0
  %4334 = vmatmul.mubr.f32.gmra.mxu0 %v4265
  %v4335 = vpop.f32.mrf.mxu0
  %v4336 = vadd.f32 0.0, %v4335
  %v4337 = vpop.f32.mrf.mxu0
  %4338 = vdwg.mxu0
  %4339 = vrot.lane.b32.xlu0 %v3928, 120
  %v4340 = vpop.permute.xlu0 %4339
  %4341 = vrot.lane.b32.xlu0 %v3928, 88
  %v4342 = vpop.permute.xlu0 %4341
  %v4343 = vsel %vm416, %v4340, 0
  %v4345 = vsel %vm416, %v4342, 0
  %4347 = vmatprep.subr.mxu0 0.0
  %4348 = vmatpush1.xpose.msra.mxu0 0.0
  %4349 = vmatprep.subr.mxu0 0.0
  %4350 = vmatpush1.xpose.msra.mxu0 0.0
  %4351 = vmatprep.subr.mxu0 0.0
  %4352 = vmatpush1.xpose.msra.mxu0 0.0
  %4353 = vmatprep.subr.mxu0 0.0
  %4354 = vmatpush1.xpose.msra.mxu0 0.0
  %4355 = vmatprep.subr.mxu0 0.0
  %4356 = vmatpush1.xpose.msra.mxu0 0.0
  %4357 = vmatprep.subr.mxu0 0.0
  %4358 = vmatpush1.xpose.msra.mxu0 0.0
  %4359 = vmatprep.subr.mxu0 0.0
  %4360 = vmatpush1.xpose.msra.mxu0 0.0
  %4361 = vmatprep.subr.mxu0 0.0
  %4362 = vmatpush1.xpose.msra.mxu0 0.0
  %4363 = vmatprep.subr.mxu0 0.0
  %4364 = vmatpush1.xpose.msra.mxu0 0.0
  %4365 = vmatprep.subr.mxu0 0.0
  %4366 = vmatpush1.xpose.msra.mxu0 0.0
  %4367 = vmatprep.subr.mxu0 0.0
  %4368 = vmatpush1.xpose.msra.mxu0 0.0
  %4369 = vmatprep.subr.mxu0 0.0
  %4370 = vmatpush1.xpose.msra.mxu0 0.0
  %4371 = vmatprep.subr.mxu0 0.0
  %4372 = vmatpush1.xpose.msra.mxu0 0.0
  %4373 = vmatprep.subr.mxu0 0.0
  %4374 = vmatpush1.xpose.msra.mxu0 0.0
  %4375 = vmatprep.subr.mxu0 0.0
  %4376 = vmatpush1.xpose.msra.mxu0 0.0
  %4377 = vmatprep.subr.mxu0 0.0
  %4378 = vmatpush1.xpose.msra.mxu0 %v4345
  %4379 = vmatprep.subr.mxu0 0.0
  %4380 = vmatpush2.xpose.msra.mxu0 0.0
  %4381 = vmatprep.subr.mxu0 0.0
  %4382 = vmatpush2.xpose.msra.mxu0 0.0
  %4383 = vmatprep.subr.mxu0 0.0
  %4384 = vmatpush2.xpose.msra.mxu0 0.0
  %4385 = vmatprep.subr.mxu0 0.0
  %4386 = vmatpush2.xpose.msra.mxu0 0.0
  %4387 = vmatprep.subr.mxu0 0.0
  %4388 = vmatpush2.xpose.msra.mxu0 0.0
  %4389 = vmatprep.subr.mxu0 0.0
  %4390 = vmatpush2.xpose.msra.mxu0 0.0
  %4391 = vmatprep.subr.mxu0 0.0
  %4392 = vmatpush2.xpose.msra.mxu0 0.0
  %4393 = vmatprep.subr.mxu0 0.0
  %4394 = vmatpush2.xpose.msra.mxu0 0.0
  %4395 = vmatprep.subr.mxu0 0.0
  %4396 = vmatpush2.xpose.msra.mxu0 0.0
  %4397 = vmatprep.subr.mxu0 0.0
  %4398 = vmatpush2.xpose.msra.mxu0 0.0
  %4399 = vmatprep.subr.mxu0 0.0
  %4400 = vmatpush2.xpose.msra.mxu0 0.0
  %4401 = vmatprep.subr.mxu0 0.0
  %4402 = vmatpush2.xpose.msra.mxu0 0.0
  %4403 = vmatprep.subr.mxu0 0.0
  %4404 = vmatpush2.xpose.msra.mxu0 0.0
  %4405 = vmatprep.subr.mxu0 0.0
  %4406 = vmatpush2.xpose.msra.mxu0 0.0
  %4407 = vmatprep.subr.mxu0 0.0
  %4408 = vmatpush2.xpose.msra.mxu0 0.0
  %4409 = vmatprep.subr.mxu0 0.0
  %4410 = vmatpush2.xpose.msra.mxu0 0.0
  %4411 = vmatprep.mubr.f32.mxu0 0.0
  %4412 = vmatmul.mubr.f32.gmra.mxu0 %v4343
  %v4413 = vpop.f32.mrf.mxu0
  %v4414 = vadd.f32 0.0, %v4413
  %v4415 = vpop.f32.mrf.mxu0
  %4416 = vdwg.mxu0
  %v4417 = vmul.f32 %v4336, 0.35355338
  %v4418 = vmul.f32 %v4414, 0.35355338
  %v4419 = vsel %vm416, %v4417, -inf
  %4420 = vmax.xlane.f32.xlu0 %v4419
  %v4421 = vpop.xlane.xlu0 %4420
  %v4422 = vsel %vm416, %v4418, -inf
  %4423 = vmax.xlane.f32.xlu0 %v4422
  %v4424 = vpop.xlane.xlu0 %4423
  %v4425 = vsub.f32 %v4417, %v4421
  %v4426 = vsub.f32 %v4418, %v4424
  %v4427 = vmul.f32 %v4425, 1.442695
  %v4428 = vpow.pop %v4427
  %v4429 = vmul.f32 %v4426, 1.442695
  %v4430 = vpow.pop %v4429
  %v4431 = vsel %vm416, %v4428, 0.0
  %4432 = vadd.xlane.f32.xlu0 %v4431
  %v4433 = vpop.xlane.xlu0 %4432
  %v4434 = vsel %vm416, %v4430, 0.0
  %4435 = vadd.xlane.f32.xlu0 %v4434
  %v4436 = vpop.xlane.xlu0 %4435
  %v4437 = vrcp.pop %v4433
  %v4438 = vmul.f32 %v4428, %v4437
  %v4439 = vrcp.pop %v4436
  %v4440 = vmul.f32 %v4430, %v4439
  %4441 = vrot.lane.b32.xlu0 %v3844, 56
  %v4442 = vpop.permute.xlu0 %4441
  %v4445 = vsel %vm416, %v4438, 0
  %4447 = vmatprep.subr.mxu0 0.0
  %4448 = vmatpush1.msra.mxu0 0.0
  %4449 = vmatprep.subr.mxu0 0.0
  %4450 = vmatpush1.msra.mxu0 0.0
  %4451 = vmatprep.subr.mxu0 0.0
  %4452 = vmatpush1.msra.mxu0 0.0
  %4453 = vmatprep.subr.mxu0 0.0
  %4454 = vmatpush1.msra.mxu0 0.0
  %4455 = vmatprep.subr.mxu0 0.0
  %4456 = vmatpush1.msra.mxu0 0.0
  %4457 = vmatprep.subr.mxu0 0.0
  %4458 = vmatpush1.msra.mxu0 0.0
  %4459 = vmatprep.subr.mxu0 0.0
  %4460 = vmatpush1.msra.mxu0 0.0
  %4461 = vmatprep.subr.mxu0 0.0
  %4462 = vmatpush1.msra.mxu0 0.0
  %4463 = vmatprep.subr.mxu0 0.0
  %4464 = vmatpush1.msra.mxu0 0.0
  %4465 = vmatprep.subr.mxu0 0.0
  %4466 = vmatpush1.msra.mxu0 0.0
  %4467 = vmatprep.subr.mxu0 0.0
  %4468 = vmatpush1.msra.mxu0 0.0
  %4469 = vmatprep.subr.mxu0 0.0
  %4470 = vmatpush1.msra.mxu0 0.0
  %4471 = vmatprep.subr.mxu0 0.0
  %4472 = vmatpush1.msra.mxu0 0.0
  %4473 = vmatprep.subr.mxu0 0.0
  %4474 = vmatpush1.msra.mxu0 0.0
  %4475 = vmatprep.subr.mxu0 0.0
  %4476 = vmatpush1.msra.mxu0 0.0
  %4477 = vmatprep.subr.mxu0 0.0
  %4478 = vmatpush1.msra.mxu0 %v4442
  %4479 = vmatprep.subr.mxu0 0.0
  %4480 = vmatpush2.msra.mxu0 0.0
  %4481 = vmatprep.subr.mxu0 0.0
  %4482 = vmatpush2.msra.mxu0 0.0
  %4483 = vmatprep.subr.mxu0 0.0
  %4484 = vmatpush2.msra.mxu0 0.0
  %4485 = vmatprep.subr.mxu0 0.0
  %4486 = vmatpush2.msra.mxu0 0.0
  %4487 = vmatprep.subr.mxu0 0.0
  %4488 = vmatpush2.msra.mxu0 0.0
  %4489 = vmatprep.subr.mxu0 0.0
  %4490 = vmatpush2.msra.mxu0 0.0
  %4491 = vmatprep.subr.mxu0 0.0
  %4492 = vmatpush2.msra.mxu0 0.0
  %4493 = vmatprep.subr.mxu0 0.0
  %4494 = vmatpush2.msra.mxu0 0.0
  %4495 = vmatprep.subr.mxu0 0.0
  %4496 = vmatpush2.msra.mxu0 0.0
  %4497 = vmatprep.subr.mxu0 0.0
  %4498 = vmatpush2.msra.mxu0 0.0
  %4499 = vmatprep.subr.mxu0 0.0
  %4500 = vmatpush2.msra.mxu0 0.0
  %4501 = vmatprep.subr.mxu0 0.0
  %4502 = vmatpush2.msra.mxu0 0.0
  %4503 = vmatprep.subr.mxu0 0.0
  %4504 = vmatpush2.msra.mxu0 0.0
  %4505 = vmatprep.subr.mxu0 0.0
  %4506 = vmatpush2.msra.mxu0 0.0
  %4507 = vmatprep.subr.mxu0 0.0
  %4508 = vmatpush2.msra.mxu0 0.0
  %4509 = vmatprep.subr.mxu0 0.0
  %4510 = vmatpush2.msra.mxu0 0.0
  %4511 = vmatprep.mubr.f32.mxu0 0.0
  %4512 = vmatmul.mubr.f32.gmra.mxu0 %v4445
  %v4513 = vpop.f32.mrf.mxu0
  %v4514 = vadd.f32 0.0, %v4513
  %v4515 = vpop.f32.mrf.mxu0
  %4516 = vdwg.mxu0
  %4517 = vrot.lane.b32.xlu0 %v3849, 56
  %v4518 = vpop.permute.xlu0 %4517
  %v4521 = vsel %vm416, %v4440, 0
  %4523 = vmatprep.subr.mxu0 0.0
  %4524 = vmatpush1.msra.mxu0 0.0
  %4525 = vmatprep.subr.mxu0 0.0
  %4526 = vmatpush1.msra.mxu0 0.0
  %4527 = vmatprep.subr.mxu0 0.0
  %4528 = vmatpush1.msra.mxu0 0.0
  %4529 = vmatprep.subr.mxu0 0.0
  %4530 = vmatpush1.msra.mxu0 0.0
  %4531 = vmatprep.subr.mxu0 0.0
  %4532 = vmatpush1.msra.mxu0 0.0
  %4533 = vmatprep.subr.mxu0 0.0
  %4534 = vmatpush1.msra.mxu0 0.0
  %4535 = vmatprep.subr.mxu0 0.0
  %4536 = vmatpush1.msra.mxu0 0.0
  %4537 = vmatprep.subr.mxu0 0.0
  %4538 = vmatpush1.msra.mxu0 0.0
  %4539 = vmatprep.subr.mxu0 0.0
  %4540 = vmatpush1.msra.mxu0 0.0
  %4541 = vmatprep.subr.mxu0 0.0
  %4542 = vmatpush1.msra.mxu0 0.0
  %4543 = vmatprep.subr.mxu0 0.0
  %4544 = vmatpush1.msra.mxu0 0.0
  %4545 = vmatprep.subr.mxu0 0.0
  %4546 = vmatpush1.msra.mxu0 0.0
  %4547 = vmatprep.subr.mxu0 0.0
  %4548 = vmatpush1.msra.mxu0 0.0
  %4549 = vmatprep.subr.mxu0 0.0
  %4550 = vmatpush1.msra.mxu0 0.0
  %4551 = vmatprep.subr.mxu0 0.0
  %4552 = vmatpush1.msra.mxu0 0.0
  %4553 = vmatprep.subr.mxu0 0.0
  %4554 = vmatpush1.msra.mxu0 %v4518
  %4555 = vmatprep.subr.mxu0 0.0
  %4556 = vmatpush2.msra.mxu0 0.0
  %4557 = vmatprep.subr.mxu0 0.0
  %4558 = vmatpush2.msra.mxu0 0.0
  %4559 = vmatprep.subr.mxu0 0.0
  %4560 = vmatpush2.msra.mxu0 0.0
  %4561 = vmatprep.subr.mxu0 0.0
  %4562 = vmatpush2.msra.mxu0 0.0
  %4563 = vmatprep.subr.mxu0 0.0
  %4564 = vmatpush2.msra.mxu0 0.0
  %4565 = vmatprep.subr.mxu0 0.0
  %4566 = vmatpush2.msra.mxu0 0.0
  %4567 = vmatprep.subr.mxu0 0.0
  %4568 = vmatpush2.msra.mxu0 0.0
  %4569 = vmatprep.subr.mxu0 0.0
  %4570 = vmatpush2.msra.mxu0 0.0
  %4571 = vmatprep.subr.mxu0 0.0
  %4572 = vmatpush2.msra.mxu0 0.0
  %4573 = vmatprep.subr.mxu0 0.0
  %4574 = vmatpush2.msra.mxu0 0.0
  %4575 = vmatprep.subr.mxu0 0.0
  %4576 = vmatpush2.msra.mxu0 0.0
  %4577 = vmatprep.subr.mxu0 0.0
  %4578 = vmatpush2.msra.mxu0 0.0
  %4579 = vmatprep.subr.mxu0 0.0
  %4580 = vmatpush2.msra.mxu0 0.0
  %4581 = vmatprep.subr.mxu0 0.0
  %4582 = vmatpush2.msra.mxu0 0.0
  %4583 = vmatprep.subr.mxu0 0.0
  %4584 = vmatpush2.msra.mxu0 0.0
  %4585 = vmatprep.subr.mxu0 0.0
  %4586 = vmatpush2.msra.mxu0 0.0
  %4587 = vmatprep.mubr.f32.mxu0 0.0
  %4588 = vmatmul.mubr.f32.gmra.mxu0 %v4521
  %v4589 = vpop.f32.mrf.mxu0
  %v4590 = vadd.f32 0.0, %v4589
  %v4591 = vpop.f32.mrf.mxu0
  %4592 = vdwg.mxu0
  %4593 = vrot.lane.b32.xlu0 %v3927, 112
  %v4594 = vpop.permute.xlu0 %4593
  %4595 = vrot.lane.b32.xlu0 %v3927, 80
  %v4596 = vpop.permute.xlu0 %4595
  %v4597 = vsel %vm416, %v4594, 0
  %v4599 = vsel %vm416, %v4596, 0
  %4601 = vmatprep.subr.mxu0 0.0
  %4602 = vmatpush1.xpose.msra.mxu0 0.0
  %4603 = vmatprep.subr.mxu0 0.0
  %4604 = vmatpush1.xpose.msra.mxu0 0.0
  %4605 = vmatprep.subr.mxu0 0.0
  %4606 = vmatpush1.xpose.msra.mxu0 0.0
  %4607 = vmatprep.subr.mxu0 0.0
  %4608 = vmatpush1.xpose.msra.mxu0 0.0
  %4609 = vmatprep.subr.mxu0 0.0
  %4610 = vmatpush1.xpose.msra.mxu0 0.0
  %4611 = vmatprep.subr.mxu0 0.0
  %4612 = vmatpush1.xpose.msra.mxu0 0.0
  %4613 = vmatprep.subr.mxu0 0.0
  %4614 = vmatpush1.xpose.msra.mxu0 0.0
  %4615 = vmatprep.subr.mxu0 0.0
  %4616 = vmatpush1.xpose.msra.mxu0 0.0
  %4617 = vmatprep.subr.mxu0 0.0
  %4618 = vmatpush1.xpose.msra.mxu0 0.0
  %4619 = vmatprep.subr.mxu0 0.0
  %4620 = vmatpush1.xpose.msra.mxu0 0.0
  %4621 = vmatprep.subr.mxu0 0.0
  %4622 = vmatpush1.xpose.msra.mxu0 0.0
  %4623 = vmatprep.subr.mxu0 0.0
  %4624 = vmatpush1.xpose.msra.mxu0 0.0
  %4625 = vmatprep.subr.mxu0 0.0
  %4626 = vmatpush1.xpose.msra.mxu0 0.0
  %4627 = vmatprep.subr.mxu0 0.0
  %4628 = vmatpush1.xpose.msra.mxu0 0.0
  %4629 = vmatprep.subr.mxu0 0.0
  %4630 = vmatpush1.xpose.msra.mxu0 0.0
  %4631 = vmatprep.subr.mxu0 0.0
  %4632 = vmatpush1.xpose.msra.mxu0 %v4599
  %4633 = vmatprep.subr.mxu0 0.0
  %4634 = vmatpush2.xpose.msra.mxu0 0.0
  %4635 = vmatprep.subr.mxu0 0.0
  %4636 = vmatpush2.xpose.msra.mxu0 0.0
  %4637 = vmatprep.subr.mxu0 0.0
  %4638 = vmatpush2.xpose.msra.mxu0 0.0
  %4639 = vmatprep.subr.mxu0 0.0
  %4640 = vmatpush2.xpose.msra.mxu0 0.0
  %4641 = vmatprep.subr.mxu0 0.0
  %4642 = vmatpush2.xpose.msra.mxu0 0.0
  %4643 = vmatprep.subr.mxu0 0.0
  %4644 = vmatpush2.xpose.msra.mxu0 0.0
  %4645 = vmatprep.subr.mxu0 0.0
  %4646 = vmatpush2.xpose.msra.mxu0 0.0
  %4647 = vmatprep.subr.mxu0 0.0
  %4648 = vmatpush2.xpose.msra.mxu0 0.0
  %4649 = vmatprep.subr.mxu0 0.0
  %4650 = vmatpush2.xpose.msra.mxu0 0.0
  %4651 = vmatprep.subr.mxu0 0.0
  %4652 = vmatpush2.xpose.msra.mxu0 0.0
  %4653 = vmatprep.subr.mxu0 0.0
  %4654 = vmatpush2.xpose.msra.mxu0 0.0
  %4655 = vmatprep.subr.mxu0 0.0
  %4656 = vmatpush2.xpose.msra.mxu0 0.0
  %4657 = vmatprep.subr.mxu0 0.0
  %4658 = vmatpush2.xpose.msra.mxu0 0.0
  %4659 = vmatprep.subr.mxu0 0.0
  %4660 = vmatpush2.xpose.msra.mxu0 0.0
  %4661 = vmatprep.subr.mxu0 0.0
  %4662 = vmatpush2.xpose.msra.mxu0 0.0
  %4663 = vmatprep.subr.mxu0 0.0
  %4664 = vmatpush2.xpose.msra.mxu0 0.0
  %4665 = vmatprep.mubr.f32.mxu0 0.0
  %4666 = vmatmul.mubr.f32.gmra.mxu0 %v4597
  %v4667 = vpop.f32.mrf.mxu0
  %v4668 = vadd.f32 0.0, %v4667
  %v4669 = vpop.f32.mrf.mxu0
  %4670 = vdwg.mxu0
  %4671 = vrot.lane.b32.xlu0 %v3928, 112
  %v4672 = vpop.permute.xlu0 %4671
  %4673 = vrot.lane.b32.xlu0 %v3928, 80
  %v4674 = vpop.permute.xlu0 %4673
  %v4675 = vsel %vm416, %v4672, 0
  %v4677 = vsel %vm416, %v4674, 0
  %4679 = vmatprep.subr.mxu0 0.0
  %4680 = vmatpush1.xpose.msra.mxu0 0.0
  %4681 = vmatprep.subr.mxu0 0.0
  %4682 = vmatpush1.xpose.msra.mxu0 0.0
  %4683 = vmatprep.subr.mxu0 0.0
  %4684 = vmatpush1.xpose.msra.mxu0 0.0
  %4685 = vmatprep.subr.mxu0 0.0
  %4686 = vmatpush1.xpose.msra.mxu0 0.0
  %4687 = vmatprep.subr.mxu0 0.0
  %4688 = vmatpush1.xpose.msra.mxu0 0.0
  %4689 = vmatprep.subr.mxu0 0.0
  %4690 = vmatpush1.xpose.msra.mxu0 0.0
  %4691 = vmatprep.subr.mxu0 0.0
  %4692 = vmatpush1.xpose.msra.mxu0 0.0
  %4693 = vmatprep.subr.mxu0 0.0
  %4694 = vmatpush1.xpose.msra.mxu0 0.0
  %4695 = vmatprep.subr.mxu0 0.0
  %4696 = vmatpush1.xpose.msra.mxu0 0.0
  %4697 = vmatprep.subr.mxu0 0.0
  %4698 = vmatpush1.xpose.msra.mxu0 0.0
  %4699 = vmatprep.subr.mxu0 0.0
  %4700 = vmatpush1.xpose.msra.mxu0 0.0
  %4701 = vmatprep.subr.mxu0 0.0
  %4702 = vmatpush1.xpose.msra.mxu0 0.0
  %4703 = vmatprep.subr.mxu0 0.0
  %4704 = vmatpush1.xpose.msra.mxu0 0.0
  %4705 = vmatprep.subr.mxu0 0.0
  %4706 = vmatpush1.xpose.msra.mxu0 0.0
  %4707 = vmatprep.subr.mxu0 0.0
  %4708 = vmatpush1.xpose.msra.mxu0 0.0
  %4709 = vmatprep.subr.mxu0 0.0
  %4710 = vmatpush1.xpose.msra.mxu0 %v4677
  %4711 = vmatprep.subr.mxu0 0.0
  %4712 = vmatpush2.xpose.msra.mxu0 0.0
  %4713 = vmatprep.subr.mxu0 0.0
  %4714 = vmatpush2.xpose.msra.mxu0 0.0
  %4715 = vmatprep.subr.mxu0 0.0
  %4716 = vmatpush2.xpose.msra.mxu0 0.0
  %4717 = vmatprep.subr.mxu0 0.0
  %4718 = vmatpush2.xpose.msra.mxu0 0.0
  %4719 = vmatprep.subr.mxu0 0.0
  %4720 = vmatpush2.xpose.msra.mxu0 0.0
  %4721 = vmatprep.subr.mxu0 0.0
  %4722 = vmatpush2.xpose.msra.mxu0 0.0
  %4723 = vmatprep.subr.mxu0 0.0
  %4724 = vmatpush2.xpose.msra.mxu0 0.0
  %4725 = vmatprep.subr.mxu0 0.0
  %4726 = vmatpush2.xpose.msra.mxu0 0.0
  %4727 = vmatprep.subr.mxu0 0.0
  %4728 = vmatpush2.xpose.msra.mxu0 0.0
  %4729 = vmatprep.subr.mxu0 0.0
  %4730 = vmatpush2.xpose.msra.mxu0 0.0
  %4731 = vmatprep.subr.mxu0 0.0
  %4732 = vmatpush2.xpose.msra.mxu0 0.0
  %4733 = vmatprep.subr.mxu0 0.0
  %4734 = vmatpush2.xpose.msra.mxu0 0.0
  %4735 = vmatprep.subr.mxu0 0.0
  %4736 = vmatpush2.xpose.msra.mxu0 0.0
  %4737 = vmatprep.subr.mxu0 0.0
  %4738 = vmatpush2.xpose.msra.mxu0 0.0
  %4739 = vmatprep.subr.mxu0 0.0
  %4740 = vmatpush2.xpose.msra.mxu0 0.0
  %4741 = vmatprep.subr.mxu0 0.0
  %4742 = vmatpush2.xpose.msra.mxu0 0.0
  %4743 = vmatprep.mubr.f32.mxu0 0.0
  %4744 = vmatmul.mubr.f32.gmra.mxu0 %v4675
  %v4745 = vpop.f32.mrf.mxu0
  %v4746 = vadd.f32 0.0, %v4745
  %v4747 = vpop.f32.mrf.mxu0
  %4748 = vdwg.mxu0
  %v4749 = vmul.f32 %v4668, 0.35355338
  %v4750 = vmul.f32 %v4746, 0.35355338
  %v4751 = vsel %vm416, %v4749, -inf
  %4752 = vmax.xlane.f32.xlu0 %v4751
  %v4753 = vpop.xlane.xlu0 %4752
  %v4754 = vsel %vm416, %v4750, -inf
  %4755 = vmax.xlane.f32.xlu0 %v4754
  %v4756 = vpop.xlane.xlu0 %4755
  %v4757 = vsub.f32 %v4749, %v4753
  %v4758 = vsub.f32 %v4750, %v4756
  %v4759 = vmul.f32 %v4757, 1.442695
  %v4760 = vpow.pop %v4759
  %v4761 = vmul.f32 %v4758, 1.442695
  %v4762 = vpow.pop %v4761
  %v4763 = vsel %vm416, %v4760, 0.0
  %4764 = vadd.xlane.f32.xlu0 %v4763
  %v4765 = vpop.xlane.xlu0 %4764
  %v4766 = vsel %vm416, %v4762, 0.0
  %4767 = vadd.xlane.f32.xlu0 %v4766
  %v4768 = vpop.xlane.xlu0 %4767
  %v4769 = vrcp.pop %v4765
  %v4770 = vmul.f32 %v4760, %v4769
  %v4771 = vrcp.pop %v4768
  %v4772 = vmul.f32 %v4762, %v4771
  %4773 = vrot.lane.b32.xlu0 %v3844, 48
  %v4774 = vpop.permute.xlu0 %4773
  %v4777 = vsel %vm416, %v4770, 0
  %4779 = vmatprep.subr.mxu0 0.0
  %4780 = vmatpush1.msra.mxu0 0.0
  %4781 = vmatprep.subr.mxu0 0.0
  %4782 = vmatpush1.msra.mxu0 0.0
  %4783 = vmatprep.subr.mxu0 0.0
  %4784 = vmatpush1.msra.mxu0 0.0
  %4785 = vmatprep.subr.mxu0 0.0
  %4786 = vmatpush1.msra.mxu0 0.0
  %4787 = vmatprep.subr.mxu0 0.0
  %4788 = vmatpush1.msra.mxu0 0.0
  %4789 = vmatprep.subr.mxu0 0.0
  %4790 = vmatpush1.msra.mxu0 0.0
  %4791 = vmatprep.subr.mxu0 0.0
  %4792 = vmatpush1.msra.mxu0 0.0
  %4793 = vmatprep.subr.mxu0 0.0
  %4794 = vmatpush1.msra.mxu0 0.0
  %4795 = vmatprep.subr.mxu0 0.0
  %4796 = vmatpush1.msra.mxu0 0.0
  %4797 = vmatprep.subr.mxu0 0.0
  %4798 = vmatpush1.msra.mxu0 0.0
  %4799 = vmatprep.subr.mxu0 0.0
  %4800 = vmatpush1.msra.mxu0 0.0
  %4801 = vmatprep.subr.mxu0 0.0
  %4802 = vmatpush1.msra.mxu0 0.0
  %4803 = vmatprep.subr.mxu0 0.0
  %4804 = vmatpush1.msra.mxu0 0.0
  %4805 = vmatprep.subr.mxu0 0.0
  %4806 = vmatpush1.msra.mxu0 0.0
  %4807 = vmatprep.subr.mxu0 0.0
  %4808 = vmatpush1.msra.mxu0 0.0
  %4809 = vmatprep.subr.mxu0 0.0
  %4810 = vmatpush1.msra.mxu0 %v4774
  %4811 = vmatprep.subr.mxu0 0.0
  %4812 = vmatpush2.msra.mxu0 0.0
  %4813 = vmatprep.subr.mxu0 0.0
  %4814 = vmatpush2.msra.mxu0 0.0
  %4815 = vmatprep.subr.mxu0 0.0
  %4816 = vmatpush2.msra.mxu0 0.0
  %4817 = vmatprep.subr.mxu0 0.0
  %4818 = vmatpush2.msra.mxu0 0.0
  %4819 = vmatprep.subr.mxu0 0.0
  %4820 = vmatpush2.msra.mxu0 0.0
  %4821 = vmatprep.subr.mxu0 0.0
  %4822 = vmatpush2.msra.mxu0 0.0
  %4823 = vmatprep.subr.mxu0 0.0
  %4824 = vmatpush2.msra.mxu0 0.0
  %4825 = vmatprep.subr.mxu0 0.0
  %4826 = vmatpush2.msra.mxu0 0.0
  %4827 = vmatprep.subr.mxu0 0.0
  %4828 = vmatpush2.msra.mxu0 0.0
  %4829 = vmatprep.subr.mxu0 0.0
  %4830 = vmatpush2.msra.mxu0 0.0
  %4831 = vmatprep.subr.mxu0 0.0
  %4832 = vmatpush2.msra.mxu0 0.0
  %4833 = vmatprep.subr.mxu0 0.0
  %4834 = vmatpush2.msra.mxu0 0.0
  %4835 = vmatprep.subr.mxu0 0.0
  %4836 = vmatpush2.msra.mxu0 0.0
  %4837 = vmatprep.subr.mxu0 0.0
  %4838 = vmatpush2.msra.mxu0 0.0
  %4839 = vmatprep.subr.mxu0 0.0
  %4840 = vmatpush2.msra.mxu0 0.0
  %4841 = vmatprep.subr.mxu0 0.0
  %4842 = vmatpush2.msra.mxu0 0.0
  %4843 = vmatprep.mubr.f32.mxu0 0.0
  %4844 = vmatmul.mubr.f32.gmra.mxu0 %v4777
  %v4845 = vpop.f32.mrf.mxu0
  %v4846 = vadd.f32 0.0, %v4845
  %v4847 = vpop.f32.mrf.mxu0
  %4848 = vdwg.mxu0
  %4849 = vrot.lane.b32.xlu0 %v3849, 48
  %v4850 = vpop.permute.xlu0 %4849
  %v4853 = vsel %vm416, %v4772, 0
  %4855 = vmatprep.subr.mxu0 0.0
  %4856 = vmatpush1.msra.mxu0 0.0
  %4857 = vmatprep.subr.mxu0 0.0
  %4858 = vmatpush1.msra.mxu0 0.0
  %4859 = vmatprep.subr.mxu0 0.0
  %4860 = vmatpush1.msra.mxu0 0.0
  %4861 = vmatprep.subr.mxu0 0.0
  %4862 = vmatpush1.msra.mxu0 0.0
  %4863 = vmatprep.subr.mxu0 0.0
  %4864 = vmatpush1.msra.mxu0 0.0
  %4865 = vmatprep.subr.mxu0 0.0
  %4866 = vmatpush1.msra.mxu0 0.0
  %4867 = vmatprep.subr.mxu0 0.0
  %4868 = vmatpush1.msra.mxu0 0.0
  %4869 = vmatprep.subr.mxu0 0.0
  %4870 = vmatpush1.msra.mxu0 0.0
  %4871 = vmatprep.subr.mxu0 0.0
  %4872 = vmatpush1.msra.mxu0 0.0
  %4873 = vmatprep.subr.mxu0 0.0
  %4874 = vmatpush1.msra.mxu0 0.0
  %4875 = vmatprep.subr.mxu0 0.0
  %4876 = vmatpush1.msra.mxu0 0.0
  %4877 = vmatprep.subr.mxu0 0.0
  %4878 = vmatpush1.msra.mxu0 0.0
  %4879 = vmatprep.subr.mxu0 0.0
  %4880 = vmatpush1.msra.mxu0 0.0
  %4881 = vmatprep.subr.mxu0 0.0
  %4882 = vmatpush1.msra.mxu0 0.0
  %4883 = vmatprep.subr.mxu0 0.0
  %4884 = vmatpush1.msra.mxu0 0.0
  %4885 = vmatprep.subr.mxu0 0.0
  %4886 = vmatpush1.msra.mxu0 %v4850
  %4887 = vmatprep.subr.mxu0 0.0
  %4888 = vmatpush2.msra.mxu0 0.0
  %4889 = vmatprep.subr.mxu0 0.0
  %4890 = vmatpush2.msra.mxu0 0.0
  %4891 = vmatprep.subr.mxu0 0.0
  %4892 = vmatpush2.msra.mxu0 0.0
  %4893 = vmatprep.subr.mxu0 0.0
  %4894 = vmatpush2.msra.mxu0 0.0
  %4895 = vmatprep.subr.mxu0 0.0
  %4896 = vmatpush2.msra.mxu0 0.0
  %4897 = vmatprep.subr.mxu0 0.0
  %4898 = vmatpush2.msra.mxu0 0.0
  %4899 = vmatprep.subr.mxu0 0.0
  %4900 = vmatpush2.msra.mxu0 0.0
  %4901 = vmatprep.subr.mxu0 0.0
  %4902 = vmatpush2.msra.mxu0 0.0
  %4903 = vmatprep.subr.mxu0 0.0
  %4904 = vmatpush2.msra.mxu0 0.0
  %4905 = vmatprep.subr.mxu0 0.0
  %4906 = vmatpush2.msra.mxu0 0.0
  %4907 = vmatprep.subr.mxu0 0.0
  %4908 = vmatpush2.msra.mxu0 0.0
  %4909 = vmatprep.subr.mxu0 0.0
  %4910 = vmatpush2.msra.mxu0 0.0
  %4911 = vmatprep.subr.mxu0 0.0
  %4912 = vmatpush2.msra.mxu0 0.0
  %4913 = vmatprep.subr.mxu0 0.0
  %4914 = vmatpush2.msra.mxu0 0.0
  %4915 = vmatprep.subr.mxu0 0.0
  %4916 = vmatpush2.msra.mxu0 0.0
  %4917 = vmatprep.subr.mxu0 0.0
  %4918 = vmatpush2.msra.mxu0 0.0
  %4919 = vmatprep.mubr.f32.mxu0 0.0
  %4920 = vmatmul.mubr.f32.gmra.mxu0 %v4853
  %v4921 = vpop.f32.mrf.mxu0
  %v4922 = vadd.f32 0.0, %v4921
  %v4923 = vpop.f32.mrf.mxu0
  %4924 = vdwg.mxu0
  %4925 = vrot.lane.b32.xlu0 %v3927, 104
  %v4926 = vpop.permute.xlu0 %4925
  %4927 = vrot.lane.b32.xlu0 %v3927, 72
  %v4928 = vpop.permute.xlu0 %4927
  %v4929 = vsel %vm416, %v4926, 0
  %v4931 = vsel %vm416, %v4928, 0
  %4933 = vmatprep.subr.mxu0 0.0
  %4934 = vmatpush1.xpose.msra.mxu0 0.0
  %4935 = vmatprep.subr.mxu0 0.0
  %4936 = vmatpush1.xpose.msra.mxu0 0.0
  %4937 = vmatprep.subr.mxu0 0.0
  %4938 = vmatpush1.xpose.msra.mxu0 0.0
  %4939 = vmatprep.subr.mxu0 0.0
  %4940 = vmatpush1.xpose.msra.mxu0 0.0
  %4941 = vmatprep.subr.mxu0 0.0
  %4942 = vmatpush1.xpose.msra.mxu0 0.0
  %4943 = vmatprep.subr.mxu0 0.0
  %4944 = vmatpush1.xpose.msra.mxu0 0.0
  %4945 = vmatprep.subr.mxu0 0.0
  %4946 = vmatpush1.xpose.msra.mxu0 0.0
  %4947 = vmatprep.subr.mxu0 0.0
  %4948 = vmatpush1.xpose.msra.mxu0 0.0
  %4949 = vmatprep.subr.mxu0 0.0
  %4950 = vmatpush1.xpose.msra.mxu0 0.0
  %4951 = vmatprep.subr.mxu0 0.0
  %4952 = vmatpush1.xpose.msra.mxu0 0.0
  %4953 = vmatprep.subr.mxu0 0.0
  %4954 = vmatpush1.xpose.msra.mxu0 0.0
  %4955 = vmatprep.subr.mxu0 0.0
  %4956 = vmatpush1.xpose.msra.mxu0 0.0
  %4957 = vmatprep.subr.mxu0 0.0
  %4958 = vmatpush1.xpose.msra.mxu0 0.0
  %4959 = vmatprep.subr.mxu0 0.0
  %4960 = vmatpush1.xpose.msra.mxu0 0.0
  %4961 = vmatprep.subr.mxu0 0.0
  %4962 = vmatpush1.xpose.msra.mxu0 0.0
  %4963 = vmatprep.subr.mxu0 0.0
  %4964 = vmatpush1.xpose.msra.mxu0 %v4931
  %4965 = vmatprep.subr.mxu0 0.0
  %4966 = vmatpush2.xpose.msra.mxu0 0.0
  %4967 = vmatprep.subr.mxu0 0.0
  %4968 = vmatpush2.xpose.msra.mxu0 0.0
  %4969 = vmatprep.subr.mxu0 0.0
  %4970 = vmatpush2.xpose.msra.mxu0 0.0
  %4971 = vmatprep.subr.mxu0 0.0
  %4972 = vmatpush2.xpose.msra.mxu0 0.0
  %4973 = vmatprep.subr.mxu0 0.0
  %4974 = vmatpush2.xpose.msra.mxu0 0.0
  %4975 = vmatprep.subr.mxu0 0.0
  %4976 = vmatpush2.xpose.msra.mxu0 0.0
  %4977 = vmatprep.subr.mxu0 0.0
  %4978 = vmatpush2.xpose.msra.mxu0 0.0
  %4979 = vmatprep.subr.mxu0 0.0
  %4980 = vmatpush2.xpose.msra.mxu0 0.0
  %4981 = vmatprep.subr.mxu0 0.0
  %4982 = vmatpush2.xpose.msra.mxu0 0.0
  %4983 = vmatprep.subr.mxu0 0.0
  %4984 = vmatpush2.xpose.msra.mxu0 0.0
  %4985 = vmatprep.subr.mxu0 0.0
  %4986 = vmatpush2.xpose.msra.mxu0 0.0
  %4987 = vmatprep.subr.mxu0 0.0
  %4988 = vmatpush2.xpose.msra.mxu0 0.0
  %4989 = vmatprep.subr.mxu0 0.0
  %4990 = vmatpush2.xpose.msra.mxu0 0.0
  %4991 = vmatprep.subr.mxu0 0.0
  %4992 = vmatpush2.xpose.msra.mxu0 0.0
  %4993 = vmatprep.subr.mxu0 0.0
  %4994 = vmatpush2.xpose.msra.mxu0 0.0
  %4995 = vmatprep.subr.mxu0 0.0
  %4996 = vmatpush2.xpose.msra.mxu0 0.0
  %4997 = vmatprep.mubr.f32.mxu0 0.0
  %4998 = vmatmul.mubr.f32.gmra.mxu0 %v4929
  %v4999 = vpop.f32.mrf.mxu0
  %v5000 = vadd.f32 0.0, %v4999
  %v5001 = vpop.f32.mrf.mxu0
  %5002 = vdwg.mxu0
  %5003 = vrot.lane.b32.xlu0 %v3928, 104
  %v5004 = vpop.permute.xlu0 %5003
  %5005 = vrot.lane.b32.xlu0 %v3928, 72
  %v5006 = vpop.permute.xlu0 %5005
  %v5007 = vsel %vm416, %v5004, 0
  %v5009 = vsel %vm416, %v5006, 0
  %5011 = vmatprep.subr.mxu0 0.0
  %5012 = vmatpush1.xpose.msra.mxu0 0.0
  %5013 = vmatprep.subr.mxu0 0.0
  %5014 = vmatpush1.xpose.msra.mxu0 0.0
  %5015 = vmatprep.subr.mxu0 0.0
  %5016 = vmatpush1.xpose.msra.mxu0 0.0
  %5017 = vmatprep.subr.mxu0 0.0
  %5018 = vmatpush1.xpose.msra.mxu0 0.0
  %5019 = vmatprep.subr.mxu0 0.0
  %5020 = vmatpush1.xpose.msra.mxu0 0.0
  %5021 = vmatprep.subr.mxu0 0.0
  %5022 = vmatpush1.xpose.msra.mxu0 0.0
  %5023 = vmatprep.subr.mxu0 0.0
  %5024 = vmatpush1.xpose.msra.mxu0 0.0
  %5025 = vmatprep.subr.mxu0 0.0
  %5026 = vmatpush1.xpose.msra.mxu0 0.0
  %5027 = vmatprep.subr.mxu0 0.0
  %5028 = vmatpush1.xpose.msra.mxu0 0.0
  %5029 = vmatprep.subr.mxu0 0.0
  %5030 = vmatpush1.xpose.msra.mxu0 0.0
  %5031 = vmatprep.subr.mxu0 0.0
  %5032 = vmatpush1.xpose.msra.mxu0 0.0
  %5033 = vmatprep.subr.mxu0 0.0
  %5034 = vmatpush1.xpose.msra.mxu0 0.0
  %5035 = vmatprep.subr.mxu0 0.0
  %5036 = vmatpush1.xpose.msra.mxu0 0.0
  %5037 = vmatprep.subr.mxu0 0.0
  %5038 = vmatpush1.xpose.msra.mxu0 0.0
  %5039 = vmatprep.subr.mxu0 0.0
  %5040 = vmatpush1.xpose.msra.mxu0 0.0
  %5041 = vmatprep.subr.mxu0 0.0
  %5042 = vmatpush1.xpose.msra.mxu0 %v5009
  %5043 = vmatprep.subr.mxu0 0.0
  %5044 = vmatpush2.xpose.msra.mxu0 0.0
  %5045 = vmatprep.subr.mxu0 0.0
  %5046 = vmatpush2.xpose.msra.mxu0 0.0
  %5047 = vmatprep.subr.mxu0 0.0
  %5048 = vmatpush2.xpose.msra.mxu0 0.0
  %5049 = vmatprep.subr.mxu0 0.0
  %5050 = vmatpush2.xpose.msra.mxu0 0.0
  %5051 = vmatprep.subr.mxu0 0.0
  %5052 = vmatpush2.xpose.msra.mxu0 0.0
  %5053 = vmatprep.subr.mxu0 0.0
  %5054 = vmatpush2.xpose.msra.mxu0 0.0
  %5055 = vmatprep.subr.mxu0 0.0
  %5056 = vmatpush2.xpose.msra.mxu0 0.0
  %5057 = vmatprep.subr.mxu0 0.0
  %5058 = vmatpush2.xpose.msra.mxu0 0.0
  %5059 = vmatprep.subr.mxu0 0.0
  %5060 = vmatpush2.xpose.msra.mxu0 0.0
  %5061 = vmatprep.subr.mxu0 0.0
  %5062 = vmatpush2.xpose.msra.mxu0 0.0
  %5063 = vmatprep.subr.mxu0 0.0
  %5064 = vmatpush2.xpose.msra.mxu0 0.0
  %5065 = vmatprep.subr.mxu0 0.0
  %5066 = vmatpush2.xpose.msra.mxu0 0.0
  %5067 = vmatprep.subr.mxu0 0.0
  %5068 = vmatpush2.xpose.msra.mxu0 0.0
  %5069 = vmatprep.subr.mxu0 0.0
  %5070 = vmatpush2.xpose.msra.mxu0 0.0
  %5071 = vmatprep.subr.mxu0 0.0
  %5072 = vmatpush2.xpose.msra.mxu0 0.0
  %5073 = vmatprep.subr.mxu0 0.0
  %5074 = vmatpush2.xpose.msra.mxu0 0.0
  %5075 = vmatprep.mubr.f32.mxu0 0.0
  %5076 = vmatmul.mubr.f32.gmra.mxu0 %v5007
  %v5077 = vpop.f32.mrf.mxu0
  %v5078 = vadd.f32 0.0, %v5077
  %v5079 = vpop.f32.mrf.mxu0
  %5080 = vdwg.mxu0
  %v5081 = vmul.f32 %v5000, 0.35355338
  %v5082 = vmul.f32 %v5078, 0.35355338
  %v5083 = vsel %vm416, %v5081, -inf
  %5084 = vmax.xlane.f32.xlu0 %v5083
  %v5085 = vpop.xlane.xlu0 %5084
  %v5086 = vsel %vm416, %v5082, -inf
  %5087 = vmax.xlane.f32.xlu0 %v5086
  %v5088 = vpop.xlane.xlu0 %5087
  %v5089 = vsub.f32 %v5081, %v5085
  %v5090 = vsub.f32 %v5082, %v5088
  %v5091 = vmul.f32 %v5089, 1.442695
  %v5092 = vpow.pop %v5091
  %v5093 = vmul.f32 %v5090, 1.442695
  %v5094 = vpow.pop %v5093
  %v5095 = vsel %vm416, %v5092, 0.0
  %5096 = vadd.xlane.f32.xlu0 %v5095
  %v5097 = vpop.xlane.xlu0 %5096
  %v5098 = vsel %vm416, %v5094, 0.0
  %5099 = vadd.xlane.f32.xlu0 %v5098
  %v5100 = vpop.xlane.xlu0 %5099
  %v5101 = vrcp.pop %v5097
  %v5102 = vmul.f32 %v5092, %v5101
  %v5103 = vrcp.pop %v5100
  %v5104 = vmul.f32 %v5094, %v5103
  %5105 = vrot.lane.b32.xlu0 %v3844, 40
  %v5106 = vpop.permute.xlu0 %5105
  %v5109 = vsel %vm416, %v5102, 0
  %5111 = vmatprep.subr.mxu0 0.0
  %5112 = vmatpush1.msra.mxu0 0.0
  %5113 = vmatprep.subr.mxu0 0.0
  %5114 = vmatpush1.msra.mxu0 0.0
  %5115 = vmatprep.subr.mxu0 0.0
  %5116 = vmatpush1.msra.mxu0 0.0
  %5117 = vmatprep.subr.mxu0 0.0
  %5118 = vmatpush1.msra.mxu0 0.0
  %5119 = vmatprep.subr.mxu0 0.0
  %5120 = vmatpush1.msra.mxu0 0.0
  %5121 = vmatprep.subr.mxu0 0.0
  %5122 = vmatpush1.msra.mxu0 0.0
  %5123 = vmatprep.subr.mxu0 0.0
  %5124 = vmatpush1.msra.mxu0 0.0
  %5125 = vmatprep.subr.mxu0 0.0
  %5126 = vmatpush1.msra.mxu0 0.0
  %5127 = vmatprep.subr.mxu0 0.0
  %5128 = vmatpush1.msra.mxu0 0.0
  %5129 = vmatprep.subr.mxu0 0.0
  %5130 = vmatpush1.msra.mxu0 0.0
  %5131 = vmatprep.subr.mxu0 0.0
  %5132 = vmatpush1.msra.mxu0 0.0
  %5133 = vmatprep.subr.mxu0 0.0
  %5134 = vmatpush1.msra.mxu0 0.0
  %5135 = vmatprep.subr.mxu0 0.0
  %5136 = vmatpush1.msra.mxu0 0.0
  %5137 = vmatprep.subr.mxu0 0.0
  %5138 = vmatpush1.msra.mxu0 0.0
  %5139 = vmatprep.subr.mxu0 0.0
  %5140 = vmatpush1.msra.mxu0 0.0
  %5141 = vmatprep.subr.mxu0 0.0
  %5142 = vmatpush1.msra.mxu0 %v5106
  %5143 = vmatprep.subr.mxu0 0.0
  %5144 = vmatpush2.msra.mxu0 0.0
  %5145 = vmatprep.subr.mxu0 0.0
  %5146 = vmatpush2.msra.mxu0 0.0
  %5147 = vmatprep.subr.mxu0 0.0
  %5148 = vmatpush2.msra.mxu0 0.0
  %5149 = vmatprep.subr.mxu0 0.0
  %5150 = vmatpush2.msra.mxu0 0.0
  %5151 = vmatprep.subr.mxu0 0.0
  %5152 = vmatpush2.msra.mxu0 0.0
  %5153 = vmatprep.subr.mxu0 0.0
  %5154 = vmatpush2.msra.mxu0 0.0
  %5155 = vmatprep.subr.mxu0 0.0
  %5156 = vmatpush2.msra.mxu0 0.0
  %5157 = vmatprep.subr.mxu0 0.0
  %5158 = vmatpush2.msra.mxu0 0.0
  %5159 = vmatprep.subr.mxu0 0.0
  %5160 = vmatpush2.msra.mxu0 0.0
  %5161 = vmatprep.subr.mxu0 0.0
  %5162 = vmatpush2.msra.mxu0 0.0
  %5163 = vmatprep.subr.mxu0 0.0
  %5164 = vmatpush2.msra.mxu0 0.0
  %5165 = vmatprep.subr.mxu0 0.0
  %5166 = vmatpush2.msra.mxu0 0.0
  %5167 = vmatprep.subr.mxu0 0.0
  %5168 = vmatpush2.msra.mxu0 0.0
  %5169 = vmatprep.subr.mxu0 0.0
  %5170 = vmatpush2.msra.mxu0 0.0
  %5171 = vmatprep.subr.mxu0 0.0
  %5172 = vmatpush2.msra.mxu0 0.0
  %5173 = vmatprep.subr.mxu0 0.0
  %5174 = vmatpush2.msra.mxu0 0.0
  %5175 = vmatprep.mubr.f32.mxu0 0.0
  %5176 = vmatmul.mubr.f32.gmra.mxu0 %v5109
  %v5177 = vpop.f32.mrf.mxu0
  %v5178 = vadd.f32 0.0, %v5177
  %v5179 = vpop.f32.mrf.mxu0
  %5180 = vdwg.mxu0
  %5181 = vrot.lane.b32.xlu0 %v3849, 40
  %v5182 = vpop.permute.xlu0 %5181
  %v5185 = vsel %vm416, %v5104, 0
  %5187 = vmatprep.subr.mxu0 0.0
  %5188 = vmatpush1.msra.mxu0 0.0
  %5189 = vmatprep.subr.mxu0 0.0
  %5190 = vmatpush1.msra.mxu0 0.0
  %5191 = vmatprep.subr.mxu0 0.0
  %5192 = vmatpush1.msra.mxu0 0.0
  %5193 = vmatprep.subr.mxu0 0.0
  %5194 = vmatpush1.msra.mxu0 0.0
  %5195 = vmatprep.subr.mxu0 0.0
  %5196 = vmatpush1.msra.mxu0 0.0
  %5197 = vmatprep.subr.mxu0 0.0
  %5198 = vmatpush1.msra.mxu0 0.0
  %5199 = vmatprep.subr.mxu0 0.0
  %5200 = vmatpush1.msra.mxu0 0.0
  %5201 = vmatprep.subr.mxu0 0.0
  %5202 = vmatpush1.msra.mxu0 0.0
  %5203 = vmatprep.subr.mxu0 0.0
  %5204 = vmatpush1.msra.mxu0 0.0
  %5205 = vmatprep.subr.mxu0 0.0
  %5206 = vmatpush1.msra.mxu0 0.0
  %5207 = vmatprep.subr.mxu0 0.0
  %5208 = vmatpush1.msra.mxu0 0.0
  %5209 = vmatprep.subr.mxu0 0.0
  %5210 = vmatpush1.msra.mxu0 0.0
  %5211 = vmatprep.subr.mxu0 0.0
  %5212 = vmatpush1.msra.mxu0 0.0
  %5213 = vmatprep.subr.mxu0 0.0
  %5214 = vmatpush1.msra.mxu0 0.0
  %5215 = vmatprep.subr.mxu0 0.0
  %5216 = vmatpush1.msra.mxu0 0.0
  %5217 = vmatprep.subr.mxu0 0.0
  %5218 = vmatpush1.msra.mxu0 %v5182
  %5219 = vmatprep.subr.mxu0 0.0
  %5220 = vmatpush2.msra.mxu0 0.0
  %5221 = vmatprep.subr.mxu0 0.0
  %5222 = vmatpush2.msra.mxu0 0.0
  %5223 = vmatprep.subr.mxu0 0.0
  %5224 = vmatpush2.msra.mxu0 0.0
  %5225 = vmatprep.subr.mxu0 0.0
  %5226 = vmatpush2.msra.mxu0 0.0
  %5227 = vmatprep.subr.mxu0 0.0
  %5228 = vmatpush2.msra.mxu0 0.0
  %5229 = vmatprep.subr.mxu0 0.0
  %5230 = vmatpush2.msra.mxu0 0.0
  %5231 = vmatprep.subr.mxu0 0.0
  %5232 = vmatpush2.msra.mxu0 0.0
  %5233 = vmatprep.subr.mxu0 0.0
  %5234 = vmatpush2.msra.mxu0 0.0
  %5235 = vmatprep.subr.mxu0 0.0
  %5236 = vmatpush2.msra.mxu0 0.0
  %5237 = vmatprep.subr.mxu0 0.0
  %5238 = vmatpush2.msra.mxu0 0.0
  %5239 = vmatprep.subr.mxu0 0.0
  %5240 = vmatpush2.msra.mxu0 0.0
  %5241 = vmatprep.subr.mxu0 0.0
  %5242 = vmatpush2.msra.mxu0 0.0
  %5243 = vmatprep.subr.mxu0 0.0
  %5244 = vmatpush2.msra.mxu0 0.0
  %5245 = vmatprep.subr.mxu0 0.0
  %5246 = vmatpush2.msra.mxu0 0.0
  %5247 = vmatprep.subr.mxu0 0.0
  %5248 = vmatpush2.msra.mxu0 0.0
  %5249 = vmatprep.subr.mxu0 0.0
  %5250 = vmatpush2.msra.mxu0 0.0
  %5251 = vmatprep.mubr.f32.mxu0 0.0
  %5252 = vmatmul.mubr.f32.gmra.mxu0 %v5185
  %v5253 = vpop.f32.mrf.mxu0
  %v5254 = vadd.f32 0.0, %v5253
  %v5255 = vpop.f32.mrf.mxu0
  %5256 = vdwg.mxu0
  %5259 = vrot.lane.b32.xlu0 %v4514, 8
  %v5260 = vpop.permute.xlu0 %5259
  %5261 = vrot.lane.b32.xlu0 %v4590, 8
  %v5262 = vpop.permute.xlu0 %5261
  %5267 = vrot.lane.b32.xlu0 %v4846, 16
  %v5268 = vpop.permute.xlu0 %5267
  %5269 = vrot.lane.b32.xlu0 %v4922, 16
  %v5270 = vpop.permute.xlu0 %5269
  %5275 = vrot.lane.b32.xlu0 %v5178, 24
  %v5276 = vpop.permute.xlu0 %5275
  %5277 = vrot.lane.b32.xlu0 %v5254, 24
  %v5278 = vpop.permute.xlu0 %5277
  %v5281 = vsel %vm416, %v4181, %v5260
  %v5282 = vsel %vm416, %v4258, %v5262
  %v5283 = vsel %vm1768, %v5281, %v5268
  %v5284 = vsel %vm1768, %v5282, %v5270
  %v5285 = vsel %vm1771, %v5283, %v5276
  %v5286 = vsel %vm1771, %v5284, %v5278
  %v5287 = vld [vmem:[%s1 + $0x168] sm:$0xff]
  %v5288 = vld [vmem:[%s1 + $0x170] sm:$0xff]
  %v5289 = vld [vmem:[%s1 + $0x178] sm:$0xff]
  %v5290 = vld [vmem:[%s1 + $0x180] sm:$0xff]
  %v5291 = vld [vmem:[%s1 + $0x188] sm:$0x1]
  %v5292 = vlaneseq
  %v5293 = vshrl.u32 %v5292, 7
  %v5294 = vsub.s32 0, %v5293
  %v5295 = vrot.slane %v5291, %v5294
  %v5297 = vsel %vm36, %v5285, 0
  %v5300 = vsel %vm36, %v5286, 0
  %5302 = vmatprep.subr.mxu0 0.0
  %5303 = vmatpush1.msra.mxu0 0.0
  %5304 = vmatprep.subr.mxu0 0.0
  %5305 = vmatpush1.msra.mxu0 0.0
  %5306 = vmatprep.subr.mxu0 0.0
  %5307 = vmatpush1.msra.mxu0 0.0
  %5308 = vmatprep.subr.mxu0 0.0
  %5309 = vmatpush1.msra.mxu0 0.0
  %5310 = vmatprep.subr.mxu0 0.0
  %5311 = vmatpush1.msra.mxu0 0.0
  %5312 = vmatprep.subr.mxu0 0.0
  %5313 = vmatpush1.msra.mxu0 0.0
  %5314 = vmatprep.subr.mxu0 0.0
  %5315 = vmatpush1.msra.mxu0 0.0
  %5316 = vmatprep.subr.mxu0 0.0
  %5317 = vmatpush1.msra.mxu0 0.0
  %5318 = vmatprep.subr.mxu0 0.0
  %5319 = vmatpush1.msra.mxu0 0.0
  %5320 = vmatprep.subr.mxu0 0.0
  %5321 = vmatpush1.msra.mxu0 0.0
  %5322 = vmatprep.subr.mxu0 0.0
  %5323 = vmatpush1.msra.mxu0 0.0
  %5324 = vmatprep.subr.mxu0 0.0
  %5325 = vmatpush1.msra.mxu0 0.0
  %5326 = vmatprep.subr.mxu0 0.0
  %5327 = vmatpush1.msra.mxu0 %v5290
  %5328 = vmatprep.subr.mxu0 0.0
  %5329 = vmatpush1.msra.mxu0 %v5289
  %5330 = vmatprep.subr.mxu0 0.0
  %5331 = vmatpush1.msra.mxu0 %v5288
  %5332 = vmatprep.subr.mxu0 0.0
  %5333 = vmatpush1.msra.mxu0 %v5287
  %5334 = vmatprep.subr.mxu0 0.0
  %5335 = vmatpush2.msra.mxu0 0.0
  %5336 = vmatprep.subr.mxu0 0.0
  %5337 = vmatpush2.msra.mxu0 0.0
  %5338 = vmatprep.subr.mxu0 0.0
  %5339 = vmatpush2.msra.mxu0 0.0
  %5340 = vmatprep.subr.mxu0 0.0
  %5341 = vmatpush2.msra.mxu0 0.0
  %5342 = vmatprep.subr.mxu0 0.0
  %5343 = vmatpush2.msra.mxu0 0.0
  %5344 = vmatprep.subr.mxu0 0.0
  %5345 = vmatpush2.msra.mxu0 0.0
  %5346 = vmatprep.subr.mxu0 0.0
  %5347 = vmatpush2.msra.mxu0 0.0
  %5348 = vmatprep.subr.mxu0 0.0
  %5349 = vmatpush2.msra.mxu0 0.0
  %5350 = vmatprep.subr.mxu0 0.0
  %5351 = vmatpush2.msra.mxu0 0.0
  %5352 = vmatprep.subr.mxu0 0.0
  %5353 = vmatpush2.msra.mxu0 0.0
  %5354 = vmatprep.subr.mxu0 0.0
  %5355 = vmatpush2.msra.mxu0 0.0
  %5356 = vmatprep.subr.mxu0 0.0
  %5357 = vmatpush2.msra.mxu0 0.0
  %5358 = vmatprep.subr.mxu0 0.0
  %5359 = vmatpush2.msra.mxu0 0.0
  %5360 = vmatprep.subr.mxu0 0.0
  %5361 = vmatpush2.msra.mxu0 0.0
  %5362 = vmatprep.subr.mxu0 0.0
  %5363 = vmatpush2.msra.mxu0 0.0
  %5364 = vmatprep.subr.mxu0 0.0
  %5365 = vmatpush2.msra.mxu0 0.0
  %5366 = vmatprep.mubr.f32.mxu0 0.0
  %5367 = vmatmul.mubr.f32.gmra.mxu0 %v5297
  %v5368 = vpop.f32.mrf.mxu0
  %v5369 = vadd.f32 %v5295, %v5368
  %v5370 = vpop.f32.mrf.mxu0
  %5371 = vmatprep.mubr.f32.mxu0 0.0
  %5372 = vmatmul.mubr.f32.gmra.mxu0 %v5300
  %v5373 = vpop.f32.mrf.mxu0
  %v5374 = vadd.f32 %v5295, %v5373
  %v5375 = vpop.f32.mrf.mxu0
  %5376 = vdwg.mxu0
  %v5377 = vadd.f32 %v3760, %v5369
  %v5378 = vadd.f32 %v3761, %v5374
  %v5379 = vld [vmem:[%s1 + $0x250] sm:$0x1]
  %v5380 = vld [vmem:[%s1 + $0x258] sm:$0x1]
  %v5381 = vsel %vm36, %v5377, 0.0
  %5382 = vadd.xlane.f32.xlu0 %v5381
  %v5383 = vpop.xlane.xlu0 %5382
  %v5384 = vsel %vm36, %v5378, 0.0
  %5385 = vadd.xlane.f32.xlu0 %v5384
  %v5386 = vpop.xlane.xlu0 %5385
  %v5387 = vmul.f32 %v5383, %v1874
  %v5388 = vmul.f32 %v5386, %v1874
  %v5389 = vsub.f32 %v5377, %v5387
  %v5390 = vsub.f32 %v5378, %v5388
  %v5391 = vmul.f32 %v5389, %v5389
  %v5392 = vmul.f32 %v5390, %v5390
  %v5393 = vsel %vm36, %v5391, 0.0
  %5394 = vadd.xlane.f32.xlu0 %v5393
  %v5395 = vpop.xlane.xlu0 %5394
  %v5396 = vsel %vm36, %v5392, 0.0
  %5397 = vadd.xlane.f32.xlu0 %v5396
  %v5398 = vpop.xlane.xlu0 %5397
  %v5399 = vmul.f32 %v5395, %v1874
  %v5400 = vmul.f32 %v5398, %v1874
  %v5401 = vadd.f32 %v5399, 1e-05
  %v5402 = vadd.f32 %v5400, 1e-05
  %v5403 = vrsqrt.pop %v5401
  %v5404 = vrsqrt.pop %v5402
  %v5405 = vmul.f32 %v5389, %v5403
  %v5406 = vmul.f32 %v5390, %v5404
  %v5407 = vlaneseq
  %v5408 = vshrl.u32 %v5407, 7
  %v5409 = vsub.s32 0, %v5408
  %v5410 = vrot.slane %v5379, %v5409
  %v5411 = vmul.f32 %v5405, %v5410
  %v5412 = vmul.f32 %v5406, %v5410
  %v5413 = vlaneseq
  %v5414 = vshrl.u32 %v5413, 7
  %v5415 = vsub.s32 0, %v5414
  %v5416 = vrot.slane %v5380, %v5415
  %v5417 = vadd.f32 %v5411, %v5416
  %v5418 = vadd.f32 %v5412, %v5416
  %v5419 = vadd.f32 %v5417, %v13
  %v5420 = vadd.f32 %v5418, %v14
  %v5421 = vld [vmem:[%s1 + $0x190] sm:$0xff]
  %v5422 = vld [vmem:[%s1 + $0x198] sm:$0xff]
  %v5423 = vld [vmem:[%s1 + $0x1a0] sm:$0xff]
  %v5424 = vld [vmem:[%s1 + $0x1a8] sm:$0xff]
  %v5425 = vld [vmem:[%s1 + $0x1b0] sm:$0x1]
  %v5426 = vlaneseq
  %v5427 = vshrl.u32 %v5426, 7
  %v5428 = vsub.s32 0, %v5427
  %v5429 = vrot.slane %v5425, %v5428
  %v5431 = vsel %vm36, %v5419, 0
  %v5434 = vsel %vm36, %v5420, 0
  %5436 = vmatprep.subr.mxu0 0.0
  %5437 = vmatpush1.msra.mxu0 0.0
  %5438 = vmatprep.subr.mxu0 0.0
  %5439 = vmatpush1.msra.mxu0 0.0
  %5440 = vmatprep.subr.mxu0 0.0
  %5441 = vmatpush1.msra.mxu0 0.0
  %5442 = vmatprep.subr.mxu0 0.0
  %5443 = vmatpush1.msra.mxu0 0.0
  %5444 = vmatprep.subr.mxu0 0.0
  %5445 = vmatpush1.msra.mxu0 0.0
  %5446 = vmatprep.subr.mxu0 0.0
  %5447 = vmatpush1.msra.mxu0 0.0
  %5448 = vmatprep.subr.mxu0 0.0
  %5449 = vmatpush1.msra.mxu0 0.0
  %5450 = vmatprep.subr.mxu0 0.0
  %5451 = vmatpush1.msra.mxu0 0.0
  %5452 = vmatprep.subr.mxu0 0.0
  %5453 = vmatpush1.msra.mxu0 0.0
  %5454 = vmatprep.subr.mxu0 0.0
  %5455 = vmatpush1.msra.mxu0 0.0
  %5456 = vmatprep.subr.mxu0 0.0
  %5457 = vmatpush1.msra.mxu0 0.0
  %5458 = vmatprep.subr.mxu0 0.0
  %5459 = vmatpush1.msra.mxu0 0.0
  %5460 = vmatprep.subr.mxu0 0.0
  %5461 = vmatpush1.msra.mxu0 %v5424
  %5462 = vmatprep.subr.mxu0 0.0
  %5463 = vmatpush1.msra.mxu0 %v5423
  %5464 = vmatprep.subr.mxu0 0.0
  %5465 = vmatpush1.msra.mxu0 %v5422
  %5466 = vmatprep.subr.mxu0 0.0
  %5467 = vmatpush1.msra.mxu0 %v5421
  %5468 = vmatprep.subr.mxu0 0.0
  %5469 = vmatpush2.msra.mxu0 0.0
  %5470 = vmatprep.subr.mxu0 0.0
  %5471 = vmatpush2.msra.mxu0 0.0
  %5472 = vmatprep.subr.mxu0 0.0
  %5473 = vmatpush2.msra.mxu0 0.0
  %5474 = vmatprep.subr.mxu0 0.0
  %5475 = vmatpush2.msra.mxu0 0.0
  %5476 = vmatprep.subr.mxu0 0.0
  %5477 = vmatpush2.msra.mxu0 0.0
  %5478 = vmatprep.subr.mxu0 0.0
  %5479 = vmatpush2.msra.mxu0 0.0
  %5480 = vmatprep.subr.mxu0 0.0
  %5481 = vmatpush2.msra.mxu0 0.0
  %5482 = vmatprep.subr.mxu0 0.0
  %5483 = vmatpush2.msra.mxu0 0.0
  %5484 = vmatprep.subr.mxu0 0.0
  %5485 = vmatpush2.msra.mxu0 0.0
  %5486 = vmatprep.subr.mxu0 0.0
  %5487 = vmatpush2.msra.mxu0 0.0
  %5488 = vmatprep.subr.mxu0 0.0
  %5489 = vmatpush2.msra.mxu0 0.0
  %5490 = vmatprep.subr.mxu0 0.0
  %5491 = vmatpush2.msra.mxu0 0.0
  %5492 = vmatprep.subr.mxu0 0.0
  %5493 = vmatpush2.msra.mxu0 0.0
  %5494 = vmatprep.subr.mxu0 0.0
  %5495 = vmatpush2.msra.mxu0 0.0
  %5496 = vmatprep.subr.mxu0 0.0
  %5497 = vmatpush2.msra.mxu0 0.0
  %5498 = vmatprep.subr.mxu0 0.0
  %5499 = vmatpush2.msra.mxu0 0.0
  %5500 = vmatprep.mubr.f32.mxu0 0.0
  %5501 = vmatmul.mubr.f32.gmra.mxu0 %v5431
  %v5502 = vpop.f32.mrf.mxu0
  %v5503 = vadd.f32 %v5429, %v5502
  %v5504 = vpop.f32.mrf.mxu0
  %5505 = vmatprep.mubr.f32.mxu0 0.0
  %5506 = vmatmul.mubr.f32.gmra.mxu0 %v5434
  %v5507 = vpop.f32.mrf.mxu0
  %v5508 = vadd.f32 %v5429, %v5507
  %v5509 = vpop.f32.mrf.mxu0
  %5510 = vdwg.mxu0
  %5511 = vrot.lane.b32.xlu0 %v116, 96
  %v5512 = vpop.permute.xlu0 %5511
  %5513 = vrot.lane.b32.xlu0 %v121, 96
  %v5514 = vpop.permute.xlu0 %5513
  %v5516 = vsel %vm416, %v5503, 0
  %v5518 = vsel %vm416, %v5512, 0
  %v5520 = vsel %vm416, %v5514, 0
  %5522 = vmatprep.subr.mxu0 0.0
  %5523 = vmatpush1.xpose.msra.mxu0 0.0
  %5524 = vmatprep.subr.mxu0 0.0
  %5525 = vmatpush1.xpose.msra.mxu0 0.0
  %5526 = vmatprep.subr.mxu0 0.0
  %5527 = vmatpush1.xpose.msra.mxu0 0.0
  %5528 = vmatprep.subr.mxu0 0.0
  %5529 = vmatpush1.xpose.msra.mxu0 0.0
  %5530 = vmatprep.subr.mxu0 0.0
  %5531 = vmatpush1.xpose.msra.mxu0 0.0
  %5532 = vmatprep.subr.mxu0 0.0
  %5533 = vmatpush1.xpose.msra.mxu0 0.0
  %5534 = vmatprep.subr.mxu0 0.0
  %5535 = vmatpush1.xpose.msra.mxu0 0.0
  %5536 = vmatprep.subr.mxu0 0.0
  %5537 = vmatpush1.xpose.msra.mxu0 0.0
  %5538 = vmatprep.subr.mxu0 0.0
  %5539 = vmatpush1.xpose.msra.mxu0 0.0
  %5540 = vmatprep.subr.mxu0 0.0
  %5541 = vmatpush1.xpose.msra.mxu0 0.0
  %5542 = vmatprep.subr.mxu0 0.0
  %5543 = vmatpush1.xpose.msra.mxu0 0.0
  %5544 = vmatprep.subr.mxu0 0.0
  %5545 = vmatpush1.xpose.msra.mxu0 0.0
  %5546 = vmatprep.subr.mxu0 0.0
  %5547 = vmatpush1.xpose.msra.mxu0 0.0
  %5548 = vmatprep.subr.mxu0 0.0
  %5549 = vmatpush1.xpose.msra.mxu0 0.0
  %5550 = vmatprep.subr.mxu0 0.0
  %5551 = vmatpush1.xpose.msra.mxu0 %v5520
  %5552 = vmatprep.subr.mxu0 0.0
  %5553 = vmatpush1.xpose.msra.mxu0 %v5518
  %5554 = vmatprep.subr.mxu0 0.0
  %5555 = vmatpush2.xpose.msra.mxu0 0.0
  %5556 = vmatprep.subr.mxu0 0.0
  %5557 = vmatpush2.xpose.msra.mxu0 0.0
  %5558 = vmatprep.subr.mxu0 0.0
  %5559 = vmatpush2.xpose.msra.mxu0 0.0
  %5560 = vmatprep.subr.mxu0 0.0
  %5561 = vmatpush2.xpose.msra.mxu0 0.0
  %5562 = vmatprep.subr.mxu0 0.0
  %5563 = vmatpush2.xpose.msra.mxu0 0.0
  %5564 = vmatprep.subr.mxu0 0.0
  %5565 = vmatpush2.xpose.msra.mxu0 0.0
  %5566 = vmatprep.subr.mxu0 0.0
  %5567 = vmatpush2.xpose.msra.mxu0 0.0
  %5568 = vmatprep.subr.mxu0 0.0
  %5569 = vmatpush2.xpose.msra.mxu0 0.0
  %5570 = vmatprep.subr.mxu0 0.0
  %5571 = vmatpush2.xpose.msra.mxu0 0.0
  %5572 = vmatprep.subr.mxu0 0.0
  %5573 = vmatpush2.xpose.msra.mxu0 0.0
  %5574 = vmatprep.subr.mxu0 0.0
  %5575 = vmatpush2.xpose.msra.mxu0 0.0
  %5576 = vmatprep.subr.mxu0 0.0
  %5577 = vmatpush2.xpose.msra.mxu0 0.0
  %5578 = vmatprep.subr.mxu0 0.0
  %5579 = vmatpush2.xpose.msra.mxu0 0.0
  %5580 = vmatprep.subr.mxu0 0.0
  %5581 = vmatpush2.xpose.msra.mxu0 0.0
  %5582 = vmatprep.subr.mxu0 0.0
  %5583 = vmatpush2.xpose.msra.mxu0 0.0
  %5584 = vmatprep.subr.mxu0 0.0
  %5585 = vmatpush2.xpose.msra.mxu0 0.0
  %5586 = vmatprep.mubr.f32.mxu0 0.0
  %5587 = vmatmul.mubr.f32.gmra.mxu0 %v5516
  %v5588 = vpop.f32.mrf.mxu0
  %v5589 = vadd.f32 0.0, %v5588
  %v5590 = vpop.f32.mrf.mxu0
  %5591 = vdwg.mxu0
  %5592 = vrot.lane.b32.xlu0 %v126, 96
  %v5593 = vpop.permute.xlu0 %5592
  %5594 = vrot.lane.b32.xlu0 %v131, 96
  %v5595 = vpop.permute.xlu0 %5594
  %v5597 = vsel %vm416, %v5508, 0
  %v5599 = vsel %vm416, %v5593, 0
  %v5601 = vsel %vm416, %v5595, 0
  %5603 = vmatprep.subr.mxu0 0.0
  %5604 = vmatpush1.xpose.msra.mxu0 0.0
  %5605 = vmatprep.subr.mxu0 0.0
  %5606 = vmatpush1.xpose.msra.mxu0 0.0
  %5607 = vmatprep.subr.mxu0 0.0
  %5608 = vmatpush1.xpose.msra.mxu0 0.0
  %5609 = vmatprep.subr.mxu0 0.0
  %5610 = vmatpush1.xpose.msra.mxu0 0.0
  %5611 = vmatprep.subr.mxu0 0.0
  %5612 = vmatpush1.xpose.msra.mxu0 0.0
  %5613 = vmatprep.subr.mxu0 0.0
  %5614 = vmatpush1.xpose.msra.mxu0 0.0
  %5615 = vmatprep.subr.mxu0 0.0
  %5616 = vmatpush1.xpose.msra.mxu0 0.0
  %5617 = vmatprep.subr.mxu0 0.0
  %5618 = vmatpush1.xpose.msra.mxu0 0.0
  %5619 = vmatprep.subr.mxu0 0.0
  %5620 = vmatpush1.xpose.msra.mxu0 0.0
  %5621 = vmatprep.subr.mxu0 0.0
  %5622 = vmatpush1.xpose.msra.mxu0 0.0
  %5623 = vmatprep.subr.mxu0 0.0
  %5624 = vmatpush1.xpose.msra.mxu0 0.0
  %5625 = vmatprep.subr.mxu0 0.0
  %5626 = vmatpush1.xpose.msra.mxu0 0.0
  %5627 = vmatprep.subr.mxu0 0.0
  %5628 = vmatpush1.xpose.msra.mxu0 0.0
  %5629 = vmatprep.subr.mxu0 0.0
  %5630 = vmatpush1.xpose.msra.mxu0 0.0
  %5631 = vmatprep.subr.mxu0 0.0
  %5632 = vmatpush1.xpose.msra.mxu0 %v5601
  %5633 = vmatprep.subr.mxu0 0.0
  %5634 = vmatpush1.xpose.msra.mxu0 %v5599
  %5635 = vmatprep.subr.mxu0 0.0
  %5636 = vmatpush2.xpose.msra.mxu0 0.0
  %5637 = vmatprep.subr.mxu0 0.0
  %5638 = vmatpush2.xpose.msra.mxu0 0.0
  %5639 = vmatprep.subr.mxu0 0.0
  %5640 = vmatpush2.xpose.msra.mxu0 0.0
  %5641 = vmatprep.subr.mxu0 0.0
  %5642 = vmatpush2.xpose.msra.mxu0 0.0
  %5643 = vmatprep.subr.mxu0 0.0
  %5644 = vmatpush2.xpose.msra.mxu0 0.0
  %5645 = vmatprep.subr.mxu0 0.0
  %5646 = vmatpush2.xpose.msra.mxu0 0.0
  %5647 = vmatprep.subr.mxu0 0.0
  %5648 = vmatpush2.xpose.msra.mxu0 0.0
  %5649 = vmatprep.subr.mxu0 0.0
  %5650 = vmatpush2.xpose.msra.mxu0 0.0
  %5651 = vmatprep.subr.mxu0 0.0
  %5652 = vmatpush2.xpose.msra.mxu0 0.0
  %5653 = vmatprep.subr.mxu0 0.0
  %5654 = vmatpush2.xpose.msra.mxu0 0.0
  %5655 = vmatprep.subr.mxu0 0.0
  %5656 = vmatpush2.xpose.msra.mxu0 0.0
  %5657 = vmatprep.subr.mxu0 0.0
  %5658 = vmatpush2.xpose.msra.mxu0 0.0
  %5659 = vmatprep.subr.mxu0 0.0
  %5660 = vmatpush2.xpose.msra.mxu0 0.0
  %5661 = vmatprep.subr.mxu0 0.0
  %5662 = vmatpush2.xpose.msra.mxu0 0.0
  %5663 = vmatprep.subr.mxu0 0.0
  %5664 = vmatpush2.xpose.msra.mxu0 0.0
  %5665 = vmatprep.subr.mxu0 0.0
  %5666 = vmatpush2.xpose.msra.mxu0 0.0
  %5667 = vmatprep.mubr.f32.mxu0 0.0
  %5668 = vmatmul.mubr.f32.gmra.mxu0 %v5597
  %v5669 = vpop.f32.mrf.mxu0
  %v5670 = vadd.f32 0.0, %v5669
  %v5671 = vpop.f32.mrf.mxu0
  %5672 = vdwg.mxu0
  %v5673 = vmul.f32 %v5589, 0.35355338
  %v5674 = vmul.f32 %v5670, 0.35355338
  %v5675 = vsel %vm1768, %v5673, -inf
  %5676 = vmax.xlane.f32.xlu0 %v5675
  %v5677 = vpop.xlane.xlu0 %5676
  %v5678 = vsel %vm1768, %v5674, -inf
  %5679 = vmax.xlane.f32.xlu0 %v5678
  %v5680 = vpop.xlane.xlu0 %5679
  %v5681 = vsub.f32 %v5673, %v5677
  %v5682 = vsub.f32 %v5674, %v5680
  %v5683 = vmul.f32 %v5681, 1.442695
  %v5684 = vpow.pop %v5683
  %v5685 = vmul.f32 %v5682, 1.442695
  %v5686 = vpow.pop %v5685
  %v5687 = vsel %vm1768, %v5684, 0.0
  %5688 = vadd.xlane.f32.xlu0 %v5687
  %v5689 = vpop.xlane.xlu0 %5688
  %v5690 = vsel %vm1768, %v5686, 0.0
  %5691 = vadd.xlane.f32.xlu0 %v5690
  %v5692 = vpop.xlane.xlu0 %5691
  %v5693 = vrcp.pop %v5689
  %v5694 = vmul.f32 %v5684, %v5693
  %v5695 = vrcp.pop %v5692
  %v5696 = vmul.f32 %v5686, %v5695
  %5697 = vrot.lane.b32.xlu0 %v222, 96
  %v5698 = vpop.permute.xlu0 %5697
  %5699 = vrot.lane.b32.xlu0 %v227, 96
  %v5700 = vpop.permute.xlu0 %5699
  %v5704 = vsel %vm1768, %v5694, 0
  %5706 = vmatprep.subr.mxu0 0.0
  %5707 = vmatpush1.msra.mxu0 0.0
  %5708 = vmatprep.subr.mxu0 0.0
  %5709 = vmatpush1.msra.mxu0 0.0
  %5710 = vmatprep.subr.mxu0 0.0
  %5711 = vmatpush1.msra.mxu0 0.0
  %5712 = vmatprep.subr.mxu0 0.0
  %5713 = vmatpush1.msra.mxu0 0.0
  %5714 = vmatprep.subr.mxu0 0.0
  %5715 = vmatpush1.msra.mxu0 0.0
  %5716 = vmatprep.subr.mxu0 0.0
  %5717 = vmatpush1.msra.mxu0 0.0
  %5718 = vmatprep.subr.mxu0 0.0
  %5719 = vmatpush1.msra.mxu0 0.0
  %5720 = vmatprep.subr.mxu0 0.0
  %5721 = vmatpush1.msra.mxu0 0.0
  %5722 = vmatprep.subr.mxu0 0.0
  %5723 = vmatpush1.msra.mxu0 0.0
  %5724 = vmatprep.subr.mxu0 0.0
  %5725 = vmatpush1.msra.mxu0 0.0
  %5726 = vmatprep.subr.mxu0 0.0
  %5727 = vmatpush1.msra.mxu0 0.0
  %5728 = vmatprep.subr.mxu0 0.0
  %5729 = vmatpush1.msra.mxu0 0.0
  %5730 = vmatprep.subr.mxu0 0.0
  %5731 = vmatpush1.msra.mxu0 0.0
  %5732 = vmatprep.subr.mxu0 0.0
  %5733 = vmatpush1.msra.mxu0 0.0
  %5734 = vmatprep.subr.mxu0 0.0
  %5735 = vmatpush1.msra.mxu0 %v5700
  %5736 = vmatprep.subr.mxu0 0.0
  %5737 = vmatpush1.msra.mxu0 %v5698
  %5738 = vmatprep.subr.mxu0 0.0
  %5739 = vmatpush2.msra.mxu0 0.0
  %5740 = vmatprep.subr.mxu0 0.0
  %5741 = vmatpush2.msra.mxu0 0.0
  %5742 = vmatprep.subr.mxu0 0.0
  %5743 = vmatpush2.msra.mxu0 0.0
  %5744 = vmatprep.subr.mxu0 0.0
  %5745 = vmatpush2.msra.mxu0 0.0
  %5746 = vmatprep.subr.mxu0 0.0
  %5747 = vmatpush2.msra.mxu0 0.0
  %5748 = vmatprep.subr.mxu0 0.0
  %5749 = vmatpush2.msra.mxu0 0.0
  %5750 = vmatprep.subr.mxu0 0.0
  %5751 = vmatpush2.msra.mxu0 0.0
  %5752 = vmatprep.subr.mxu0 0.0
  %5753 = vmatpush2.msra.mxu0 0.0
  %5754 = vmatprep.subr.mxu0 0.0
  %5755 = vmatpush2.msra.mxu0 0.0
  %5756 = vmatprep.subr.mxu0 0.0
  %5757 = vmatpush2.msra.mxu0 0.0
  %5758 = vmatprep.subr.mxu0 0.0
  %5759 = vmatpush2.msra.mxu0 0.0
  %5760 = vmatprep.subr.mxu0 0.0
  %5761 = vmatpush2.msra.mxu0 0.0
  %5762 = vmatprep.subr.mxu0 0.0
  %5763 = vmatpush2.msra.mxu0 0.0
  %5764 = vmatprep.subr.mxu0 0.0
  %5765 = vmatpush2.msra.mxu0 0.0
  %5766 = vmatprep.subr.mxu0 0.0
  %5767 = vmatpush2.msra.mxu0 0.0
  %5768 = vmatprep.subr.mxu0 0.0
  %5769 = vmatpush2.msra.mxu0 0.0
  %5770 = vmatprep.mubr.f32.mxu0 0.0
  %5771 = vmatmul.mubr.f32.gmra.mxu0 %v5704
  %v5772 = vpop.f32.mrf.mxu0
  %v5773 = vadd.f32 0.0, %v5772
  %v5774 = vpop.f32.mrf.mxu0
  %5775 = vdwg.mxu0
  %5776 = vrot.lane.b32.xlu0 %v232, 96
  %v5777 = vpop.permute.xlu0 %5776
  %5778 = vrot.lane.b32.xlu0 %v237, 96
  %v5779 = vpop.permute.xlu0 %5778
  %v5783 = vsel %vm1768, %v5696, 0
  %5785 = vmatprep.subr.mxu0 0.0
  %5786 = vmatpush1.msra.mxu0 0.0
  %5787 = vmatprep.subr.mxu0 0.0
  %5788 = vmatpush1.msra.mxu0 0.0
  %5789 = vmatprep.subr.mxu0 0.0
  %5790 = vmatpush1.msra.mxu0 0.0
  %5791 = vmatprep.subr.mxu0 0.0
  %5792 = vmatpush1.msra.mxu0 0.0
  %5793 = vmatprep.subr.mxu0 0.0
  %5794 = vmatpush1.msra.mxu0 0.0
  %5795 = vmatprep.subr.mxu0 0.0
  %5796 = vmatpush1.msra.mxu0 0.0
  %5797 = vmatprep.subr.mxu0 0.0
  %5798 = vmatpush1.msra.mxu0 0.0
  %5799 = vmatprep.subr.mxu0 0.0
  %5800 = vmatpush1.msra.mxu0 0.0
  %5801 = vmatprep.subr.mxu0 0.0
  %5802 = vmatpush1.msra.mxu0 0.0
  %5803 = vmatprep.subr.mxu0 0.0
  %5804 = vmatpush1.msra.mxu0 0.0
  %5805 = vmatprep.subr.mxu0 0.0
  %5806 = vmatpush1.msra.mxu0 0.0
  %5807 = vmatprep.subr.mxu0 0.0
  %5808 = vmatpush1.msra.mxu0 0.0
  %5809 = vmatprep.subr.mxu0 0.0
  %5810 = vmatpush1.msra.mxu0 0.0
  %5811 = vmatprep.subr.mxu0 0.0
  %5812 = vmatpush1.msra.mxu0 0.0
  %5813 = vmatprep.subr.mxu0 0.0
  %5814 = vmatpush1.msra.mxu0 %v5779
  %5815 = vmatprep.subr.mxu0 0.0
  %5816 = vmatpush1.msra.mxu0 %v5777
  %5817 = vmatprep.subr.mxu0 0.0
  %5818 = vmatpush2.msra.mxu0 0.0
  %5819 = vmatprep.subr.mxu0 0.0
  %5820 = vmatpush2.msra.mxu0 0.0
  %5821 = vmatprep.subr.mxu0 0.0
  %5822 = vmatpush2.msra.mxu0 0.0
  %5823 = vmatprep.subr.mxu0 0.0
  %5824 = vmatpush2.msra.mxu0 0.0
  %5825 = vmatprep.subr.mxu0 0.0
  %5826 = vmatpush2.msra.mxu0 0.0
  %5827 = vmatprep.subr.mxu0 0.0
  %5828 = vmatpush2.msra.mxu0 0.0
  %5829 = vmatprep.subr.mxu0 0.0
  %5830 = vmatpush2.msra.mxu0 0.0
  %5831 = vmatprep.subr.mxu0 0.0
  %5832 = vmatpush2.msra.mxu0 0.0
  %5833 = vmatprep.subr.mxu0 0.0
  %5834 = vmatpush2.msra.mxu0 0.0
  %5835 = vmatprep.subr.mxu0 0.0
  %5836 = vmatpush2.msra.mxu0 0.0
  %5837 = vmatprep.subr.mxu0 0.0
  %5838 = vmatpush2.msra.mxu0 0.0
  %5839 = vmatprep.subr.mxu0 0.0
  %5840 = vmatpush2.msra.mxu0 0.0
  %5841 = vmatprep.subr.mxu0 0.0
  %5842 = vmatpush2.msra.mxu0 0.0
  %5843 = vmatprep.subr.mxu0 0.0
  %5844 = vmatpush2.msra.mxu0 0.0
  %5845 = vmatprep.subr.mxu0 0.0
  %5846 = vmatpush2.msra.mxu0 0.0
  %5847 = vmatprep.subr.mxu0 0.0
  %5848 = vmatpush2.msra.mxu0 0.0
  %5849 = vmatprep.mubr.f32.mxu0 0.0
  %5850 = vmatmul.mubr.f32.gmra.mxu0 %v5783
  %v5851 = vpop.f32.mrf.mxu0
  %v5852 = vadd.f32 0.0, %v5851
  %v5853 = vpop.f32.mrf.mxu0
  %5854 = vdwg.mxu0
  %5855 = vrot.lane.b32.xlu0 %v5503, 120
  %v5856 = vpop.permute.xlu0 %5855
  %5857 = vrot.lane.b32.xlu0 %v116, 88
  %v5858 = vpop.permute.xlu0 %5857
  %5859 = vrot.lane.b32.xlu0 %v121, 88
  %v5860 = vpop.permute.xlu0 %5859
  %v5861 = vsel %vm416, %v5856, 0
  %v5863 = vsel %vm416, %v5858, 0
  %v5865 = vsel %vm416, %v5860, 0
  %5867 = vmatprep.subr.mxu0 0.0
  %5868 = vmatpush1.xpose.msra.mxu0 0.0
  %5869 = vmatprep.subr.mxu0 0.0
  %5870 = vmatpush1.xpose.msra.mxu0 0.0
  %5871 = vmatprep.subr.mxu0 0.0
  %5872 = vmatpush1.xpose.msra.mxu0 0.0
  %5873 = vmatprep.subr.mxu0 0.0
  %5874 = vmatpush1.xpose.msra.mxu0 0.0
  %5875 = vmatprep.subr.mxu0 0.0
  %5876 = vmatpush1.xpose.msra.mxu0 0.0
  %5877 = vmatprep.subr.mxu0 0.0
  %5878 = vmatpush1.xpose.msra.mxu0 0.0
  %5879 = vmatprep.subr.mxu0 0.0
  %5880 = vmatpush1.xpose.msra.mxu0 0.0
  %5881 = vmatprep.subr.mxu0 0.0
  %5882 = vmatpush1.xpose.msra.mxu0 0.0
  %5883 = vmatprep.subr.mxu0 0.0
  %5884 = vmatpush1.xpose.msra.mxu0 0.0
  %5885 = vmatprep.subr.mxu0 0.0
  %5886 = vmatpush1.xpose.msra.mxu0 0.0
  %5887 = vmatprep.subr.mxu0 0.0
  %5888 = vmatpush1.xpose.msra.mxu0 0.0
  %5889 = vmatprep.subr.mxu0 0.0
  %5890 = vmatpush1.xpose.msra.mxu0 0.0
  %5891 = vmatprep.subr.mxu0 0.0
  %5892 = vmatpush1.xpose.msra.mxu0 0.0
  %5893 = vmatprep.subr.mxu0 0.0
  %5894 = vmatpush1.xpose.msra.mxu0 0.0
  %5895 = vmatprep.subr.mxu0 0.0
  %5896 = vmatpush1.xpose.msra.mxu0 %v5865
  %5897 = vmatprep.subr.mxu0 0.0
  %5898 = vmatpush1.xpose.msra.mxu0 %v5863
  %5899 = vmatprep.subr.mxu0 0.0
  %5900 = vmatpush2.xpose.msra.mxu0 0.0
  %5901 = vmatprep.subr.mxu0 0.0
  %5902 = vmatpush2.xpose.msra.mxu0 0.0
  %5903 = vmatprep.subr.mxu0 0.0
  %5904 = vmatpush2.xpose.msra.mxu0 0.0
  %5905 = vmatprep.subr.mxu0 0.0
  %5906 = vmatpush2.xpose.msra.mxu0 0.0
  %5907 = vmatprep.subr.mxu0 0.0
  %5908 = vmatpush2.xpose.msra.mxu0 0.0
  %5909 = vmatprep.subr.mxu0 0.0
  %5910 = vmatpush2.xpose.msra.mxu0 0.0
  %5911 = vmatprep.subr.mxu0 0.0
  %5912 = vmatpush2.xpose.msra.mxu0 0.0
  %5913 = vmatprep.subr.mxu0 0.0
  %5914 = vmatpush2.xpose.msra.mxu0 0.0
  %5915 = vmatprep.subr.mxu0 0.0
  %5916 = vmatpush2.xpose.msra.mxu0 0.0
  %5917 = vmatprep.subr.mxu0 0.0
  %5918 = vmatpush2.xpose.msra.mxu0 0.0
  %5919 = vmatprep.subr.mxu0 0.0
  %5920 = vmatpush2.xpose.msra.mxu0 0.0
  %5921 = vmatprep.subr.mxu0 0.0
  %5922 = vmatpush2.xpose.msra.mxu0 0.0
  %5923 = vmatprep.subr.mxu0 0.0
  %5924 = vmatpush2.xpose.msra.mxu0 0.0
  %5925 = vmatprep.subr.mxu0 0.0
  %5926 = vmatpush2.xpose.msra.mxu0 0.0
  %5927 = vmatprep.subr.mxu0 0.0
  %5928 = vmatpush2.xpose.msra.mxu0 0.0
  %5929 = vmatprep.subr.mxu0 0.0
  %5930 = vmatpush2.xpose.msra.mxu0 0.0
  %5931 = vmatprep.mubr.f32.mxu0 0.0
  %5932 = vmatmul.mubr.f32.gmra.mxu0 %v5861
  %v5933 = vpop.f32.mrf.mxu0
  %v5934 = vadd.f32 0.0, %v5933
  %v5935 = vpop.f32.mrf.mxu0
  %5936 = vdwg.mxu0
  %5937 = vrot.lane.b32.xlu0 %v5508, 120
  %v5938 = vpop.permute.xlu0 %5937
  %5939 = vrot.lane.b32.xlu0 %v126, 88
  %v5940 = vpop.permute.xlu0 %5939
  %5941 = vrot.lane.b32.xlu0 %v131, 88
  %v5942 = vpop.permute.xlu0 %5941
  %v5943 = vsel %vm416, %v5938, 0
  %v5945 = vsel %vm416, %v5940, 0
  %v5947 = vsel %vm416, %v5942, 0
  %5949 = vmatprep.subr.mxu0 0.0
  %5950 = vmatpush1.xpose.msra.mxu0 0.0
  %5951 = vmatprep.subr.mxu0 0.0
  %5952 = vmatpush1.xpose.msra.mxu0 0.0
  %5953 = vmatprep.subr.mxu0 0.0
  %5954 = vmatpush1.xpose.msra.mxu0 0.0
  %5955 = vmatprep.subr.mxu0 0.0
  %5956 = vmatpush1.xpose.msra.mxu0 0.0
  %5957 = vmatprep.subr.mxu0 0.0
  %5958 = vmatpush1.xpose.msra.mxu0 0.0
  %5959 = vmatprep.subr.mxu0 0.0
  %5960 = vmatpush1.xpose.msra.mxu0 0.0
  %5961 = vmatprep.subr.mxu0 0.0
  %5962 = vmatpush1.xpose.msra.mxu0 0.0
  %5963 = vmatprep.subr.mxu0 0.0
  %5964 = vmatpush1.xpose.msra.mxu0 0.0
  %5965 = vmatprep.subr.mxu0 0.0
  %5966 = vmatpush1.xpose.msra.mxu0 0.0
  %5967 = vmatprep.subr.mxu0 0.0
  %5968 = vmatpush1.xpose.msra.mxu0 0.0
  %5969 = vmatprep.subr.mxu0 0.0
  %5970 = vmatpush1.xpose.msra.mxu0 0.0
  %5971 = vmatprep.subr.mxu0 0.0
  %5972 = vmatpush1.xpose.msra.mxu0 0.0
  %5973 = vmatprep.subr.mxu0 0.0
  %5974 = vmatpush1.xpose.msra.mxu0 0.0
  %5975 = vmatprep.subr.mxu0 0.0
  %5976 = vmatpush1.xpose.msra.mxu0 0.0
  %5977 = vmatprep.subr.mxu0 0.0
  %5978 = vmatpush1.xpose.msra.mxu0 %v5947
  %5979 = vmatprep.subr.mxu0 0.0
  %5980 = vmatpush1.xpose.msra.mxu0 %v5945
  %5981 = vmatprep.subr.mxu0 0.0
  %5982 = vmatpush2.xpose.msra.mxu0 0.0
  %5983 = vmatprep.subr.mxu0 0.0
  %5984 = vmatpush2.xpose.msra.mxu0 0.0
  %5985 = vmatprep.subr.mxu0 0.0
  %5986 = vmatpush2.xpose.msra.mxu0 0.0
  %5987 = vmatprep.subr.mxu0 0.0
  %5988 = vmatpush2.xpose.msra.mxu0 0.0
  %5989 = vmatprep.subr.mxu0 0.0
  %5990 = vmatpush2.xpose.msra.mxu0 0.0
  %5991 = vmatprep.subr.mxu0 0.0
  %5992 = vmatpush2.xpose.msra.mxu0 0.0
  %5993 = vmatprep.subr.mxu0 0.0
  %5994 = vmatpush2.xpose.msra.mxu0 0.0
  %5995 = vmatprep.subr.mxu0 0.0
  %5996 = vmatpush2.xpose.msra.mxu0 0.0
  %5997 = vmatprep.subr.mxu0 0.0
  %5998 = vmatpush2.xpose.msra.mxu0 0.0
  %5999 = vmatprep.subr.mxu0 0.0
  %6000 = vmatpush2.xpose.msra.mxu0 0.0
  %6001 = vmatprep.subr.mxu0 0.0
  %6002 = vmatpush2.xpose.msra.mxu0 0.0
  %6003 = vmatprep.subr.mxu0 0.0
  %6004 = vmatpush2.xpose.msra.mxu0 0.0
  %6005 = vmatprep.subr.mxu0 0.0
  %6006 = vmatpush2.xpose.msra.mxu0 0.0
  %6007 = vmatprep.subr.mxu0 0.0
  %6008 = vmatpush2.xpose.msra.mxu0 0.0
  %6009 = vmatprep.subr.mxu0 0.0
  %6010 = vmatpush2.xpose.msra.mxu0 0.0
  %6011 = vmatprep.subr.mxu0 0.0
  %6012 = vmatpush2.xpose.msra.mxu0 0.0
  %6013 = vmatprep.mubr.f32.mxu0 0.0
  %6014 = vmatmul.mubr.f32.gmra.mxu0 %v5943
  %v6015 = vpop.f32.mrf.mxu0
  %v6016 = vadd.f32 0.0, %v6015
  %v6017 = vpop.f32.mrf.mxu0
  %6018 = vdwg.mxu0
  %v6019 = vmul.f32 %v5934, 0.35355338
  %v6020 = vmul.f32 %v6016, 0.35355338
  %v6021 = vsel %vm1768, %v6019, -inf
  %6022 = vmax.xlane.f32.xlu0 %v6021
  %v6023 = vpop.xlane.xlu0 %6022
  %v6024 = vsel %vm1768, %v6020, -inf
  %6025 = vmax.xlane.f32.xlu0 %v6024
  %v6026 = vpop.xlane.xlu0 %6025
  %v6027 = vsub.f32 %v6019, %v6023
  %v6028 = vsub.f32 %v6020, %v6026
  %v6029 = vmul.f32 %v6027, 1.442695
  %v6030 = vpow.pop %v6029
  %v6031 = vmul.f32 %v6028, 1.442695
  %v6032 = vpow.pop %v6031
  %v6033 = vsel %vm1768, %v6030, 0.0
  %6034 = vadd.xlane.f32.xlu0 %v6033
  %v6035 = vpop.xlane.xlu0 %6034
  %v6036 = vsel %vm1768, %v6032, 0.0
  %6037 = vadd.xlane.f32.xlu0 %v6036
  %v6038 = vpop.xlane.xlu0 %6037
  %v6039 = vrcp.pop %v6035
  %v6040 = vmul.f32 %v6030, %v6039
  %v6041 = vrcp.pop %v6038
  %v6042 = vmul.f32 %v6032, %v6041
  %6043 = vrot.lane.b32.xlu0 %v222, 88
  %v6044 = vpop.permute.xlu0 %6043
  %6045 = vrot.lane.b32.xlu0 %v227, 88
  %v6046 = vpop.permute.xlu0 %6045
  %v6050 = vsel %vm1768, %v6040, 0
  %6052 = vmatprep.subr.mxu0 0.0
  %6053 = vmatpush1.msra.mxu0 0.0
  %6054 = vmatprep.subr.mxu0 0.0
  %6055 = vmatpush1.msra.mxu0 0.0
  %6056 = vmatprep.subr.mxu0 0.0
  %6057 = vmatpush1.msra.mxu0 0.0
  %6058 = vmatprep.subr.mxu0 0.0
  %6059 = vmatpush1.msra.mxu0 0.0
  %6060 = vmatprep.subr.mxu0 0.0
  %6061 = vmatpush1.msra.mxu0 0.0
  %6062 = vmatprep.subr.mxu0 0.0
  %6063 = vmatpush1.msra.mxu0 0.0
  %6064 = vmatprep.subr.mxu0 0.0
  %6065 = vmatpush1.msra.mxu0 0.0
  %6066 = vmatprep.subr.mxu0 0.0
  %6067 = vmatpush1.msra.mxu0 0.0
  %6068 = vmatprep.subr.mxu0 0.0
  %6069 = vmatpush1.msra.mxu0 0.0
  %6070 = vmatprep.subr.mxu0 0.0
  %6071 = vmatpush1.msra.mxu0 0.0
  %6072 = vmatprep.subr.mxu0 0.0
  %6073 = vmatpush1.msra.mxu0 0.0
  %6074 = vmatprep.subr.mxu0 0.0
  %6075 = vmatpush1.msra.mxu0 0.0
  %6076 = vmatprep.subr.mxu0 0.0
  %6077 = vmatpush1.msra.mxu0 0.0
  %6078 = vmatprep.subr.mxu0 0.0
  %6079 = vmatpush1.msra.mxu0 0.0
  %6080 = vmatprep.subr.mxu0 0.0
  %6081 = vmatpush1.msra.mxu0 %v6046
  %6082 = vmatprep.subr.mxu0 0.0
  %6083 = vmatpush1.msra.mxu0 %v6044
  %6084 = vmatprep.subr.mxu0 0.0
  %6085 = vmatpush2.msra.mxu0 0.0
  %6086 = vmatprep.subr.mxu0 0.0
  %6087 = vmatpush2.msra.mxu0 0.0
  %6088 = vmatprep.subr.mxu0 0.0
  %6089 = vmatpush2.msra.mxu0 0.0
  %6090 = vmatprep.subr.mxu0 0.0
  %6091 = vmatpush2.msra.mxu0 0.0
  %6092 = vmatprep.subr.mxu0 0.0
  %6093 = vmatpush2.msra.mxu0 0.0
  %6094 = vmatprep.subr.mxu0 0.0
  %6095 = vmatpush2.msra.mxu0 0.0
  %6096 = vmatprep.subr.mxu0 0.0
  %6097 = vmatpush2.msra.mxu0 0.0
  %6098 = vmatprep.subr.mxu0 0.0
  %6099 = vmatpush2.msra.mxu0 0.0
  %6100 = vmatprep.subr.mxu0 0.0
  %6101 = vmatpush2.msra.mxu0 0.0
  %6102 = vmatprep.subr.mxu0 0.0
  %6103 = vmatpush2.msra.mxu0 0.0
  %6104 = vmatprep.subr.mxu0 0.0
  %6105 = vmatpush2.msra.mxu0 0.0
  %6106 = vmatprep.subr.mxu0 0.0
  %6107 = vmatpush2.msra.mxu0 0.0
  %6108 = vmatprep.subr.mxu0 0.0
  %6109 = vmatpush2.msra.mxu0 0.0
  %6110 = vmatprep.subr.mxu0 0.0
  %6111 = vmatpush2.msra.mxu0 0.0
  %6112 = vmatprep.subr.mxu0 0.0
  %6113 = vmatpush2.msra.mxu0 0.0
  %6114 = vmatprep.subr.mxu0 0.0
  %6115 = vmatpush2.msra.mxu0 0.0
  %6116 = vmatprep.mubr.f32.mxu0 0.0
  %6117 = vmatmul.mubr.f32.gmra.mxu0 %v6050
  %v6118 = vpop.f32.mrf.mxu0
  %v6119 = vadd.f32 0.0, %v6118
  %v6120 = vpop.f32.mrf.mxu0
  %6121 = vdwg.mxu0
  %6122 = vrot.lane.b32.xlu0 %v232, 88
  %v6123 = vpop.permute.xlu0 %6122
  %6124 = vrot.lane.b32.xlu0 %v237, 88
  %v6125 = vpop.permute.xlu0 %6124
  %v6129 = vsel %vm1768, %v6042, 0
  %6131 = vmatprep.subr.mxu0 0.0
  %6132 = vmatpush1.msra.mxu0 0.0
  %6133 = vmatprep.subr.mxu0 0.0
  %6134 = vmatpush1.msra.mxu0 0.0
  %6135 = vmatprep.subr.mxu0 0.0
  %6136 = vmatpush1.msra.mxu0 0.0
  %6137 = vmatprep.subr.mxu0 0.0
  %6138 = vmatpush1.msra.mxu0 0.0
  %6139 = vmatprep.subr.mxu0 0.0
  %6140 = vmatpush1.msra.mxu0 0.0
  %6141 = vmatprep.subr.mxu0 0.0
  %6142 = vmatpush1.msra.mxu0 0.0
  %6143 = vmatprep.subr.mxu0 0.0
  %6144 = vmatpush1.msra.mxu0 0.0
  %6145 = vmatprep.subr.mxu0 0.0
  %6146 = vmatpush1.msra.mxu0 0.0
  %6147 = vmatprep.subr.mxu0 0.0
  %6148 = vmatpush1.msra.mxu0 0.0
  %6149 = vmatprep.subr.mxu0 0.0
  %6150 = vmatpush1.msra.mxu0 0.0
  %6151 = vmatprep.subr.mxu0 0.0
  %6152 = vmatpush1.msra.mxu0 0.0
  %6153 = vmatprep.subr.mxu0 0.0
  %6154 = vmatpush1.msra.mxu0 0.0
  %6155 = vmatprep.subr.mxu0 0.0
  %6156 = vmatpush1.msra.mxu0 0.0
  %6157 = vmatprep.subr.mxu0 0.0
  %6158 = vmatpush1.msra.mxu0 0.0
  %6159 = vmatprep.subr.mxu0 0.0
  %6160 = vmatpush1.msra.mxu0 %v6125
  %6161 = vmatprep.subr.mxu0 0.0
  %6162 = vmatpush1.msra.mxu0 %v6123
  %6163 = vmatprep.subr.mxu0 0.0
  %6164 = vmatpush2.msra.mxu0 0.0
  %6165 = vmatprep.subr.mxu0 0.0
  %6166 = vmatpush2.msra.mxu0 0.0
  %6167 = vmatprep.subr.mxu0 0.0
  %6168 = vmatpush2.msra.mxu0 0.0
  %6169 = vmatprep.subr.mxu0 0.0
  %6170 = vmatpush2.msra.mxu0 0.0
  %6171 = vmatprep.subr.mxu0 0.0
  %6172 = vmatpush2.msra.mxu0 0.0
  %6173 = vmatprep.subr.mxu0 0.0
  %6174 = vmatpush2.msra.mxu0 0.0
  %6175 = vmatprep.subr.mxu0 0.0
  %6176 = vmatpush2.msra.mxu0 0.0
  %6177 = vmatprep.subr.mxu0 0.0
  %6178 = vmatpush2.msra.mxu0 0.0
  %6179 = vmatprep.subr.mxu0 0.0
  %6180 = vmatpush2.msra.mxu0 0.0
  %6181 = vmatprep.subr.mxu0 0.0
  %6182 = vmatpush2.msra.mxu0 0.0
  %6183 = vmatprep.subr.mxu0 0.0
  %6184 = vmatpush2.msra.mxu0 0.0
  %6185 = vmatprep.subr.mxu0 0.0
  %6186 = vmatpush2.msra.mxu0 0.0
  %6187 = vmatprep.subr.mxu0 0.0
  %6188 = vmatpush2.msra.mxu0 0.0
  %6189 = vmatprep.subr.mxu0 0.0
  %6190 = vmatpush2.msra.mxu0 0.0
  %6191 = vmatprep.subr.mxu0 0.0
  %6192 = vmatpush2.msra.mxu0 0.0
  %6193 = vmatprep.subr.mxu0 0.0
  %6194 = vmatpush2.msra.mxu0 0.0
  %6195 = vmatprep.mubr.f32.mxu0 0.0
  %6196 = vmatmul.mubr.f32.gmra.mxu0 %v6129
  %v6197 = vpop.f32.mrf.mxu0
  %v6198 = vadd.f32 0.0, %v6197
  %v6199 = vpop.f32.mrf.mxu0
  %6200 = vdwg.mxu0
  %6201 = vrot.lane.b32.xlu0 %v5503, 112
  %v6202 = vpop.permute.xlu0 %6201
  %6203 = vrot.lane.b32.xlu0 %v116, 80
  %v6204 = vpop.permute.xlu0 %6203
  %6205 = vrot.lane.b32.xlu0 %v121, 80
  %v6206 = vpop.permute.xlu0 %6205
  %v6207 = vsel %vm416, %v6202, 0
  %v6209 = vsel %vm416, %v6204, 0
  %v6211 = vsel %vm416, %v6206, 0
  %6213 = vmatprep.subr.mxu0 0.0
  %6214 = vmatpush1.xpose.msra.mxu0 0.0
  %6215 = vmatprep.subr.mxu0 0.0
  %6216 = vmatpush1.xpose.msra.mxu0 0.0
  %6217 = vmatprep.subr.mxu0 0.0
  %6218 = vmatpush1.xpose.msra.mxu0 0.0
  %6219 = vmatprep.subr.mxu0 0.0
  %6220 = vmatpush1.xpose.msra.mxu0 0.0
  %6221 = vmatprep.subr.mxu0 0.0
  %6222 = vmatpush1.xpose.msra.mxu0 0.0
  %6223 = vmatprep.subr.mxu0 0.0
  %6224 = vmatpush1.xpose.msra.mxu0 0.0
  %6225 = vmatprep.subr.mxu0 0.0
  %6226 = vmatpush1.xpose.msra.mxu0 0.0
  %6227 = vmatprep.subr.mxu0 0.0
  %6228 = vmatpush1.xpose.msra.mxu0 0.0
  %6229 = vmatprep.subr.mxu0 0.0
  %6230 = vmatpush1.xpose.msra.mxu0 0.0
  %6231 = vmatprep.subr.mxu0 0.0
  %6232 = vmatpush1.xpose.msra.mxu0 0.0
  %6233 = vmatprep.subr.mxu0 0.0
  %6234 = vmatpush1.xpose.msra.mxu0 0.0
  %6235 = vmatprep.subr.mxu0 0.0
  %6236 = vmatpush1.xpose.msra.mxu0 0.0
  %6237 = vmatprep.subr.mxu0 0.0
  %6238 = vmatpush1.xpose.msra.mxu0 0.0
  %6239 = vmatprep.subr.mxu0 0.0
  %6240 = vmatpush1.xpose.msra.mxu0 0.0
  %6241 = vmatprep.subr.mxu0 0.0
  %6242 = vmatpush1.xpose.msra.mxu0 %v6211
  %6243 = vmatprep.subr.mxu0 0.0
  %6244 = vmatpush1.xpose.msra.mxu0 %v6209
  %6245 = vmatprep.subr.mxu0 0.0
  %6246 = vmatpush2.xpose.msra.mxu0 0.0
  %6247 = vmatprep.subr.mxu0 0.0
  %6248 = vmatpush2.xpose.msra.mxu0 0.0
  %6249 = vmatprep.subr.mxu0 0.0
  %6250 = vmatpush2.xpose.msra.mxu0 0.0
  %6251 = vmatprep.subr.mxu0 0.0
  %6252 = vmatpush2.xpose.msra.mxu0 0.0
  %6253 = vmatprep.subr.mxu0 0.0
  %6254 = vmatpush2.xpose.msra.mxu0 0.0
  %6255 = vmatprep.subr.mxu0 0.0
  %6256 = vmatpush2.xpose.msra.mxu0 0.0
  %6257 = vmatprep.subr.mxu0 0.0
  %6258 = vmatpush2.xpose.msra.mxu0 0.0
  %6259 = vmatprep.subr.mxu0 0.0
  %6260 = vmatpush2.xpose.msra.mxu0 0.0
  %6261 = vmatprep.subr.mxu0 0.0
  %6262 = vmatpush2.xpose.msra.mxu0 0.0
  %6263 = vmatprep.subr.mxu0 0.0
  %6264 = vmatpush2.xpose.msra.mxu0 0.0
  %6265 = vmatprep.subr.mxu0 0.0
  %6266 = vmatpush2.xpose.msra.mxu0 0.0
  %6267 = vmatprep.subr.mxu0 0.0
  %6268 = vmatpush2.xpose.msra.mxu0 0.0
  %6269 = vmatprep.subr.mxu0 0.0
  %6270 = vmatpush2.xpose.msra.mxu0 0.0
  %6271 = vmatprep.subr.mxu0 0.0
  %6272 = vmatpush2.xpose.msra.mxu0 0.0
  %6273 = vmatprep.subr.mxu0 0.0
  %6274 = vmatpush2.xpose.msra.mxu0 0.0
  %6275 = vmatprep.subr.mxu0 0.0
  %6276 = vmatpush2.xpose.msra.mxu0 0.0
  %6277 = vmatprep.mubr.f32.mxu0 0.0
  %6278 = vmatmul.mubr.f32.gmra.mxu0 %v6207
  %v6279 = vpop.f32.mrf.mxu0
  %v6280 = vadd.f32 0.0, %v6279
  %v6281 = vpop.f32.mrf.mxu0
  %6282 = vdwg.mxu0
  %6283 = vrot.lane.b32.xlu0 %v5508, 112
  %v6284 = vpop.permute.xlu0 %6283
  %6285 = vrot.lane.b32.xlu0 %v126, 80
  %v6286 = vpop.permute.xlu0 %6285
  %6287 = vrot.lane.b32.xlu0 %v131, 80
  %v6288 = vpop.permute.xlu0 %6287
  %v6289 = vsel %vm416, %v6284, 0
  %v6291 = vsel %vm416, %v6286, 0
  %v6293 = vsel %vm416, %v6288, 0
  %6295 = vmatprep.subr.mxu0 0.0
  %6296 = vmatpush1.xpose.msra.mxu0 0.0
  %6297 = vmatprep.subr.mxu0 0.0
  %6298 = vmatpush1.xpose.msra.mxu0 0.0
  %6299 = vmatprep.subr.mxu0 0.0
  %6300 = vmatpush1.xpose.msra.mxu0 0.0
  %6301 = vmatprep.subr.mxu0 0.0
  %6302 = vmatpush1.xpose.msra.mxu0 0.0
  %6303 = vmatprep.subr.mxu0 0.0
  %6304 = vmatpush1.xpose.msra.mxu0 0.0
  %6305 = vmatprep.subr.mxu0 0.0
  %6306 = vmatpush1.xpose.msra.mxu0 0.0
  %6307 = vmatprep.subr.mxu0 0.0
  %6308 = vmatpush1.xpose.msra.mxu0 0.0
  %6309 = vmatprep.subr.mxu0 0.0
  %6310 = vmatpush1.xpose.msra.mxu0 0.0
  %6311 = vmatprep.subr.mxu0 0.0
  %6312 = vmatpush1.xpose.msra.mxu0 0.0
  %6313 = vmatprep.subr.mxu0 0.0
  %6314 = vmatpush1.xpose.msra.mxu0 0.0
  %6315 = vmatprep.subr.mxu0 0.0
  %6316 = vmatpush1.xpose.msra.mxu0 0.0
  %6317 = vmatprep.subr.mxu0 0.0
  %6318 = vmatpush1.xpose.msra.mxu0 0.0
  %6319 = vmatprep.subr.mxu0 0.0
  %6320 = vmatpush1.xpose.msra.mxu0 0.0
  %6321 = vmatprep.subr.mxu0 0.0
  %6322 = vmatpush1.xpose.msra.mxu0 0.0
  %6323 = vmatprep.subr.mxu0 0.0
  %6324 = vmatpush1.xpose.msra.mxu0 %v6293
  %6325 = vmatprep.subr.mxu0 0.0
  %6326 = vmatpush1.xpose.msra.mxu0 %v6291
  %6327 = vmatprep.subr.mxu0 0.0
  %6328 = vmatpush2.xpose.msra.mxu0 0.0
  %6329 = vmatprep.subr.mxu0 0.0
  %6330 = vmatpush2.xpose.msra.mxu0 0.0
  %6331 = vmatprep.subr.mxu0 0.0
  %6332 = vmatpush2.xpose.msra.mxu0 0.0
  %6333 = vmatprep.subr.mxu0 0.0
  %6334 = vmatpush2.xpose.msra.mxu0 0.0
  %6335 = vmatprep.subr.mxu0 0.0
  %6336 = vmatpush2.xpose.msra.mxu0 0.0
  %6337 = vmatprep.subr.mxu0 0.0
  %6338 = vmatpush2.xpose.msra.mxu0 0.0
  %6339 = vmatprep.subr.mxu0 0.0
  %6340 = vmatpush2.xpose.msra.mxu0 0.0
  %6341 = vmatprep.subr.mxu0 0.0
  %6342 = vmatpush2.xpose.msra.mxu0 0.0
  %6343 = vmatprep.subr.mxu0 0.0
  %6344 = vmatpush2.xpose.msra.mxu0 0.0
  %6345 = vmatprep.subr.mxu0 0.0
  %6346 = vmatpush2.xpose.msra.mxu0 0.0
  %6347 = vmatprep.subr.mxu0 0.0
  %6348 = vmatpush2.xpose.msra.mxu0 0.0
  %6349 = vmatprep.subr.mxu0 0.0
  %6350 = vmatpush2.xpose.msra.mxu0 0.0
  %6351 = vmatprep.subr.mxu0 0.0
  %6352 = vmatpush2.xpose.msra.mxu0 0.0
  %6353 = vmatprep.subr.mxu0 0.0
  %6354 = vmatpush2.xpose.msra.mxu0 0.0
  %6355 = vmatprep.subr.mxu0 0.0
  %6356 = vmatpush2.xpose.msra.mxu0 0.0
  %6357 = vmatprep.subr.mxu0 0.0
  %6358 = vmatpush2.xpose.msra.mxu0 0.0
  %6359 = vmatprep.mubr.f32.mxu0 0.0
  %6360 = vmatmul.mubr.f32.gmra.mxu0 %v6289
  %v6361 = vpop.f32.mrf.mxu0
  %v6362 = vadd.f32 0.0, %v6361
  %v6363 = vpop.f32.mrf.mxu0
  %6364 = vdwg.mxu0
  %v6365 = vmul.f32 %v6280, 0.35355338
  %v6366 = vmul.f32 %v6362, 0.35355338
  %v6367 = vsel %vm1768, %v6365, -inf
  %6368 = vmax.xlane.f32.xlu0 %v6367
  %v6369 = vpop.xlane.xlu0 %6368
  %v6370 = vsel %vm1768, %v6366, -inf
  %6371 = vmax.xlane.f32.xlu0 %v6370
  %v6372 = vpop.xlane.xlu0 %6371
  %v6373 = vsub.f32 %v6365, %v6369
  %v6374 = vsub.f32 %v6366, %v6372
  %v6375 = vmul.f32 %v6373, 1.442695
  %v6376 = vpow.pop %v6375
  %v6377 = vmul.f32 %v6374, 1.442695
  %v6378 = vpow.pop %v6377
  %v6379 = vsel %vm1768, %v6376, 0.0
  %6380 = vadd.xlane.f32.xlu0 %v6379
  %v6381 = vpop.xlane.xlu0 %6380
  %v6382 = vsel %vm1768, %v6378, 0.0
  %6383 = vadd.xlane.f32.xlu0 %v6382
  %v6384 = vpop.xlane.xlu0 %6383
  %v6385 = vrcp.pop %v6381
  %v6386 = vmul.f32 %v6376, %v6385
  %v6387 = vrcp.pop %v6384
  %v6388 = vmul.f32 %v6378, %v6387
  %6389 = vrot.lane.b32.xlu0 %v222, 80
  %v6390 = vpop.permute.xlu0 %6389
  %6391 = vrot.lane.b32.xlu0 %v227, 80
  %v6392 = vpop.permute.xlu0 %6391
  %v6396 = vsel %vm1768, %v6386, 0
  %6398 = vmatprep.subr.mxu0 0.0
  %6399 = vmatpush1.msra.mxu0 0.0
  %6400 = vmatprep.subr.mxu0 0.0
  %6401 = vmatpush1.msra.mxu0 0.0
  %6402 = vmatprep.subr.mxu0 0.0
  %6403 = vmatpush1.msra.mxu0 0.0
  %6404 = vmatprep.subr.mxu0 0.0
  %6405 = vmatpush1.msra.mxu0 0.0
  %6406 = vmatprep.subr.mxu0 0.0
  %6407 = vmatpush1.msra.mxu0 0.0
  %6408 = vmatprep.subr.mxu0 0.0
  %6409 = vmatpush1.msra.mxu0 0.0
  %6410 = vmatprep.subr.mxu0 0.0
  %6411 = vmatpush1.msra.mxu0 0.0
  %6412 = vmatprep.subr.mxu0 0.0
  %6413 = vmatpush1.msra.mxu0 0.0
  %6414 = vmatprep.subr.mxu0 0.0
  %6415 = vmatpush1.msra.mxu0 0.0
  %6416 = vmatprep.subr.mxu0 0.0
  %6417 = vmatpush1.msra.mxu0 0.0
  %6418 = vmatprep.subr.mxu0 0.0
  %6419 = vmatpush1.msra.mxu0 0.0
  %6420 = vmatprep.subr.mxu0 0.0
  %6421 = vmatpush1.msra.mxu0 0.0
  %6422 = vmatprep.subr.mxu0 0.0
  %6423 = vmatpush1.msra.mxu0 0.0
  %6424 = vmatprep.subr.mxu0 0.0
  %6425 = vmatpush1.msra.mxu0 0.0
  %6426 = vmatprep.subr.mxu0 0.0
  %6427 = vmatpush1.msra.mxu0 %v6392
  %6428 = vmatprep.subr.mxu0 0.0
  %6429 = vmatpush1.msra.mxu0 %v6390
  %6430 = vmatprep.subr.mxu0 0.0
  %6431 = vmatpush2.msra.mxu0 0.0
  %6432 = vmatprep.subr.mxu0 0.0
  %6433 = vmatpush2.msra.mxu0 0.0
  %6434 = vmatprep.subr.mxu0 0.0
  %6435 = vmatpush2.msra.mxu0 0.0
  %6436 = vmatprep.subr.mxu0 0.0
  %6437 = vmatpush2.msra.mxu0 0.0
  %6438 = vmatprep.subr.mxu0 0.0
  %6439 = vmatpush2.msra.mxu0 0.0
  %6440 = vmatprep.subr.mxu0 0.0
  %6441 = vmatpush2.msra.mxu0 0.0
  %6442 = vmatprep.subr.mxu0 0.0
  %6443 = vmatpush2.msra.mxu0 0.0
  %6444 = vmatprep.subr.mxu0 0.0
  %6445 = vmatpush2.msra.mxu0 0.0
  %6446 = vmatprep.subr.mxu0 0.0
  %6447 = vmatpush2.msra.mxu0 0.0
  %6448 = vmatprep.subr.mxu0 0.0
  %6449 = vmatpush2.msra.mxu0 0.0
  %6450 = vmatprep.subr.mxu0 0.0
  %6451 = vmatpush2.msra.mxu0 0.0
  %6452 = vmatprep.subr.mxu0 0.0
  %6453 = vmatpush2.msra.mxu0 0.0
  %6454 = vmatprep.subr.mxu0 0.0
  %6455 = vmatpush2.msra.mxu0 0.0
  %6456 = vmatprep.subr.mxu0 0.0
  %6457 = vmatpush2.msra.mxu0 0.0
  %6458 = vmatprep.subr.mxu0 0.0
  %6459 = vmatpush2.msra.mxu0 0.0
  %6460 = vmatprep.subr.mxu0 0.0
  %6461 = vmatpush2.msra.mxu0 0.0
  %6462 = vmatprep.mubr.f32.mxu0 0.0
  %6463 = vmatmul.mubr.f32.gmra.mxu0 %v6396
  %v6464 = vpop.f32.mrf.mxu0
  %v6465 = vadd.f32 0.0, %v6464
  %v6466 = vpop.f32.mrf.mxu0
  %6467 = vdwg.mxu0
  %6468 = vrot.lane.b32.xlu0 %v232, 80
  %v6469 = vpop.permute.xlu0 %6468
  %6470 = vrot.lane.b32.xlu0 %v237, 80
  %v6471 = vpop.permute.xlu0 %6470
  %v6475 = vsel %vm1768, %v6388, 0
  %6477 = vmatprep.subr.mxu0 0.0
  %6478 = vmatpush1.msra.mxu0 0.0
  %6479 = vmatprep.subr.mxu0 0.0
  %6480 = vmatpush1.msra.mxu0 0.0
  %6481 = vmatprep.subr.mxu0 0.0
  %6482 = vmatpush1.msra.mxu0 0.0
  %6483 = vmatprep.subr.mxu0 0.0
  %6484 = vmatpush1.msra.mxu0 0.0
  %6485 = vmatprep.subr.mxu0 0.0
  %6486 = vmatpush1.msra.mxu0 0.0
  %6487 = vmatprep.subr.mxu0 0.0
  %6488 = vmatpush1.msra.mxu0 0.0
  %6489 = vmatprep.subr.mxu0 0.0
  %6490 = vmatpush1.msra.mxu0 0.0
  %6491 = vmatprep.subr.mxu0 0.0
  %6492 = vmatpush1.msra.mxu0 0.0
  %6493 = vmatprep.subr.mxu0 0.0
  %6494 = vmatpush1.msra.mxu0 0.0
  %6495 = vmatprep.subr.mxu0 0.0
  %6496 = vmatpush1.msra.mxu0 0.0
  %6497 = vmatprep.subr.mxu0 0.0
  %6498 = vmatpush1.msra.mxu0 0.0
  %6499 = vmatprep.subr.mxu0 0.0
  %6500 = vmatpush1.msra.mxu0 0.0
  %6501 = vmatprep.subr.mxu0 0.0
  %6502 = vmatpush1.msra.mxu0 0.0
  %6503 = vmatprep.subr.mxu0 0.0
  %6504 = vmatpush1.msra.mxu0 0.0
  %6505 = vmatprep.subr.mxu0 0.0
  %6506 = vmatpush1.msra.mxu0 %v6471
  %6507 = vmatprep.subr.mxu0 0.0
  %6508 = vmatpush1.msra.mxu0 %v6469
  %6509 = vmatprep.subr.mxu0 0.0
  %6510 = vmatpush2.msra.mxu0 0.0
  %6511 = vmatprep.subr.mxu0 0.0
  %6512 = vmatpush2.msra.mxu0 0.0
  %6513 = vmatprep.subr.mxu0 0.0
  %6514 = vmatpush2.msra.mxu0 0.0
  %6515 = vmatprep.subr.mxu0 0.0
  %6516 = vmatpush2.msra.mxu0 0.0
  %6517 = vmatprep.subr.mxu0 0.0
  %6518 = vmatpush2.msra.mxu0 0.0
  %6519 = vmatprep.subr.mxu0 0.0
  %6520 = vmatpush2.msra.mxu0 0.0
  %6521 = vmatprep.subr.mxu0 0.0
  %6522 = vmatpush2.msra.mxu0 0.0
  %6523 = vmatprep.subr.mxu0 0.0
  %6524 = vmatpush2.msra.mxu0 0.0
  %6525 = vmatprep.subr.mxu0 0.0
  %6526 = vmatpush2.msra.mxu0 0.0
  %6527 = vmatprep.subr.mxu0 0.0
  %6528 = vmatpush2.msra.mxu0 0.0
  %6529 = vmatprep.subr.mxu0 0.0
  %6530 = vmatpush2.msra.mxu0 0.0
  %6531 = vmatprep.subr.mxu0 0.0
  %6532 = vmatpush2.msra.mxu0 0.0
  %6533 = vmatprep.subr.mxu0 0.0
  %6534 = vmatpush2.msra.mxu0 0.0
  %6535 = vmatprep.subr.mxu0 0.0
  %6536 = vmatpush2.msra.mxu0 0.0
  %6537 = vmatprep.subr.mxu0 0.0
  %6538 = vmatpush2.msra.mxu0 0.0
  %6539 = vmatprep.subr.mxu0 0.0
  %6540 = vmatpush2.msra.mxu0 0.0
  %6541 = vmatprep.mubr.f32.mxu0 0.0
  %6542 = vmatmul.mubr.f32.gmra.mxu0 %v6475
  %v6543 = vpop.f32.mrf.mxu0
  %v6544 = vadd.f32 0.0, %v6543
  %v6545 = vpop.f32.mrf.mxu0
  %6546 = vdwg.mxu0
  %6547 = vrot.lane.b32.xlu0 %v5503, 104
  %v6548 = vpop.permute.xlu0 %6547
  %6549 = vrot.lane.b32.xlu0 %v116, 72
  %v6550 = vpop.permute.xlu0 %6549
  %6551 = vrot.lane.b32.xlu0 %v121, 72
  %v6552 = vpop.permute.xlu0 %6551
  %v6553 = vsel %vm416, %v6548, 0
  %v6555 = vsel %vm416, %v6550, 0
  %v6557 = vsel %vm416, %v6552, 0
  %6559 = vmatprep.subr.mxu0 0.0
  %6560 = vmatpush1.xpose.msra.mxu0 0.0
  %6561 = vmatprep.subr.mxu0 0.0
  %6562 = vmatpush1.xpose.msra.mxu0 0.0
  %6563 = vmatprep.subr.mxu0 0.0
  %6564 = vmatpush1.xpose.msra.mxu0 0.0
  %6565 = vmatprep.subr.mxu0 0.0
  %6566 = vmatpush1.xpose.msra.mxu0 0.0
  %6567 = vmatprep.subr.mxu0 0.0
  %6568 = vmatpush1.xpose.msra.mxu0 0.0
  %6569 = vmatprep.subr.mxu0 0.0
  %6570 = vmatpush1.xpose.msra.mxu0 0.0
  %6571 = vmatprep.subr.mxu0 0.0
  %6572 = vmatpush1.xpose.msra.mxu0 0.0
  %6573 = vmatprep.subr.mxu0 0.0
  %6574 = vmatpush1.xpose.msra.mxu0 0.0
  %6575 = vmatprep.subr.mxu0 0.0
  %6576 = vmatpush1.xpose.msra.mxu0 0.0
  %6577 = vmatprep.subr.mxu0 0.0
  %6578 = vmatpush1.xpose.msra.mxu0 0.0
  %6579 = vmatprep.subr.mxu0 0.0
  %6580 = vmatpush1.xpose.msra.mxu0 0.0
  %6581 = vmatprep.subr.mxu0 0.0
  %6582 = vmatpush1.xpose.msra.mxu0 0.0
  %6583 = vmatprep.subr.mxu0 0.0
  %6584 = vmatpush1.xpose.msra.mxu0 0.0
  %6585 = vmatprep.subr.mxu0 0.0
  %6586 = vmatpush1.xpose.msra.mxu0 0.0
  %6587 = vmatprep.subr.mxu0 0.0
  %6588 = vmatpush1.xpose.msra.mxu0 %v6557
  %6589 = vmatprep.subr.mxu0 0.0
  %6590 = vmatpush1.xpose.msra.mxu0 %v6555
  %6591 = vmatprep.subr.mxu0 0.0
  %6592 = vmatpush2.xpose.msra.mxu0 0.0
  %6593 = vmatprep.subr.mxu0 0.0
  %6594 = vmatpush2.xpose.msra.mxu0 0.0
  %6595 = vmatprep.subr.mxu0 0.0
  %6596 = vmatpush2.xpose.msra.mxu0 0.0
  %6597 = vmatprep.subr.mxu0 0.0
  %6598 = vmatpush2.xpose.msra.mxu0 0.0
  %6599 = vmatprep.subr.mxu0 0.0
  %6600 = vmatpush2.xpose.msra.mxu0 0.0
  %6601 = vmatprep.subr.mxu0 0.0
  %6602 = vmatpush2.xpose.msra.mxu0 0.0
  %6603 = vmatprep.subr.mxu0 0.0
  %6604 = vmatpush2.xpose.msra.mxu0 0.0
  %6605 = vmatprep.subr.mxu0 0.0
  %6606 = vmatpush2.xpose.msra.mxu0 0.0
  %6607 = vmatprep.subr.mxu0 0.0
  %6608 = vmatpush2.xpose.msra.mxu0 0.0
  %6609 = vmatprep.subr.mxu0 0.0
  %6610 = vmatpush2.xpose.msra.mxu0 0.0
  %6611 = vmatprep.subr.mxu0 0.0
  %6612 = vmatpush2.xpose.msra.mxu0 0.0
  %6613 = vmatprep.subr.mxu0 0.0
  %6614 = vmatpush2.xpose.msra.mxu0 0.0
  %6615 = vmatprep.subr.mxu0 0.0
  %6616 = vmatpush2.xpose.msra.mxu0 0.0
  %6617 = vmatprep.subr.mxu0 0.0
  %6618 = vmatpush2.xpose.msra.mxu0 0.0
  %6619 = vmatprep.subr.mxu0 0.0
  %6620 = vmatpush2.xpose.msra.mxu0 0.0
  %6621 = vmatprep.subr.mxu0 0.0
  %6622 = vmatpush2.xpose.msra.mxu0 0.0
  %6623 = vmatprep.mubr.f32.mxu0 0.0
  %6624 = vmatmul.mubr.f32.gmra.mxu0 %v6553
  %v6625 = vpop.f32.mrf.mxu0
  %v6626 = vadd.f32 0.0, %v6625
  %v6627 = vpop.f32.mrf.mxu0
  %6628 = vdwg.mxu0
  %6629 = vrot.lane.b32.xlu0 %v5508, 104
  %v6630 = vpop.permute.xlu0 %6629
  %6631 = vrot.lane.b32.xlu0 %v126, 72
  %v6632 = vpop.permute.xlu0 %6631
  %6633 = vrot.lane.b32.xlu0 %v131, 72
  %v6634 = vpop.permute.xlu0 %6633
  %v6635 = vsel %vm416, %v6630, 0
  %v6637 = vsel %vm416, %v6632, 0
  %v6639 = vsel %vm416, %v6634, 0
  %6641 = vmatprep.subr.mxu0 0.0
  %6642 = vmatpush1.xpose.msra.mxu0 0.0
  %6643 = vmatprep.subr.mxu0 0.0
  %6644 = vmatpush1.xpose.msra.mxu0 0.0
  %6645 = vmatprep.subr.mxu0 0.0
  %6646 = vmatpush1.xpose.msra.mxu0 0.0
  %6647 = vmatprep.subr.mxu0 0.0
  %6648 = vmatpush1.xpose.msra.mxu0 0.0
  %6649 = vmatprep.subr.mxu0 0.0
  %6650 = vmatpush1.xpose.msra.mxu0 0.0
  %6651 = vmatprep.subr.mxu0 0.0
  %6652 = vmatpush1.xpose.msra.mxu0 0.0
  %6653 = vmatprep.subr.mxu0 0.0
  %6654 = vmatpush1.xpose.msra.mxu0 0.0
  %6655 = vmatprep.subr.mxu0 0.0
  %6656 = vmatpush1.xpose.msra.mxu0 0.0
  %6657 = vmatprep.subr.mxu0 0.0
  %6658 = vmatpush1.xpose.msra.mxu0 0.0
  %6659 = vmatprep.subr.mxu0 0.0
  %6660 = vmatpush1.xpose.msra.mxu0 0.0
  %6661 = vmatprep.subr.mxu0 0.0
  %6662 = vmatpush1.xpose.msra.mxu0 0.0
  %6663 = vmatprep.subr.mxu0 0.0
  %6664 = vmatpush1.xpose.msra.mxu0 0.0
  %6665 = vmatprep.subr.mxu0 0.0
  %6666 = vmatpush1.xpose.msra.mxu0 0.0
  %6667 = vmatprep.subr.mxu0 0.0
  %6668 = vmatpush1.xpose.msra.mxu0 0.0
  %6669 = vmatprep.subr.mxu0 0.0
  %6670 = vmatpush1.xpose.msra.mxu0 %v6639
  %6671 = vmatprep.subr.mxu0 0.0
  %6672 = vmatpush1.xpose.msra.mxu0 %v6637
  %6673 = vmatprep.subr.mxu0 0.0
  %6674 = vmatpush2.xpose.msra.mxu0 0.0
  %6675 = vmatprep.subr.mxu0 0.0
  %6676 = vmatpush2.xpose.msra.mxu0 0.0
  %6677 = vmatprep.subr.mxu0 0.0
  %6678 = vmatpush2.xpose.msra.mxu0 0.0
  %6679 = vmatprep.subr.mxu0 0.0
  %6680 = vmatpush2.xpose.msra.mxu0 0.0
  %6681 = vmatprep.subr.mxu0 0.0
  %6682 = vmatpush2.xpose.msra.mxu0 0.0
  %6683 = vmatprep.subr.mxu0 0.0
  %6684 = vmatpush2.xpose.msra.mxu0 0.0
  %6685 = vmatprep.subr.mxu0 0.0
  %6686 = vmatpush2.xpose.msra.mxu0 0.0
  %6687 = vmatprep.subr.mxu0 0.0
  %6688 = vmatpush2.xpose.msra.mxu0 0.0
  %6689 = vmatprep.subr.mxu0 0.0
  %6690 = vmatpush2.xpose.msra.mxu0 0.0
  %6691 = vmatprep.subr.mxu0 0.0
  %6692 = vmatpush2.xpose.msra.mxu0 0.0
  %6693 = vmatprep.subr.mxu0 0.0
  %6694 = vmatpush2.xpose.msra.mxu0 0.0
  %6695 = vmatprep.subr.mxu0 0.0
  %6696 = vmatpush2.xpose.msra.mxu0 0.0
  %6697 = vmatprep.subr.mxu0 0.0
  %6698 = vmatpush2.xpose.msra.mxu0 0.0
  %6699 = vmatprep.subr.mxu0 0.0
  %6700 = vmatpush2.xpose.msra.mxu0 0.0
  %6701 = vmatprep.subr.mxu0 0.0
  %6702 = vmatpush2.xpose.msra.mxu0 0.0
  %6703 = vmatprep.subr.mxu0 0.0
  %6704 = vmatpush2.xpose.msra.mxu0 0.0
  %6705 = vmatprep.mubr.f32.mxu0 0.0
  %6706 = vmatmul.mubr.f32.gmra.mxu0 %v6635
  %v6707 = vpop.f32.mrf.mxu0
  %v6708 = vadd.f32 0.0, %v6707
  %v6709 = vpop.f32.mrf.mxu0
  %6710 = vdwg.mxu0
  %v6711 = vmul.f32 %v6626, 0.35355338
  %v6712 = vmul.f32 %v6708, 0.35355338
  %v6713 = vsel %vm1768, %v6711, -inf
  %6714 = vmax.xlane.f32.xlu0 %v6713
  %v6715 = vpop.xlane.xlu0 %6714
  %v6716 = vsel %vm1768, %v6712, -inf
  %6717 = vmax.xlane.f32.xlu0 %v6716
  %v6718 = vpop.xlane.xlu0 %6717
  %v6719 = vsub.f32 %v6711, %v6715
  %v6720 = vsub.f32 %v6712, %v6718
  %v6721 = vmul.f32 %v6719, 1.442695
  %v6722 = vpow.pop %v6721
  %v6723 = vmul.f32 %v6720, 1.442695
  %v6724 = vpow.pop %v6723
  %v6725 = vsel %vm1768, %v6722, 0.0
  %6726 = vadd.xlane.f32.xlu0 %v6725
  %v6727 = vpop.xlane.xlu0 %6726
  %v6728 = vsel %vm1768, %v6724, 0.0
  %6729 = vadd.xlane.f32.xlu0 %v6728
  %v6730 = vpop.xlane.xlu0 %6729
  %v6731 = vrcp.pop %v6727
  %v6732 = vmul.f32 %v6722, %v6731
  %v6733 = vrcp.pop %v6730
  %v6734 = vmul.f32 %v6724, %v6733
  %6735 = vrot.lane.b32.xlu0 %v222, 72
  %v6736 = vpop.permute.xlu0 %6735
  %6737 = vrot.lane.b32.xlu0 %v227, 72
  %v6738 = vpop.permute.xlu0 %6737
  %v6742 = vsel %vm1768, %v6732, 0
  %6744 = vmatprep.subr.mxu0 0.0
  %6745 = vmatpush1.msra.mxu0 0.0
  %6746 = vmatprep.subr.mxu0 0.0
  %6747 = vmatpush1.msra.mxu0 0.0
  %6748 = vmatprep.subr.mxu0 0.0
  %6749 = vmatpush1.msra.mxu0 0.0
  %6750 = vmatprep.subr.mxu0 0.0
  %6751 = vmatpush1.msra.mxu0 0.0
  %6752 = vmatprep.subr.mxu0 0.0
  %6753 = vmatpush1.msra.mxu0 0.0
  %6754 = vmatprep.subr.mxu0 0.0
  %6755 = vmatpush1.msra.mxu0 0.0
  %6756 = vmatprep.subr.mxu0 0.0
  %6757 = vmatpush1.msra.mxu0 0.0
  %6758 = vmatprep.subr.mxu0 0.0
  %6759 = vmatpush1.msra.mxu0 0.0
  %6760 = vmatprep.subr.mxu0 0.0
  %6761 = vmatpush1.msra.mxu0 0.0
  %6762 = vmatprep.subr.mxu0 0.0
  %6763 = vmatpush1.msra.mxu0 0.0
  %6764 = vmatprep.subr.mxu0 0.0
  %6765 = vmatpush1.msra.mxu0 0.0
  %6766 = vmatprep.subr.mxu0 0.0
  %6767 = vmatpush1.msra.mxu0 0.0
  %6768 = vmatprep.subr.mxu0 0.0
  %6769 = vmatpush1.msra.mxu0 0.0
  %6770 = vmatprep.subr.mxu0 0.0
  %6771 = vmatpush1.msra.mxu0 0.0
  %6772 = vmatprep.subr.mxu0 0.0
  %6773 = vmatpush1.msra.mxu0 %v6738
  %6774 = vmatprep.subr.mxu0 0.0
  %6775 = vmatpush1.msra.mxu0 %v6736
  %6776 = vmatprep.subr.mxu0 0.0
  %6777 = vmatpush2.msra.mxu0 0.0
  %6778 = vmatprep.subr.mxu0 0.0
  %6779 = vmatpush2.msra.mxu0 0.0
  %6780 = vmatprep.subr.mxu0 0.0
  %6781 = vmatpush2.msra.mxu0 0.0
  %6782 = vmatprep.subr.mxu0 0.0
  %6783 = vmatpush2.msra.mxu0 0.0
  %6784 = vmatprep.subr.mxu0 0.0
  %6785 = vmatpush2.msra.mxu0 0.0
  %6786 = vmatprep.subr.mxu0 0.0
  %6787 = vmatpush2.msra.mxu0 0.0
  %6788 = vmatprep.subr.mxu0 0.0
  %6789 = vmatpush2.msra.mxu0 0.0
  %6790 = vmatprep.subr.mxu0 0.0
  %6791 = vmatpush2.msra.mxu0 0.0
  %6792 = vmatprep.subr.mxu0 0.0
  %6793 = vmatpush2.msra.mxu0 0.0
  %6794 = vmatprep.subr.mxu0 0.0
  %6795 = vmatpush2.msra.mxu0 0.0
  %6796 = vmatprep.subr.mxu0 0.0
  %6797 = vmatpush2.msra.mxu0 0.0
  %6798 = vmatprep.subr.mxu0 0.0
  %6799 = vmatpush2.msra.mxu0 0.0
  %6800 = vmatprep.subr.mxu0 0.0
  %6801 = vmatpush2.msra.mxu0 0.0
  %6802 = vmatprep.subr.mxu0 0.0
  %6803 = vmatpush2.msra.mxu0 0.0
  %6804 = vmatprep.subr.mxu0 0.0
  %6805 = vmatpush2.msra.mxu0 0.0
  %6806 = vmatprep.subr.mxu0 0.0
  %6807 = vmatpush2.msra.mxu0 0.0
  %6808 = vmatprep.mubr.f32.mxu0 0.0
  %6809 = vmatmul.mubr.f32.gmra.mxu0 %v6742
  %v6810 = vpop.f32.mrf.mxu0
  %v6811 = vadd.f32 0.0, %v6810
  %v6812 = vpop.f32.mrf.mxu0
  %6813 = vdwg.mxu0
  %6814 = vrot.lane.b32.xlu0 %v232, 72
  %v6815 = vpop.permute.xlu0 %6814
  %6816 = vrot.lane.b32.xlu0 %v237, 72
  %v6817 = vpop.permute.xlu0 %6816
  %v6821 = vsel %vm1768, %v6734, 0
  %6823 = vmatprep.subr.mxu0 0.0
  %6824 = vmatpush1.msra.mxu0 0.0
  %6825 = vmatprep.subr.mxu0 0.0
  %6826 = vmatpush1.msra.mxu0 0.0
  %6827 = vmatprep.subr.mxu0 0.0
  %6828 = vmatpush1.msra.mxu0 0.0
  %6829 = vmatprep.subr.mxu0 0.0
  %6830 = vmatpush1.msra.mxu0 0.0
  %6831 = vmatprep.subr.mxu0 0.0
  %6832 = vmatpush1.msra.mxu0 0.0
  %6833 = vmatprep.subr.mxu0 0.0
  %6834 = vmatpush1.msra.mxu0 0.0
  %6835 = vmatprep.subr.mxu0 0.0
  %6836 = vmatpush1.msra.mxu0 0.0
  %6837 = vmatprep.subr.mxu0 0.0
  %6838 = vmatpush1.msra.mxu0 0.0
  %6839 = vmatprep.subr.mxu0 0.0
  %6840 = vmatpush1.msra.mxu0 0.0
  %6841 = vmatprep.subr.mxu0 0.0
  %6842 = vmatpush1.msra.mxu0 0.0
  %6843 = vmatprep.subr.mxu0 0.0
  %6844 = vmatpush1.msra.mxu0 0.0
  %6845 = vmatprep.subr.mxu0 0.0
  %6846 = vmatpush1.msra.mxu0 0.0
  %6847 = vmatprep.subr.mxu0 0.0
  %6848 = vmatpush1.msra.mxu0 0.0
  %6849 = vmatprep.subr.mxu0 0.0
  %6850 = vmatpush1.msra.mxu0 0.0
  %6851 = vmatprep.subr.mxu0 0.0
  %6852 = vmatpush1.msra.mxu0 %v6817
  %6853 = vmatprep.subr.mxu0 0.0
  %6854 = vmatpush1.msra.mxu0 %v6815
  %6855 = vmatprep.subr.mxu0 0.0
  %6856 = vmatpush2.msra.mxu0 0.0
  %6857 = vmatprep.subr.mxu0 0.0
  %6858 = vmatpush2.msra.mxu0 0.0
  %6859 = vmatprep.subr.mxu0 0.0
  %6860 = vmatpush2.msra.mxu0 0.0
  %6861 = vmatprep.subr.mxu0 0.0
  %6862 = vmatpush2.msra.mxu0 0.0
  %6863 = vmatprep.subr.mxu0 0.0
  %6864 = vmatpush2.msra.mxu0 0.0
  %6865 = vmatprep.subr.mxu0 0.0
  %6866 = vmatpush2.msra.mxu0 0.0
  %6867 = vmatprep.subr.mxu0 0.0
  %6868 = vmatpush2.msra.mxu0 0.0
  %6869 = vmatprep.subr.mxu0 0.0
  %6870 = vmatpush2.msra.mxu0 0.0
  %6871 = vmatprep.subr.mxu0 0.0
  %6872 = vmatpush2.msra.mxu0 0.0
  %6873 = vmatprep.subr.mxu0 0.0
  %6874 = vmatpush2.msra.mxu0 0.0
  %6875 = vmatprep.subr.mxu0 0.0
  %6876 = vmatpush2.msra.mxu0 0.0
  %6877 = vmatprep.subr.mxu0 0.0
  %6878 = vmatpush2.msra.mxu0 0.0
  %6879 = vmatprep.subr.mxu0 0.0
  %6880 = vmatpush2.msra.mxu0 0.0
  %6881 = vmatprep.subr.mxu0 0.0
  %6882 = vmatpush2.msra.mxu0 0.0
  %6883 = vmatprep.subr.mxu0 0.0
  %6884 = vmatpush2.msra.mxu0 0.0
  %6885 = vmatprep.subr.mxu0 0.0
  %6886 = vmatpush2.msra.mxu0 0.0
  %6887 = vmatprep.mubr.f32.mxu0 0.0
  %6888 = vmatmul.mubr.f32.gmra.mxu0 %v6821
  %v6889 = vpop.f32.mrf.mxu0
  %v6890 = vadd.f32 0.0, %v6889
  %v6891 = vpop.f32.mrf.mxu0
  %6892 = vdwg.mxu0
  %6895 = vrot.lane.b32.xlu0 %v6119, 8
  %v6896 = vpop.permute.xlu0 %6895
  %6897 = vrot.lane.b32.xlu0 %v6198, 8
  %v6898 = vpop.permute.xlu0 %6897
  %6903 = vrot.lane.b32.xlu0 %v6465, 16
  %v6904 = vpop.permute.xlu0 %6903
  %6905 = vrot.lane.b32.xlu0 %v6544, 16
  %v6906 = vpop.permute.xlu0 %6905
  %6911 = vrot.lane.b32.xlu0 %v6811, 24
  %v6912 = vpop.permute.xlu0 %6911
  %6913 = vrot.lane.b32.xlu0 %v6890, 24
  %v6914 = vpop.permute.xlu0 %6913
  %v6917 = vsel %vm416, %v5773, %v6896
  %v6918 = vsel %vm416, %v5852, %v6898
  %v6919 = vsel %vm1768, %v6917, %v6904
  %v6920 = vsel %vm1768, %v6918, %v6906
  %v6921 = vsel %vm1771, %v6919, %v6912
  %v6922 = vsel %vm1771, %v6920, %v6914
  %v6923 = vld [vmem:[%s1 + $0x1b8] sm:$0xff]
  %v6924 = vld [vmem:[%s1 + $0x1c0] sm:$0xff]
  %v6925 = vld [vmem:[%s1 + $0x1c8] sm:$0xff]
  %v6926 = vld [vmem:[%s1 + $0x1d0] sm:$0xff]
  %v6927 = vld [vmem:[%s1 + $0x1d8] sm:$0x1]
  %v6928 = vlaneseq
  %v6929 = vshrl.u32 %v6928, 7
  %v6930 = vsub.s32 0, %v6929
  %v6931 = vrot.slane %v6927, %v6930
  %v6933 = vsel %vm36, %v6921, 0
  %v6936 = vsel %vm36, %v6922, 0
  %6938 = vmatprep.subr.mxu0 0.0
  %6939 = vmatpush1.msra.mxu0 0.0
  %6940 = vmatprep.subr.mxu0 0.0
  %6941 = vmatpush1.msra.mxu0 0.0
  %6942 = vmatprep.subr.mxu0 0.0
  %6943 = vmatpush1.msra.mxu0 0.0
  %6944 = vmatprep.subr.mxu0 0.0
  %6945 = vmatpush1.msra.mxu0 0.0
  %6946 = vmatprep.subr.mxu0 0.0
  %6947 = vmatpush1.msra.mxu0 0.0
  %6948 = vmatprep.subr.mxu0 0.0
  %6949 = vmatpush1.msra.mxu0 0.0
  %6950 = vmatprep.subr.mxu0 0.0
  %6951 = vmatpush1.msra.mxu0 0.0
  %6952 = vmatprep.subr.mxu0 0.0
  %6953 = vmatpush1.msra.mxu0 0.0
  %6954 = vmatprep.subr.mxu0 0.0
  %6955 = vmatpush1.msra.mxu0 0.0
  %6956 = vmatprep.subr.mxu0 0.0
  %6957 = vmatpush1.msra.mxu0 0.0
  %6958 = vmatprep.subr.mxu0 0.0
  %6959 = vmatpush1.msra.mxu0 0.0
  %6960 = vmatprep.subr.mxu0 0.0
  %6961 = vmatpush1.msra.mxu0 0.0
  %6962 = vmatprep.subr.mxu0 0.0
  %6963 = vmatpush1.msra.mxu0 %v6926
  %6964 = vmatprep.subr.mxu0 0.0
  %6965 = vmatpush1.msra.mxu0 %v6925
  %6966 = vmatprep.subr.mxu0 0.0
  %6967 = vmatpush1.msra.mxu0 %v6924
  %6968 = vmatprep.subr.mxu0 0.0
  %6969 = vmatpush1.msra.mxu0 %v6923
  %6970 = vmatprep.subr.mxu0 0.0
  %6971 = vmatpush2.msra.mxu0 0.0
  %6972 = vmatprep.subr.mxu0 0.0
  %6973 = vmatpush2.msra.mxu0 0.0
  %6974 = vmatprep.subr.mxu0 0.0
  %6975 = vmatpush2.msra.mxu0 0.0
  %6976 = vmatprep.subr.mxu0 0.0
  %6977 = vmatpush2.msra.mxu0 0.0
  %6978 = vmatprep.subr.mxu0 0.0
  %6979 = vmatpush2.msra.mxu0 0.0
  %6980 = vmatprep.subr.mxu0 0.0
  %6981 = vmatpush2.msra.mxu0 0.0
  %6982 = vmatprep.subr.mxu0 0.0
  %6983 = vmatpush2.msra.mxu0 0.0
  %6984 = vmatprep.subr.mxu0 0.0
  %6985 = vmatpush2.msra.mxu0 0.0
  %6986 = vmatprep.subr.mxu0 0.0
  %6987 = vmatpush2.msra.mxu0 0.0
  %6988 = vmatprep.subr.mxu0 0.0
  %6989 = vmatpush2.msra.mxu0 0.0
  %6990 = vmatprep.subr.mxu0 0.0
  %6991 = vmatpush2.msra.mxu0 0.0
  %6992 = vmatprep.subr.mxu0 0.0
  %6993 = vmatpush2.msra.mxu0 0.0
  %6994 = vmatprep.subr.mxu0 0.0
  %6995 = vmatpush2.msra.mxu0 0.0
  %6996 = vmatprep.subr.mxu0 0.0
  %6997 = vmatpush2.msra.mxu0 0.0
  %6998 = vmatprep.subr.mxu0 0.0
  %6999 = vmatpush2.msra.mxu0 0.0
  %7000 = vmatprep.subr.mxu0 0.0
  %7001 = vmatpush2.msra.mxu0 0.0
  %7002 = vmatprep.mubr.f32.mxu0 0.0
  %7003 = vmatmul.mubr.f32.gmra.mxu0 %v6933
  %v7004 = vpop.f32.mrf.mxu0
  %v7005 = vadd.f32 %v6931, %v7004
  %v7006 = vpop.f32.mrf.mxu0
  %7007 = vmatprep.mubr.f32.mxu0 0.0
  %7008 = vmatmul.mubr.f32.gmra.mxu0 %v6936
  %v7009 = vpop.f32.mrf.mxu0
  %v7010 = vadd.f32 %v6931, %v7009
  %v7011 = vpop.f32.mrf.mxu0
  %7012 = vdwg.mxu0
  %v7013 = vadd.f32 %v5417, %v7005
  %v7014 = vadd.f32 %v5418, %v7010
  %v7015 = vld [vmem:[%s1 + $0x260] sm:$0x1]
  %v7016 = vld [vmem:[%s1 + $0x268] sm:$0x1]
  %v7017 = vsel %vm36, %v7013, 0.0
  %7018 = vadd.xlane.f32.xlu0 %v7017
  %v7019 = vpop.xlane.xlu0 %7018
  %v7020 = vsel %vm36, %v7014, 0.0
  %7021 = vadd.xlane.f32.xlu0 %v7020
  %v7022 = vpop.xlane.xlu0 %7021
  %v7023 = vmul.f32 %v7019, %v1874
  %v7024 = vmul.f32 %v7022, %v1874
  %v7025 = vsub.f32 %v7013, %v7023
  %v7026 = vsub.f32 %v7014, %v7024
  %v7027 = vmul.f32 %v7025, %v7025
  %v7028 = vmul.f32 %v7026, %v7026
  %v7029 = vsel %vm36, %v7027, 0.0
  %7030 = vadd.xlane.f32.xlu0 %v7029
  %v7031 = vpop.xlane.xlu0 %7030
  %v7032 = vsel %vm36, %v7028, 0.0
  %7033 = vadd.xlane.f32.xlu0 %v7032
  %v7034 = vpop.xlane.xlu0 %7033
  %v7035 = vmul.f32 %v7031, %v1874
  %v7036 = vmul.f32 %v7034, %v1874
  %v7037 = vadd.f32 %v7035, 1e-05
  %v7038 = vadd.f32 %v7036, 1e-05
  %v7039 = vrsqrt.pop %v7037
  %v7040 = vrsqrt.pop %v7038
  %v7041 = vmul.f32 %v7025, %v7039
  %v7042 = vmul.f32 %v7026, %v7040
  %v7043 = vlaneseq
  %v7044 = vshrl.u32 %v7043, 7
  %v7045 = vsub.s32 0, %v7044
  %v7046 = vrot.slane %v7015, %v7045
  %v7047 = vmul.f32 %v7041, %v7046
  %v7048 = vmul.f32 %v7042, %v7046
  %v7049 = vlaneseq
  %v7050 = vshrl.u32 %v7049, 7
  %v7051 = vsub.s32 0, %v7050
  %v7052 = vrot.slane %v7016, %v7051
  %v7053 = vadd.f32 %v7047, %v7052
  %v7054 = vadd.f32 %v7048, %v7052
  %v7055 = vld [vmem:[%s1 + $0x1e0] sm:$0xff]
  %v7056 = vld [vmem:[%s1 + $0x1e8] sm:$0xff]
  %v7057 = vld [vmem:[%s1 + $0x1f0] sm:$0xff]
  %v7058 = vld [vmem:[%s1 + $0x1f8] sm:$0xff]
  %v7059 = vld [vmem:[%s1 + $0x200] sm:$0x1]
  %v7060 = vlaneseq
  %v7061 = vshrl.u32 %v7060, 7
  %v7062 = vsub.s32 0, %v7061
  %v7063 = vrot.slane %v7059, %v7062
  %v7065 = vsel %vm36, %v7053, 0
  %v7068 = vsel %vm36, %v7054, 0
  %7070 = vmatprep.subr.mxu0 0.0
  %7071 = vmatpush1.msra.mxu0 0.0
  %7072 = vmatprep.subr.mxu0 0.0
  %7073 = vmatpush1.msra.mxu0 0.0
  %7074 = vmatprep.subr.mxu0 0.0
  %7075 = vmatpush1.msra.mxu0 0.0
  %7076 = vmatprep.subr.mxu0 0.0
  %7077 = vmatpush1.msra.mxu0 0.0
  %7078 = vmatprep.subr.mxu0 0.0
  %7079 = vmatpush1.msra.mxu0 0.0
  %7080 = vmatprep.subr.mxu0 0.0
  %7081 = vmatpush1.msra.mxu0 0.0
  %7082 = vmatprep.subr.mxu0 0.0
  %7083 = vmatpush1.msra.mxu0 0.0
  %7084 = vmatprep.subr.mxu0 0.0
  %7085 = vmatpush1.msra.mxu0 0.0
  %7086 = vmatprep.subr.mxu0 0.0
  %7087 = vmatpush1.msra.mxu0 0.0
  %7088 = vmatprep.subr.mxu0 0.0
  %7089 = vmatpush1.msra.mxu0 0.0
  %7090 = vmatprep.subr.mxu0 0.0
  %7091 = vmatpush1.msra.mxu0 0.0
  %7092 = vmatprep.subr.mxu0 0.0
  %7093 = vmatpush1.msra.mxu0 0.0
  %7094 = vmatprep.subr.mxu0 0.0
  %7095 = vmatpush1.msra.mxu0 %v7058
  %7096 = vmatprep.subr.mxu0 0.0
  %7097 = vmatpush1.msra.mxu0 %v7057
  %7098 = vmatprep.subr.mxu0 0.0
  %7099 = vmatpush1.msra.mxu0 %v7056
  %7100 = vmatprep.subr.mxu0 0.0
  %7101 = vmatpush1.msra.mxu0 %v7055
  %7102 = vmatprep.subr.mxu0 0.0
  %7103 = vmatpush2.msra.mxu0 0.0
  %7104 = vmatprep.subr.mxu0 0.0
  %7105 = vmatpush2.msra.mxu0 0.0
  %7106 = vmatprep.subr.mxu0 0.0
  %7107 = vmatpush2.msra.mxu0 0.0
  %7108 = vmatprep.subr.mxu0 0.0
  %7109 = vmatpush2.msra.mxu0 0.0
  %7110 = vmatprep.subr.mxu0 0.0
  %7111 = vmatpush2.msra.mxu0 0.0
  %7112 = vmatprep.subr.mxu0 0.0
  %7113 = vmatpush2.msra.mxu0 0.0
  %7114 = vmatprep.subr.mxu0 0.0
  %7115 = vmatpush2.msra.mxu0 0.0
  %7116 = vmatprep.subr.mxu0 0.0
  %7117 = vmatpush2.msra.mxu0 0.0
  %7118 = vmatprep.subr.mxu0 0.0
  %7119 = vmatpush2.msra.mxu0 0.0
  %7120 = vmatprep.subr.mxu0 0.0
  %7121 = vmatpush2.msra.mxu0 0.0
  %7122 = vmatprep.subr.mxu0 0.0
  %7123 = vmatpush2.msra.mxu0 0.0
  %7124 = vmatprep.subr.mxu0 0.0
  %7125 = vmatpush2.msra.mxu0 0.0
  %7126 = vmatprep.subr.mxu0 0.0
  %7127 = vmatpush2.msra.mxu0 0.0
  %7128 = vmatprep.subr.mxu0 0.0
  %7129 = vmatpush2.msra.mxu0 0.0
  %7130 = vmatprep.subr.mxu0 0.0
  %7131 = vmatpush2.msra.mxu0 0.0
  %7132 = vmatprep.subr.mxu0 0.0
  %7133 = vmatpush2.msra.mxu0 0.0
  %7134 = vmatprep.mubr.f32.mxu0 0.0
  %7135 = vmatmul.mubr.f32.gmra.mxu0 %v7065
  %v7136 = vpop.f32.mrf.mxu0
  %v7137 = vadd.f32 %v7063, %v7136
  %v7138 = vpop.f32.mrf.mxu0
  %7139 = vmatprep.mubr.f32.mxu0 0.0
  %7140 = vmatmul.mubr.f32.gmra.mxu0 %v7068
  %v7141 = vpop.f32.mrf.mxu0
  %v7142 = vadd.f32 %v7063, %v7141
  %v7143 = vpop.f32.mrf.mxu0
  %7144 = vdwg.mxu0
  %v7145 = vmax.f32 %v7137, 0.0
  %v7146 = vmax.f32 %v7142, 0.0
  %v7147 = vld [vmem:[%s1 + $0x208] sm:$0xff]
  %v7148 = vld [vmem:[%s1 + $0x210] sm:$0xff]
  %v7149 = vld [vmem:[%s1 + $0x218] sm:$0xff]
  %v7150 = vld [vmem:[%s1 + $0x220] sm:$0xff]
  %v7151 = vld [vmem:[%s1 + $0x228] sm:$0xff]
  %v7152 = vld [vmem:[%s1 + $0x230] sm:$0xff]
  %v7153 = vld [vmem:[%s1 + $0x238] sm:$0xff]
  %v7154 = vld [vmem:[%s1 + $0x240] sm:$0xff]
  %v7156 = vsel %vm3631, %v7145, 0
  %v7159 = vsel %vm3631, %v7146, 0
  %7161 = vmatprep.subr.mxu0 0.0
  %7162 = vmatpush1.msra.mxu0 0.0
  %7163 = vmatprep.subr.mxu0 0.0
  %7164 = vmatpush1.msra.mxu0 0.0
  %7165 = vmatprep.subr.mxu0 0.0
  %7166 = vmatpush1.msra.mxu0 0.0
  %7167 = vmatprep.subr.mxu0 0.0
  %7168 = vmatpush1.msra.mxu0 0.0
  %7169 = vmatprep.subr.mxu0 0.0
  %7170 = vmatpush1.msra.mxu0 0.0
  %7171 = vmatprep.subr.mxu0 0.0
  %7172 = vmatpush1.msra.mxu0 0.0
  %7173 = vmatprep.subr.mxu0 0.0
  %7174 = vmatpush1.msra.mxu0 0.0
  %7175 = vmatprep.subr.mxu0 0.0
  %7176 = vmatpush1.msra.mxu0 0.0
  %7177 = vmatprep.subr.mxu0 0.0
  %7178 = vmatpush1.msra.mxu0 %v7154
  %7179 = vmatprep.subr.mxu0 0.0
  %7180 = vmatpush1.msra.mxu0 %v7153
  %7181 = vmatprep.subr.mxu0 0.0
  %7182 = vmatpush1.msra.mxu0 %v7152
  %7183 = vmatprep.subr.mxu0 0.0
  %7184 = vmatpush1.msra.mxu0 %v7151
  %7185 = vmatprep.subr.mxu0 0.0
  %7186 = vmatpush1.msra.mxu0 %v7150
  %7187 = vmatprep.subr.mxu0 0.0
  %7188 = vmatpush1.msra.mxu0 %v7149
  %7189 = vmatprep.subr.mxu0 0.0
  %7190 = vmatpush1.msra.mxu0 %v7148
  %7191 = vmatprep.subr.mxu0 0.0
  %7192 = vmatpush1.msra.mxu0 %v7147
  %7193 = vmatprep.subr.mxu0 0.0
  %7194 = vmatpush2.msra.mxu0 0.0
  %7195 = vmatprep.subr.mxu0 0.0
  %7196 = vmatpush2.msra.mxu0 0.0
  %7197 = vmatprep.subr.mxu0 0.0
  %7198 = vmatpush2.msra.mxu0 0.0
  %7199 = vmatprep.subr.mxu0 0.0
  %7200 = vmatpush2.msra.mxu0 0.0
  %7201 = vmatprep.subr.mxu0 0.0
  %7202 = vmatpush2.msra.mxu0 0.0
  %7203 = vmatprep.subr.mxu0 0.0
  %7204 = vmatpush2.msra.mxu0 0.0
  %7205 = vmatprep.subr.mxu0 0.0
  %7206 = vmatpush2.msra.mxu0 0.0
  %7207 = vmatprep.subr.mxu0 0.0
  %7208 = vmatpush2.msra.mxu0 0.0
  %7209 = vmatprep.subr.mxu0 0.0
  %7210 = vmatpush2.msra.mxu0 0.0
  %7211 = vmatprep.subr.mxu0 0.0
  %7212 = vmatpush2.msra.mxu0 0.0
  %7213 = vmatprep.subr.mxu0 0.0
  %7214 = vmatpush2.msra.mxu0 0.0
  %7215 = vmatprep.subr.mxu0 0.0
  %7216 = vmatpush2.msra.mxu0 0.0
  %7217 = vmatprep.subr.mxu0 0.0
  %7218 = vmatpush2.msra.mxu0 0.0
  %7219 = vmatprep.subr.mxu0 0.0
  %7220 = vmatpush2.msra.mxu0 0.0
  %7221 = vmatprep.subr.mxu0 0.0
  %7222 = vmatpush2.msra.mxu0 0.0
  %7223 = vmatprep.subr.mxu0 0.0
  %7224 = vmatpush2.msra.mxu0 0.0
  %7225 = vmatprep.mubr.f32.mxu0 0.0
  %7226 = vmatmul.mubr.f32.gmra.mxu0 %v7156
  %v7227 = vpop.f32.mrf.mxu0
  %v7228 = vadd.f32 0.0, %v7227
  %v7229 = vpop.f32.mrf.mxu0
  %7230 = vmatprep.mubr.f32.mxu0 0.0
  %7231 = vmatmul.mubr.f32.gmra.mxu0 %v7159
  %v7232 = vpop.f32.mrf.mxu0
  %v7233 = vadd.f32 0.0, %v7232
  %v7234 = vpop.f32.mrf.mxu0
  %7235 = vdwg.mxu0
  %v7236 = vadd.f32 %v7053, %v7228
  %v7237 = vadd.f32 %v7054, %v7233
  %v7238 = vld [vmem:[%s1 + $0x248] sm:$0x1]
  %v7239 = vlaneseq
  %v7240 = vshrl.u32 %v7239, 7
  %v7241 = vsub.s32 0, %v7240
  %v7242 = vrot.slane %v7238, %v7241
  %v7243 = vadd.f32 %v7236, %v7242
  %v7244 = vadd.f32 %v7237, %v7242
  %v7245 = vld [vmem:[%s1 + $0x270] sm:$0x1]
  %v7246 = vld [vmem:[%s1 + $0x278] sm:$0x1]
  %v7247 = vsel %vm36, %v7243, 0.0
  %7248 = vadd.xlane.f32.xlu0 %v7247
  %v7249 = vpop.xlane.xlu0 %7248
  %v7250 = vsel %vm36, %v7244, 0.0
  %7251 = vadd.xlane.f32.xlu0 %v7250
  %v7252 = vpop.xlane.xlu0 %7251
  %v7253 = vmul.f32 %v7249, %v1874
  %v7254 = vmul.f32 %v7252, %v1874
  %v7255 = vsub.f32 %v7243, %v7253
  %v7256 = vsub.f32 %v7244, %v7254
  %v7257 = vmul.f32 %v7255, %v7255
  %v7258 = vmul.f32 %v7256, %v7256
  %v7259 = vsel %vm36, %v7257, 0.0
  %7260 = vadd.xlane.f32.xlu0 %v7259
  %v7261 = vpop.xlane.xlu0 %7260
  %v7262 = vsel %vm36, %v7258, 0.0
  %7263 = vadd.xlane.f32.xlu0 %v7262
  %v7264 = vpop.xlane.xlu0 %7263
  %v7265 = vmul.f32 %v7261, %v1874
  %v7266 = vmul.f32 %v7264, %v1874
  %v7267 = vadd.f32 %v7265, 1e-05
  %v7268 = vadd.f32 %v7266, 1e-05
  %v7269 = vrsqrt.pop %v7267
  %v7270 = vrsqrt.pop %v7268
  %v7271 = vmul.f32 %v7255, %v7269
  %v7272 = vmul.f32 %v7256, %v7270
  %v7273 = vlaneseq
  %v7274 = vshrl.u32 %v7273, 7
  %v7275 = vsub.s32 0, %v7274
  %v7276 = vrot.slane %v7245, %v7275
  %v7277 = vmul.f32 %v7271, %v7276
  %v7278 = vmul.f32 %v7272, %v7276
  %v7279 = vlaneseq
  %v7280 = vshrl.u32 %v7279, 7
  %v7281 = vsub.s32 0, %v7280
  %v7282 = vrot.slane %v7246, %v7281
  %v7283 = vadd.f32 %v7277, %v7282
  %v7284 = vadd.f32 %v7278, %v7282
  %v7285 = vld [vmem:[%s1 + $0x2d0] sm:$0x1]
  %v7286 = vld [vmem:[%s1 + $0x2d8] sm:$0x1]
  %v7287 = vsel %vm36, %v7283, 0.0
  %7288 = vadd.xlane.f32.xlu0 %v7287
  %v7289 = vpop.xlane.xlu0 %7288
  %v7290 = vsel %vm36, %v7284, 0.0
  %7291 = vadd.xlane.f32.xlu0 %v7290
  %v7292 = vpop.xlane.xlu0 %7291
  %v7293 = vmul.f32 %v7289, %v1874
  %v7294 = vmul.f32 %v7292, %v1874
  %v7295 = vsub.f32 %v7283, %v7293
  %v7296 = vsub.f32 %v7284, %v7294
  %v7297 = vmul.f32 %v7295, %v7295
  %v7298 = vmul.f32 %v7296, %v7296
  %v7299 = vsel %vm36, %v7297, 0.0
  %7300 = vadd.xlane.f32.xlu0 %v7299
  %v7301 = vpop.xlane.xlu0 %7300
  %v7302 = vsel %vm36, %v7298, 0.0
  %7303 = vadd.xlane.f32.xlu0 %v7302
  %v7304 = vpop.xlane.xlu0 %7303
  %v7305 = vmul.f32 %v7301, %v1874
  %v7306 = vmul.f32 %v7304, %v1874
  %v7307 = vadd.f32 %v7305, 1e-05
  %v7308 = vadd.f32 %v7306, 1e-05
  %v7309 = vrsqrt.pop %v7307
  %v7310 = vrsqrt.pop %v7308
  %v7311 = vmul.f32 %v7295, %v7309
  %v7312 = vmul.f32 %v7296, %v7310
  %v7313 = vlaneseq
  %v7314 = vshrl.u32 %v7313, 7
  %v7315 = vsub.s32 0, %v7314
  %v7316 = vrot.slane %v7285, %v7315
  %v7317 = vmul.f32 %v7311, %v7316
  %v7318 = vmul.f32 %v7312, %v7316
  %v7319 = vlaneseq
  %v7320 = vshrl.u32 %v7319, 7
  %v7321 = vsub.s32 0, %v7320
  %v7322 = vrot.slane %v7286, %v7321
  %v7323 = vadd.f32 %v7317, %v7322
  %v7324 = vadd.f32 %v7318, %v7322
  %7327 = vrot.lane.b32.xlu0 %v7283, 32
  %v7328 = vpop.permute.xlu0 %7327
  %7329 = vrot.lane.b32.xlu0 %v7284, 32
  %v7330 = vpop.permute.xlu0 %7329
  %v7333 = vsel %vm36, %v7323, %v7328
  %v7334 = vsel %vm36, %v7324, %v7330
  %7335 = vst.msk [vmem:[%s2] sm:$0xff] %vm3631, %v7333
  %7336 = vst.msk [vmem:[%s2 + $0x8] sm:$0xff] %vm3631, %v7334
  // Predicated region
  $region10: #{_lambda_.1} parent=0 // pred_check
    _
  $region11: #{_lambda_.1} parent=0 // pred_check_branch
    %7338 = sbr.rel (0) target = $region13
  $region12: #{_lambda_.1} parent=0 // pred_region
    _
  $region13: #{_lambda_.1} parent=0 // pred_fallthru
    _
  // Predicated region
  $region14: #{_lambda_.1} parent=0 // pred_check
    _
  $region15: #{_lambda_.1} parent=0 // pred_check_branch
    %7340 = sbr.rel (0) target = $region17
  $region16: #{_lambda_.1} parent=0 // pred_region
    _
  $region17: #{_lambda_.1} parent=0 // pred_fallthru
    _

</llo_original>
